<compile_context>
chip_gen: v7x
topology: tpu7x:2x2x1
jax: 0.10.0
libtpu: 0.0.40
codegen_flags: <defaults>
</compile_context>

<pallas_src>
import functools

import jax
import jax.numpy as jnp
from jax.experimental import pallas as pl
from jax.experimental.pallas import tpu as pltpu  # noqa: F401  (no TPU-specific params needed)

# ---------------- small, forward-consistent configuration ----------------
IN_CHANNELS = 3
INPUT_SIZE = (16, 16, 16)     # (D, H, W)
PATCH = 8                     # patch_size
EMB = 32                      # emb_size
DEPTH = 2                     # transformer depth
HEADS = 4                     # num_heads (head_dim = 8)
FF_MULT = 4                   # ff_hidden_mult
NUM_FEATURES = 16             # ViT num_features == CLIP embedding dim
VOCAB = 64                    # placeholder text vocab
TXT_DIM = 24                  # placeholder text embedding dim
LN_EPS = 1e-5
NORM_EPS = 1e-12              # CLIP L2-normalization epsilon
LOGIT_PAD = 128               # lane-dense output width (wrapper slices back to n_texts)

N_PATCHES = (INPUT_SIZE[0] // PATCH) * (INPUT_SIZE[1] // PATCH) * (INPUT_SIZE[2] // PATCH)
SEQ = 1 + N_PATCHES                       # 9 tokens (CLS + patches)
PATCH_DIM = IN_CHANNELS * PATCH ** 3      # 1536
FF_HIDDEN = FF_MULT * EMB                 # 128
HEAD_DIM = EMB // HEADS                   # 8


# ---------------- in-kernel helpers (all f32 elementwise) ----------------
def _layernorm(x, g, b):
    mu = jnp.mean(x, axis=-1, keepdims=True)
    var = jnp.mean((x - mu) ** 2, axis=-1, keepdims=True)
    return (x - mu) * jax.lax.rsqrt(var + LN_EPS) * g + b


def _gelu(x):
    # tanh-approximate GELU: tanh goes to the otherwise-idle EUP slot; ~1e-3 abs deviation
    # from nn.GELU()'s exact erf.
    return 0.5 * x * (1.0 + jnp.tanh(0.7978845608028654 * (x + 0.044715 * x * x * x)))


# ---------------- the fused kernel (whole batch in one step) ----------------
def _clipnet_kernel(patches_ref, pos_ref, mask_ref, patch_w_ref,
                    ln1g_ref, ln1b_ref, qkv_w_ref, qkv_b_ref, fc_w_ref, fc_b_ref,
                    ln2g_ref, ln2b_ref, ff1_w_ref, ff1_b_ref, ff2_w_ref, ff2_b_ref,
                    lng_ref, lnb_ref, fcv_w_ref, fcv_b_ref, txt_ref,
                    logits_ref, *, num_heads, depth, batch):
    BT, E = pos_ref.shape                       # B*SEQ tokens, emb size

    # --- patch embedding (bf16 MXU, f32 accumulate).  CLS rows live at the END of the
    # --- token stream and come entirely from the folded cls/pos/bias table.
    tok = jnp.dot(patches_ref[...], patch_w_ref[...],
                  preferred_element_type=jnp.float32)                     # (B*P, E)
    x = jnp.concatenate([tok, jnp.zeros((batch, E), jnp.float32)], axis=0) + pos_ref[...]

    mask = mask_ref[...]                        # (BT, BT) block-diagonal batch-isolation mask

    for d in range(depth):                      # static unroll, DEPTH=2
        # ---------------- MHSA (1/sqrt(head_dim) folded into the Q weights/bias) ----------
        h1 = _layernorm(x, ln1g_ref[d], ln1b_ref[d])
        attn = jnp.zeros((BT, E), jnp.float32)
        for h in range(num_heads):              # static unroll, HEADS=4
            # static Ref slices -> every per-head operand starts at lane/sublane offset 0
            q = jnp.dot(h1, qkv_w_ref[d, 0, h],
                        preferred_element_type=jnp.float32) + qkv_b_ref[d, 0, h]
            k = jnp.dot(h1, qkv_w_ref[d, 1, h],
                        preferred_element_type=jnp.float32) + qkv_b_ref[d, 1, h]
            v = jnp.dot(h1, qkv_w_ref[d, 2, h],
                        preferred_element_type=jnp.float32) + qkv_b_ref[d, 2, h]
            s = jnp.dot(q, k.T, preferred_element_type=jnp.float32) + mask   # (BT, BT)
            s = s - jnp.max(s, axis=-1, keepdims=True)
            p = jnp.exp(s)
            p = p * pl.reciprocal(jnp.sum(p, axis=-1, keepdims=True), approx=True)
            o = jnp.dot(p, v, preferred_element_type=jnp.float32)            # (BT, hd)
            # concat-then-project == sum of per-head partial projections (no lane concat)
            attn = attn + jnp.dot(o, fc_w_ref[d, h], preferred_element_type=jnp.float32)
        x = x + attn + fc_b_ref[d]              # dropout1 == identity (eval)

        # ---------------- FFN ----------------
        h2 = _layernorm(x, ln2g_ref[d], ln2b_ref[d])
        ff = jnp.dot(h2, ff1_w_ref[d], preferred_element_type=jnp.float32) + ff1_b_ref[d]
        ff = _gelu(ff)
        ff = jnp.dot(ff, ff2_w_ref[d], preferred_element_type=jnp.float32) + ff2_b_ref[d]
        x = x + ff                              # dropout2 == identity (eval)

    # --- final LayerNorm + fc on the CLS rows (last `batch` rows; 8-aligned sublane slice,
    # --- LN is per-token so LN on the slice equals slicing the full LN) ---
    cls = x[BT - batch:, :]                                                   # (B, E)
    cls_n = _layernorm(cls, lng_ref[...], lnb_ref[...])
    img = jnp.dot(cls_n, fcv_w_ref[...], preferred_element_type=jnp.float32) + fcv_b_ref[...]
    img_n = img * jax.lax.rsqrt(jnp.sum(img * img, axis=-1, keepdims=True) + NORM_EPS)

    # Text features arrive pre-normalized, pre-scaled by exp(logit_scale), transposed and
    # zero-padded to 128 lanes -> lane-dense (B, 128) store, no masked partial vst.
    logits_ref[...] = jnp.dot(img_n, txt_ref[...], preferred_element_type=jnp.float32)


def _run_fused(pp, patches, pos_table, attn_mask, txt_padT, batch):
    kern = functools.partial(_clipnet_kernel, num_heads=HEADS, depth=DEPTH, batch=batch)
    # No grid: the whole working set (<1 MiB of weights + activations) is VMEM-resident in
    # one step, so there is zero per-step grid overhead (the TPU grid is a strictly serial
    # loop on v5e/v6e).  Default BlockSpecs map every input whole into VMEM.
    # TODO(synk): on v7x, split the batch over the 2 TensorCores with a size-2 CORE_PARALLEL
    # leading axis (or pl.core_map); kept single-step here for portability across v5e/v6e/v7x.
    return pl.pallas_call(
        kern,
        out_shape=jax.ShapeDtypeStruct((batch, LOGIT_PAD), jnp.float32),
    )(patches, pos_table, attn_mask, pp["patch_w"],
      pp["ln1_g"], pp["ln1_b"], pp["qkv_w"], pp["qkv_b"], pp["fc_w"], pp["fc_b"],
      pp["ln2_g"], pp["ln2_b"], pp["ff1_w"], pp["ff1_b"], pp["ff2_w"], pp["ff2_b"],
      pp["ln_g"], pp["ln_b"], pp["fcv_w"], pp["fcv_b"], txt_padT)


# ---------------- parameter init (deterministic, synthetic; PyTorch layouts) -------------
def init_params(key):
    keys = iter(jax.random.split(key, 64))

    def nrm(shape, scale=0.02):
        return (scale * jax.random.normal(next(keys), shape)).astype(jnp.float32)

    params = {
        # PatchEmbedding3D: Conv3d(C, EMB, k=p, s=p) == (C*p^3, EMB) matmul
        "patch_w": nrm((PATCH_DIM, EMB)),
        "patch_b": nrm((EMB,)),
        "cls_token": jax.random.normal(next(keys), (1, 1, EMB), jnp.float32),
        "pos_emb": jax.random.normal(next(keys), (1, SEQ, EMB), jnp.float32),
        "blocks": [],
        # final ViT layer norm + fc
        "ln_g": jnp.ones((1, EMB), jnp.float32),
        "ln_b": jnp.zeros((1, EMB), jnp.float32),
        "fc_w": nrm((EMB, NUM_FEATURES)),
        "fc_b": nrm((1, NUM_FEATURES)),
        # placeholder text encoder
        "txt_embed": jax.random.normal(next(keys), (VOCAB, TXT_DIM), jnp.float32),
        "txt_w": nrm((TXT_DIM, NUM_FEATURES)),
        "txt_b": nrm((NUM_FEATURES,)),
        # CLIP temperature (reference ClipNet applies no clamp before exp)
        "logit_scale": jnp.asarray(jnp.log(1.0 / 0.07), jnp.float32),
    }
    for _ in range(DEPTH):
        params["blocks"].append({
            "ln1_g": jnp.ones((1, EMB), jnp.float32), "ln1_b": jnp.zeros((1, EMB), jnp.float32),
            "qkv_w": nrm((EMB, 3 * EMB)), "qkv_b": nrm((1, 3 * EMB)),
            "fc_w": nrm((EMB, EMB)), "fc_b": nrm((1, EMB)),
            "ln2_g": jnp.ones((1, EMB), jnp.float32), "ln2_b": jnp.zeros((1, EMB), jnp.float32),
            "ff1_w": nrm((EMB, FF_HIDDEN)), "ff1_b": nrm((1, FF_HIDDEN)),
            "ff2_w": nrm((FF_HIDDEN, EMB)), "ff2_b": nrm((1, EMB)),
        })
    return params


def prepare_params(params):
    """One-time inference prep: stack per-block weights head-major, fold the attention scale."""
    D, H, E, hd = DEPTH, HEADS, EMB, HEAD_DIM

    def stack(key):
        return jnp.stack([blk[key] for blk in params["blocks"]], axis=0)

    # QKV re-laid-out to (D, 3, H, E, hd) so every per-head projection is a static Ref slice
    # in the kernel; the 3E output columns follow PyTorch's reshape(..., 3, H, hd) ordering.
    qkv_w = stack("qkv_w").reshape(D, E, 3, H, hd).transpose(0, 2, 3, 1, 4)   # (D,3,H,E,hd)
    qkv_b = stack("qkv_b").reshape(D, 1, 3, H, hd).transpose(0, 2, 3, 1, 4)   # (D,3,H,1,hd)
    qscale = jnp.array([hd ** -0.5, 1.0, 1.0], jnp.float32).reshape(1, 3, 1, 1, 1)
    qkv_w = qkv_w * qscale                      # fold 1/sqrt(head_dim) into Q weights/bias
    qkv_b = qkv_b * qscale

    fc_w = stack("fc_w").reshape(D, H, hd, E)   # rows of (E,E) grouped per head -> (D,H,hd,E)

    return {
        # kernel weights (attention / FFN stay f32: MXU is idle at these shapes and f32
        # removes VALU cast work; only the K=1536 patch-embed uses bf16)
        "patch_w": params["patch_w"].astype(jnp.bfloat16),
        "ln1_g": stack("ln1_g"), "ln1_b": stack("ln1_b"),
        "qkv_w": qkv_w, "qkv_b": qkv_b,
        "fc_w": fc_w, "fc_b": stack("fc_b"),
        "ln2_g": stack("ln2_g"), "ln2_b": stack("ln2_b"),
        "ff1_w": stack("ff1_w"), "ff1_b": stack("ff1_b"),
        "ff2_w": stack("ff2_w"), "ff2_b": stack("ff2_b"),
        "ln_g": params["ln_g"], "ln_b": params["ln_b"],
        "fcv_w": params["fc_w"], "fcv_b": params["fc_b"],
        # wrapper-side pieces (token table, text branch, CLIP temperature)
        "patch_b": params["patch_b"],
        "cls_token": params["cls_token"],
        "pos_emb": params["pos_emb"],
        "txt_embed": params["txt_embed"],
        "txt_w": params["txt_w"],
        "txt_b": params["txt_b"].reshape(1, NUM_FEATURES),
        "scale": jnp.exp(params["logit_scale"]),
    }


# ---------------- full forward ----------------
def clipnet_forward(pp, images, text_ids):
    B, C, D, H, W = images.shape
    p = PATCH
    Dp, Hp, Wp = D // p, H // p, W // p
    P = Dp * Hp * Wp

    # Conv3d(k=s=p) == strided patch gather + matmul.  The gather has no rectangular
    # BlockSpec equivalent, so it stays as one XLA reshape/transpose; the matmul and
    # everything downstream run inside the single fused Pallas kernel.
    xp = images.reshape(B, C, Dp, p, Hp, p, Wp, p)
    xp = xp.transpose(0, 2, 4, 6, 1, 3, 5, 7).reshape(B * P, C * p * p * p)
    patches = xp.astype(jnp.bfloat16)                                        # (B*P, 1536)

    # Additive token table in kernel layout [b0 patches | b1 patches | ... | cls_b0..cls_bB-1]
    # (constant-folded under jit: depends only on params).
    pos_patch = pp["pos_emb"][0, 1:, :] + pp["patch_b"][None, :]             # (P, E)
    pos_cls = pp["pos_emb"][0, 0:1, :] + pp["cls_token"][0]                  # (1, E)
    pos_table = jnp.concatenate(
        [jnp.tile(pos_patch, (B, 1)), jnp.tile(pos_cls, (B, 1))], axis=0)    # (B*SEQ, E)

    # Block-diagonal batch-isolation mask for the folded-batch attention scores
    # (also constant-folded under jit).
    row_batch = jnp.concatenate(
        [jnp.arange(B * P, dtype=jnp.int32) // P, jnp.arange(B, dtype=jnp.int32)])
    attn_mask = jnp.where(row_batch[:, None] == row_batch[None, :],
                          0.0, -1e30).astype(jnp.float32)                    # (B*SEQ, B*SEQ)

    # TODO(synk): the real TextEncoder wraps a pretrained HF text model loaded from
    # pretrained_model_dir; replaced by a deterministic embedding + mean-pool + linear.
    te = jnp.take(pp["txt_embed"], text_ids, axis=0).mean(axis=1)            # (T, TXT_DIM)
    txt = te @ pp["txt_w"] + pp["txt_b"]                                     # (T, F)
    txt_n = txt * jax.lax.rsqrt(jnp.sum(txt * txt, axis=-1, keepdims=True) + NORM_EPS)
    txt_scaledT = (pp["scale"] * txt_n).T                                    # (F, T)
    T = txt_scaledT.shape[1]
    txt_padT = jnp.zeros((NUM_FEATURES, LOGIT_PAD), jnp.float32).at[:, :T].set(txt_scaledT)

    logits_pad = _run_fused(pp, patches, pos_table, attn_mask, txt_padT, B)  # (B, 128)
    logits_per_image = logits_pad[:, :T]
    logits_per_text = logits_per_image.T
    return logits_per_image, logits_per_text


if __name__ == "__main__":
    key = jax.random.PRNGKey(0)
    pkey, ikey, tkey = jax.random.split(key, 3)
    params = init_params(pkey)
    prepped = prepare_params(params)

    images = jax.random.normal(ikey, (2, IN_CHANNELS) + INPUT_SIZE, jnp.float32)   # (2,3,16,16,16)
    text_ids = jax.random.randint(tkey, (3, 6), 0, VOCAB)                          # 3 texts, 6 tokens

    fwd = jax.jit(functools.partial(clipnet_forward, prepped))
    logits_per_image, logits_per_text = fwd(images, text_ids)
    jax.block_until_ready((logits_per_image, logits_per_text))

    assert logits_per_image.shape == (2, 3)
    assert logits_per_text.shape == (3, 2)
    assert bool(jnp.all(jnp.isfinite(logits_per_image)))
    print("KERNEL_OK")
</pallas_src>

<mosaic_0001>
module attributes {stable_mosaic.version = 11 : i64} {
  func.func @_clipnet_kernel(%arg0: memref<16x1536xbf16, #tpu.memory_space<vmem>>, %arg1: memref<18x32xf32, #tpu.memory_space<vmem>>, %arg2: memref<18x18xf32, #tpu.memory_space<vmem>>, %arg3: memref<1536x32xbf16, #tpu.memory_space<vmem>>, %arg4: memref<2x1x32xf32, #tpu.memory_space<vmem>>, %arg5: memref<2x1x32xf32, #tpu.memory_space<vmem>>, %arg6: memref<2x3x4x32x8xf32, #tpu.memory_space<vmem>>, %arg7: memref<2x3x4x1x8xf32, #tpu.memory_space<vmem>>, %arg8: memref<2x4x8x32xf32, #tpu.memory_space<vmem>>, %arg9: memref<2x1x32xf32, #tpu.memory_space<vmem>>, %arg10: memref<2x1x32xf32, #tpu.memory_space<vmem>>, %arg11: memref<2x1x32xf32, #tpu.memory_space<vmem>>, %arg12: memref<2x32x128xf32, #tpu.memory_space<vmem>>, %arg13: memref<2x1x128xf32, #tpu.memory_space<vmem>>, %arg14: memref<2x128x32xf32, #tpu.memory_space<vmem>>, %arg15: memref<2x1x32xf32, #tpu.memory_space<vmem>>, %arg16: memref<1x32xf32, #tpu.memory_space<vmem>>, %arg17: memref<1x32xf32, #tpu.memory_space<vmem>>, %arg18: memref<32x16xf32, #tpu.memory_space<vmem>>, %arg19: memref<1x16xf32, #tpu.memory_space<vmem>>, %arg20: memref<16x128xf32, #tpu.memory_space<vmem>>, %arg21: memref<2x128xf32, #tpu.memory_space<vmem>>) attributes {dimension_semantics = [], scalar_prefetch = 0 : i64, scratch_operands = 0 : i64, tpu.core_type = #tpu.core_type<tc>} {
    %c0 = arith.constant 0 : index
    %c0_0 = arith.constant 0 : index
    %0 = vector.load %arg0[%c0, %c0_0] : memref<16x1536xbf16, #tpu.memory_space<vmem>>, vector<16x1536xbf16>
    %c0_1 = arith.constant 0 : index
    %c0_2 = arith.constant 0 : index
    %1 = vector.load %arg3[%c0_1, %c0_2] : memref<1536x32xbf16, #tpu.memory_space<vmem>>, vector<1536x32xbf16>
    %cst = arith.constant dense<0.000000e+00> : vector<16x32xf32>
    %2 = tpu.matmul %0, %1, %cst {dimension_numbers = #tpu.dot_dimension_numbers<[1], [0], [0], [1], [0, 0, 1, 1], [], []>} : vector<16x1536xbf16>, vector<1536x32xbf16>, vector<16x32xf32> -> vector<16x32xf32>
    %cst_3 = arith.constant 0.000000e+00 : f32
    %3 = vector.broadcast %cst_3 : f32 to vector<2x32xf32>
    %4 = tpu.concatenate %2, %3 in 0 : vector<16x32xf32>, vector<2x32xf32> -> vector<18x32xf32>
    %c0_4 = arith.constant 0 : index
    %c0_5 = arith.constant 0 : index
    %5 = vector.load %arg1[%c0_4, %c0_5] : memref<18x32xf32, #tpu.memory_space<vmem>>, vector<18x32xf32>
    %6 = arith.addf %4, %5 : vector<18x32xf32>
    %c0_6 = arith.constant 0 : index
    %c0_7 = arith.constant 0 : index
    %7 = vector.load %arg2[%c0_6, %c0_7] : memref<18x18xf32, #tpu.memory_space<vmem>>, vector<18x18xf32>
    %c0_8 = arith.constant 0 : index
    %c0_9 = arith.constant 0 : index
    %c0_10 = arith.constant 0 : index
    %8 = vector.load %arg4[%c0_8, %c0_9, %c0_10] : memref<2x1x32xf32, #tpu.memory_space<vmem>>, vector<1x1x32xf32>
    %9 = vector.shape_cast %8 : vector<1x1x32xf32> to vector<1x32xf32>
    %c0_11 = arith.constant 0 : index
    %c0_12 = arith.constant 0 : index
    %c0_13 = arith.constant 0 : index
    %10 = vector.load %arg5[%c0_11, %c0_12, %c0_13] : memref<2x1x32xf32, #tpu.memory_space<vmem>>, vector<1x1x32xf32>
    %11 = vector.shape_cast %10 : vector<1x1x32xf32> to vector<1x32xf32>
    %cst_14 = arith.constant dense<0.000000e+00> : vector<18xf32>
    %12 = vector.multi_reduction <add>, %6, %cst_14 [1] : vector<18x32xf32> to vector<18xf32>
    %13 = vector.shape_cast %12 : vector<18xf32> to vector<18x1xf32>
    %cst_15 = arith.constant 3.200000e+01 : f32
    %14 = vector.broadcast %cst_15 : f32 to vector<18x1xf32>
    %15 = arith.divf %13, %14 : vector<18x1xf32>
    %16 = vector.broadcast %15 : vector<18x1xf32> to vector<18x32xf32>
    %17 = arith.subf %6, %16 : vector<18x32xf32>
    %18 = arith.mulf %17, %17 : vector<18x32xf32>
    %cst_16 = arith.constant dense<0.000000e+00> : vector<18xf32>
    %19 = vector.multi_reduction <add>, %18, %cst_16 [1] : vector<18x32xf32> to vector<18xf32>
    %20 = vector.shape_cast %19 : vector<18xf32> to vector<18x1xf32>
    %cst_17 = arith.constant 3.200000e+01 : f32
    %21 = vector.broadcast %cst_17 : f32 to vector<18x1xf32>
    %22 = arith.divf %20, %21 : vector<18x1xf32>
    %23 = vector.broadcast %15 : vector<18x1xf32> to vector<18x32xf32>
    %24 = arith.subf %6, %23 : vector<18x32xf32>
    %cst_18 = arith.constant 9.99999974E-6 : f32
    %25 = vector.broadcast %cst_18 : f32 to vector<18x1xf32>
    %26 = arith.addf %22, %25 : vector<18x1xf32>
    %27 = math.rsqrt %26 : vector<18x1xf32>
    %28 = vector.broadcast %27 : vector<18x1xf32> to vector<18x32xf32>
    %29 = arith.mulf %24, %28 : vector<18x32xf32>
    %30 = vector.broadcast %9 : vector<1x32xf32> to vector<18x32xf32>
    %31 = arith.mulf %29, %30 : vector<18x32xf32>
    %32 = vector.broadcast %11 : vector<1x32xf32> to vector<18x32xf32>
    %33 = arith.addf %31, %32 : vector<18x32xf32>
    %cst_19 = arith.constant 0.000000e+00 : f32
    %34 = vector.broadcast %cst_19 : f32 to vector<18x32xf32>
    %c0_20 = arith.constant 0 : index
    %c0_21 = arith.constant 0 : index
    %c0_22 = arith.constant 0 : index
    %c0_23 = arith.constant 0 : index
    %c0_24 = arith.constant 0 : index
    %35 = vector.load %arg6[%c0_20, %c0_21, %c0_22, %c0_23, %c0_24] : memref<2x3x4x32x8xf32, #tpu.memory_space<vmem>>, vector<1x1x1x32x8xf32>
    %36 = vector.shape_cast %35 : vector<1x1x1x32x8xf32> to vector<32x8xf32>
    %cst_25 = arith.constant dense<0.000000e+00> : vector<18x8xf32>
    %37 = tpu.matmul %33, %36, %cst_25 {dimension_numbers = #tpu.dot_dimension_numbers<[1], [0], [0], [1], [0, 0, 1, 1], [], []>} : vector<18x32xf32>, vector<32x8xf32>, vector<18x8xf32> -> vector<18x8xf32>
    %c0_26 = arith.constant 0 : index
    %c0_27 = arith.constant 0 : index
    %c0_28 = arith.constant 0 : index
    %c0_29 = arith.constant 0 : index
    %c0_30 = arith.constant 0 : index
    %38 = vector.load %arg7[%c0_26, %c0_27, %c0_28, %c0_29, %c0_30] : memref<2x3x4x1x8xf32, #tpu.memory_space<vmem>>, vector<1x1x1x1x8xf32>
    %39 = vector.shape_cast %38 : vector<1x1x1x1x8xf32> to vector<1x8xf32>
    %40 = vector.broadcast %39 : vector<1x8xf32> to vector<18x8xf32>
    %41 = arith.addf %37, %40 : vector<18x8xf32>
    %c0_31 = arith.constant 0 : index
    %c1 = arith.constant 1 : index
    %c0_32 = arith.constant 0 : index
    %c0_33 = arith.constant 0 : index
    %c0_34 = arith.constant 0 : index
    %42 = vector.load %arg6[%c0_31, %c1, %c0_32, %c0_33, %c0_34] : memref<2x3x4x32x8xf32, #tpu.memory_space<vmem>>, vector<1x1x1x32x8xf32>
    %43 = vector.shape_cast %42 : vector<1x1x1x32x8xf32> to vector<32x8xf32>
    %cst_35 = arith.constant dense<0.000000e+00> : vector<18x8xf32>
    %44 = tpu.matmul %33, %43, %cst_35 {dimension_numbers = #tpu.dot_dimension_numbers<[1], [0], [0], [1], [0, 0, 1, 1], [], []>} : vector<18x32xf32>, vector<32x8xf32>, vector<18x8xf32> -> vector<18x8xf32>
    %c0_36 = arith.constant 0 : index
    %c1_37 = arith.constant 1 : index
    %c0_38 = arith.constant 0 : index
    %c0_39 = arith.constant 0 : index
    %c0_40 = arith.constant 0 : index
    %45 = vector.load %arg7[%c0_36, %c1_37, %c0_38, %c0_39, %c0_40] : memref<2x3x4x1x8xf32, #tpu.memory_space<vmem>>, vector<1x1x1x1x8xf32>
    %46 = vector.shape_cast %45 : vector<1x1x1x1x8xf32> to vector<1x8xf32>
    %47 = vector.broadcast %46 : vector<1x8xf32> to vector<18x8xf32>
    %48 = arith.addf %44, %47 : vector<18x8xf32>
    %c0_41 = arith.constant 0 : index
    %c2 = arith.constant 2 : index
    %c0_42 = arith.constant 0 : index
    %c0_43 = arith.constant 0 : index
    %c0_44 = arith.constant 0 : index
    %49 = vector.load %arg6[%c0_41, %c2, %c0_42, %c0_43, %c0_44] : memref<2x3x4x32x8xf32, #tpu.memory_space<vmem>>, vector<1x1x1x32x8xf32>
    %50 = vector.shape_cast %49 : vector<1x1x1x32x8xf32> to vector<32x8xf32>
    %cst_45 = arith.constant dense<0.000000e+00> : vector<18x8xf32>
    %51 = tpu.matmul %33, %50, %cst_45 {dimension_numbers = #tpu.dot_dimension_numbers<[1], [0], [0], [1], [0, 0, 1, 1], [], []>} : vector<18x32xf32>, vector<32x8xf32>, vector<18x8xf32> -> vector<18x8xf32>
    %c0_46 = arith.constant 0 : index
    %c2_47 = arith.constant 2 : index
    %c0_48 = arith.constant 0 : index
    %c0_49 = arith.constant 0 : index
    %c0_50 = arith.constant 0 : index
    %52 = vector.load %arg7[%c0_46, %c2_47, %c0_48, %c0_49, %c0_50] : memref<2x3x4x1x8xf32, #tpu.memory_space<vmem>>, vector<1x1x1x1x8xf32>
    %53 = vector.shape_cast %52 : vector<1x1x1x1x8xf32> to vector<1x8xf32>
    %54 = vector.broadcast %53 : vector<1x8xf32> to vector<18x8xf32>
    %55 = arith.addf %51, %54 : vector<18x8xf32>
    %56 = tpu.transpose %48, [1, 0] : vector<18x8xf32> -> vector<8x18xf32>
    %cst_51 = arith.constant dense<0.000000e+00> : vector<18x18xf32>
    %57 = tpu.matmul %41, %56, %cst_51 {dimension_numbers = #tpu.dot_dimension_numbers<[1], [0], [0], [1], [0, 0, 1, 1], [], []>} : vector<18x8xf32>, vector<8x18xf32>, vector<18x18xf32> -> vector<18x18xf32>
    %58 = arith.addf %57, %7 : vector<18x18xf32>
    %cst_52 = arith.constant dense<0xFF800000> : vector<18xf32>
    %59 = vector.multi_reduction <maximumf>, %58, %cst_52 [1] : vector<18x18xf32> to vector<18xf32>
    %60 = vector.shape_cast %59 : vector<18xf32> to vector<18x1xf32>
    %61 = vector.broadcast %60 : vector<18x1xf32> to vector<18x18xf32>
    %62 = arith.subf %58, %61 : vector<18x18xf32>
    %63 = math.exp %62 : vector<18x18xf32>
    %cst_53 = arith.constant dense<0.000000e+00> : vector<18xf32>
    %64 = vector.multi_reduction <add>, %63, %cst_53 [1] : vector<18x18xf32> to vector<18xf32>
    %65 = vector.shape_cast %64 : vector<18xf32> to vector<18x1xf32>
    %66 = tpu.reciprocal %65 {approx = true} : vector<18x1xf32> -> vector<18x1xf32>
    %67 = vector.broadcast %66 : vector<18x1xf32> to vector<18x18xf32>
    %68 = arith.mulf %63, %67 : vector<18x18xf32>
    %cst_54 = arith.constant dense<0.000000e+00> : vector<18x8xf32>
    %69 = tpu.matmul %68, %55, %cst_54 {dimension_numbers = #tpu.dot_dimension_numbers<[1], [0], [0], [1], [0, 0, 1, 1], [], []>} : vector<18x18xf32>, vector<18x8xf32>, vector<18x8xf32> -> vector<18x8xf32>
    %c0_55 = arith.constant 0 : index
    %c0_56 = arith.constant 0 : index
    %c0_57 = arith.constant 0 : index
    %c0_58 = arith.constant 0 : index
    %70 = vector.load %arg8[%c0_55, %c0_56, %c0_57, %c0_58] : memref<2x4x8x32xf32, #tpu.memory_space<vmem>>, vector<1x1x8x32xf32>
    %71 = vector.shape_cast %70 : vector<1x1x8x32xf32> to vector<8x32xf32>
    %cst_59 = arith.constant dense<0.000000e+00> : vector<18x32xf32>
    %72 = tpu.matmul %69, %71, %cst_59 {dimension_numbers = #tpu.dot_dimension_numbers<[1], [0], [0], [1], [0, 0, 1, 1], [], []>} : vector<18x8xf32>, vector<8x32xf32>, vector<18x32xf32> -> vector<18x32xf32>
    %73 = arith.addf %34, %72 : vector<18x32xf32>
    %c0_60 = arith.constant 0 : index
    %c0_61 = arith.constant 0 : index
    %c1_62 = arith.constant 1 : index
    %c0_63 = arith.constant 0 : index
    %c0_64 = arith.constant 0 : index
    %74 = vector.load %arg6[%c0_60, %c0_61, %c1_62, %c0_63, %c0_64] : memref<2x3x4x32x8xf32, #tpu.memory_space<vmem>>, vector<1x1x1x32x8xf32>
    %75 = vector.shape_cast %74 : vector<1x1x1x32x8xf32> to vector<32x8xf32>
    %cst_65 = arith.constant dense<0.000000e+00> : vector<18x8xf32>
    %76 = tpu.matmul %33, %75, %cst_65 {dimension_numbers = #tpu.dot_dimension_numbers<[1], [0], [0], [1], [0, 0, 1, 1], [], []>} : vector<18x32xf32>, vector<32x8xf32>, vector<18x8xf32> -> vector<18x8xf32>
    %c0_66 = arith.constant 0 : index
    %c0_67 = arith.constant 0 : index
    %c1_68 = arith.constant 1 : index
    %c0_69 = arith.constant 0 : index
    %c0_70 = arith.constant 0 : index
    %77 = vector.load %arg7[%c0_66, %c0_67, %c1_68, %c0_69, %c0_70] : memref<2x3x4x1x8xf32, #tpu.memory_space<vmem>>, vector<1x1x1x1x8xf32>
    %78 = vector.shape_cast %77 : vector<1x1x1x1x8xf32> to vector<1x8xf32>
    %79 = vector.broadcast %78 : vector<1x8xf32> to vector<18x8xf32>
    %80 = arith.addf %76, %79 : vector<18x8xf32>
    %c0_71 = arith.constant 0 : index
    %c1_72 = arith.constant 1 : index
    %c1_73 = arith.constant 1 : index
    %c0_74 = arith.constant 0 : index
    %c0_75 = arith.constant 0 : index
    %81 = vector.load %arg6[%c0_71, %c1_72, %c1_73, %c0_74, %c0_75] : memref<2x3x4x32x8xf32, #tpu.memory_space<vmem>>, vector<1x1x1x32x8xf32>
    %82 = vector.shape_cast %81 : vector<1x1x1x32x8xf32> to vector<32x8xf32>
    %cst_76 = arith.constant dense<0.000000e+00> : vector<18x8xf32>
    %83 = tpu.matmul %33, %82, %cst_76 {dimension_numbers = #tpu.dot_dimension_numbers<[1], [0], [0], [1], [0, 0, 1, 1], [], []>} : vector<18x32xf32>, vector<32x8xf32>, vector<18x8xf32> -> vector<18x8xf32>
    %c0_77 = arith.constant 0 : index
    %c1_78 = arith.constant 1 : index
    %c1_79 = arith.constant 1 : index
    %c0_80 = arith.constant 0 : index
    %c0_81 = arith.constant 0 : index
    %84 = vector.load %arg7[%c0_77, %c1_78, %c1_79, %c0_80, %c0_81] : memref<2x3x4x1x8xf32, #tpu.memory_space<vmem>>, vector<1x1x1x1x8xf32>
    %85 = vector.shape_cast %84 : vector<1x1x1x1x8xf32> to vector<1x8xf32>
    %86 = vector.broadcast %85 : vector<1x8xf32> to vector<18x8xf32>
    %87 = arith.addf %83, %86 : vector<18x8xf32>
    %c0_82 = arith.constant 0 : index
    %c2_83 = arith.constant 2 : index
    %c1_84 = arith.constant 1 : index
    %c0_85 = arith.constant 0 : index
    %c0_86 = arith.constant 0 : index
    %88 = vector.load %arg6[%c0_82, %c2_83, %c1_84, %c0_85, %c0_86] : memref<2x3x4x32x8xf32, #tpu.memory_space<vmem>>, vector<1x1x1x32x8xf32>
    %89 = vector.shape_cast %88 : vector<1x1x1x32x8xf32> to vector<32x8xf32>
    %cst_87 = arith.constant dense<0.000000e+00> : vector<18x8xf32>
    %90 = tpu.matmul %33, %89, %cst_87 {dimension_numbers = #tpu.dot_dimension_numbers<[1], [0], [0], [1], [0, 0, 1, 1], [], []>} : vector<18x32xf32>, vector<32x8xf32>, vector<18x8xf32> -> vector<18x8xf32>
    %c0_88 = arith.constant 0 : index
    %c2_89 = arith.constant 2 : index
    %c1_90 = arith.constant 1 : index
    %c0_91 = arith.constant 0 : index
    %c0_92 = arith.constant 0 : index
    %91 = vector.load %arg7[%c0_88, %c2_89, %c1_90, %c0_91, %c0_92] : memref<2x3x4x1x8xf32, #tpu.memory_space<vmem>>, vector<1x1x1x1x8xf32>
    %92 = vector.shape_cast %91 : vector<1x1x1x1x8xf32> to vector<1x8xf32>
    %93 = vector.broadcast %92 : vector<1x8xf32> to vector<18x8xf32>
    %94 = arith.addf %90, %93 : vector<18x8xf32>
    %95 = tpu.transpose %87, [1, 0] : vector<18x8xf32> -> vector<8x18xf32>
    %cst_93 = arith.constant dense<0.000000e+00> : vector<18x18xf32>
    %96 = tpu.matmul %80, %95, %cst_93 {dimension_numbers = #tpu.dot_dimension_numbers<[1], [0], [0], [1], [0, 0, 1, 1], [], []>} : vector<18x8xf32>, vector<8x18xf32>, vector<18x18xf32> -> vector<18x18xf32>
    %97 = arith.addf %96, %7 : vector<18x18xf32>
    %cst_94 = arith.constant dense<0xFF800000> : vector<18xf32>
    %98 = vector.multi_reduction <maximumf>, %97, %cst_94 [1] : vector<18x18xf32> to vector<18xf32>
    %99 = vector.shape_cast %98 : vector<18xf32> to vector<18x1xf32>
    %100 = vector.broadcast %99 : vector<18x1xf32> to vector<18x18xf32>
    %101 = arith.subf %97, %100 : vector<18x18xf32>
    %102 = math.exp %101 : vector<18x18xf32>
    %cst_95 = arith.constant dense<0.000000e+00> : vector<18xf32>
    %103 = vector.multi_reduction <add>, %102, %cst_95 [1] : vector<18x18xf32> to vector<18xf32>
    %104 = vector.shape_cast %103 : vector<18xf32> to vector<18x1xf32>
    %105 = tpu.reciprocal %104 {approx = true} : vector<18x1xf32> -> vector<18x1xf32>
    %106 = vector.broadcast %105 : vector<18x1xf32> to vector<18x18xf32>
    %107 = arith.mulf %102, %106 : vector<18x18xf32>
    %cst_96 = arith.constant dense<0.000000e+00> : vector<18x8xf32>
    %108 = tpu.matmul %107, %94, %cst_96 {dimension_numbers = #tpu.dot_dimension_numbers<[1], [0], [0], [1], [0, 0, 1, 1], [], []>} : vector<18x18xf32>, vector<18x8xf32>, vector<18x8xf32> -> vector<18x8xf32>
    %c0_97 = arith.constant 0 : index
    %c1_98 = arith.constant 1 : index
    %c0_99 = arith.constant 0 : index
    %c0_100 = arith.constant 0 : index
    %109 = vector.load %arg8[%c0_97, %c1_98, %c0_99, %c0_100] : memref<2x4x8x32xf32, #tpu.memory_space<vmem>>, vector<1x1x8x32xf32>
    %110 = vector.shape_cast %109 : vector<1x1x8x32xf32> to vector<8x32xf32>
    %cst_101 = arith.constant dense<0.000000e+00> : vector<18x32xf32>
    %111 = tpu.matmul %108, %110, %cst_101 {dimension_numbers = #tpu.dot_dimension_numbers<[1], [0], [0], [1], [0, 0, 1, 1], [], []>} : vector<18x8xf32>, vector<8x32xf32>, vector<18x32xf32> -> vector<18x32xf32>
    %112 = arith.addf %73, %111 : vector<18x32xf32>
    %c0_102 = arith.constant 0 : index
    %c0_103 = arith.constant 0 : index
    %c2_104 = arith.constant 2 : index
    %c0_105 = arith.constant 0 : index
    %c0_106 = arith.constant 0 : index
    %113 = vector.load %arg6[%c0_102, %c0_103, %c2_104, %c0_105, %c0_106] : memref<2x3x4x32x8xf32, #tpu.memory_space<vmem>>, vector<1x1x1x32x8xf32>
    %114 = vector.shape_cast %113 : vector<1x1x1x32x8xf32> to vector<32x8xf32>
    %cst_107 = arith.constant dense<0.000000e+00> : vector<18x8xf32>
    %115 = tpu.matmul %33, %114, %cst_107 {dimension_numbers = #tpu.dot_dimension_numbers<[1], [0], [0], [1], [0, 0, 1, 1], [], []>} : vector<18x32xf32>, vector<32x8xf32>, vector<18x8xf32> -> vector<18x8xf32>
    %c0_108 = arith.constant 0 : index
    %c0_109 = arith.constant 0 : index
    %c2_110 = arith.constant 2 : index
    %c0_111 = arith.constant 0 : index
    %c0_112 = arith.constant 0 : index
    %116 = vector.load %arg7[%c0_108, %c0_109, %c2_110, %c0_111, %c0_112] : memref<2x3x4x1x8xf32, #tpu.memory_space<vmem>>, vector<1x1x1x1x8xf32>
    %117 = vector.shape_cast %116 : vector<1x1x1x1x8xf32> to vector<1x8xf32>
    %118 = vector.broadcast %117 : vector<1x8xf32> to vector<18x8xf32>
    %119 = arith.addf %115, %118 : vector<18x8xf32>
    %c0_113 = arith.constant 0 : index
    %c1_114 = arith.constant 1 : index
    %c2_115 = arith.constant 2 : index
    %c0_116 = arith.constant 0 : index
    %c0_117 = arith.constant 0 : index
    %120 = vector.load %arg6[%c0_113, %c1_114, %c2_115, %c0_116, %c0_117] : memref<2x3x4x32x8xf32, #tpu.memory_space<vmem>>, vector<1x1x1x32x8xf32>
    %121 = vector.shape_cast %120 : vector<1x1x1x32x8xf32> to vector<32x8xf32>
    %cst_118 = arith.constant dense<0.000000e+00> : vector<18x8xf32>
    %122 = tpu.matmul %33, %121, %cst_118 {dimension_numbers = #tpu.dot_dimension_numbers<[1], [0], [0], [1], [0, 0, 1, 1], [], []>} : vector<18x32xf32>, vector<32x8xf32>, vector<18x8xf32> -> vector<18x8xf32>
    %c0_119 = arith.constant 0 : index
    %c1_120 = arith.constant 1 : index
    %c2_121 = arith.constant 2 : index
    %c0_122 = arith.constant 0 : index
    %c0_123 = arith.constant 0 : index
    %123 = vector.load %arg7[%c0_119, %c1_120, %c2_121, %c0_122, %c0_123] : memref<2x3x4x1x8xf32, #tpu.memory_space<vmem>>, vector<1x1x1x1x8xf32>
    %124 = vector.shape_cast %123 : vector<1x1x1x1x8xf32> to vector<1x8xf32>
    %125 = vector.broadcast %124 : vector<1x8xf32> to vector<18x8xf32>
    %126 = arith.addf %122, %125 : vector<18x8xf32>
    %c0_124 = arith.constant 0 : index
    %c2_125 = arith.constant 2 : index
    %c2_126 = arith.constant 2 : index
    %c0_127 = arith.constant 0 : index
    %c0_128 = arith.constant 0 : index
    %127 = vector.load %arg6[%c0_124, %c2_125, %c2_126, %c0_127, %c0_128] : memref<2x3x4x32x8xf32, #tpu.memory_space<vmem>>, vector<1x1x1x32x8xf32>
    %128 = vector.shape_cast %127 : vector<1x1x1x32x8xf32> to vector<32x8xf32>
    %cst_129 = arith.constant dense<0.000000e+00> : vector<18x8xf32>
    %129 = tpu.matmul %33, %128, %cst_129 {dimension_numbers = #tpu.dot_dimension_numbers<[1], [0], [0], [1], [0, 0, 1, 1], [], []>} : vector<18x32xf32>, vector<32x8xf32>, vector<18x8xf32> -> vector<18x8xf32>
    %c0_130 = arith.constant 0 : index
    %c2_131 = arith.constant 2 : index
    %c2_132 = arith.constant 2 : index
    %c0_133 = arith.constant 0 : index
    %c0_134 = arith.constant 0 : index
    %130 = vector.load %arg7[%c0_130, %c2_131, %c2_132, %c0_133, %c0_134] : memref<2x3x4x1x8xf32, #tpu.memory_space<vmem>>, vector<1x1x1x1x8xf32>
    %131 = vector.shape_cast %130 : vector<1x1x1x1x8xf32> to vector<1x8xf32>
    %132 = vector.broadcast %131 : vector<1x8xf32> to vector<18x8xf32>
    %133 = arith.addf %129, %132 : vector<18x8xf32>
    %134 = tpu.transpose %126, [1, 0] : vector<18x8xf32> -> vector<8x18xf32>
    %cst_135 = arith.constant dense<0.000000e+00> : vector<18x18xf32>
    %135 = tpu.matmul %119, %134, %cst_135 {dimension_numbers = #tpu.dot_dimension_numbers<[1], [0], [0], [1], [0, 0, 1, 1], [], []>} : vector<18x8xf32>, vector<8x18xf32>, vector<18x18xf32> -> vector<18x18xf32>
    %136 = arith.addf %135, %7 : vector<18x18xf32>
    %cst_136 = arith.constant dense<0xFF800000> : vector<18xf32>
    %137 = vector.multi_reduction <maximumf>, %136, %cst_136 [1] : vector<18x18xf32> to vector<18xf32>
    %138 = vector.shape_cast %137 : vector<18xf32> to vector<18x1xf32>
    %139 = vector.broadcast %138 : vector<18x1xf32> to vector<18x18xf32>
    %140 = arith.subf %136, %139 : vector<18x18xf32>
    %141 = math.exp %140 : vector<18x18xf32>
    %cst_137 = arith.constant dense<0.000000e+00> : vector<18xf32>
    %142 = vector.multi_reduction <add>, %141, %cst_137 [1] : vector<18x18xf32> to vector<18xf32>
    %143 = vector.shape_cast %142 : vector<18xf32> to vector<18x1xf32>
    %144 = tpu.reciprocal %143 {approx = true} : vector<18x1xf32> -> vector<18x1xf32>
    %145 = vector.broadcast %144 : vector<18x1xf32> to vector<18x18xf32>
    %146 = arith.mulf %141, %145 : vector<18x18xf32>
    %cst_138 = arith.constant dense<0.000000e+00> : vector<18x8xf32>
    %147 = tpu.matmul %146, %133, %cst_138 {dimension_numbers = #tpu.dot_dimension_numbers<[1], [0], [0], [1], [0, 0, 1, 1], [], []>} : vector<18x18xf32>, vector<18x8xf32>, vector<18x8xf32> -> vector<18x8xf32>
    %c0_139 = arith.constant 0 : index
    %c2_140 = arith.constant 2 : index
    %c0_141 = arith.constant 0 : index
    %c0_142 = arith.constant 0 : index
    %148 = vector.load %arg8[%c0_139, %c2_140, %c0_141, %c0_142] : memref<2x4x8x32xf32, #tpu.memory_space<vmem>>, vector<1x1x8x32xf32>
    %149 = vector.shape_cast %148 : vector<1x1x8x32xf32> to vector<8x32xf32>
    %cst_143 = arith.constant dense<0.000000e+00> : vector<18x32xf32>
    %150 = tpu.matmul %147, %149, %cst_143 {dimension_numbers = #tpu.dot_dimension_numbers<[1], [0], [0], [1], [0, 0, 1, 1], [], []>} : vector<18x8xf32>, vector<8x32xf32>, vector<18x32xf32> -> vector<18x32xf32>
    %151 = arith.addf %112, %150 : vector<18x32xf32>
    %c0_144 = arith.constant 0 : index
    %c0_145 = arith.constant 0 : index
    %c3 = arith.constant 3 : index
    %c0_146 = arith.constant 0 : index
    %c0_147 = arith.constant 0 : index
    %152 = vector.load %arg6[%c0_144, %c0_145, %c3, %c0_146, %c0_147] : memref<2x3x4x32x8xf32, #tpu.memory_space<vmem>>, vector<1x1x1x32x8xf32>
    %153 = vector.shape_cast %152 : vector<1x1x1x32x8xf32> to vector<32x8xf32>
    %cst_148 = arith.constant dense<0.000000e+00> : vector<18x8xf32>
    %154 = tpu.matmul %33, %153, %cst_148 {dimension_numbers = #tpu.dot_dimension_numbers<[1], [0], [0], [1], [0, 0, 1, 1], [], []>} : vector<18x32xf32>, vector<32x8xf32>, vector<18x8xf32> -> vector<18x8xf32>
    %c0_149 = arith.constant 0 : index
    %c0_150 = arith.constant 0 : index
    %c3_151 = arith.constant 3 : index
    %c0_152 = arith.constant 0 : index
    %c0_153 = arith.constant 0 : index
    %155 = vector.load %arg7[%c0_149, %c0_150, %c3_151, %c0_152, %c0_153] : memref<2x3x4x1x8xf32, #tpu.memory_space<vmem>>, vector<1x1x1x1x8xf32>
    %156 = vector.shape_cast %155 : vector<1x1x1x1x8xf32> to vector<1x8xf32>
    %157 = vector.broadcast %156 : vector<1x8xf32> to vector<18x8xf32>
    %158 = arith.addf %154, %157 : vector<18x8xf32>
    %c0_154 = arith.constant 0 : index
    %c1_155 = arith.constant 1 : index
    %c3_156 = arith.constant 3 : index
    %c0_157 = arith.constant 0 : index
    %c0_158 = arith.constant 0 : index
    %159 = vector.load %arg6[%c0_154, %c1_155, %c3_156, %c0_157, %c0_158] : memref<2x3x4x32x8xf32, #tpu.memory_space<vmem>>, vector<1x1x1x32x8xf32>
    %160 = vector.shape_cast %159 : vector<1x1x1x32x8xf32> to vector<32x8xf32>
    %cst_159 = arith.constant dense<0.000000e+00> : vector<18x8xf32>
    %161 = tpu.matmul %33, %160, %cst_159 {dimension_numbers = #tpu.dot_dimension_numbers<[1], [0], [0], [1], [0, 0, 1, 1], [], []>} : vector<18x32xf32>, vector<32x8xf32>, vector<18x8xf32> -> vector<18x8xf32>
    %c0_160 = arith.constant 0 : index
    %c1_161 = arith.constant 1 : index
    %c3_162 = arith.constant 3 : index
    %c0_163 = arith.constant 0 : index
    %c0_164 = arith.constant 0 : index
    %162 = vector.load %arg7[%c0_160, %c1_161, %c3_162, %c0_163, %c0_164] : memref<2x3x4x1x8xf32, #tpu.memory_space<vmem>>, vector<1x1x1x1x8xf32>
    %163 = vector.shape_cast %162 : vector<1x1x1x1x8xf32> to vector<1x8xf32>
    %164 = vector.broadcast %163 : vector<1x8xf32> to vector<18x8xf32>
    %165 = arith.addf %161, %164 : vector<18x8xf32>
    %c0_165 = arith.constant 0 : index
    %c2_166 = arith.constant 2 : index
    %c3_167 = arith.constant 3 : index
    %c0_168 = arith.constant 0 : index
    %c0_169 = arith.constant 0 : index
    %166 = vector.load %arg6[%c0_165, %c2_166, %c3_167, %c0_168, %c0_169] : memref<2x3x4x32x8xf32, #tpu.memory_space<vmem>>, vector<1x1x1x32x8xf32>
    %167 = vector.shape_cast %166 : vector<1x1x1x32x8xf32> to vector<32x8xf32>
    %cst_170 = arith.constant dense<0.000000e+00> : vector<18x8xf32>
    %168 = tpu.matmul %33, %167, %cst_170 {dimension_numbers = #tpu.dot_dimension_numbers<[1], [0], [0], [1], [0, 0, 1, 1], [], []>} : vector<18x32xf32>, vector<32x8xf32>, vector<18x8xf32> -> vector<18x8xf32>
    %c0_171 = arith.constant 0 : index
    %c2_172 = arith.constant 2 : index
    %c3_173 = arith.constant 3 : index
    %c0_174 = arith.constant 0 : index
    %c0_175 = arith.constant 0 : index
    %169 = vector.load %arg7[%c0_171, %c2_172, %c3_173, %c0_174, %c0_175] : memref<2x3x4x1x8xf32, #tpu.memory_space<vmem>>, vector<1x1x1x1x8xf32>
    %170 = vector.shape_cast %169 : vector<1x1x1x1x8xf32> to vector<1x8xf32>
    %171 = vector.broadcast %170 : vector<1x8xf32> to vector<18x8xf32>
    %172 = arith.addf %168, %171 : vector<18x8xf32>
    %173 = tpu.transpose %165, [1, 0] : vector<18x8xf32> -> vector<8x18xf32>
    %cst_176 = arith.constant dense<0.000000e+00> : vector<18x18xf32>
    %174 = tpu.matmul %158, %173, %cst_176 {dimension_numbers = #tpu.dot_dimension_numbers<[1], [0], [0], [1], [0, 0, 1, 1], [], []>} : vector<18x8xf32>, vector<8x18xf32>, vector<18x18xf32> -> vector<18x18xf32>
    %175 = arith.addf %174, %7 : vector<18x18xf32>
    %cst_177 = arith.constant dense<0xFF800000> : vector<18xf32>
    %176 = vector.multi_reduction <maximumf>, %175, %cst_177 [1] : vector<18x18xf32> to vector<18xf32>
    %177 = vector.shape_cast %176 : vector<18xf32> to vector<18x1xf32>
    %178 = vector.broadcast %177 : vector<18x1xf32> to vector<18x18xf32>
    %179 = arith.subf %175, %178 : vector<18x18xf32>
    %180 = math.exp %179 : vector<18x18xf32>
    %cst_178 = arith.constant dense<0.000000e+00> : vector<18xf32>
    %181 = vector.multi_reduction <add>, %180, %cst_178 [1] : vector<18x18xf32> to vector<18xf32>
    %182 = vector.shape_cast %181 : vector<18xf32> to vector<18x1xf32>
    %183 = tpu.reciprocal %182 {approx = true} : vector<18x1xf32> -> vector<18x1xf32>
    %184 = vector.broadcast %183 : vector<18x1xf32> to vector<18x18xf32>
    %185 = arith.mulf %180, %184 : vector<18x18xf32>
    %cst_179 = arith.constant dense<0.000000e+00> : vector<18x8xf32>
    %186 = tpu.matmul %185, %172, %cst_179 {dimension_numbers = #tpu.dot_dimension_numbers<[1], [0], [0], [1], [0, 0, 1, 1], [], []>} : vector<18x18xf32>, vector<18x8xf32>, vector<18x8xf32> -> vector<18x8xf32>
    %c0_180 = arith.constant 0 : index
    %c3_181 = arith.constant 3 : index
    %c0_182 = arith.constant 0 : index
    %c0_183 = arith.constant 0 : index
    %187 = vector.load %arg8[%c0_180, %c3_181, %c0_182, %c0_183] : memref<2x4x8x32xf32, #tpu.memory_space<vmem>>, vector<1x1x8x32xf32>
    %188 = vector.shape_cast %187 : vector<1x1x8x32xf32> to vector<8x32xf32>
    %cst_184 = arith.constant dense<0.000000e+00> : vector<18x32xf32>
    %189 = tpu.matmul %186, %188, %cst_184 {dimension_numbers = #tpu.dot_dimension_numbers<[1], [0], [0], [1], [0, 0, 1, 1], [], []>} : vector<18x8xf32>, vector<8x32xf32>, vector<18x32xf32> -> vector<18x32xf32>
    %190 = arith.addf %151, %189 : vector<18x32xf32>
    %191 = arith.addf %6, %190 : vector<18x32xf32>
    %c0_185 = arith.constant 0 : index
    %c0_186 = arith.constant 0 : index
    %c0_187 = arith.constant 0 : index
    %192 = vector.load %arg9[%c0_185, %c0_186, %c0_187] : memref<2x1x32xf32, #tpu.memory_space<vmem>>, vector<1x1x32xf32>
    %193 = vector.shape_cast %192 : vector<1x1x32xf32> to vector<1x32xf32>
    %194 = vector.broadcast %193 : vector<1x32xf32> to vector<18x32xf32>
    %195 = arith.addf %191, %194 : vector<18x32xf32>
    %c0_188 = arith.constant 0 : index
    %c0_189 = arith.constant 0 : index
    %c0_190 = arith.constant 0 : index
    %196 = vector.load %arg10[%c0_188, %c0_189, %c0_190] : memref<2x1x32xf32, #tpu.memory_space<vmem>>, vector<1x1x32xf32>
    %197 = vector.shape_cast %196 : vector<1x1x32xf32> to vector<1x32xf32>
    %c0_191 = arith.constant 0 : index
    %c0_192 = arith.constant 0 : index
    %c0_193 = arith.constant 0 : index
    %198 = vector.load %arg11[%c0_191, %c0_192, %c0_193] : memref<2x1x32xf32, #tpu.memory_space<vmem>>, vector<1x1x32xf32>
    %199 = vector.shape_cast %198 : vector<1x1x32xf32> to vector<1x32xf32>
    %cst_194 = arith.constant dense<0.000000e+00> : vector<18xf32>
    %200 = vector.multi_reduction <add>, %195, %cst_194 [1] : vector<18x32xf32> to vector<18xf32>
    %201 = vector.shape_cast %200 : vector<18xf32> to vector<18x1xf32>
    %cst_195 = arith.constant 3.200000e+01 : f32
    %202 = vector.broadcast %cst_195 : f32 to vector<18x1xf32>
    %203 = arith.divf %201, %202 : vector<18x1xf32>
    %204 = vector.broadcast %203 : vector<18x1xf32> to vector<18x32xf32>
    %205 = arith.subf %195, %204 : vector<18x32xf32>
    %206 = arith.mulf %205, %205 : vector<18x32xf32>
    %cst_196 = arith.constant dense<0.000000e+00> : vector<18xf32>
    %207 = vector.multi_reduction <add>, %206, %cst_196 [1] : vector<18x32xf32> to vector<18xf32>
    %208 = vector.shape_cast %207 : vector<18xf32> to vector<18x1xf32>
    %cst_197 = arith.constant 3.200000e+01 : f32
    %209 = vector.broadcast %cst_197 : f32 to vector<18x1xf32>
    %210 = arith.divf %208, %209 : vector<18x1xf32>
    %211 = vector.broadcast %203 : vector<18x1xf32> to vector<18x32xf32>
    %212 = arith.subf %195, %211 : vector<18x32xf32>
    %cst_198 = arith.constant 9.99999974E-6 : f32
    %213 = vector.broadcast %cst_198 : f32 to vector<18x1xf32>
    %214 = arith.addf %210, %213 : vector<18x1xf32>
    %215 = math.rsqrt %214 : vector<18x1xf32>
    %216 = vector.broadcast %215 : vector<18x1xf32> to vector<18x32xf32>
    %217 = arith.mulf %212, %216 : vector<18x32xf32>
    %218 = vector.broadcast %197 : vector<1x32xf32> to vector<18x32xf32>
    %219 = arith.mulf %217, %218 : vector<18x32xf32>
    %220 = vector.broadcast %199 : vector<1x32xf32> to vector<18x32xf32>
    %221 = arith.addf %219, %220 : vector<18x32xf32>
    %c0_199 = arith.constant 0 : index
    %c0_200 = arith.constant 0 : index
    %c0_201 = arith.constant 0 : index
    %222 = vector.load %arg12[%c0_199, %c0_200, %c0_201] : memref<2x32x128xf32, #tpu.memory_space<vmem>>, vector<1x32x128xf32>
    %223 = vector.shape_cast %222 : vector<1x32x128xf32> to vector<32x128xf32>
    %cst_202 = arith.constant dense<0.000000e+00> : vector<18x128xf32>
    %224 = tpu.matmul %221, %223, %cst_202 {dimension_numbers = #tpu.dot_dimension_numbers<[1], [0], [0], [1], [0, 0, 1, 1], [], []>} : vector<18x32xf32>, vector<32x128xf32>, vector<18x128xf32> -> vector<18x128xf32>
    %c0_203 = arith.constant 0 : index
    %c0_204 = arith.constant 0 : index
    %c0_205 = arith.constant 0 : index
    %225 = vector.load %arg13[%c0_203, %c0_204, %c0_205] : memref<2x1x128xf32, #tpu.memory_space<vmem>>, vector<1x1x128xf32>
    %226 = vector.shape_cast %225 : vector<1x1x128xf32> to vector<1x128xf32>
    %227 = vector.broadcast %226 : vector<1x128xf32> to vector<18x128xf32>
    %228 = arith.addf %224, %227 : vector<18x128xf32>
    %cst_206 = arith.constant 5.000000e-01 : f32
    %229 = vector.broadcast %cst_206 : f32 to vector<18x128xf32>
    %230 = arith.mulf %229, %228 : vector<18x128xf32>
    %cst_207 = arith.constant 4.471500e-02 : f32
    %231 = vector.broadcast %cst_207 : f32 to vector<18x128xf32>
    %232 = arith.mulf %231, %228 : vector<18x128xf32>
    %233 = arith.mulf %232, %228 : vector<18x128xf32>
    %234 = arith.mulf %233, %228 : vector<18x128xf32>
    %235 = arith.addf %228, %234 : vector<18x128xf32>
    %cst_208 = arith.constant 0.797884583 : f32
    %236 = vector.broadcast %cst_208 : f32 to vector<18x128xf32>
    %237 = arith.mulf %236, %235 : vector<18x128xf32>
    %238 = math.tanh %237 : vector<18x128xf32>
    %cst_209 = arith.constant 1.000000e+00 : f32
    %239 = vector.broadcast %cst_209 : f32 to vector<18x128xf32>
    %240 = arith.addf %239, %238 : vector<18x128xf32>
    %241 = arith.mulf %230, %240 : vector<18x128xf32>
    %c0_210 = arith.constant 0 : index
    %c0_211 = arith.constant 0 : index
    %c0_212 = arith.constant 0 : index
    %242 = vector.load %arg14[%c0_210, %c0_211, %c0_212] : memref<2x128x32xf32, #tpu.memory_space<vmem>>, vector<1x128x32xf32>
    %243 = vector.shape_cast %242 : vector<1x128x32xf32> to vector<128x32xf32>
    %cst_213 = arith.constant dense<0.000000e+00> : vector<18x32xf32>
    %244 = tpu.matmul %241, %243, %cst_213 {dimension_numbers = #tpu.dot_dimension_numbers<[1], [0], [0], [1], [0, 0, 1, 1], [], []>} : vector<18x128xf32>, vector<128x32xf32>, vector<18x32xf32> -> vector<18x32xf32>
    %c0_214 = arith.constant 0 : index
    %c0_215 = arith.constant 0 : index
    %c0_216 = arith.constant 0 : index
    %245 = vector.load %arg15[%c0_214, %c0_215, %c0_216] : memref<2x1x32xf32, #tpu.memory_space<vmem>>, vector<1x1x32xf32>
    %246 = vector.shape_cast %245 : vector<1x1x32xf32> to vector<1x32xf32>
    %247 = vector.broadcast %246 : vector<1x32xf32> to vector<18x32xf32>
    %248 = arith.addf %244, %247 : vector<18x32xf32>
    %249 = arith.addf %195, %248 : vector<18x32xf32>
    %c1_217 = arith.constant 1 : index
    %c0_218 = arith.constant 0 : index
    %c0_219 = arith.constant 0 : index
    %250 = vector.load %arg4[%c1_217, %c0_218, %c0_219] : memref<2x1x32xf32, #tpu.memory_space<vmem>>, vector<1x1x32xf32>
    %251 = vector.shape_cast %250 : vector<1x1x32xf32> to vector<1x32xf32>
    %c1_220 = arith.constant 1 : index
    %c0_221 = arith.constant 0 : index
    %c0_222 = arith.constant 0 : index
    %252 = vector.load %arg5[%c1_220, %c0_221, %c0_222] : memref<2x1x32xf32, #tpu.memory_space<vmem>>, vector<1x1x32xf32>
    %253 = vector.shape_cast %252 : vector<1x1x32xf32> to vector<1x32xf32>
    %cst_223 = arith.constant dense<0.000000e+00> : vector<18xf32>
    %254 = vector.multi_reduction <add>, %249, %cst_223 [1] : vector<18x32xf32> to vector<18xf32>
    %255 = vector.shape_cast %254 : vector<18xf32> to vector<18x1xf32>
    %cst_224 = arith.constant 3.200000e+01 : f32
    %256 = vector.broadcast %cst_224 : f32 to vector<18x1xf32>
    %257 = arith.divf %255, %256 : vector<18x1xf32>
    %258 = vector.broadcast %257 : vector<18x1xf32> to vector<18x32xf32>
    %259 = arith.subf %249, %258 : vector<18x32xf32>
    %260 = arith.mulf %259, %259 : vector<18x32xf32>
    %cst_225 = arith.constant dense<0.000000e+00> : vector<18xf32>
    %261 = vector.multi_reduction <add>, %260, %cst_225 [1] : vector<18x32xf32> to vector<18xf32>
    %262 = vector.shape_cast %261 : vector<18xf32> to vector<18x1xf32>
    %cst_226 = arith.constant 3.200000e+01 : f32
    %263 = vector.broadcast %cst_226 : f32 to vector<18x1xf32>
    %264 = arith.divf %262, %263 : vector<18x1xf32>
    %265 = vector.broadcast %257 : vector<18x1xf32> to vector<18x32xf32>
    %266 = arith.subf %249, %265 : vector<18x32xf32>
    %cst_227 = arith.constant 9.99999974E-6 : f32
    %267 = vector.broadcast %cst_227 : f32 to vector<18x1xf32>
    %268 = arith.addf %264, %267 : vector<18x1xf32>
    %269 = math.rsqrt %268 : vector<18x1xf32>
    %270 = vector.broadcast %269 : vector<18x1xf32> to vector<18x32xf32>
    %271 = arith.mulf %266, %270 : vector<18x32xf32>
    %272 = vector.broadcast %251 : vector<1x32xf32> to vector<18x32xf32>
    %273 = arith.mulf %271, %272 : vector<18x32xf32>
    %274 = vector.broadcast %253 : vector<1x32xf32> to vector<18x32xf32>
    %275 = arith.addf %273, %274 : vector<18x32xf32>
    %cst_228 = arith.constant 0.000000e+00 : f32
    %276 = vector.broadcast %cst_228 : f32 to vector<18x32xf32>
    %c1_229 = arith.constant 1 : index
    %c0_230 = arith.constant 0 : index
    %c0_231 = arith.constant 0 : index
    %c0_232 = arith.constant 0 : index
    %c0_233 = arith.constant 0 : index
    %277 = vector.load %arg6[%c1_229, %c0_230, %c0_231, %c0_232, %c0_233] : memref<2x3x4x32x8xf32, #tpu.memory_space<vmem>>, vector<1x1x1x32x8xf32>
    %278 = vector.shape_cast %277 : vector<1x1x1x32x8xf32> to vector<32x8xf32>
    %cst_234 = arith.constant dense<0.000000e+00> : vector<18x8xf32>
    %279 = tpu.matmul %275, %278, %cst_234 {dimension_numbers = #tpu.dot_dimension_numbers<[1], [0], [0], [1], [0, 0, 1, 1], [], []>} : vector<18x32xf32>, vector<32x8xf32>, vector<18x8xf32> -> vector<18x8xf32>
    %c1_235 = arith.constant 1 : index
    %c0_236 = arith.constant 0 : index
    %c0_237 = arith.constant 0 : index
    %c0_238 = arith.constant 0 : index
    %c0_239 = arith.constant 0 : index
    %280 = vector.load %arg7[%c1_235, %c0_236, %c0_237, %c0_238, %c0_239] : memref<2x3x4x1x8xf32, #tpu.memory_space<vmem>>, vector<1x1x1x1x8xf32>
    %281 = vector.shape_cast %280 : vector<1x1x1x1x8xf32> to vector<1x8xf32>
    %282 = vector.broadcast %281 : vector<1x8xf32> to vector<18x8xf32>
    %283 = arith.addf %279, %282 : vector<18x8xf32>
    %c1_240 = arith.constant 1 : index
    %c1_241 = arith.constant 1 : index
    %c0_242 = arith.constant 0 : index
    %c0_243 = arith.constant 0 : index
    %c0_244 = arith.constant 0 : index
    %284 = vector.load %arg6[%c1_240, %c1_241, %c0_242, %c0_243, %c0_244] : memref<2x3x4x32x8xf32, #tpu.memory_space<vmem>>, vector<1x1x1x32x8xf32>
    %285 = vector.shape_cast %284 : vector<1x1x1x32x8xf32> to vector<32x8xf32>
    %cst_245 = arith.constant dense<0.000000e+00> : vector<18x8xf32>
    %286 = tpu.matmul %275, %285, %cst_245 {dimension_numbers = #tpu.dot_dimension_numbers<[1], [0], [0], [1], [0, 0, 1, 1], [], []>} : vector<18x32xf32>, vector<32x8xf32>, vector<18x8xf32> -> vector<18x8xf32>
    %c1_246 = arith.constant 1 : index
    %c1_247 = arith.constant 1 : index
    %c0_248 = arith.constant 0 : index
    %c0_249 = arith.constant 0 : index
    %c0_250 = arith.constant 0 : index
    %287 = vector.load %arg7[%c1_246, %c1_247, %c0_248, %c0_249, %c0_250] : memref<2x3x4x1x8xf32, #tpu.memory_space<vmem>>, vector<1x1x1x1x8xf32>
    %288 = vector.shape_cast %287 : vector<1x1x1x1x8xf32> to vector<1x8xf32>
    %289 = vector.broadcast %288 : vector<1x8xf32> to vector<18x8xf32>
    %290 = arith.addf %286, %289 : vector<18x8xf32>
    %c1_251 = arith.constant 1 : index
    %c2_252 = arith.constant 2 : index
    %c0_253 = arith.constant 0 : index
    %c0_254 = arith.constant 0 : index
    %c0_255 = arith.constant 0 : index
    %291 = vector.load %arg6[%c1_251, %c2_252, %c0_253, %c0_254, %c0_255] : memref<2x3x4x32x8xf32, #tpu.memory_space<vmem>>, vector<1x1x1x32x8xf32>
    %292 = vector.shape_cast %291 : vector<1x1x1x32x8xf32> to vector<32x8xf32>
    %cst_256 = arith.constant dense<0.000000e+00> : vector<18x8xf32>
    %293 = tpu.matmul %275, %292, %cst_256 {dimension_numbers = #tpu.dot_dimension_numbers<[1], [0], [0], [1], [0, 0, 1, 1], [], []>} : vector<18x32xf32>, vector<32x8xf32>, vector<18x8xf32> -> vector<18x8xf32>
    %c1_257 = arith.constant 1 : index
    %c2_258 = arith.constant 2 : index
    %c0_259 = arith.constant 0 : index
    %c0_260 = arith.constant 0 : index
    %c0_261 = arith.constant 0 : index
    %294 = vector.load %arg7[%c1_257, %c2_258, %c0_259, %c0_260, %c0_261] : memref<2x3x4x1x8xf32, #tpu.memory_space<vmem>>, vector<1x1x1x1x8xf32>
    %295 = vector.shape_cast %294 : vector<1x1x1x1x8xf32> to vector<1x8xf32>
    %296 = vector.broadcast %295 : vector<1x8xf32> to vector<18x8xf32>
    %297 = arith.addf %293, %296 : vector<18x8xf32>
    %298 = tpu.transpose %290, [1, 0] : vector<18x8xf32> -> vector<8x18xf32>
    %cst_262 = arith.constant dense<0.000000e+00> : vector<18x18xf32>
    %299 = tpu.matmul %283, %298, %cst_262 {dimension_numbers = #tpu.dot_dimension_numbers<[1], [0], [0], [1], [0, 0, 1, 1], [], []>} : vector<18x8xf32>, vector<8x18xf32>, vector<18x18xf32> -> vector<18x18xf32>
    %300 = arith.addf %299, %7 : vector<18x18xf32>
    %cst_263 = arith.constant dense<0xFF800000> : vector<18xf32>
    %301 = vector.multi_reduction <maximumf>, %300, %cst_263 [1] : vector<18x18xf32> to vector<18xf32>
    %302 = vector.shape_cast %301 : vector<18xf32> to vector<18x1xf32>
    %303 = vector.broadcast %302 : vector<18x1xf32> to vector<18x18xf32>
    %304 = arith.subf %300, %303 : vector<18x18xf32>
    %305 = math.exp %304 : vector<18x18xf32>
    %cst_264 = arith.constant dense<0.000000e+00> : vector<18xf32>
    %306 = vector.multi_reduction <add>, %305, %cst_264 [1] : vector<18x18xf32> to vector<18xf32>
    %307 = vector.shape_cast %306 : vector<18xf32> to vector<18x1xf32>
    %308 = tpu.reciprocal %307 {approx = true} : vector<18x1xf32> -> vector<18x1xf32>
    %309 = vector.broadcast %308 : vector<18x1xf32> to vector<18x18xf32>
    %310 = arith.mulf %305, %309 : vector<18x18xf32>
    %cst_265 = arith.constant dense<0.000000e+00> : vector<18x8xf32>
    %311 = tpu.matmul %310, %297, %cst_265 {dimension_numbers = #tpu.dot_dimension_numbers<[1], [0], [0], [1], [0, 0, 1, 1], [], []>} : vector<18x18xf32>, vector<18x8xf32>, vector<18x8xf32> -> vector<18x8xf32>
    %c1_266 = arith.constant 1 : index
    %c0_267 = arith.constant 0 : index
    %c0_268 = arith.constant 0 : index
    %c0_269 = arith.constant 0 : index
    %312 = vector.load %arg8[%c1_266, %c0_267, %c0_268, %c0_269] : memref<2x4x8x32xf32, #tpu.memory_space<vmem>>, vector<1x1x8x32xf32>
    %313 = vector.shape_cast %312 : vector<1x1x8x32xf32> to vector<8x32xf32>
    %cst_270 = arith.constant dense<0.000000e+00> : vector<18x32xf32>
    %314 = tpu.matmul %311, %313, %cst_270 {dimension_numbers = #tpu.dot_dimension_numbers<[1], [0], [0], [1], [0, 0, 1, 1], [], []>} : vector<18x8xf32>, vector<8x32xf32>, vector<18x32xf32> -> vector<18x32xf32>
    %315 = arith.addf %276, %314 : vector<18x32xf32>
    %c1_271 = arith.constant 1 : index
    %c0_272 = arith.constant 0 : index
    %c1_273 = arith.constant 1 : index
    %c0_274 = arith.constant 0 : index
    %c0_275 = arith.constant 0 : index
    %316 = vector.load %arg6[%c1_271, %c0_272, %c1_273, %c0_274, %c0_275] : memref<2x3x4x32x8xf32, #tpu.memory_space<vmem>>, vector<1x1x1x32x8xf32>
    %317 = vector.shape_cast %316 : vector<1x1x1x32x8xf32> to vector<32x8xf32>
    %cst_276 = arith.constant dense<0.000000e+00> : vector<18x8xf32>
    %318 = tpu.matmul %275, %317, %cst_276 {dimension_numbers = #tpu.dot_dimension_numbers<[1], [0], [0], [1], [0, 0, 1, 1], [], []>} : vector<18x32xf32>, vector<32x8xf32>, vector<18x8xf32> -> vector<18x8xf32>
    %c1_277 = arith.constant 1 : index
    %c0_278 = arith.constant 0 : index
    %c1_279 = arith.constant 1 : index
    %c0_280 = arith.constant 0 : index
    %c0_281 = arith.constant 0 : index
    %319 = vector.load %arg7[%c1_277, %c0_278, %c1_279, %c0_280, %c0_281] : memref<2x3x4x1x8xf32, #tpu.memory_space<vmem>>, vector<1x1x1x1x8xf32>
    %320 = vector.shape_cast %319 : vector<1x1x1x1x8xf32> to vector<1x8xf32>
    %321 = vector.broadcast %320 : vector<1x8xf32> to vector<18x8xf32>
    %322 = arith.addf %318, %321 : vector<18x8xf32>
    %c1_282 = arith.constant 1 : index
    %c1_283 = arith.constant 1 : index
    %c1_284 = arith.constant 1 : index
    %c0_285 = arith.constant 0 : index
    %c0_286 = arith.constant 0 : index
    %323 = vector.load %arg6[%c1_282, %c1_283, %c1_284, %c0_285, %c0_286] : memref<2x3x4x32x8xf32, #tpu.memory_space<vmem>>, vector<1x1x1x32x8xf32>
    %324 = vector.shape_cast %323 : vector<1x1x1x32x8xf32> to vector<32x8xf32>
    %cst_287 = arith.constant dense<0.000000e+00> : vector<18x8xf32>
    %325 = tpu.matmul %275, %324, %cst_287 {dimension_numbers = #tpu.dot_dimension_numbers<[1], [0], [0], [1], [0, 0, 1, 1], [], []>} : vector<18x32xf32>, vector<32x8xf32>, vector<18x8xf32> -> vector<18x8xf32>
    %c1_288 = arith.constant 1 : index
    %c1_289 = arith.constant 1 : index
    %c1_290 = arith.constant 1 : index
    %c0_291 = arith.constant 0 : index
    %c0_292 = arith.constant 0 : index
    %326 = vector.load %arg7[%c1_288, %c1_289, %c1_290, %c0_291, %c0_292] : memref<2x3x4x1x8xf32, #tpu.memory_space<vmem>>, vector<1x1x1x1x8xf32>
    %327 = vector.shape_cast %326 : vector<1x1x1x1x8xf32> to vector<1x8xf32>
    %328 = vector.broadcast %327 : vector<1x8xf32> to vector<18x8xf32>
    %329 = arith.addf %325, %328 : vector<18x8xf32>
    %c1_293 = arith.constant 1 : index
    %c2_294 = arith.constant 2 : index
    %c1_295 = arith.constant 1 : index
    %c0_296 = arith.constant 0 : index
    %c0_297 = arith.constant 0 : index
    %330 = vector.load %arg6[%c1_293, %c2_294, %c1_295, %c0_296, %c0_297] : memref<2x3x4x32x8xf32, #tpu.memory_space<vmem>>, vector<1x1x1x32x8xf32>
    %331 = vector.shape_cast %330 : vector<1x1x1x32x8xf32> to vector<32x8xf32>
    %cst_298 = arith.constant dense<0.000000e+00> : vector<18x8xf32>
    %332 = tpu.matmul %275, %331, %cst_298 {dimension_numbers = #tpu.dot_dimension_numbers<[1], [0], [0], [1], [0, 0, 1, 1], [], []>} : vector<18x32xf32>, vector<32x8xf32>, vector<18x8xf32> -> vector<18x8xf32>
    %c1_299 = arith.constant 1 : index
    %c2_300 = arith.constant 2 : index
    %c1_301 = arith.constant 1 : index
    %c0_302 = arith.constant 0 : index
    %c0_303 = arith.constant 0 : index
    %333 = vector.load %arg7[%c1_299, %c2_300, %c1_301, %c0_302, %c0_303] : memref<2x3x4x1x8xf32, #tpu.memory_space<vmem>>, vector<1x1x1x1x8xf32>
    %334 = vector.shape_cast %333 : vector<1x1x1x1x8xf32> to vector<1x8xf32>
    %335 = vector.broadcast %334 : vector<1x8xf32> to vector<18x8xf32>
    %336 = arith.addf %332, %335 : vector<18x8xf32>
    %337 = tpu.transpose %329, [1, 0] : vector<18x8xf32> -> vector<8x18xf32>
    %cst_304 = arith.constant dense<0.000000e+00> : vector<18x18xf32>
    %338 = tpu.matmul %322, %337, %cst_304 {dimension_numbers = #tpu.dot_dimension_numbers<[1], [0], [0], [1], [0, 0, 1, 1], [], []>} : vector<18x8xf32>, vector<8x18xf32>, vector<18x18xf32> -> vector<18x18xf32>
    %339 = arith.addf %338, %7 : vector<18x18xf32>
    %cst_305 = arith.constant dense<0xFF800000> : vector<18xf32>
    %340 = vector.multi_reduction <maximumf>, %339, %cst_305 [1] : vector<18x18xf32> to vector<18xf32>
    %341 = vector.shape_cast %340 : vector<18xf32> to vector<18x1xf32>
    %342 = vector.broadcast %341 : vector<18x1xf32> to vector<18x18xf32>
    %343 = arith.subf %339, %342 : vector<18x18xf32>
    %344 = math.exp %343 : vector<18x18xf32>
    %cst_306 = arith.constant dense<0.000000e+00> : vector<18xf32>
    %345 = vector.multi_reduction <add>, %344, %cst_306 [1] : vector<18x18xf32> to vector<18xf32>
    %346 = vector.shape_cast %345 : vector<18xf32> to vector<18x1xf32>
    %347 = tpu.reciprocal %346 {approx = true} : vector<18x1xf32> -> vector<18x1xf32>
    %348 = vector.broadcast %347 : vector<18x1xf32> to vector<18x18xf32>
    %349 = arith.mulf %344, %348 : vector<18x18xf32>
    %cst_307 = arith.constant dense<0.000000e+00> : vector<18x8xf32>
    %350 = tpu.matmul %349, %336, %cst_307 {dimension_numbers = #tpu.dot_dimension_numbers<[1], [0], [0], [1], [0, 0, 1, 1], [], []>} : vector<18x18xf32>, vector<18x8xf32>, vector<18x8xf32> -> vector<18x8xf32>
    %c1_308 = arith.constant 1 : index
    %c1_309 = arith.constant 1 : index
    %c0_310 = arith.constant 0 : index
    %c0_311 = arith.constant 0 : index
    %351 = vector.load %arg8[%c1_308, %c1_309, %c0_310, %c0_311] : memref<2x4x8x32xf32, #tpu.memory_space<vmem>>, vector<1x1x8x32xf32>
    %352 = vector.shape_cast %351 : vector<1x1x8x32xf32> to vector<8x32xf32>
    %cst_312 = arith.constant dense<0.000000e+00> : vector<18x32xf32>
    %353 = tpu.matmul %350, %352, %cst_312 {dimension_numbers = #tpu.dot_dimension_numbers<[1], [0], [0], [1], [0, 0, 1, 1], [], []>} : vector<18x8xf32>, vector<8x32xf32>, vector<18x32xf32> -> vector<18x32xf32>
    %354 = arith.addf %315, %353 : vector<18x32xf32>
    %c1_313 = arith.constant 1 : index
    %c0_314 = arith.constant 0 : index
    %c2_315 = arith.constant 2 : index
    %c0_316 = arith.constant 0 : index
    %c0_317 = arith.constant 0 : index
    %355 = vector.load %arg6[%c1_313, %c0_314, %c2_315, %c0_316, %c0_317] : memref<2x3x4x32x8xf32, #tpu.memory_space<vmem>>, vector<1x1x1x32x8xf32>
    %356 = vector.shape_cast %355 : vector<1x1x1x32x8xf32> to vector<32x8xf32>
    %cst_318 = arith.constant dense<0.000000e+00> : vector<18x8xf32>
    %357 = tpu.matmul %275, %356, %cst_318 {dimension_numbers = #tpu.dot_dimension_numbers<[1], [0], [0], [1], [0, 0, 1, 1], [], []>} : vector<18x32xf32>, vector<32x8xf32>, vector<18x8xf32> -> vector<18x8xf32>
    %c1_319 = arith.constant 1 : index
    %c0_320 = arith.constant 0 : index
    %c2_321 = arith.constant 2 : index
    %c0_322 = arith.constant 0 : index
    %c0_323 = arith.constant 0 : index
    %358 = vector.load %arg7[%c1_319, %c0_320, %c2_321, %c0_322, %c0_323] : memref<2x3x4x1x8xf32, #tpu.memory_space<vmem>>, vector<1x1x1x1x8xf32>
    %359 = vector.shape_cast %358 : vector<1x1x1x1x8xf32> to vector<1x8xf32>
    %360 = vector.broadcast %359 : vector<1x8xf32> to vector<18x8xf32>
    %361 = arith.addf %357, %360 : vector<18x8xf32>
    %c1_324 = arith.constant 1 : index
    %c1_325 = arith.constant 1 : index
    %c2_326 = arith.constant 2 : index
    %c0_327 = arith.constant 0 : index
    %c0_328 = arith.constant 0 : index
    %362 = vector.load %arg6[%c1_324, %c1_325, %c2_326, %c0_327, %c0_328] : memref<2x3x4x32x8xf32, #tpu.memory_space<vmem>>, vector<1x1x1x32x8xf32>
    %363 = vector.shape_cast %362 : vector<1x1x1x32x8xf32> to vector<32x8xf32>
    %cst_329 = arith.constant dense<0.000000e+00> : vector<18x8xf32>
    %364 = tpu.matmul %275, %363, %cst_329 {dimension_numbers = #tpu.dot_dimension_numbers<[1], [0], [0], [1], [0, 0, 1, 1], [], []>} : vector<18x32xf32>, vector<32x8xf32>, vector<18x8xf32> -> vector<18x8xf32>
    %c1_330 = arith.constant 1 : index
    %c1_331 = arith.constant 1 : index
    %c2_332 = arith.constant 2 : index
    %c0_333 = arith.constant 0 : index
    %c0_334 = arith.constant 0 : index
    %365 = vector.load %arg7[%c1_330, %c1_331, %c2_332, %c0_333, %c0_334] : memref<2x3x4x1x8xf32, #tpu.memory_space<vmem>>, vector<1x1x1x1x8xf32>
    %366 = vector.shape_cast %365 : vector<1x1x1x1x8xf32> to vector<1x8xf32>
    %367 = vector.broadcast %366 : vector<1x8xf32> to vector<18x8xf32>
    %368 = arith.addf %364, %367 : vector<18x8xf32>
    %c1_335 = arith.constant 1 : index
    %c2_336 = arith.constant 2 : index
    %c2_337 = arith.constant 2 : index
    %c0_338 = arith.constant 0 : index
    %c0_339 = arith.constant 0 : index
    %369 = vector.load %arg6[%c1_335, %c2_336, %c2_337, %c0_338, %c0_339] : memref<2x3x4x32x8xf32, #tpu.memory_space<vmem>>, vector<1x1x1x32x8xf32>
    %370 = vector.shape_cast %369 : vector<1x1x1x32x8xf32> to vector<32x8xf32>
    %cst_340 = arith.constant dense<0.000000e+00> : vector<18x8xf32>
    %371 = tpu.matmul %275, %370, %cst_340 {dimension_numbers = #tpu.dot_dimension_numbers<[1], [0], [0], [1], [0, 0, 1, 1], [], []>} : vector<18x32xf32>, vector<32x8xf32>, vector<18x8xf32> -> vector<18x8xf32>
    %c1_341 = arith.constant 1 : index
    %c2_342 = arith.constant 2 : index
    %c2_343 = arith.constant 2 : index
    %c0_344 = arith.constant 0 : index
    %c0_345 = arith.constant 0 : index
    %372 = vector.load %arg7[%c1_341, %c2_342, %c2_343, %c0_344, %c0_345] : memref<2x3x4x1x8xf32, #tpu.memory_space<vmem>>, vector<1x1x1x1x8xf32>
    %373 = vector.shape_cast %372 : vector<1x1x1x1x8xf32> to vector<1x8xf32>
    %374 = vector.broadcast %373 : vector<1x8xf32> to vector<18x8xf32>
    %375 = arith.addf %371, %374 : vector<18x8xf32>
    %376 = tpu.transpose %368, [1, 0] : vector<18x8xf32> -> vector<8x18xf32>
    %cst_346 = arith.constant dense<0.000000e+00> : vector<18x18xf32>
    %377 = tpu.matmul %361, %376, %cst_346 {dimension_numbers = #tpu.dot_dimension_numbers<[1], [0], [0], [1], [0, 0, 1, 1], [], []>} : vector<18x8xf32>, vector<8x18xf32>, vector<18x18xf32> -> vector<18x18xf32>
    %378 = arith.addf %377, %7 : vector<18x18xf32>
    %cst_347 = arith.constant dense<0xFF800000> : vector<18xf32>
    %379 = vector.multi_reduction <maximumf>, %378, %cst_347 [1] : vector<18x18xf32> to vector<18xf32>
    %380 = vector.shape_cast %379 : vector<18xf32> to vector<18x1xf32>
    %381 = vector.broadcast %380 : vector<18x1xf32> to vector<18x18xf32>
    %382 = arith.subf %378, %381 : vector<18x18xf32>
    %383 = math.exp %382 : vector<18x18xf32>
    %cst_348 = arith.constant dense<0.000000e+00> : vector<18xf32>
    %384 = vector.multi_reduction <add>, %383, %cst_348 [1] : vector<18x18xf32> to vector<18xf32>
    %385 = vector.shape_cast %384 : vector<18xf32> to vector<18x1xf32>
    %386 = tpu.reciprocal %385 {approx = true} : vector<18x1xf32> -> vector<18x1xf32>
    %387 = vector.broadcast %386 : vector<18x1xf32> to vector<18x18xf32>
    %388 = arith.mulf %383, %387 : vector<18x18xf32>
    %cst_349 = arith.constant dense<0.000000e+00> : vector<18x8xf32>
    %389 = tpu.matmul %388, %375, %cst_349 {dimension_numbers = #tpu.dot_dimension_numbers<[1], [0], [0], [1], [0, 0, 1, 1], [], []>} : vector<18x18xf32>, vector<18x8xf32>, vector<18x8xf32> -> vector<18x8xf32>
    %c1_350 = arith.constant 1 : index
    %c2_351 = arith.constant 2 : index
    %c0_352 = arith.constant 0 : index
    %c0_353 = arith.constant 0 : index
    %390 = vector.load %arg8[%c1_350, %c2_351, %c0_352, %c0_353] : memref<2x4x8x32xf32, #tpu.memory_space<vmem>>, vector<1x1x8x32xf32>
    %391 = vector.shape_cast %390 : vector<1x1x8x32xf32> to vector<8x32xf32>
    %cst_354 = arith.constant dense<0.000000e+00> : vector<18x32xf32>
    %392 = tpu.matmul %389, %391, %cst_354 {dimension_numbers = #tpu.dot_dimension_numbers<[1], [0], [0], [1], [0, 0, 1, 1], [], []>} : vector<18x8xf32>, vector<8x32xf32>, vector<18x32xf32> -> vector<18x32xf32>
    %393 = arith.addf %354, %392 : vector<18x32xf32>
    %c1_355 = arith.constant 1 : index
    %c0_356 = arith.constant 0 : index
    %c3_357 = arith.constant 3 : index
    %c0_358 = arith.constant 0 : index
    %c0_359 = arith.constant 0 : index
    %394 = vector.load %arg6[%c1_355, %c0_356, %c3_357, %c0_358, %c0_359] : memref<2x3x4x32x8xf32, #tpu.memory_space<vmem>>, vector<1x1x1x32x8xf32>
    %395 = vector.shape_cast %394 : vector<1x1x1x32x8xf32> to vector<32x8xf32>
    %cst_360 = arith.constant dense<0.000000e+00> : vector<18x8xf32>
    %396 = tpu.matmul %275, %395, %cst_360 {dimension_numbers = #tpu.dot_dimension_numbers<[1], [0], [0], [1], [0, 0, 1, 1], [], []>} : vector<18x32xf32>, vector<32x8xf32>, vector<18x8xf32> -> vector<18x8xf32>
    %c1_361 = arith.constant 1 : index
    %c0_362 = arith.constant 0 : index
    %c3_363 = arith.constant 3 : index
    %c0_364 = arith.constant 0 : index
    %c0_365 = arith.constant 0 : index
    %397 = vector.load %arg7[%c1_361, %c0_362, %c3_363, %c0_364, %c0_365] : memref<2x3x4x1x8xf32, #tpu.memory_space<vmem>>, vector<1x1x1x1x8xf32>
    %398 = vector.shape_cast %397 : vector<1x1x1x1x8xf32> to vector<1x8xf32>
    %399 = vector.broadcast %398 : vector<1x8xf32> to vector<18x8xf32>
    %400 = arith.addf %396, %399 : vector<18x8xf32>
    %c1_366 = arith.constant 1 : index
    %c1_367 = arith.constant 1 : index
    %c3_368 = arith.constant 3 : index
    %c0_369 = arith.constant 0 : index
    %c0_370 = arith.constant 0 : index
    %401 = vector.load %arg6[%c1_366, %c1_367, %c3_368, %c0_369, %c0_370] : memref<2x3x4x32x8xf32, #tpu.memory_space<vmem>>, vector<1x1x1x32x8xf32>
    %402 = vector.shape_cast %401 : vector<1x1x1x32x8xf32> to vector<32x8xf32>
    %cst_371 = arith.constant dense<0.000000e+00> : vector<18x8xf32>
    %403 = tpu.matmul %275, %402, %cst_371 {dimension_numbers = #tpu.dot_dimension_numbers<[1], [0], [0], [1], [0, 0, 1, 1], [], []>} : vector<18x32xf32>, vector<32x8xf32>, vector<18x8xf32> -> vector<18x8xf32>
    %c1_372 = arith.constant 1 : index
    %c1_373 = arith.constant 1 : index
    %c3_374 = arith.constant 3 : index
    %c0_375 = arith.constant 0 : index
    %c0_376 = arith.constant 0 : index
    %404 = vector.load %arg7[%c1_372, %c1_373, %c3_374, %c0_375, %c0_376] : memref<2x3x4x1x8xf32, #tpu.memory_space<vmem>>, vector<1x1x1x1x8xf32>
    %405 = vector.shape_cast %404 : vector<1x1x1x1x8xf32> to vector<1x8xf32>
    %406 = vector.broadcast %405 : vector<1x8xf32> to vector<18x8xf32>
    %407 = arith.addf %403, %406 : vector<18x8xf32>
    %c1_377 = arith.constant 1 : index
    %c2_378 = arith.constant 2 : index
    %c3_379 = arith.constant 3 : index
    %c0_380 = arith.constant 0 : index
    %c0_381 = arith.constant 0 : index
    %408 = vector.load %arg6[%c1_377, %c2_378, %c3_379, %c0_380, %c0_381] : memref<2x3x4x32x8xf32, #tpu.memory_space<vmem>>, vector<1x1x1x32x8xf32>
    %409 = vector.shape_cast %408 : vector<1x1x1x32x8xf32> to vector<32x8xf32>
    %cst_382 = arith.constant dense<0.000000e+00> : vector<18x8xf32>
    %410 = tpu.matmul %275, %409, %cst_382 {dimension_numbers = #tpu.dot_dimension_numbers<[1], [0], [0], [1], [0, 0, 1, 1], [], []>} : vector<18x32xf32>, vector<32x8xf32>, vector<18x8xf32> -> vector<18x8xf32>
    %c1_383 = arith.constant 1 : index
    %c2_384 = arith.constant 2 : index
    %c3_385 = arith.constant 3 : index
    %c0_386 = arith.constant 0 : index
    %c0_387 = arith.constant 0 : index
    %411 = vector.load %arg7[%c1_383, %c2_384, %c3_385, %c0_386, %c0_387] : memref<2x3x4x1x8xf32, #tpu.memory_space<vmem>>, vector<1x1x1x1x8xf32>
    %412 = vector.shape_cast %411 : vector<1x1x1x1x8xf32> to vector<1x8xf32>
    %413 = vector.broadcast %412 : vector<1x8xf32> to vector<18x8xf32>
    %414 = arith.addf %410, %413 : vector<18x8xf32>
    %415 = tpu.transpose %407, [1, 0] : vector<18x8xf32> -> vector<8x18xf32>
    %cst_388 = arith.constant dense<0.000000e+00> : vector<18x18xf32>
    %416 = tpu.matmul %400, %415, %cst_388 {dimension_numbers = #tpu.dot_dimension_numbers<[1], [0], [0], [1], [0, 0, 1, 1], [], []>} : vector<18x8xf32>, vector<8x18xf32>, vector<18x18xf32> -> vector<18x18xf32>
    %417 = arith.addf %416, %7 : vector<18x18xf32>
    %cst_389 = arith.constant dense<0xFF800000> : vector<18xf32>
    %418 = vector.multi_reduction <maximumf>, %417, %cst_389 [1] : vector<18x18xf32> to vector<18xf32>
    %419 = vector.shape_cast %418 : vector<18xf32> to vector<18x1xf32>
    %420 = vector.broadcast %419 : vector<18x1xf32> to vector<18x18xf32>
    %421 = arith.subf %417, %420 : vector<18x18xf32>
    %422 = math.exp %421 : vector<18x18xf32>
    %cst_390 = arith.constant dense<0.000000e+00> : vector<18xf32>
    %423 = vector.multi_reduction <add>, %422, %cst_390 [1] : vector<18x18xf32> to vector<18xf32>
    %424 = vector.shape_cast %423 : vector<18xf32> to vector<18x1xf32>
    %425 = tpu.reciprocal %424 {approx = true} : vector<18x1xf32> -> vector<18x1xf32>
    %426 = vector.broadcast %425 : vector<18x1xf32> to vector<18x18xf32>
    %427 = arith.mulf %422, %426 : vector<18x18xf32>
    %cst_391 = arith.constant dense<0.000000e+00> : vector<18x8xf32>
    %428 = tpu.matmul %427, %414, %cst_391 {dimension_numbers = #tpu.dot_dimension_numbers<[1], [0], [0], [1], [0, 0, 1, 1], [], []>} : vector<18x18xf32>, vector<18x8xf32>, vector<18x8xf32> -> vector<18x8xf32>
    %c1_392 = arith.constant 1 : index
    %c3_393 = arith.constant 3 : index
    %c0_394 = arith.constant 0 : index
    %c0_395 = arith.constant 0 : index
    %429 = vector.load %arg8[%c1_392, %c3_393, %c0_394, %c0_395] : memref<2x4x8x32xf32, #tpu.memory_space<vmem>>, vector<1x1x8x32xf32>
    %430 = vector.shape_cast %429 : vector<1x1x8x32xf32> to vector<8x32xf32>
    %cst_396 = arith.constant dense<0.000000e+00> : vector<18x32xf32>
    %431 = tpu.matmul %428, %430, %cst_396 {dimension_numbers = #tpu.dot_dimension_numbers<[1], [0], [0], [1], [0, 0, 1, 1], [], []>} : vector<18x8xf32>, vector<8x32xf32>, vector<18x32xf32> -> vector<18x32xf32>
    %432 = arith.addf %393, %431 : vector<18x32xf32>
    %433 = arith.addf %249, %432 : vector<18x32xf32>
    %c1_397 = arith.constant 1 : index
    %c0_398 = arith.constant 0 : index
    %c0_399 = arith.constant 0 : index
    %434 = vector.load %arg9[%c1_397, %c0_398, %c0_399] : memref<2x1x32xf32, #tpu.memory_space<vmem>>, vector<1x1x32xf32>
    %435 = vector.shape_cast %434 : vector<1x1x32xf32> to vector<1x32xf32>
    %436 = vector.broadcast %435 : vector<1x32xf32> to vector<18x32xf32>
    %437 = arith.addf %433, %436 : vector<18x32xf32>
    %c1_400 = arith.constant 1 : index
    %c0_401 = arith.constant 0 : index
    %c0_402 = arith.constant 0 : index
    %438 = vector.load %arg10[%c1_400, %c0_401, %c0_402] : memref<2x1x32xf32, #tpu.memory_space<vmem>>, vector<1x1x32xf32>
    %439 = vector.shape_cast %438 : vector<1x1x32xf32> to vector<1x32xf32>
    %c1_403 = arith.constant 1 : index
    %c0_404 = arith.constant 0 : index
    %c0_405 = arith.constant 0 : index
    %440 = vector.load %arg11[%c1_403, %c0_404, %c0_405] : memref<2x1x32xf32, #tpu.memory_space<vmem>>, vector<1x1x32xf32>
    %441 = vector.shape_cast %440 : vector<1x1x32xf32> to vector<1x32xf32>
    %cst_406 = arith.constant dense<0.000000e+00> : vector<18xf32>
    %442 = vector.multi_reduction <add>, %437, %cst_406 [1] : vector<18x32xf32> to vector<18xf32>
    %443 = vector.shape_cast %442 : vector<18xf32> to vector<18x1xf32>
    %cst_407 = arith.constant 3.200000e+01 : f32
    %444 = vector.broadcast %cst_407 : f32 to vector<18x1xf32>
    %445 = arith.divf %443, %444 : vector<18x1xf32>
    %446 = vector.broadcast %445 : vector<18x1xf32> to vector<18x32xf32>
    %447 = arith.subf %437, %446 : vector<18x32xf32>
    %448 = arith.mulf %447, %447 : vector<18x32xf32>
    %cst_408 = arith.constant dense<0.000000e+00> : vector<18xf32>
    %449 = vector.multi_reduction <add>, %448, %cst_408 [1] : vector<18x32xf32> to vector<18xf32>
    %450 = vector.shape_cast %449 : vector<18xf32> to vector<18x1xf32>
    %cst_409 = arith.constant 3.200000e+01 : f32
    %451 = vector.broadcast %cst_409 : f32 to vector<18x1xf32>
    %452 = arith.divf %450, %451 : vector<18x1xf32>
    %453 = vector.broadcast %445 : vector<18x1xf32> to vector<18x32xf32>
    %454 = arith.subf %437, %453 : vector<18x32xf32>
    %cst_410 = arith.constant 9.99999974E-6 : f32
    %455 = vector.broadcast %cst_410 : f32 to vector<18x1xf32>
    %456 = arith.addf %452, %455 : vector<18x1xf32>
    %457 = math.rsqrt %456 : vector<18x1xf32>
    %458 = vector.broadcast %457 : vector<18x1xf32> to vector<18x32xf32>
    %459 = arith.mulf %454, %458 : vector<18x32xf32>
    %460 = vector.broadcast %439 : vector<1x32xf32> to vector<18x32xf32>
    %461 = arith.mulf %459, %460 : vector<18x32xf32>
    %462 = vector.broadcast %441 : vector<1x32xf32> to vector<18x32xf32>
    %463 = arith.addf %461, %462 : vector<18x32xf32>
    %c1_411 = arith.constant 1 : index
    %c0_412 = arith.constant 0 : index
    %c0_413 = arith.constant 0 : index
    %464 = vector.load %arg12[%c1_411, %c0_412, %c0_413] : memref<2x32x128xf32, #tpu.memory_space<vmem>>, vector<1x32x128xf32>
    %465 = vector.shape_cast %464 : vector<1x32x128xf32> to vector<32x128xf32>
    %cst_414 = arith.constant dense<0.000000e+00> : vector<18x128xf32>
    %466 = tpu.matmul %463, %465, %cst_414 {dimension_numbers = #tpu.dot_dimension_numbers<[1], [0], [0], [1], [0, 0, 1, 1], [], []>} : vector<18x32xf32>, vector<32x128xf32>, vector<18x128xf32> -> vector<18x128xf32>
    %c1_415 = arith.constant 1 : index
    %c0_416 = arith.constant 0 : index
    %c0_417 = arith.constant 0 : index
    %467 = vector.load %arg13[%c1_415, %c0_416, %c0_417] : memref<2x1x128xf32, #tpu.memory_space<vmem>>, vector<1x1x128xf32>
    %468 = vector.shape_cast %467 : vector<1x1x128xf32> to vector<1x128xf32>
    %469 = vector.broadcast %468 : vector<1x128xf32> to vector<18x128xf32>
    %470 = arith.addf %466, %469 : vector<18x128xf32>
    %cst_418 = arith.constant 5.000000e-01 : f32
    %471 = vector.broadcast %cst_418 : f32 to vector<18x128xf32>
    %472 = arith.mulf %471, %470 : vector<18x128xf32>
    %cst_419 = arith.constant 4.471500e-02 : f32
    %473 = vector.broadcast %cst_419 : f32 to vector<18x128xf32>
    %474 = arith.mulf %473, %470 : vector<18x128xf32>
    %475 = arith.mulf %474, %470 : vector<18x128xf32>
    %476 = arith.mulf %475, %470 : vector<18x128xf32>
    %477 = arith.addf %470, %476 : vector<18x128xf32>
    %cst_420 = arith.constant 0.797884583 : f32
    %478 = vector.broadcast %cst_420 : f32 to vector<18x128xf32>
    %479 = arith.mulf %478, %477 : vector<18x128xf32>
    %480 = math.tanh %479 : vector<18x128xf32>
    %cst_421 = arith.constant 1.000000e+00 : f32
    %481 = vector.broadcast %cst_421 : f32 to vector<18x128xf32>
    %482 = arith.addf %481, %480 : vector<18x128xf32>
    %483 = arith.mulf %472, %482 : vector<18x128xf32>
    %c1_422 = arith.constant 1 : index
    %c0_423 = arith.constant 0 : index
    %c0_424 = arith.constant 0 : index
    %484 = vector.load %arg14[%c1_422, %c0_423, %c0_424] : memref<2x128x32xf32, #tpu.memory_space<vmem>>, vector<1x128x32xf32>
    %485 = vector.shape_cast %484 : vector<1x128x32xf32> to vector<128x32xf32>
    %cst_425 = arith.constant dense<0.000000e+00> : vector<18x32xf32>
    %486 = tpu.matmul %483, %485, %cst_425 {dimension_numbers = #tpu.dot_dimension_numbers<[1], [0], [0], [1], [0, 0, 1, 1], [], []>} : vector<18x128xf32>, vector<128x32xf32>, vector<18x32xf32> -> vector<18x32xf32>
    %c1_426 = arith.constant 1 : index
    %c0_427 = arith.constant 0 : index
    %c0_428 = arith.constant 0 : index
    %487 = vector.load %arg15[%c1_426, %c0_427, %c0_428] : memref<2x1x32xf32, #tpu.memory_space<vmem>>, vector<1x1x32xf32>
    %488 = vector.shape_cast %487 : vector<1x1x32xf32> to vector<1x32xf32>
    %489 = vector.broadcast %488 : vector<1x32xf32> to vector<18x32xf32>
    %490 = arith.addf %486, %489 : vector<18x32xf32>
    %491 = arith.addf %437, %490 : vector<18x32xf32>
    %492 = vector.extract_strided_slice %491 {offsets = [16, 0], sizes = [2, 32], strides = [1, 1]} : vector<18x32xf32> to vector<2x32xf32>
    %c0_429 = arith.constant 0 : index
    %c0_430 = arith.constant 0 : index
    %493 = vector.load %arg16[%c0_429, %c0_430] : memref<1x32xf32, #tpu.memory_space<vmem>>, vector<1x32xf32>
    %c0_431 = arith.constant 0 : index
    %c0_432 = arith.constant 0 : index
    %494 = vector.load %arg17[%c0_431, %c0_432] : memref<1x32xf32, #tpu.memory_space<vmem>>, vector<1x32xf32>
    %cst_433 = arith.constant dense<0.000000e+00> : vector<2xf32>
    %495 = vector.multi_reduction <add>, %492, %cst_433 [1] : vector<2x32xf32> to vector<2xf32>
    %496 = vector.shape_cast %495 : vector<2xf32> to vector<2x1xf32>
    %cst_434 = arith.constant 3.200000e+01 : f32
    %497 = vector.broadcast %cst_434 : f32 to vector<2x1xf32>
    %498 = arith.divf %496, %497 : vector<2x1xf32>
    %499 = vector.broadcast %498 : vector<2x1xf32> to vector<2x32xf32>
    %500 = arith.subf %492, %499 : vector<2x32xf32>
    %501 = arith.mulf %500, %500 : vector<2x32xf32>
    %cst_435 = arith.constant dense<0.000000e+00> : vector<2xf32>
    %502 = vector.multi_reduction <add>, %501, %cst_435 [1] : vector<2x32xf32> to vector<2xf32>
    %503 = vector.shape_cast %502 : vector<2xf32> to vector<2x1xf32>
    %cst_436 = arith.constant 3.200000e+01 : f32
    %504 = vector.broadcast %cst_436 : f32 to vector<2x1xf32>
    %505 = arith.divf %503, %504 : vector<2x1xf32>
    %506 = vector.broadcast %498 : vector<2x1xf32> to vector<2x32xf32>
    %507 = arith.subf %492, %506 : vector<2x32xf32>
    %cst_437 = arith.constant 9.99999974E-6 : f32
    %508 = vector.broadcast %cst_437 : f32 to vector<2x1xf32>
    %509 = arith.addf %505, %508 : vector<2x1xf32>
    %510 = math.rsqrt %509 : vector<2x1xf32>
    %511 = vector.broadcast %510 : vector<2x1xf32> to vector<2x32xf32>
    %512 = arith.mulf %507, %511 : vector<2x32xf32>
    %513 = vector.broadcast %493 : vector<1x32xf32> to vector<2x32xf32>
    %514 = arith.mulf %512, %513 : vector<2x32xf32>
    %515 = vector.broadcast %494 : vector<1x32xf32> to vector<2x32xf32>
    %516 = arith.addf %514, %515 : vector<2x32xf32>
    %c0_438 = arith.constant 0 : index
    %c0_439 = arith.constant 0 : index
    %517 = vector.load %arg18[%c0_438, %c0_439] : memref<32x16xf32, #tpu.memory_space<vmem>>, vector<32x16xf32>
    %cst_440 = arith.constant dense<0.000000e+00> : vector<2x16xf32>
    %518 = tpu.matmul %516, %517, %cst_440 {dimension_numbers = #tpu.dot_dimension_numbers<[1], [0], [0], [1], [0, 0, 1, 1], [], []>} : vector<2x32xf32>, vector<32x16xf32>, vector<2x16xf32> -> vector<2x16xf32>
    %c0_441 = arith.constant 0 : index
    %c0_442 = arith.constant 0 : index
    %519 = vector.load %arg19[%c0_441, %c0_442] : memref<1x16xf32, #tpu.memory_space<vmem>>, vector<1x16xf32>
    %520 = vector.broadcast %519 : vector<1x16xf32> to vector<2x16xf32>
    %521 = arith.addf %518, %520 : vector<2x16xf32>
    %522 = arith.mulf %521, %521 : vector<2x16xf32>
    %cst_443 = arith.constant dense<0.000000e+00> : vector<2xf32>
    %523 = vector.multi_reduction <add>, %522, %cst_443 [1] : vector<2x16xf32> to vector<2xf32>
    %524 = vector.shape_cast %523 : vector<2xf32> to vector<2x1xf32>
    %cst_444 = arith.constant 9.99999996E-13 : f32
    %525 = vector.broadcast %cst_444 : f32 to vector<2x1xf32>
    %526 = arith.addf %524, %525 : vector<2x1xf32>
    %527 = math.rsqrt %526 : vector<2x1xf32>
    %528 = vector.broadcast %527 : vector<2x1xf32> to vector<2x16xf32>
    %529 = arith.mulf %521, %528 : vector<2x16xf32>
    %c0_445 = arith.constant 0 : index
    %c0_446 = arith.constant 0 : index
    %530 = vector.load %arg20[%c0_445, %c0_446] : memref<16x128xf32, #tpu.memory_space<vmem>>, vector<16x128xf32>
    %cst_447 = arith.constant dense<0.000000e+00> : vector<2x128xf32>
    %531 = tpu.matmul %529, %530, %cst_447 {dimension_numbers = #tpu.dot_dimension_numbers<[1], [0], [0], [1], [0, 0, 1, 1], [], []>} : vector<2x16xf32>, vector<16x128xf32>, vector<2x128xf32> -> vector<2x128xf32>
    %c0_448 = arith.constant 0 : index
    %c0_449 = arith.constant 0 : index
    %532 = vector.load %arg21[%c0_448, %c0_449] : memref<2x128xf32, #tpu.memory_space<vmem>>, vector<2x128xf32>
    tpu.vector_store %arg21[%c0_448, %c0_449], %531 {strides = array<i32>} : memref<2x128xf32, #tpu.memory_space<vmem>>, vector<2x128xf32>,
    return
  }
}

</mosaic_0001>

<llo_original>
// kernel: clipnet_forward.1
$region0: #{clipnet_forward.1}
  #allocation0 [shape = 'u32[]', space=smem, size = 0x4, offset = 0x4, fixed_abs, tag = 'smem constant byte address 0x4 - core index']
  #allocation1 [shape = 'u32[144,128]{1,0:T(1,128)}', space=vmem, size = 0x12000, scoped, tag = 'internal scratch']
  %s0 = inlined_call_operand.vmem [shape: bf16[16,1536], index: 0, kind: input, shape index: {}]
  %s1 = inlined_call_operand.vmem [shape: f32[18,32], index: 1, kind: input, shape index: {}]
  %s2 = inlined_call_operand.vmem [shape: f32[18,18], index: 2, kind: input, shape index: {}]
  %s3 = inlined_call_operand.vmem [shape: bf16[1536,32], index: 3, kind: input, shape index: {}]
  %s4 = inlined_call_operand.vmem [shape: f32[2,1,32], index: 4, kind: input, shape index: {}, may-alias: {4,10}]
  %s5 = inlined_call_operand.vmem [shape: f32[2,1,32], index: 5, kind: input, shape index: {}, may-alias: {5,11}]
  %s6 = inlined_call_operand.vmem [shape: f32[2,3,4,32,8], index: 6, kind: input, shape index: {}]
  %s7 = inlined_call_operand.vmem [shape: f32[2,3,4,1,8], index: 7, kind: input, shape index: {}]
  %s8 = inlined_call_operand.vmem [shape: f32[2,4,8,32], index: 8, kind: input, shape index: {}]
  %s9 = inlined_call_operand.vmem [shape: f32[2,1,32], index: 9, kind: input, shape index: {}]
  %s10 = inlined_call_operand.vmem [shape: f32[2,1,32], index: 10, kind: input, shape index: {}, may-alias: {4,10}]
  %s11 = inlined_call_operand.vmem [shape: f32[2,1,32], index: 11, kind: input, shape index: {}, may-alias: {5,11}]
  %s12 = inlined_call_operand.vmem [shape: f32[2,32,128], index: 12, kind: input, shape index: {}]
  %s13 = inlined_call_operand.vmem [shape: f32[2,1,128], index: 13, kind: input, shape index: {}]
  %s14 = inlined_call_operand.vmem [shape: f32[2,128,32], index: 14, kind: input, shape index: {}]
  %s15 = inlined_call_operand.vmem [shape: f32[2,1,32], index: 15, kind: input, shape index: {}]
  %s16 = inlined_call_operand.vmem [shape: f32[1,32], index: 16, kind: input, shape index: {}]
  %s17 = inlined_call_operand.vmem [shape: f32[1,32], index: 17, kind: input, shape index: {}]
  %s18 = inlined_call_operand.vmem [shape: f32[32,16], index: 18, kind: input, shape index: {}]
  %s19 = inlined_call_operand.vmem [shape: f32[1,16], index: 19, kind: input, shape index: {}]
  %s20 = inlined_call_operand.vmem [shape: f32[16,128], index: 20, kind: input, shape index: {}]
  %s21 = inlined_call_operand.vmem [shape: f32[2,128], index: 21, kind: output, shape index: {}]
  %s22 = sld [smem:[#allocation0]]
  $region94: #{clipnet_forward.1} parent=0
    _
  %s24 = ssub.s32 1, %s22
  %s25 = scalar_select 0, %s24, %s22
  // Predicated region
  $region2: #{clipnet_forward.1} parent=0 // pred_check
    _
  $region3: #{clipnet_forward.1} parent=0 // pred_check_branch
    %27 = sbr.rel (0) target = $region5
  $region4: #{clipnet_forward.1} parent=0 // pred_region
    _
  $region5: #{clipnet_forward.1} parent=0 // pred_fallthru
    _
  // Predicated region
  $region6: #{clipnet_forward.1} parent=0 // pred_check
    _
  $region7: #{clipnet_forward.1} parent=0 // pred_check_branch
    %29 = sbr.rel (0) target = $region9
  $region8: #{clipnet_forward.1} parent=0 // pred_region
    _
  $region9: #{clipnet_forward.1} parent=0 // pred_fallthru
    _
  // Predicated region
  $region10: #{clipnet_forward.1} parent=0 // pred_check
    _
  $region11: #{clipnet_forward.1} parent=0 // pred_check_branch
    %31 = sbr.rel (0) target = $region13
  $region12: #{clipnet_forward.1} parent=0 // pred_region
    _
  $region13: #{clipnet_forward.1} parent=0 // pred_fallthru
    _
  // Predicated region
  $region14: #{clipnet_forward.1} parent=0 // pred_check
    _
  $region15: #{clipnet_forward.1} parent=0 // pred_check_branch
    %33 = sbr.rel (0) target = $region17
  $region16: #{clipnet_forward.1} parent=0 // pred_region
    _
  $region17: #{clipnet_forward.1} parent=0 // pred_fallthru
    _
  // Predicated region
  $region18: #{clipnet_forward.1} parent=0 // pred_check
    _
  $region19: #{clipnet_forward.1} parent=0 // pred_check_branch
    %35 = sbr.rel (0) target = $region21
  $region20: #{clipnet_forward.1} parent=0 // pred_region
    _
  $region21: #{clipnet_forward.1} parent=0 // pred_fallthru
    _
  // Predicated region
  $region22: #{clipnet_forward.1} parent=0 // pred_check
    _
  $region23: #{clipnet_forward.1} parent=0 // pred_check_branch
    %37 = sbr.rel (0) target = $region25
  $region24: #{clipnet_forward.1} parent=0 // pred_region
    _
  $region25: #{clipnet_forward.1} parent=0 // pred_fallthru
    _
  // Predicated region
  $region26: #{clipnet_forward.1} parent=0 // pred_check
    _
  $region27: #{clipnet_forward.1} parent=0 // pred_check_branch
    %39 = sbr.rel (0) target = $region29
  $region28: #{clipnet_forward.1} parent=0 // pred_region
    _
  $region29: #{clipnet_forward.1} parent=0 // pred_fallthru
    _
  // Predicated region
  $region30: #{clipnet_forward.1} parent=0 // pred_check
    _
  $region31: #{clipnet_forward.1} parent=0 // pred_check_branch
    %41 = sbr.rel (0) target = $region33
  $region32: #{clipnet_forward.1} parent=0 // pred_region
    _
  $region33: #{clipnet_forward.1} parent=0 // pred_fallthru
    _
  // Predicated region
  $region34: #{clipnet_forward.1} parent=0 // pred_check
    _
  $region35: #{clipnet_forward.1} parent=0 // pred_check_branch
    %43 = sbr.rel (0) target = $region37
  $region36: #{clipnet_forward.1} parent=0 // pred_region
    _
  $region37: #{clipnet_forward.1} parent=0 // pred_fallthru
    _
  // Predicated region
  $region38: #{clipnet_forward.1} parent=0 // pred_check
    _
  $region39: #{clipnet_forward.1} parent=0 // pred_check_branch
    %45 = sbr.rel (0) target = $region41
  $region40: #{clipnet_forward.1} parent=0 // pred_region
    _
  $region41: #{clipnet_forward.1} parent=0 // pred_fallthru
    _
  // Predicated region
  $region42: #{clipnet_forward.1} parent=0 // pred_check
    _
  $region43: #{clipnet_forward.1} parent=0 // pred_check_branch
    %47 = sbr.rel (0) target = $region45
  $region44: #{clipnet_forward.1} parent=0 // pred_region
    _
  $region45: #{clipnet_forward.1} parent=0 // pred_fallthru
    _
  // Predicated region
  $region46: #{clipnet_forward.1} parent=0 // pred_check
    _
  $region47: #{clipnet_forward.1} parent=0 // pred_check_branch
    %49 = sbr.rel (0) target = $region49
  $region48: #{clipnet_forward.1} parent=0 // pred_region
    _
  $region49: #{clipnet_forward.1} parent=0 // pred_fallthru
    _
  // Predicated region
  $region50: #{clipnet_forward.1} parent=0 // pred_check
    _
  $region51: #{clipnet_forward.1} parent=0 // pred_check_branch
    %51 = sbr.rel (0) target = $region53
  $region52: #{clipnet_forward.1} parent=0 // pred_region
    _
  $region53: #{clipnet_forward.1} parent=0 // pred_fallthru
    _
  // Predicated region
  $region54: #{clipnet_forward.1} parent=0 // pred_check
    _
  $region55: #{clipnet_forward.1} parent=0 // pred_check_branch
    %53 = sbr.rel (0) target = $region57
  $region56: #{clipnet_forward.1} parent=0 // pred_region
    _
  $region57: #{clipnet_forward.1} parent=0 // pred_fallthru
    _
  // Predicated region
  $region58: #{clipnet_forward.1} parent=0 // pred_check
    _
  $region59: #{clipnet_forward.1} parent=0 // pred_check_branch
    %55 = sbr.rel (0) target = $region61
  $region60: #{clipnet_forward.1} parent=0 // pred_region
    _
  $region61: #{clipnet_forward.1} parent=0 // pred_fallthru
    _
  // Predicated region
  $region62: #{clipnet_forward.1} parent=0 // pred_check
    _
  $region63: #{clipnet_forward.1} parent=0 // pred_check_branch
    %57 = sbr.rel (0) target = $region65
  $region64: #{clipnet_forward.1} parent=0 // pred_region
    _
  $region65: #{clipnet_forward.1} parent=0 // pred_fallthru
    _
  // Predicated region
  $region66: #{clipnet_forward.1} parent=0 // pred_check
    _
  $region67: #{clipnet_forward.1} parent=0 // pred_check_branch
    %59 = sbr.rel (0) target = $region69
  $region68: #{clipnet_forward.1} parent=0 // pred_region
    _
  $region69: #{clipnet_forward.1} parent=0 // pred_fallthru
    _
  // Predicated region
  $region70: #{clipnet_forward.1} parent=0 // pred_check
    _
  $region71: #{clipnet_forward.1} parent=0 // pred_check_branch
    %61 = sbr.rel (0) target = $region73
  $region72: #{clipnet_forward.1} parent=0 // pred_region
    _
  $region73: #{clipnet_forward.1} parent=0 // pred_fallthru
    _
  // Predicated region
  $region74: #{clipnet_forward.1} parent=0 // pred_check
    _
  $region75: #{clipnet_forward.1} parent=0 // pred_check_branch
    %63 = sbr.rel (0) target = $region77
  $region76: #{clipnet_forward.1} parent=0 // pred_region
    _
  $region77: #{clipnet_forward.1} parent=0 // pred_fallthru
    _
  // Predicated region
  $region78: #{clipnet_forward.1} parent=0 // pred_check
    _
  $region79: #{clipnet_forward.1} parent=0 // pred_check_branch
    %65 = sbr.rel (0) target = $region81
  $region80: #{clipnet_forward.1} parent=0 // pred_region
    _
  $region81: #{clipnet_forward.1} parent=0 // pred_fallthru
    _
  // Predicated region
  $region82: #{clipnet_forward.1} parent=0 // pred_check
    _
  $region83: #{clipnet_forward.1} parent=0 // pred_check_branch
    %67 = sbr.rel (0) target = $region85
  $region84: #{clipnet_forward.1} parent=0 // pred_region
    _
  $region85: #{clipnet_forward.1} parent=0 // pred_fallthru
    _
  %v69 = vld [vmem:[%s0] sm:$0xff]
  %v70 = vld [vmem:[%s0 + $0x8] sm:$0xff]
  %v71 = vld [vmem:[%s0 + $0x10] sm:$0xff]
  %v72 = vld [vmem:[%s0 + $0x18] sm:$0xff]
  %v73 = vld [vmem:[%s0 + $0x20] sm:$0xff]
  %v74 = vld [vmem:[%s0 + $0x28] sm:$0xff]
  %v75 = vld [vmem:[%s0 + $0x30] sm:$0xff]
  %v76 = vld [vmem:[%s0 + $0x38] sm:$0xff]
  %v77 = vld [vmem:[%s0 + $0x40] sm:$0xff]
  %v78 = vld [vmem:[%s0 + $0x48] sm:$0xff]
  %v79 = vld [vmem:[%s0 + $0x50] sm:$0xff]
  %v80 = vld [vmem:[%s0 + $0x58] sm:$0xff]
  %v81 = vld [vmem:[%s3] sm:$0xf]
  %v82 = vld [vmem:[%s3 + $0x4] sm:$0xf]
  %v83 = vld [vmem:[%s3 + $0x8] sm:$0xf]
  %v84 = vld [vmem:[%s3 + $0xc] sm:$0xf]
  %v85 = vld [vmem:[%s3 + $0x10] sm:$0xf]
  %v86 = vld [vmem:[%s3 + $0x14] sm:$0xf]
  %v87 = vld [vmem:[%s3 + $0x18] sm:$0xf]
  %v88 = vld [vmem:[%s3 + $0x1c] sm:$0xf]
  %v89 = vld [vmem:[%s3 + $0x20] sm:$0xf]
  %v90 = vld [vmem:[%s3 + $0x24] sm:$0xf]
  %v91 = vld [vmem:[%s3 + $0x28] sm:$0xf]
  %v92 = vld [vmem:[%s3 + $0x2c] sm:$0xf]
  %v93 = vld [vmem:[%s3 + $0x30] sm:$0xf]
  %v94 = vld [vmem:[%s3 + $0x34] sm:$0xf]
  %v95 = vld [vmem:[%s3 + $0x38] sm:$0xf]
  %v96 = vld [vmem:[%s3 + $0x3c] sm:$0xf]
  %v97 = vld [vmem:[%s3 + $0x40] sm:$0xf]
  %v98 = vld [vmem:[%s3 + $0x44] sm:$0xf]
  %v99 = vld [vmem:[%s3 + $0x48] sm:$0xf]
  %v100 = vld [vmem:[%s3 + $0x4c] sm:$0xf]
  %v101 = vld [vmem:[%s3 + $0x50] sm:$0xf]
  %v102 = vld [vmem:[%s3 + $0x54] sm:$0xf]
  %v103 = vld [vmem:[%s3 + $0x58] sm:$0xf]
  %v104 = vld [vmem:[%s3 + $0x5c] sm:$0xf]
  %v105 = vld [vmem:[%s3 + $0x60] sm:$0xf]
  %v106 = vld [vmem:[%s3 + $0x64] sm:$0xf]
  %v107 = vld [vmem:[%s3 + $0x68] sm:$0xf]
  %v108 = vld [vmem:[%s3 + $0x6c] sm:$0xf]
  %v109 = vld [vmem:[%s3 + $0x70] sm:$0xf]
  %v110 = vld [vmem:[%s3 + $0x74] sm:$0xf]
  %v111 = vld [vmem:[%s3 + $0x78] sm:$0xf]
  %v112 = vld [vmem:[%s3 + $0x7c] sm:$0xf]
  %v113 = vld [vmem:[%s3 + $0x80] sm:$0xf]
  %v114 = vld [vmem:[%s3 + $0x84] sm:$0xf]
  %v115 = vld [vmem:[%s3 + $0x88] sm:$0xf]
  %v116 = vld [vmem:[%s3 + $0x8c] sm:$0xf]
  %v117 = vld [vmem:[%s3 + $0x90] sm:$0xf]
  %v118 = vld [vmem:[%s3 + $0x94] sm:$0xf]
  %v119 = vld [vmem:[%s3 + $0x98] sm:$0xf]
  %v120 = vld [vmem:[%s3 + $0x9c] sm:$0xf]
  %v121 = vld [vmem:[%s3 + $0xa0] sm:$0xf]
  %v122 = vld [vmem:[%s3 + $0xa4] sm:$0xf]
  %v123 = vld [vmem:[%s3 + $0xa8] sm:$0xf]
  %v124 = vld [vmem:[%s3 + $0xac] sm:$0xf]
  %v125 = vld [vmem:[%s3 + $0xb0] sm:$0xf]
  %v126 = vld [vmem:[%s3 + $0xb4] sm:$0xf]
  %v127 = vld [vmem:[%s3 + $0xb8] sm:$0xf]
  %v128 = vld [vmem:[%s3 + $0xbc] sm:$0xf]
  %v129 = vld [vmem:[%s3 + $0xc0] sm:$0xf]
  %v130 = vld [vmem:[%s3 + $0xc4] sm:$0xf]
  %v131 = vld [vmem:[%s3 + $0xc8] sm:$0xf]
  %v132 = vld [vmem:[%s3 + $0xcc] sm:$0xf]
  %v133 = vld [vmem:[%s3 + $0xd0] sm:$0xf]
  %v134 = vld [vmem:[%s3 + $0xd4] sm:$0xf]
  %v135 = vld [vmem:[%s3 + $0xd8] sm:$0xf]
  %v136 = vld [vmem:[%s3 + $0xdc] sm:$0xf]
  %v137 = vld [vmem:[%s3 + $0xe0] sm:$0xf]
  %v138 = vld [vmem:[%s3 + $0xe4] sm:$0xf]
  %v139 = vld [vmem:[%s3 + $0xe8] sm:$0xf]
  %v140 = vld [vmem:[%s3 + $0xec] sm:$0xf]
  %v141 = vld [vmem:[%s3 + $0xf0] sm:$0xf]
  %v142 = vld [vmem:[%s3 + $0xf4] sm:$0xf]
  %v143 = vld [vmem:[%s3 + $0xf8] sm:$0xf]
  %v144 = vld [vmem:[%s3 + $0xfc] sm:$0xf]
  %v145 = vld [vmem:[%s3 + $0x100] sm:$0xf]
  %v146 = vld [vmem:[%s3 + $0x104] sm:$0xf]
  %v147 = vld [vmem:[%s3 + $0x108] sm:$0xf]
  %v148 = vld [vmem:[%s3 + $0x10c] sm:$0xf]
  %v149 = vld [vmem:[%s3 + $0x110] sm:$0xf]
  %v150 = vld [vmem:[%s3 + $0x114] sm:$0xf]
  %v151 = vld [vmem:[%s3 + $0x118] sm:$0xf]
  %v152 = vld [vmem:[%s3 + $0x11c] sm:$0xf]
  %v153 = vld [vmem:[%s3 + $0x120] sm:$0xf]
  %v154 = vld [vmem:[%s3 + $0x124] sm:$0xf]
  %v155 = vld [vmem:[%s3 + $0x128] sm:$0xf]
  %v156 = vld [vmem:[%s3 + $0x12c] sm:$0xf]
  %v157 = vld [vmem:[%s3 + $0x130] sm:$0xf]
  %v158 = vld [vmem:[%s3 + $0x134] sm:$0xf]
  %v159 = vld [vmem:[%s3 + $0x138] sm:$0xf]
  %v160 = vld [vmem:[%s3 + $0x13c] sm:$0xf]
  %v161 = vld [vmem:[%s3 + $0x140] sm:$0xf]
  %v162 = vld [vmem:[%s3 + $0x144] sm:$0xf]
  %v163 = vld [vmem:[%s3 + $0x148] sm:$0xf]
  %v164 = vld [vmem:[%s3 + $0x14c] sm:$0xf]
  %v165 = vld [vmem:[%s3 + $0x150] sm:$0xf]
  %v166 = vld [vmem:[%s3 + $0x154] sm:$0xf]
  %v167 = vld [vmem:[%s3 + $0x158] sm:$0xf]
  %v168 = vld [vmem:[%s3 + $0x15c] sm:$0xf]
  %v169 = vld [vmem:[%s3 + $0x160] sm:$0xf]
  %v170 = vld [vmem:[%s3 + $0x164] sm:$0xf]
  %v171 = vld [vmem:[%s3 + $0x168] sm:$0xf]
  %v172 = vld [vmem:[%s3 + $0x16c] sm:$0xf]
  %v173 = vld [vmem:[%s3 + $0x170] sm:$0xf]
  %v174 = vld [vmem:[%s3 + $0x174] sm:$0xf]
  %v175 = vld [vmem:[%s3 + $0x178] sm:$0xf]
  %v176 = vld [vmem:[%s3 + $0x17c] sm:$0xf]
  %v177 = vld [vmem:[%s3 + $0x180] sm:$0xf]
  %v178 = vld [vmem:[%s3 + $0x184] sm:$0xf]
  %v179 = vld [vmem:[%s3 + $0x188] sm:$0xf]
  %v180 = vld [vmem:[%s3 + $0x18c] sm:$0xf]
  %v181 = vld [vmem:[%s3 + $0x190] sm:$0xf]
  %v182 = vld [vmem:[%s3 + $0x194] sm:$0xf]
  %v183 = vld [vmem:[%s3 + $0x198] sm:$0xf]
  %v184 = vld [vmem:[%s3 + $0x19c] sm:$0xf]
  %v185 = vld [vmem:[%s3 + $0x1a0] sm:$0xf]
  %v186 = vld [vmem:[%s3 + $0x1a4] sm:$0xf]
  %v187 = vld [vmem:[%s3 + $0x1a8] sm:$0xf]
  %v188 = vld [vmem:[%s3 + $0x1ac] sm:$0xf]
  %v189 = vld [vmem:[%s3 + $0x1b0] sm:$0xf]
  %v190 = vld [vmem:[%s3 + $0x1b4] sm:$0xf]
  %v191 = vld [vmem:[%s3 + $0x1b8] sm:$0xf]
  %v192 = vld [vmem:[%s3 + $0x1bc] sm:$0xf]
  %v193 = vld [vmem:[%s3 + $0x1c0] sm:$0xf]
  %v194 = vld [vmem:[%s3 + $0x1c4] sm:$0xf]
  %v195 = vld [vmem:[%s3 + $0x1c8] sm:$0xf]
  %v196 = vld [vmem:[%s3 + $0x1cc] sm:$0xf]
  %v197 = vld [vmem:[%s3 + $0x1d0] sm:$0xf]
  %v198 = vld [vmem:[%s3 + $0x1d4] sm:$0xf]
  %v199 = vld [vmem:[%s3 + $0x1d8] sm:$0xf]
  %v200 = vld [vmem:[%s3 + $0x1dc] sm:$0xf]
  %v201 = vld [vmem:[%s3 + $0x1e0] sm:$0xf]
  %v202 = vld [vmem:[%s3 + $0x1e4] sm:$0xf]
  %v203 = vld [vmem:[%s3 + $0x1e8] sm:$0xf]
  %v204 = vld [vmem:[%s3 + $0x1ec] sm:$0xf]
  %v205 = vld [vmem:[%s3 + $0x1f0] sm:$0xf]
  %v206 = vld [vmem:[%s3 + $0x1f4] sm:$0xf]
  %v207 = vld [vmem:[%s3 + $0x1f8] sm:$0xf]
  %v208 = vld [vmem:[%s3 + $0x1fc] sm:$0xf]
  %v209 = vld [vmem:[%s3 + $0x200] sm:$0xf]
  %v210 = vld [vmem:[%s3 + $0x204] sm:$0xf]
  %v211 = vld [vmem:[%s3 + $0x208] sm:$0xf]
  %v212 = vld [vmem:[%s3 + $0x20c] sm:$0xf]
  %v213 = vld [vmem:[%s3 + $0x210] sm:$0xf]
  %v214 = vld [vmem:[%s3 + $0x214] sm:$0xf]
  %v215 = vld [vmem:[%s3 + $0x218] sm:$0xf]
  %v216 = vld [vmem:[%s3 + $0x21c] sm:$0xf]
  %v217 = vld [vmem:[%s3 + $0x220] sm:$0xf]
  %v218 = vld [vmem:[%s3 + $0x224] sm:$0xf]
  %v219 = vld [vmem:[%s3 + $0x228] sm:$0xf]
  %v220 = vld [vmem:[%s3 + $0x22c] sm:$0xf]
  %v221 = vld [vmem:[%s3 + $0x230] sm:$0xf]
  %v222 = vld [vmem:[%s3 + $0x234] sm:$0xf]
  %v223 = vld [vmem:[%s3 + $0x238] sm:$0xf]
  %v224 = vld [vmem:[%s3 + $0x23c] sm:$0xf]
  %v225 = vld [vmem:[%s3 + $0x240] sm:$0xf]
  %v226 = vld [vmem:[%s3 + $0x244] sm:$0xf]
  %v227 = vld [vmem:[%s3 + $0x248] sm:$0xf]
  %v228 = vld [vmem:[%s3 + $0x24c] sm:$0xf]
  %v229 = vld [vmem:[%s3 + $0x250] sm:$0xf]
  %v230 = vld [vmem:[%s3 + $0x254] sm:$0xf]
  %v231 = vld [vmem:[%s3 + $0x258] sm:$0xf]
  %v232 = vld [vmem:[%s3 + $0x25c] sm:$0xf]
  %v233 = vld [vmem:[%s3 + $0x260] sm:$0xf]
  %v234 = vld [vmem:[%s3 + $0x264] sm:$0xf]
  %v235 = vld [vmem:[%s3 + $0x268] sm:$0xf]
  %v236 = vld [vmem:[%s3 + $0x26c] sm:$0xf]
  %v237 = vld [vmem:[%s3 + $0x270] sm:$0xf]
  %v238 = vld [vmem:[%s3 + $0x274] sm:$0xf]
  %v239 = vld [vmem:[%s3 + $0x278] sm:$0xf]
  %v240 = vld [vmem:[%s3 + $0x27c] sm:$0xf]
  %v241 = vld [vmem:[%s3 + $0x280] sm:$0xf]
  %v242 = vld [vmem:[%s3 + $0x284] sm:$0xf]
  %v243 = vld [vmem:[%s3 + $0x288] sm:$0xf]
  %v244 = vld [vmem:[%s3 + $0x28c] sm:$0xf]
  %v245 = vld [vmem:[%s3 + $0x290] sm:$0xf]
  %v246 = vld [vmem:[%s3 + $0x294] sm:$0xf]
  %v247 = vld [vmem:[%s3 + $0x298] sm:$0xf]
  %v248 = vld [vmem:[%s3 + $0x29c] sm:$0xf]
  %v249 = vld [vmem:[%s3 + $0x2a0] sm:$0xf]
  %v250 = vld [vmem:[%s3 + $0x2a4] sm:$0xf]
  %v251 = vld [vmem:[%s3 + $0x2a8] sm:$0xf]
  %v252 = vld [vmem:[%s3 + $0x2ac] sm:$0xf]
  %v253 = vld [vmem:[%s3 + $0x2b0] sm:$0xf]
  %v254 = vld [vmem:[%s3 + $0x2b4] sm:$0xf]
  %v255 = vld [vmem:[%s3 + $0x2b8] sm:$0xf]
  %v256 = vld [vmem:[%s3 + $0x2bc] sm:$0xf]
  %v257 = vld [vmem:[%s3 + $0x2c0] sm:$0xf]
  %v258 = vld [vmem:[%s3 + $0x2c4] sm:$0xf]
  %v259 = vld [vmem:[%s3 + $0x2c8] sm:$0xf]
  %v260 = vld [vmem:[%s3 + $0x2cc] sm:$0xf]
  %v261 = vld [vmem:[%s3 + $0x2d0] sm:$0xf]
  %v262 = vld [vmem:[%s3 + $0x2d4] sm:$0xf]
  %v263 = vld [vmem:[%s3 + $0x2d8] sm:$0xf]
  %v264 = vld [vmem:[%s3 + $0x2dc] sm:$0xf]
  %v265 = vld [vmem:[%s3 + $0x2e0] sm:$0xf]
  %v266 = vld [vmem:[%s3 + $0x2e4] sm:$0xf]
  %v267 = vld [vmem:[%s3 + $0x2e8] sm:$0xf]
  %v268 = vld [vmem:[%s3 + $0x2ec] sm:$0xf]
  %v269 = vld [vmem:[%s3 + $0x2f0] sm:$0xf]
  %v270 = vld [vmem:[%s3 + $0x2f4] sm:$0xf]
  %v271 = vld [vmem:[%s3 + $0x2f8] sm:$0xf]
  %v272 = vld [vmem:[%s3 + $0x2fc] sm:$0xf]
  %v285 = vunpack.c.l.b16 %v69
  %v286 = vunpack.c.h.b16 %v69
  %v287 = vunpack.c.l.b16 %v70
  %v288 = vunpack.c.h.b16 %v70
  %v289 = vunpack.c.l.b16 %v71
  %v290 = vunpack.c.h.b16 %v71
  %v291 = vunpack.c.l.b16 %v72
  %v292 = vunpack.c.h.b16 %v72
  %v293 = vunpack.c.l.b16 %v73
  %v294 = vunpack.c.h.b16 %v73
  %v295 = vunpack.c.l.b16 %v74
  %v296 = vunpack.c.h.b16 %v74
  %v297 = vunpack.c.l.b16 %v75
  %v298 = vunpack.c.h.b16 %v75
  %v299 = vunpack.c.l.b16 %v76
  %v300 = vunpack.c.h.b16 %v76
  %v301 = vunpack.c.l.b16 %v77
  %v302 = vunpack.c.h.b16 %v77
  %v303 = vunpack.c.l.b16 %v78
  %v304 = vunpack.c.h.b16 %v78
  %v305 = vunpack.c.l.b16 %v79
  %v306 = vunpack.c.h.b16 %v79
  %v307 = vunpack.c.l.b16 %v80
  %v308 = vunpack.c.h.b16 %v80
  %v309 = vpack.c.b16 %v297, %v285
  %v310 = vpack.c.b16 %v298, %v286
  %v311 = vpack.c.b16 %v299, %v287
  %v312 = vpack.c.b16 %v300, %v288
  %v313 = vpack.c.b16 %v301, %v289
  %v314 = vpack.c.b16 %v302, %v290
  %v315 = vpack.c.b16 %v303, %v291
  %v316 = vpack.c.b16 %v304, %v292
  %v317 = vpack.c.b16 %v305, %v293
  %v318 = vpack.c.b16 %v306, %v294
  %v319 = vpack.c.b16 %v307, %v295
  %v320 = vpack.c.b16 %v308, %v296
  %v525 = vunpack.c.l.b16 %v81
  %v526 = vunpack.c.l.b16 %v82
  %v527 = vunpack.c.l.b16 %v83
  %v528 = vunpack.c.l.b16 %v84
  %v529 = vunpack.c.l.b16 %v85
  %v530 = vunpack.c.l.b16 %v86
  %v531 = vunpack.c.l.b16 %v87
  %v532 = vunpack.c.l.b16 %v88
  %v533 = vunpack.c.l.b16 %v89
  %v534 = vunpack.c.l.b16 %v90
  %v535 = vunpack.c.l.b16 %v91
  %v536 = vunpack.c.l.b16 %v92
  %v537 = vunpack.c.l.b16 %v93
  %v538 = vunpack.c.l.b16 %v94
  %v539 = vunpack.c.l.b16 %v95
  %v540 = vunpack.c.l.b16 %v96
  %v541 = vunpack.c.l.b16 %v97
  %v542 = vunpack.c.l.b16 %v98
  %v543 = vunpack.c.l.b16 %v99
  %v544 = vunpack.c.l.b16 %v100
  %v545 = vunpack.c.l.b16 %v101
  %v546 = vunpack.c.l.b16 %v102
  %v547 = vunpack.c.l.b16 %v103
  %v548 = vunpack.c.l.b16 %v104
  %v549 = vunpack.c.l.b16 %v105
  %v550 = vunpack.c.l.b16 %v106
  %v551 = vunpack.c.l.b16 %v107
  %v552 = vunpack.c.l.b16 %v108
  %v553 = vunpack.c.l.b16 %v109
  %v554 = vunpack.c.l.b16 %v110
  %v555 = vunpack.c.l.b16 %v111
  %v556 = vunpack.c.l.b16 %v112
  %v557 = vunpack.c.l.b16 %v113
  %v558 = vunpack.c.l.b16 %v114
  %v559 = vunpack.c.l.b16 %v115
  %v560 = vunpack.c.l.b16 %v116
  %v561 = vunpack.c.l.b16 %v117
  %v562 = vunpack.c.l.b16 %v118
  %v563 = vunpack.c.l.b16 %v119
  %v564 = vunpack.c.l.b16 %v120
  %v565 = vunpack.c.l.b16 %v121
  %v566 = vunpack.c.l.b16 %v122
  %v567 = vunpack.c.l.b16 %v123
  %v568 = vunpack.c.l.b16 %v124
  %v569 = vunpack.c.l.b16 %v125
  %v570 = vunpack.c.l.b16 %v126
  %v571 = vunpack.c.l.b16 %v127
  %v572 = vunpack.c.l.b16 %v128
  %v573 = vunpack.c.l.b16 %v129
  %v574 = vunpack.c.l.b16 %v130
  %v575 = vunpack.c.l.b16 %v131
  %v576 = vunpack.c.l.b16 %v132
  %v577 = vunpack.c.l.b16 %v133
  %v578 = vunpack.c.l.b16 %v134
  %v579 = vunpack.c.l.b16 %v135
  %v580 = vunpack.c.l.b16 %v136
  %v581 = vunpack.c.l.b16 %v137
  %v582 = vunpack.c.l.b16 %v138
  %v583 = vunpack.c.l.b16 %v139
  %v584 = vunpack.c.l.b16 %v140
  %v585 = vunpack.c.l.b16 %v141
  %v586 = vunpack.c.l.b16 %v142
  %v587 = vunpack.c.l.b16 %v143
  %v588 = vunpack.c.l.b16 %v144
  %v589 = vunpack.c.l.b16 %v145
  %v590 = vunpack.c.l.b16 %v146
  %v591 = vunpack.c.l.b16 %v147
  %v592 = vunpack.c.l.b16 %v148
  %v593 = vunpack.c.l.b16 %v149
  %v594 = vunpack.c.l.b16 %v150
  %v595 = vunpack.c.l.b16 %v151
  %v596 = vunpack.c.l.b16 %v152
  %v597 = vunpack.c.l.b16 %v153
  %v598 = vunpack.c.l.b16 %v154
  %v599 = vunpack.c.l.b16 %v155
  %v600 = vunpack.c.l.b16 %v156
  %v601 = vunpack.c.l.b16 %v157
  %v602 = vunpack.c.l.b16 %v158
  %v603 = vunpack.c.l.b16 %v159
  %v604 = vunpack.c.l.b16 %v160
  %v605 = vunpack.c.l.b16 %v161
  %v606 = vunpack.c.l.b16 %v162
  %v607 = vunpack.c.l.b16 %v163
  %v608 = vunpack.c.l.b16 %v164
  %v609 = vunpack.c.l.b16 %v165
  %v610 = vunpack.c.l.b16 %v166
  %v611 = vunpack.c.l.b16 %v167
  %v612 = vunpack.c.l.b16 %v168
  %v613 = vunpack.c.l.b16 %v169
  %v614 = vunpack.c.l.b16 %v170
  %v615 = vunpack.c.l.b16 %v171
  %v616 = vunpack.c.l.b16 %v172
  %v617 = vunpack.c.l.b16 %v173
  %v618 = vunpack.c.l.b16 %v174
  %v619 = vunpack.c.l.b16 %v175
  %v620 = vunpack.c.l.b16 %v176
  %v621 = vunpack.c.l.b16 %v177
  %v622 = vunpack.c.l.b16 %v178
  %v623 = vunpack.c.l.b16 %v179
  %v624 = vunpack.c.l.b16 %v180
  %v625 = vunpack.c.l.b16 %v181
  %v626 = vunpack.c.l.b16 %v182
  %v627 = vunpack.c.l.b16 %v183
  %v628 = vunpack.c.l.b16 %v184
  %v629 = vunpack.c.l.b16 %v185
  %v630 = vunpack.c.l.b16 %v186
  %v631 = vunpack.c.l.b16 %v187
  %v632 = vunpack.c.l.b16 %v188
  %v633 = vunpack.c.l.b16 %v189
  %v634 = vunpack.c.l.b16 %v190
  %v635 = vunpack.c.l.b16 %v191
  %v636 = vunpack.c.l.b16 %v192
  %v637 = vunpack.c.l.b16 %v193
  %v638 = vunpack.c.l.b16 %v194
  %v639 = vunpack.c.l.b16 %v195
  %v640 = vunpack.c.l.b16 %v196
  %v641 = vunpack.c.l.b16 %v197
  %v642 = vunpack.c.l.b16 %v198
  %v643 = vunpack.c.l.b16 %v199
  %v644 = vunpack.c.l.b16 %v200
  %v645 = vunpack.c.l.b16 %v201
  %v646 = vunpack.c.l.b16 %v202
  %v647 = vunpack.c.l.b16 %v203
  %v648 = vunpack.c.l.b16 %v204
  %v649 = vunpack.c.l.b16 %v205
  %v650 = vunpack.c.l.b16 %v206
  %v651 = vunpack.c.l.b16 %v207
  %v652 = vunpack.c.l.b16 %v208
  %v653 = vunpack.c.l.b16 %v209
  %v654 = vunpack.c.l.b16 %v210
  %v655 = vunpack.c.l.b16 %v211
  %v656 = vunpack.c.l.b16 %v212
  %v657 = vunpack.c.l.b16 %v213
  %v658 = vunpack.c.l.b16 %v214
  %v659 = vunpack.c.l.b16 %v215
  %v660 = vunpack.c.l.b16 %v216
  %v661 = vunpack.c.l.b16 %v217
  %v662 = vunpack.c.l.b16 %v218
  %v663 = vunpack.c.l.b16 %v219
  %v664 = vunpack.c.l.b16 %v220
  %v665 = vunpack.c.l.b16 %v221
  %v666 = vunpack.c.l.b16 %v222
  %v667 = vunpack.c.l.b16 %v223
  %v668 = vunpack.c.l.b16 %v224
  %v669 = vunpack.c.l.b16 %v225
  %v670 = vunpack.c.l.b16 %v226
  %v671 = vunpack.c.l.b16 %v227
  %v672 = vunpack.c.l.b16 %v228
  %v673 = vunpack.c.l.b16 %v229
  %v674 = vunpack.c.l.b16 %v230
  %v675 = vunpack.c.l.b16 %v231
  %v676 = vunpack.c.l.b16 %v232
  %v677 = vunpack.c.l.b16 %v233
  %v678 = vunpack.c.l.b16 %v234
  %v679 = vunpack.c.l.b16 %v235
  %v680 = vunpack.c.l.b16 %v236
  %v681 = vunpack.c.l.b16 %v237
  %v682 = vunpack.c.l.b16 %v238
  %v683 = vunpack.c.l.b16 %v239
  %v684 = vunpack.c.l.b16 %v240
  %v685 = vunpack.c.l.b16 %v241
  %v686 = vunpack.c.l.b16 %v242
  %v687 = vunpack.c.l.b16 %v243
  %v688 = vunpack.c.l.b16 %v244
  %v689 = vunpack.c.l.b16 %v245
  %v690 = vunpack.c.l.b16 %v246
  %v691 = vunpack.c.l.b16 %v247
  %v692 = vunpack.c.l.b16 %v248
  %v693 = vunpack.c.l.b16 %v249
  %v694 = vunpack.c.l.b16 %v250
  %v695 = vunpack.c.l.b16 %v251
  %v696 = vunpack.c.l.b16 %v252
  %v697 = vunpack.c.l.b16 %v253
  %v698 = vunpack.c.l.b16 %v254
  %v699 = vunpack.c.l.b16 %v255
  %v700 = vunpack.c.l.b16 %v256
  %v701 = vunpack.c.l.b16 %v257
  %v702 = vunpack.c.l.b16 %v258
  %v703 = vunpack.c.l.b16 %v259
  %v704 = vunpack.c.l.b16 %v260
  %v705 = vunpack.c.l.b16 %v261
  %v706 = vunpack.c.l.b16 %v262
  %v707 = vunpack.c.l.b16 %v263
  %v708 = vunpack.c.l.b16 %v264
  %v709 = vunpack.c.l.b16 %v265
  %v710 = vunpack.c.l.b16 %v266
  %v711 = vunpack.c.l.b16 %v267
  %v712 = vunpack.c.l.b16 %v268
  %v713 = vunpack.c.l.b16 %v269
  %v714 = vunpack.c.l.b16 %v270
  %v715 = vunpack.c.l.b16 %v271
  %v716 = vunpack.c.l.b16 %v272
  %v717 = vpack.c.b16 %v526, %v525
  %v718 = vpack.c.b16 %v528, %v527
  %v719 = vpack.c.b16 %v530, %v529
  %v720 = vpack.c.b16 %v532, %v531
  %v721 = vpack.c.b16 %v534, %v533
  %v722 = vpack.c.b16 %v536, %v535
  %v723 = vpack.c.b16 %v538, %v537
  %v724 = vpack.c.b16 %v540, %v539
  %v725 = vpack.c.b16 %v542, %v541
  %v726 = vpack.c.b16 %v544, %v543
  %v727 = vpack.c.b16 %v546, %v545
  %v728 = vpack.c.b16 %v548, %v547
  %v729 = vpack.c.b16 %v550, %v549
  %v730 = vpack.c.b16 %v552, %v551
  %v731 = vpack.c.b16 %v554, %v553
  %v732 = vpack.c.b16 %v556, %v555
  %v733 = vpack.c.b16 %v558, %v557
  %v734 = vpack.c.b16 %v560, %v559
  %v735 = vpack.c.b16 %v562, %v561
  %v736 = vpack.c.b16 %v564, %v563
  %v737 = vpack.c.b16 %v566, %v565
  %v738 = vpack.c.b16 %v568, %v567
  %v739 = vpack.c.b16 %v570, %v569
  %v740 = vpack.c.b16 %v572, %v571
  %v741 = vpack.c.b16 %v574, %v573
  %v742 = vpack.c.b16 %v576, %v575
  %v743 = vpack.c.b16 %v578, %v577
  %v744 = vpack.c.b16 %v580, %v579
  %v745 = vpack.c.b16 %v582, %v581
  %v746 = vpack.c.b16 %v584, %v583
  %v747 = vpack.c.b16 %v586, %v585
  %v748 = vpack.c.b16 %v588, %v587
  %v749 = vpack.c.b16 %v590, %v589
  %v750 = vpack.c.b16 %v592, %v591
  %v751 = vpack.c.b16 %v594, %v593
  %v752 = vpack.c.b16 %v596, %v595
  %v753 = vpack.c.b16 %v598, %v597
  %v754 = vpack.c.b16 %v600, %v599
  %v755 = vpack.c.b16 %v602, %v601
  %v756 = vpack.c.b16 %v604, %v603
  %v757 = vpack.c.b16 %v606, %v605
  %v758 = vpack.c.b16 %v608, %v607
  %v759 = vpack.c.b16 %v610, %v609
  %v760 = vpack.c.b16 %v612, %v611
  %v761 = vpack.c.b16 %v614, %v613
  %v762 = vpack.c.b16 %v616, %v615
  %v763 = vpack.c.b16 %v618, %v617
  %v764 = vpack.c.b16 %v620, %v619
  %v765 = vpack.c.b16 %v622, %v621
  %v766 = vpack.c.b16 %v624, %v623
  %v767 = vpack.c.b16 %v626, %v625
  %v768 = vpack.c.b16 %v628, %v627
  %v769 = vpack.c.b16 %v630, %v629
  %v770 = vpack.c.b16 %v632, %v631
  %v771 = vpack.c.b16 %v634, %v633
  %v772 = vpack.c.b16 %v636, %v635
  %v773 = vpack.c.b16 %v638, %v637
  %v774 = vpack.c.b16 %v640, %v639
  %v775 = vpack.c.b16 %v642, %v641
  %v776 = vpack.c.b16 %v644, %v643
  %v777 = vpack.c.b16 %v646, %v645
  %v778 = vpack.c.b16 %v648, %v647
  %v779 = vpack.c.b16 %v650, %v649
  %v780 = vpack.c.b16 %v652, %v651
  %v781 = vpack.c.b16 %v654, %v653
  %v782 = vpack.c.b16 %v656, %v655
  %v783 = vpack.c.b16 %v658, %v657
  %v784 = vpack.c.b16 %v660, %v659
  %v785 = vpack.c.b16 %v662, %v661
  %v786 = vpack.c.b16 %v664, %v663
  %v787 = vpack.c.b16 %v666, %v665
  %v788 = vpack.c.b16 %v668, %v667
  %v789 = vpack.c.b16 %v670, %v669
  %v790 = vpack.c.b16 %v672, %v671
  %v791 = vpack.c.b16 %v674, %v673
  %v792 = vpack.c.b16 %v676, %v675
  %v793 = vpack.c.b16 %v678, %v677
  %v794 = vpack.c.b16 %v680, %v679
  %v795 = vpack.c.b16 %v682, %v681
  %v796 = vpack.c.b16 %v684, %v683
  %v797 = vpack.c.b16 %v686, %v685
  %v798 = vpack.c.b16 %v688, %v687
  %v799 = vpack.c.b16 %v690, %v689
  %v800 = vpack.c.b16 %v692, %v691
  %v801 = vpack.c.b16 %v694, %v693
  %v802 = vpack.c.b16 %v696, %v695
  %v803 = vpack.c.b16 %v698, %v697
  %v804 = vpack.c.b16 %v700, %v699
  %v805 = vpack.c.b16 %v702, %v701
  %v806 = vpack.c.b16 %v704, %v703
  %v807 = vpack.c.b16 %v706, %v705
  %v808 = vpack.c.b16 %v708, %v707
  %v809 = vpack.c.b16 %v710, %v709
  %v810 = vpack.c.b16 %v712, %v711
  %v811 = vpack.c.b16 %v714, %v713
  %v812 = vpack.c.b16 %v716, %v715
  %909 = vmatprep.subr.bf16.mxu0 0
  %910 = vmatpush1.bf16.msra.mxu0 %v717
  %911 = vmatprep.subr.bf16.mxu0 0
  %912 = vmatpush1.bf16.msra.mxu0 %v718
  %913 = vmatprep.subr.bf16.mxu0 0
  %914 = vmatpush1.bf16.msra.mxu0 %v719
  %915 = vmatprep.subr.bf16.mxu0 0
  %916 = vmatpush1.bf16.msra.mxu0 %v720
  %917 = vmatprep.subr.bf16.mxu0 0
  %918 = vmatpush1.bf16.msra.mxu0 %v721
  %919 = vmatprep.subr.bf16.mxu0 0
  %920 = vmatpush1.bf16.msra.mxu0 %v722
  %921 = vmatprep.subr.bf16.mxu0 0
  %922 = vmatpush1.bf16.msra.mxu0 %v723
  %923 = vmatprep.subr.bf16.mxu0 0
  %924 = vmatpush1.bf16.msra.mxu0 %v724
  %925 = vmatprep.subr.bf16.mxu0 0
  %926 = vmatpush1.bf16.msra.mxu0 %v725
  %927 = vmatprep.subr.bf16.mxu0 0
  %928 = vmatpush1.bf16.msra.mxu0 %v726
  %929 = vmatprep.subr.bf16.mxu0 0
  %930 = vmatpush1.bf16.msra.mxu0 %v727
  %931 = vmatprep.subr.bf16.mxu0 0
  %932 = vmatpush1.bf16.msra.mxu0 %v728
  %933 = vmatprep.subr.bf16.mxu0 0
  %934 = vmatpush1.bf16.msra.mxu0 %v729
  %935 = vmatprep.subr.bf16.mxu0 0
  %936 = vmatpush1.bf16.msra.mxu0 %v730
  %937 = vmatprep.subr.bf16.mxu0 0
  %938 = vmatpush1.bf16.msra.mxu0 %v731
  %939 = vmatprep.subr.bf16.mxu0 0
  %940 = vmatpush1.bf16.msra.mxu0 %v732
  %941 = vmatprep.mubr.bf16.mxu0 %v310
  %942 = vmatmul.mubr.bf16.gmra.mrb[0].mxu0 %v309
  %v943 = vpop.f32.mrb[0].mxu0
  %v944 = vadd.f32 0.0, %v943
  %v945 = vpop.f32.mrb[0].mxu0
  %v946 = vpop.f32.mrb[0].mxu0
  %v947 = vadd.f32 0.0, %v946
  %v948 = vpop.f32.mrb[0].mxu0
  %949 = vdwg.mxu0
  %950 = vmatprep.subr.bf16.mxu0 0
  %951 = vmatpush1.bf16.msra.mxu0 %v733
  %952 = vmatprep.subr.bf16.mxu0 0
  %953 = vmatpush1.bf16.msra.mxu0 %v734
  %954 = vmatprep.subr.bf16.mxu0 0
  %955 = vmatpush1.bf16.msra.mxu0 %v735
  %956 = vmatprep.subr.bf16.mxu0 0
  %957 = vmatpush1.bf16.msra.mxu0 %v736
  %958 = vmatprep.subr.bf16.mxu0 0
  %959 = vmatpush1.bf16.msra.mxu0 %v737
  %960 = vmatprep.subr.bf16.mxu0 0
  %961 = vmatpush1.bf16.msra.mxu0 %v738
  %962 = vmatprep.subr.bf16.mxu0 0
  %963 = vmatpush1.bf16.msra.mxu0 %v739
  %964 = vmatprep.subr.bf16.mxu0 0
  %965 = vmatpush1.bf16.msra.mxu0 %v740
  %966 = vmatprep.subr.bf16.mxu0 0
  %967 = vmatpush1.bf16.msra.mxu0 %v741
  %968 = vmatprep.subr.bf16.mxu0 0
  %969 = vmatpush1.bf16.msra.mxu0 %v742
  %970 = vmatprep.subr.bf16.mxu0 0
  %971 = vmatpush1.bf16.msra.mxu0 %v743
  %972 = vmatprep.subr.bf16.mxu0 0
  %973 = vmatpush1.bf16.msra.mxu0 %v744
  %974 = vmatprep.subr.bf16.mxu0 0
  %975 = vmatpush1.bf16.msra.mxu0 %v745
  %976 = vmatprep.subr.bf16.mxu0 0
  %977 = vmatpush1.bf16.msra.mxu0 %v746
  %978 = vmatprep.subr.bf16.mxu0 0
  %979 = vmatpush1.bf16.msra.mxu0 %v747
  %980 = vmatprep.subr.bf16.mxu0 0
  %981 = vmatpush1.bf16.msra.mxu0 %v748
  %982 = vmatprep.mubr.bf16.mxu0 %v312
  %983 = vmatmul.mubr.bf16.gmra.mrb[0].mxu0 %v311
  %v984 = vpop.f32.mrb[0].mxu0
  %v985 = vadd.f32 %v944, %v984
  %v986 = vpop.f32.mrb[0].mxu0
  %v987 = vpop.f32.mrb[0].mxu0
  %v988 = vadd.f32 %v947, %v987
  %v989 = vpop.f32.mrb[0].mxu0
  %990 = vdwg.mxu0
  %991 = vmatprep.subr.bf16.mxu0 0
  %992 = vmatpush1.bf16.msra.mxu0 %v749
  %993 = vmatprep.subr.bf16.mxu0 0
  %994 = vmatpush1.bf16.msra.mxu0 %v750
  %995 = vmatprep.subr.bf16.mxu0 0
  %996 = vmatpush1.bf16.msra.mxu0 %v751
  %997 = vmatprep.subr.bf16.mxu0 0
  %998 = vmatpush1.bf16.msra.mxu0 %v752
  %999 = vmatprep.subr.bf16.mxu0 0
  %1000 = vmatpush1.bf16.msra.mxu0 %v753
  %1001 = vmatprep.subr.bf16.mxu0 0
  %1002 = vmatpush1.bf16.msra.mxu0 %v754
  %1003 = vmatprep.subr.bf16.mxu0 0
  %1004 = vmatpush1.bf16.msra.mxu0 %v755
  %1005 = vmatprep.subr.bf16.mxu0 0
  %1006 = vmatpush1.bf16.msra.mxu0 %v756
  %1007 = vmatprep.subr.bf16.mxu0 0
  %1008 = vmatpush1.bf16.msra.mxu0 %v757
  %1009 = vmatprep.subr.bf16.mxu0 0
  %1010 = vmatpush1.bf16.msra.mxu0 %v758
  %1011 = vmatprep.subr.bf16.mxu0 0
  %1012 = vmatpush1.bf16.msra.mxu0 %v759
  %1013 = vmatprep.subr.bf16.mxu0 0
  %1014 = vmatpush1.bf16.msra.mxu0 %v760
  %1015 = vmatprep.subr.bf16.mxu0 0
  %1016 = vmatpush1.bf16.msra.mxu0 %v761
  %1017 = vmatprep.subr.bf16.mxu0 0
  %1018 = vmatpush1.bf16.msra.mxu0 %v762
  %1019 = vmatprep.subr.bf16.mxu0 0
  %1020 = vmatpush1.bf16.msra.mxu0 %v763
  %1021 = vmatprep.subr.bf16.mxu0 0
  %1022 = vmatpush1.bf16.msra.mxu0 %v764
  %1023 = vmatprep.mubr.bf16.mxu0 %v314
  %1024 = vmatmul.mubr.bf16.gmra.mrb[0].mxu0 %v313
  %v1025 = vpop.f32.mrb[0].mxu0
  %v1026 = vadd.f32 %v985, %v1025
  %v1027 = vpop.f32.mrb[0].mxu0
  %v1028 = vpop.f32.mrb[0].mxu0
  %v1029 = vadd.f32 %v988, %v1028
  %v1030 = vpop.f32.mrb[0].mxu0
  %1031 = vdwg.mxu0
  %1032 = vmatprep.subr.bf16.mxu0 0
  %1033 = vmatpush1.bf16.msra.mxu0 %v765
  %1034 = vmatprep.subr.bf16.mxu0 0
  %1035 = vmatpush1.bf16.msra.mxu0 %v766
  %1036 = vmatprep.subr.bf16.mxu0 0
  %1037 = vmatpush1.bf16.msra.mxu0 %v767
  %1038 = vmatprep.subr.bf16.mxu0 0
  %1039 = vmatpush1.bf16.msra.mxu0 %v768
  %1040 = vmatprep.subr.bf16.mxu0 0
  %1041 = vmatpush1.bf16.msra.mxu0 %v769
  %1042 = vmatprep.subr.bf16.mxu0 0
  %1043 = vmatpush1.bf16.msra.mxu0 %v770
  %1044 = vmatprep.subr.bf16.mxu0 0
  %1045 = vmatpush1.bf16.msra.mxu0 %v771
  %1046 = vmatprep.subr.bf16.mxu0 0
  %1047 = vmatpush1.bf16.msra.mxu0 %v772
  %1048 = vmatprep.subr.bf16.mxu0 0
  %1049 = vmatpush1.bf16.msra.mxu0 %v773
  %1050 = vmatprep.subr.bf16.mxu0 0
  %1051 = vmatpush1.bf16.msra.mxu0 %v774
  %1052 = vmatprep.subr.bf16.mxu0 0
  %1053 = vmatpush1.bf16.msra.mxu0 %v775
  %1054 = vmatprep.subr.bf16.mxu0 0
  %1055 = vmatpush1.bf16.msra.mxu0 %v776
  %1056 = vmatprep.subr.bf16.mxu0 0
  %1057 = vmatpush1.bf16.msra.mxu0 %v777
  %1058 = vmatprep.subr.bf16.mxu0 0
  %1059 = vmatpush1.bf16.msra.mxu0 %v778
  %1060 = vmatprep.subr.bf16.mxu0 0
  %1061 = vmatpush1.bf16.msra.mxu0 %v779
  %1062 = vmatprep.subr.bf16.mxu0 0
  %1063 = vmatpush1.bf16.msra.mxu0 %v780
  %1064 = vmatprep.mubr.bf16.mxu0 %v316
  %1065 = vmatmul.mubr.bf16.gmra.mrb[0].mxu0 %v315
  %v1066 = vpop.f32.mrb[0].mxu0
  %v1067 = vadd.f32 %v1026, %v1066
  %v1068 = vpop.f32.mrb[0].mxu0
  %v1069 = vpop.f32.mrb[0].mxu0
  %v1070 = vadd.f32 %v1029, %v1069
  %v1071 = vpop.f32.mrb[0].mxu0
  %1072 = vdwg.mxu0
  %1073 = vmatprep.subr.bf16.mxu0 0
  %1074 = vmatpush1.bf16.msra.mxu0 %v781
  %1075 = vmatprep.subr.bf16.mxu0 0
  %1076 = vmatpush1.bf16.msra.mxu0 %v782
  %1077 = vmatprep.subr.bf16.mxu0 0
  %1078 = vmatpush1.bf16.msra.mxu0 %v783
  %1079 = vmatprep.subr.bf16.mxu0 0
  %1080 = vmatpush1.bf16.msra.mxu0 %v784
  %1081 = vmatprep.subr.bf16.mxu0 0
  %1082 = vmatpush1.bf16.msra.mxu0 %v785
  %1083 = vmatprep.subr.bf16.mxu0 0
  %1084 = vmatpush1.bf16.msra.mxu0 %v786
  %1085 = vmatprep.subr.bf16.mxu0 0
  %1086 = vmatpush1.bf16.msra.mxu0 %v787
  %1087 = vmatprep.subr.bf16.mxu0 0
  %1088 = vmatpush1.bf16.msra.mxu0 %v788
  %1089 = vmatprep.subr.bf16.mxu0 0
  %1090 = vmatpush1.bf16.msra.mxu0 %v789
  %1091 = vmatprep.subr.bf16.mxu0 0
  %1092 = vmatpush1.bf16.msra.mxu0 %v790
  %1093 = vmatprep.subr.bf16.mxu0 0
  %1094 = vmatpush1.bf16.msra.mxu0 %v791
  %1095 = vmatprep.subr.bf16.mxu0 0
  %1096 = vmatpush1.bf16.msra.mxu0 %v792
  %1097 = vmatprep.subr.bf16.mxu0 0
  %1098 = vmatpush1.bf16.msra.mxu0 %v793
  %1099 = vmatprep.subr.bf16.mxu0 0
  %1100 = vmatpush1.bf16.msra.mxu0 %v794
  %1101 = vmatprep.subr.bf16.mxu0 0
  %1102 = vmatpush1.bf16.msra.mxu0 %v795
  %1103 = vmatprep.subr.bf16.mxu0 0
  %1104 = vmatpush1.bf16.msra.mxu0 %v796
  %1105 = vmatprep.mubr.bf16.mxu0 %v318
  %1106 = vmatmul.mubr.bf16.gmra.mrb[0].mxu0 %v317
  %v1107 = vpop.f32.mrb[0].mxu0
  %v1108 = vadd.f32 %v1067, %v1107
  %v1109 = vpop.f32.mrb[0].mxu0
  %v1110 = vpop.f32.mrb[0].mxu0
  %v1111 = vadd.f32 %v1070, %v1110
  %v1112 = vpop.f32.mrb[0].mxu0
  %1113 = vdwg.mxu0
  %1114 = vmatprep.subr.bf16.mxu0 0
  %1115 = vmatpush1.bf16.msra.mxu0 %v797
  %1116 = vmatprep.subr.bf16.mxu0 0
  %1117 = vmatpush1.bf16.msra.mxu0 %v798
  %1118 = vmatprep.subr.bf16.mxu0 0
  %1119 = vmatpush1.bf16.msra.mxu0 %v799
  %1120 = vmatprep.subr.bf16.mxu0 0
  %1121 = vmatpush1.bf16.msra.mxu0 %v800
  %1122 = vmatprep.subr.bf16.mxu0 0
  %1123 = vmatpush1.bf16.msra.mxu0 %v801
  %1124 = vmatprep.subr.bf16.mxu0 0
  %1125 = vmatpush1.bf16.msra.mxu0 %v802
  %1126 = vmatprep.subr.bf16.mxu0 0
  %1127 = vmatpush1.bf16.msra.mxu0 %v803
  %1128 = vmatprep.subr.bf16.mxu0 0
  %1129 = vmatpush1.bf16.msra.mxu0 %v804
  %1130 = vmatprep.subr.bf16.mxu0 0
  %1131 = vmatpush1.bf16.msra.mxu0 %v805
  %1132 = vmatprep.subr.bf16.mxu0 0
  %1133 = vmatpush1.bf16.msra.mxu0 %v806
  %1134 = vmatprep.subr.bf16.mxu0 0
  %1135 = vmatpush1.bf16.msra.mxu0 %v807
  %1136 = vmatprep.subr.bf16.mxu0 0
  %1137 = vmatpush1.bf16.msra.mxu0 %v808
  %1138 = vmatprep.subr.bf16.mxu0 0
  %1139 = vmatpush1.bf16.msra.mxu0 %v809
  %1140 = vmatprep.subr.bf16.mxu0 0
  %1141 = vmatpush1.bf16.msra.mxu0 %v810
  %1142 = vmatprep.subr.bf16.mxu0 0
  %1143 = vmatpush1.bf16.msra.mxu0 %v811
  %1144 = vmatprep.subr.bf16.mxu0 0
  %1145 = vmatpush1.bf16.msra.mxu0 %v812
  %1146 = vmatprep.mubr.bf16.mxu0 %v320
  %1147 = vmatmul.mubr.bf16.gmra.mrb[0].mxu0 %v319
  %v1148 = vpop.f32.mrb[0].mxu0
  %v1149 = vadd.f32 %v1108, %v1148
  %v1150 = vpop.f32.mrb[0].mxu0
  %v1151 = vpop.f32.mrb[0].mxu0
  %v1152 = vadd.f32 %v1111, %v1151
  %v1153 = vpop.f32.mrb[0].mxu0
  %1154 = vdwg.mxu0
  %v1155 = vld [vmem:[%s1] sm:$0xff]
  %v1156 = vld [vmem:[%s1 + $0x8] sm:$0xff]
  %v1157 = vld [vmem:[%s1 + $0x10] sm:$0x3]
  %v1158 = vadd.f32 %v1149, %v1155
  %v1159 = vadd.f32 %v1152, %v1156
  %v1160 = vadd.f32 %v1157, 0.0
  %v1161 = vld [vmem:[%s2] sm:$0xff]
  %v1162 = vld [vmem:[%s2 + $0x8] sm:$0xff]
  %v1163 = vld [vmem:[%s2 + $0x10] sm:$0x3]
  %v1164 = vld [vmem:[%s4] sm:$0x1]
  %v1165 = vld [vmem:[%s5] sm:$0x1]
  %vm1166 = vcmask 261120
  %v1167 = vsel %vm1166, %v1158, 0.0
  %1168 = vadd.xlane.f32.xlu0 %v1167
  %v1169 = vpop.xlane.xlu0 %1168
  %v1170 = vsel %vm1166, %v1159, 0.0
  %1171 = vadd.xlane.f32.xlu0 %v1170
  %v1172 = vpop.xlane.xlu0 %1171
  %vm1173 = vcmask 254976
  %v1174 = vsel %vm1173, %v1160, 0.0
  %1175 = vadd.xlane.f32.xlu0 %v1174
  %v1176 = vpop.xlane.xlu0 %1175
  %v1177 = vrcp.pop 32.0
  %v1178 = vmul.f32 %v1169, %v1177
  %v1179 = vmul.f32 %v1172, %v1177
  %v1180 = vmul.f32 %v1176, %v1177
  %v1181 = vsub.f32 %v1158, %v1178
  %v1182 = vsub.f32 %v1159, %v1179
  %v1183 = vsub.f32 %v1160, %v1180
  %v1184 = vmul.f32 %v1181, %v1181
  %v1185 = vmul.f32 %v1182, %v1182
  %v1186 = vmul.f32 %v1183, %v1183
  %v1187 = vsel %vm1166, %v1184, 0.0
  %1188 = vadd.xlane.f32.xlu0 %v1187
  %v1189 = vpop.xlane.xlu0 %1188
  %v1190 = vsel %vm1166, %v1185, 0.0
  %1191 = vadd.xlane.f32.xlu0 %v1190
  %v1192 = vpop.xlane.xlu0 %1191
  %v1193 = vsel %vm1173, %v1186, 0.0
  %1194 = vadd.xlane.f32.xlu0 %v1193
  %v1195 = vpop.xlane.xlu0 %1194
  %v1196 = vmul.f32 %v1189, %v1177
  %v1197 = vmul.f32 %v1192, %v1177
  %v1198 = vmul.f32 %v1195, %v1177
  %v1199 = vadd.f32 %v1196, 1e-05
  %v1200 = vadd.f32 %v1197, 1e-05
  %v1201 = vadd.f32 %v1198, 1e-05
  %v1202 = vrsqrt.pop %v1199
  %v1203 = vrsqrt.pop %v1200
  %v1204 = vrsqrt.pop %v1201
  %v1205 = vmul.f32 %v1181, %v1202
  %v1206 = vmul.f32 %v1182, %v1203
  %v1207 = vmul.f32 %v1183, %v1204
  %v1209 = vlaneseq
  %v1210 = vshrl.u32 %v1209, 7
  %v1211 = vsub.s32 0, %v1210
  %v1212 = vrot.slane %v1164, %v1211
  %v1214 = vmul.f32 %v1205, %v1212
  %v1215 = vmul.f32 %v1206, %v1212
  %v1216 = vmul.f32 %v1207, %v1212
  %v1218 = vlaneseq
  %v1219 = vshrl.u32 %v1218, 7
  %v1220 = vsub.s32 0, %v1219
  %v1221 = vrot.slane %v1165, %v1220
  %v1223 = vadd.f32 %v1214, %v1221
  %v1224 = vadd.f32 %v1215, %v1221
  %v1225 = vadd.f32 %v1216, %v1221
  %v1226 = vld [vmem:[%s6] sm:$0xff]
  %v1227 = vld [vmem:[%s6 + $0x8] sm:$0xff]
  %v1228 = vld [vmem:[%s6 + $0x10] sm:$0xff]
  %v1229 = vld [vmem:[%s6 + $0x18] sm:$0xff]
  %v1230 = vld [vmem:[%s7] sm:$0x1]
  %v1232 = vlaneseq
  %v1233 = vshrl.u32 %v1232, 7
  %v1234 = vsub.s32 0, %v1233
  %v1235 = vrot.slane %v1230, %v1234
  %v1238 = vsel %vm1166, %v1223, 0
  %v1241 = vsel %vm1166, %v1224, 0
  %v1244 = vsel %vm1166, %v1225, 0
  %1246 = vmatprep.subr.mxu0 0.0
  %1247 = vmatpush1.msra.mxu0 %v1226
  %1248 = vmatprep.subr.mxu0 0.0
  %1249 = vmatpush1.msra.mxu0 %v1227
  %1250 = vmatprep.subr.mxu0 0.0
  %1251 = vmatpush1.msra.mxu0 %v1228
  %1252 = vmatprep.subr.mxu0 0.0
  %1253 = vmatpush1.msra.mxu0 %v1229
  %1254 = vmatprep.subr.mxu0 0.0
  %1255 = vmatpush1.msra.mxu0 0.0
  %1256 = vmatprep.subr.mxu0 0.0
  %1257 = vmatpush1.msra.mxu0 0.0
  %1258 = vmatprep.subr.mxu0 0.0
  %1259 = vmatpush1.msra.mxu0 0.0
  %1260 = vmatprep.subr.mxu0 0.0
  %1261 = vmatpush1.msra.mxu0 0.0
  %1262 = vmatprep.subr.mxu0 0.0
  %1263 = vmatpush1.msra.mxu0 0.0
  %1264 = vmatprep.subr.mxu0 0.0
  %1265 = vmatpush1.msra.mxu0 0.0
  %1266 = vmatprep.subr.mxu0 0.0
  %1267 = vmatpush1.msra.mxu0 0.0
  %1268 = vmatprep.subr.mxu0 0.0
  %1269 = vmatpush1.msra.mxu0 0.0
  %1270 = vmatprep.subr.mxu0 0.0
  %1271 = vmatpush1.msra.mxu0 0.0
  %1272 = vmatprep.subr.mxu0 0.0
  %1273 = vmatpush1.msra.mxu0 0.0
  %1274 = vmatprep.subr.mxu0 0.0
  %1275 = vmatpush1.msra.mxu0 0.0
  %1276 = vmatprep.subr.mxu0 0.0
  %1277 = vmatpush1.msra.mxu0 0.0
  %1278 = vmatprep.subr.mxu0 0.0
  %1279 = vmatpush1.msra.mxu0 0.0
  %1280 = vmatprep.subr.mxu0 0.0
  %1281 = vmatpush1.msra.mxu0 0.0
  %1282 = vmatprep.subr.mxu0 0.0
  %1283 = vmatpush1.msra.mxu0 0.0
  %1284 = vmatprep.subr.mxu0 0.0
  %1285 = vmatpush1.msra.mxu0 0.0
  %1286 = vmatprep.subr.mxu0 0.0
  %1287 = vmatpush1.msra.mxu0 0.0
  %1288 = vmatprep.subr.mxu0 0.0
  %1289 = vmatpush1.msra.mxu0 0.0
  %1290 = vmatprep.subr.mxu0 0.0
  %1291 = vmatpush1.msra.mxu0 0.0
  %1292 = vmatprep.subr.mxu0 0.0
  %1293 = vmatpush1.msra.mxu0 0.0
  %1294 = vmatprep.subr.mxu0 0.0
  %1295 = vmatpush1.msra.mxu0 0.0
  %1296 = vmatprep.subr.mxu0 0.0
  %1297 = vmatpush1.msra.mxu0 0.0
  %1298 = vmatprep.subr.mxu0 0.0
  %1299 = vmatpush1.msra.mxu0 0.0
  %1300 = vmatprep.subr.mxu0 0.0
  %1301 = vmatpush1.msra.mxu0 0.0
  %1302 = vmatprep.subr.mxu0 0.0
  %1303 = vmatpush1.msra.mxu0 0.0
  %1304 = vmatprep.subr.mxu0 0.0
  %1305 = vmatpush1.msra.mxu0 0.0
  %1306 = vmatprep.subr.mxu0 0.0
  %1307 = vmatpush1.msra.mxu0 0.0
  %1308 = vmatprep.subr.mxu0 0.0
  %1309 = vmatpush1.msra.mxu0 0.0
  %1310 = vmatprep.mubr.f32.mxu0 0.0
  %1311 = vmatmul.mubr.f32.gmra.mrb[0].mxu0 %v1238
  %v1312 = vpop.f32.mrb[0].mxu0
  %v1313 = vadd.f32 %v1235, %v1312
  %v1314 = vpop.f32.mrb[0].mxu0
  %1315 = vmatprep.mubr.f32.mxu0 0.0
  %1316 = vmatmul.mubr.f32.gmra.mrb[0].mxu0 %v1241
  %v1317 = vpop.f32.mrb[0].mxu0
  %v1318 = vadd.f32 %v1235, %v1317
  %v1319 = vpop.f32.mrb[0].mxu0
  %1320 = vmatprep.mubr.f32.mxu0 0.0
  %1321 = vmatmul.mubr.f32.gmra.mrb[0].mxu0 %v1244
  %v1322 = vpop.f32.mrb[0].mxu0
  %v1323 = vadd.f32 %v1235, %v1322
  %v1324 = vpop.f32.mrb[0].mxu0
  %1325 = vdwg.mxu0
  %s1326 = scalar_lea.vmem %s6, 128
  %v1327 = vld [vmem:[%s1326] sm:$0xff]
  %v1328 = vld [vmem:[%s1326 + $0x8] sm:$0xff]
  %v1329 = vld [vmem:[%s1326 + $0x10] sm:$0xff]
  %v1330 = vld [vmem:[%s1326 + $0x18] sm:$0xff]
  %s1331 = scalar_lea.vmem %s7, 4
  %v1332 = vld [vmem:[%s1331] sm:$0x1]
  %v1334 = vlaneseq
  %v1335 = vshrl.u32 %v1334, 7
  %v1336 = vsub.s32 0, %v1335
  %v1337 = vrot.slane %v1332, %v1336
  %1339 = vmatprep.subr.mxu0 0.0
  %1340 = vmatpush1.msra.mxu0 %v1327
  %1341 = vmatprep.subr.mxu0 0.0
  %1342 = vmatpush1.msra.mxu0 %v1328
  %1343 = vmatprep.subr.mxu0 0.0
  %1344 = vmatpush1.msra.mxu0 %v1329
  %1345 = vmatprep.subr.mxu0 0.0
  %1346 = vmatpush1.msra.mxu0 %v1330
  %1347 = vmatprep.subr.mxu0 0.0
  %1348 = vmatpush1.msra.mxu0 0.0
  %1349 = vmatprep.subr.mxu0 0.0
  %1350 = vmatpush1.msra.mxu0 0.0
  %1351 = vmatprep.subr.mxu0 0.0
  %1352 = vmatpush1.msra.mxu0 0.0
  %1353 = vmatprep.subr.mxu0 0.0
  %1354 = vmatpush1.msra.mxu0 0.0
  %1355 = vmatprep.subr.mxu0 0.0
  %1356 = vmatpush1.msra.mxu0 0.0
  %1357 = vmatprep.subr.mxu0 0.0
  %1358 = vmatpush1.msra.mxu0 0.0
  %1359 = vmatprep.subr.mxu0 0.0
  %1360 = vmatpush1.msra.mxu0 0.0
  %1361 = vmatprep.subr.mxu0 0.0
  %1362 = vmatpush1.msra.mxu0 0.0
  %1363 = vmatprep.subr.mxu0 0.0
  %1364 = vmatpush1.msra.mxu0 0.0
  %1365 = vmatprep.subr.mxu0 0.0
  %1366 = vmatpush1.msra.mxu0 0.0
  %1367 = vmatprep.subr.mxu0 0.0
  %1368 = vmatpush1.msra.mxu0 0.0
  %1369 = vmatprep.subr.mxu0 0.0
  %1370 = vmatpush1.msra.mxu0 0.0
  %1371 = vmatprep.subr.mxu0 0.0
  %1372 = vmatpush1.msra.mxu0 0.0
  %1373 = vmatprep.subr.mxu0 0.0
  %1374 = vmatpush1.msra.mxu0 0.0
  %1375 = vmatprep.subr.mxu0 0.0
  %1376 = vmatpush1.msra.mxu0 0.0
  %1377 = vmatprep.subr.mxu0 0.0
  %1378 = vmatpush1.msra.mxu0 0.0
  %1379 = vmatprep.subr.mxu0 0.0
  %1380 = vmatpush1.msra.mxu0 0.0
  %1381 = vmatprep.subr.mxu0 0.0
  %1382 = vmatpush1.msra.mxu0 0.0
  %1383 = vmatprep.subr.mxu0 0.0
  %1384 = vmatpush1.msra.mxu0 0.0
  %1385 = vmatprep.subr.mxu0 0.0
  %1386 = vmatpush1.msra.mxu0 0.0
  %1387 = vmatprep.subr.mxu0 0.0
  %1388 = vmatpush1.msra.mxu0 0.0
  %1389 = vmatprep.subr.mxu0 0.0
  %1390 = vmatpush1.msra.mxu0 0.0
  %1391 = vmatprep.subr.mxu0 0.0
  %1392 = vmatpush1.msra.mxu0 0.0
  %1393 = vmatprep.subr.mxu0 0.0
  %1394 = vmatpush1.msra.mxu0 0.0
  %1395 = vmatprep.subr.mxu0 0.0
  %1396 = vmatpush1.msra.mxu0 0.0
  %1397 = vmatprep.subr.mxu0 0.0
  %1398 = vmatpush1.msra.mxu0 0.0
  %1399 = vmatprep.subr.mxu0 0.0
  %1400 = vmatpush1.msra.mxu0 0.0
  %1401 = vmatprep.subr.mxu0 0.0
  %1402 = vmatpush1.msra.mxu0 0.0
  %1403 = vmatprep.mubr.f32.mxu0 0.0
  %1404 = vmatmul.mubr.f32.gmra.mrb[0].mxu0 %v1238
  %v1405 = vpop.f32.mrb[0].mxu0
  %v1406 = vadd.f32 %v1337, %v1405
  %v1407 = vpop.f32.mrb[0].mxu0
  %1408 = vmatprep.mubr.f32.mxu0 0.0
  %1409 = vmatmul.mubr.f32.gmra.mrb[0].mxu0 %v1241
  %v1410 = vpop.f32.mrb[0].mxu0
  %v1411 = vadd.f32 %v1337, %v1410
  %v1412 = vpop.f32.mrb[0].mxu0
  %1413 = vmatprep.mubr.f32.mxu0 0.0
  %1414 = vmatmul.mubr.f32.gmra.mrb[0].mxu0 %v1244
  %v1415 = vpop.f32.mrb[0].mxu0
  %v1416 = vadd.f32 %v1337, %v1415
  %v1417 = vpop.f32.mrb[0].mxu0
  %1418 = vdwg.mxu0
  %s1419 = scalar_lea.vmem %s6, 256
  %v1420 = vld [vmem:[%s1419] sm:$0xff]
  %v1421 = vld [vmem:[%s1419 + $0x8] sm:$0xff]
  %v1422 = vld [vmem:[%s1419 + $0x10] sm:$0xff]
  %v1423 = vld [vmem:[%s1419 + $0x18] sm:$0xff]
  %s1424 = scalar_lea.vmem %s7, 8
  %v1425 = vld [vmem:[%s1424] sm:$0x1]
  %v1427 = vlaneseq
  %v1428 = vshrl.u32 %v1427, 7
  %v1429 = vsub.s32 0, %v1428
  %v1430 = vrot.slane %v1425, %v1429
  %1432 = vmatprep.subr.mxu0 0.0
  %1433 = vmatpush1.msra.mxu0 %v1420
  %1434 = vmatprep.subr.mxu0 0.0
  %1435 = vmatpush1.msra.mxu0 %v1421
  %1436 = vmatprep.subr.mxu0 0.0
  %1437 = vmatpush1.msra.mxu0 %v1422
  %1438 = vmatprep.subr.mxu0 0.0
  %1439 = vmatpush1.msra.mxu0 %v1423
  %1440 = vmatprep.subr.mxu0 0.0
  %1441 = vmatpush1.msra.mxu0 0.0
  %1442 = vmatprep.subr.mxu0 0.0
  %1443 = vmatpush1.msra.mxu0 0.0
  %1444 = vmatprep.subr.mxu0 0.0
  %1445 = vmatpush1.msra.mxu0 0.0
  %1446 = vmatprep.subr.mxu0 0.0
  %1447 = vmatpush1.msra.mxu0 0.0
  %1448 = vmatprep.subr.mxu0 0.0
  %1449 = vmatpush1.msra.mxu0 0.0
  %1450 = vmatprep.subr.mxu0 0.0
  %1451 = vmatpush1.msra.mxu0 0.0
  %1452 = vmatprep.subr.mxu0 0.0
  %1453 = vmatpush1.msra.mxu0 0.0
  %1454 = vmatprep.subr.mxu0 0.0
  %1455 = vmatpush1.msra.mxu0 0.0
  %1456 = vmatprep.subr.mxu0 0.0
  %1457 = vmatpush1.msra.mxu0 0.0
  %1458 = vmatprep.subr.mxu0 0.0
  %1459 = vmatpush1.msra.mxu0 0.0
  %1460 = vmatprep.subr.mxu0 0.0
  %1461 = vmatpush1.msra.mxu0 0.0
  %1462 = vmatprep.subr.mxu0 0.0
  %1463 = vmatpush1.msra.mxu0 0.0
  %1464 = vmatprep.subr.mxu0 0.0
  %1465 = vmatpush1.msra.mxu0 0.0
  %1466 = vmatprep.subr.mxu0 0.0
  %1467 = vmatpush1.msra.mxu0 0.0
  %1468 = vmatprep.subr.mxu0 0.0
  %1469 = vmatpush1.msra.mxu0 0.0
  %1470 = vmatprep.subr.mxu0 0.0
  %1471 = vmatpush1.msra.mxu0 0.0
  %1472 = vmatprep.subr.mxu0 0.0
  %1473 = vmatpush1.msra.mxu0 0.0
  %1474 = vmatprep.subr.mxu0 0.0
  %1475 = vmatpush1.msra.mxu0 0.0
  %1476 = vmatprep.subr.mxu0 0.0
  %1477 = vmatpush1.msra.mxu0 0.0
  %1478 = vmatprep.subr.mxu0 0.0
  %1479 = vmatpush1.msra.mxu0 0.0
  %1480 = vmatprep.subr.mxu0 0.0
  %1481 = vmatpush1.msra.mxu0 0.0
  %1482 = vmatprep.subr.mxu0 0.0
  %1483 = vmatpush1.msra.mxu0 0.0
  %1484 = vmatprep.subr.mxu0 0.0
  %1485 = vmatpush1.msra.mxu0 0.0
  %1486 = vmatprep.subr.mxu0 0.0
  %1487 = vmatpush1.msra.mxu0 0.0
  %1488 = vmatprep.subr.mxu0 0.0
  %1489 = vmatpush1.msra.mxu0 0.0
  %1490 = vmatprep.subr.mxu0 0.0
  %1491 = vmatpush1.msra.mxu0 0.0
  %1492 = vmatprep.subr.mxu0 0.0
  %1493 = vmatpush1.msra.mxu0 0.0
  %1494 = vmatprep.subr.mxu0 0.0
  %1495 = vmatpush1.msra.mxu0 0.0
  %1496 = vmatprep.mubr.f32.mxu0 0.0
  %1497 = vmatmul.mubr.f32.gmra.mrb[0].mxu0 %v1238
  %v1498 = vpop.f32.mrb[0].mxu0
  %v1499 = vadd.f32 %v1430, %v1498
  %v1500 = vpop.f32.mrb[0].mxu0
  %1501 = vmatprep.mubr.f32.mxu0 0.0
  %1502 = vmatmul.mubr.f32.gmra.mrb[0].mxu0 %v1241
  %v1503 = vpop.f32.mrb[0].mxu0
  %v1504 = vadd.f32 %v1430, %v1503
  %v1505 = vpop.f32.mrb[0].mxu0
  %1506 = vmatprep.mubr.f32.mxu0 0.0
  %1507 = vmatmul.mubr.f32.gmra.mrb[0].mxu0 %v1244
  %v1508 = vpop.f32.mrb[0].mxu0
  %v1509 = vadd.f32 %v1430, %v1508
  %v1510 = vpop.f32.mrb[0].mxu0
  %1511 = vdwg.mxu0
  %vm1512 = vcmask 64512
  %v1514 = vsel %vm1512, %v1313, 0
  %v1517 = vsel %vm1512, %v1318, 0
  %v1520 = vsel %vm1512, %v1323, 0
  %v1523 = vsel %vm1512, %v1406, 0
  %v1526 = vsel %vm1512, %v1411, 0
  %v1529 = vsel %vm1512, %v1416, 0
  %1531 = vmatprep.subr.mxu0 0.0
  %1532 = vmatpush1.xpose.msra.mxu0 %v1523
  %1533 = vmatprep.subr.mxu0 0.0
  %1534 = vmatpush1.xpose.msra.mxu0 %v1526
  %1535 = vmatprep.subr.mxu0 0.0
  %1536 = vmatpush1.xpose.msra.mxu0 %v1529
  %1537 = vmatprep.subr.mxu0 0.0
  %1538 = vmatpush1.xpose.msra.mxu0 0.0
  %1539 = vmatprep.subr.mxu0 0.0
  %1540 = vmatpush1.xpose.msra.mxu0 0.0
  %1541 = vmatprep.subr.mxu0 0.0
  %1542 = vmatpush1.xpose.msra.mxu0 0.0
  %1543 = vmatprep.subr.mxu0 0.0
  %1544 = vmatpush1.xpose.msra.mxu0 0.0
  %1545 = vmatprep.subr.mxu0 0.0
  %1546 = vmatpush1.xpose.msra.mxu0 0.0
  %1547 = vmatprep.subr.mxu0 0.0
  %1548 = vmatpush1.xpose.msra.mxu0 0.0
  %1549 = vmatprep.subr.mxu0 0.0
  %1550 = vmatpush1.xpose.msra.mxu0 0.0
  %1551 = vmatprep.subr.mxu0 0.0
  %1552 = vmatpush1.xpose.msra.mxu0 0.0
  %1553 = vmatprep.subr.mxu0 0.0
  %1554 = vmatpush1.xpose.msra.mxu0 0.0
  %1555 = vmatprep.subr.mxu0 0.0
  %1556 = vmatpush1.xpose.msra.mxu0 0.0
  %1557 = vmatprep.subr.mxu0 0.0
  %1558 = vmatpush1.xpose.msra.mxu0 0.0
  %1559 = vmatprep.subr.mxu0 0.0
  %1560 = vmatpush1.xpose.msra.mxu0 0.0
  %1561 = vmatprep.subr.mxu0 0.0
  %1562 = vmatpush1.xpose.msra.mxu0 0.0
  %1563 = vmatprep.subr.mxu0 0.0
  %1564 = vmatpush1.xpose.msra.mxu0 0.0
  %1565 = vmatprep.subr.mxu0 0.0
  %1566 = vmatpush1.xpose.msra.mxu0 0.0
  %1567 = vmatprep.subr.mxu0 0.0
  %1568 = vmatpush1.xpose.msra.mxu0 0.0
  %1569 = vmatprep.subr.mxu0 0.0
  %1570 = vmatpush1.xpose.msra.mxu0 0.0
  %1571 = vmatprep.subr.mxu0 0.0
  %1572 = vmatpush1.xpose.msra.mxu0 0.0
  %1573 = vmatprep.subr.mxu0 0.0
  %1574 = vmatpush1.xpose.msra.mxu0 0.0
  %1575 = vmatprep.subr.mxu0 0.0
  %1576 = vmatpush1.xpose.msra.mxu0 0.0
  %1577 = vmatprep.subr.mxu0 0.0
  %1578 = vmatpush1.xpose.msra.mxu0 0.0
  %1579 = vmatprep.subr.mxu0 0.0
  %1580 = vmatpush1.xpose.msra.mxu0 0.0
  %1581 = vmatprep.subr.mxu0 0.0
  %1582 = vmatpush1.xpose.msra.mxu0 0.0
  %1583 = vmatprep.subr.mxu0 0.0
  %1584 = vmatpush1.xpose.msra.mxu0 0.0
  %1585 = vmatprep.subr.mxu0 0.0
  %1586 = vmatpush1.xpose.msra.mxu0 0.0
  %1587 = vmatprep.subr.mxu0 0.0
  %1588 = vmatpush1.xpose.msra.mxu0 0.0
  %1589 = vmatprep.subr.mxu0 0.0
  %1590 = vmatpush1.xpose.msra.mxu0 0.0
  %1591 = vmatprep.subr.mxu0 0.0
  %1592 = vmatpush1.xpose.msra.mxu0 0.0
  %1593 = vmatprep.subr.mxu0 0.0
  %1594 = vmatpush1.xpose.msra.mxu0 0.0
  %1595 = vmatprep.mubr.f32.mxu0 0.0
  %1596 = vmatmul.mubr.f32.gmra.mrb[0].mxu0 %v1514
  %v1597 = vpop.f32.mrb[0].mxu0
  %v1598 = vadd.f32 %v1161, %v1597
  %v1599 = vpop.f32.mrb[0].mxu0
  %1600 = vmatprep.mubr.f32.mxu0 0.0
  %1601 = vmatmul.mubr.f32.gmra.mrb[0].mxu0 %v1517
  %v1602 = vpop.f32.mrb[0].mxu0
  %v1603 = vadd.f32 %v1162, %v1602
  %v1604 = vpop.f32.mrb[0].mxu0
  %1605 = vmatprep.mubr.f32.mxu0 0.0
  %1606 = vmatmul.mubr.f32.gmra.mrb[0].mxu0 %v1520
  %v1607 = vpop.f32.mrb[0].mxu0
  %v1608 = vadd.f32 %v1163, %v1607
  %v1609 = vpop.f32.mrb[0].mxu0
  %1610 = vdwg.mxu0
  %vm1611 = vcmask 146432
  %v1612 = vsel %vm1611, %v1598, -inf
  %1613 = vmax.xlane.f32.xlu0 %v1612
  %v1614 = vpop.xlane.xlu0 %1613
  %v1615 = vsel %vm1611, %v1603, -inf
  %1616 = vmax.xlane.f32.xlu0 %v1615
  %v1617 = vpop.xlane.xlu0 %1616
  %vm1618 = vcmask 140288
  %v1619 = vsel %vm1618, %v1608, -inf
  %1620 = vmax.xlane.f32.xlu0 %v1619
  %v1621 = vpop.xlane.xlu0 %1620
  %v1622 = vsub.f32 %v1598, %v1614
  %v1623 = vsub.f32 %v1603, %v1617
  %v1624 = vsub.f32 %v1608, %v1621
  %v1625 = vmul.f32 %v1622, 1.442695
  %v1626 = vpow.pop %v1625
  %v1627 = vmul.f32 %v1623, 1.442695
  %v1628 = vpow.pop %v1627
  %v1629 = vmul.f32 %v1624, 1.442695
  %v1630 = vpow.pop %v1629
  %v1631 = vsel %vm1611, %v1626, 0.0
  %1632 = vadd.xlane.f32.xlu0 %v1631
  %v1633 = vpop.xlane.xlu0 %1632
  %v1634 = vsel %vm1611, %v1628, 0.0
  %1635 = vadd.xlane.f32.xlu0 %v1634
  %v1636 = vpop.xlane.xlu0 %1635
  %v1637 = vsel %vm1618, %v1630, 0.0
  %1638 = vadd.xlane.f32.xlu0 %v1637
  %v1639 = vpop.xlane.xlu0 %1638
  %v1640 = vrcp.pop %v1633
  %v1641 = vrcp.pop %v1636
  %v1642 = vrcp.pop %v1639
  %v1643 = vmul.f32 %v1626, %v1640
  %v1644 = vmul.f32 %v1628, %v1641
  %v1645 = vmul.f32 %v1630, %v1642
  %v1647 = vsel %vm1611, %v1643, 0
  %v1650 = vsel %vm1611, %v1644, 0
  %v1653 = vsel %vm1611, %v1645, 0
  %vm1655 = vcmask 1041408
  %v1657 = vsel %vm1655, %v1509, 0
  %1659 = vmatprep.subr.mxu0 0.0
  %1660 = vmatpush1.msra.mxu0 %v1499
  %1661 = vmatprep.subr.mxu0 0.0
  %1662 = vmatpush1.msra.mxu0 %v1504
  %1663 = vmatprep.subr.mxu0 0.0
  %1664 = vmatpush1.msra.mxu0 %v1657
  %1665 = vmatprep.subr.mxu0 0.0
  %1666 = vmatpush1.msra.mxu0 0.0
  %1667 = vmatprep.subr.mxu0 0.0
  %1668 = vmatpush1.msra.mxu0 0.0
  %1669 = vmatprep.subr.mxu0 0.0
  %1670 = vmatpush1.msra.mxu0 0.0
  %1671 = vmatprep.subr.mxu0 0.0
  %1672 = vmatpush1.msra.mxu0 0.0
  %1673 = vmatprep.subr.mxu0 0.0
  %1674 = vmatpush1.msra.mxu0 0.0
  %1675 = vmatprep.subr.mxu0 0.0
  %1676 = vmatpush1.msra.mxu0 0.0
  %1677 = vmatprep.subr.mxu0 0.0
  %1678 = vmatpush1.msra.mxu0 0.0
  %1679 = vmatprep.subr.mxu0 0.0
  %1680 = vmatpush1.msra.mxu0 0.0
  %1681 = vmatprep.subr.mxu0 0.0
  %1682 = vmatpush1.msra.mxu0 0.0
  %1683 = vmatprep.subr.mxu0 0.0
  %1684 = vmatpush1.msra.mxu0 0.0
  %1685 = vmatprep.subr.mxu0 0.0
  %1686 = vmatpush1.msra.mxu0 0.0
  %1687 = vmatprep.subr.mxu0 0.0
  %1688 = vmatpush1.msra.mxu0 0.0
  %1689 = vmatprep.subr.mxu0 0.0
  %1690 = vmatpush1.msra.mxu0 0.0
  %1691 = vmatprep.subr.mxu0 0.0
  %1692 = vmatpush1.msra.mxu0 0.0
  %1693 = vmatprep.subr.mxu0 0.0
  %1694 = vmatpush1.msra.mxu0 0.0
  %1695 = vmatprep.subr.mxu0 0.0
  %1696 = vmatpush1.msra.mxu0 0.0
  %1697 = vmatprep.subr.mxu0 0.0
  %1698 = vmatpush1.msra.mxu0 0.0
  %1699 = vmatprep.subr.mxu0 0.0
  %1700 = vmatpush1.msra.mxu0 0.0
  %1701 = vmatprep.subr.mxu0 0.0
  %1702 = vmatpush1.msra.mxu0 0.0
  %1703 = vmatprep.subr.mxu0 0.0
  %1704 = vmatpush1.msra.mxu0 0.0
  %1705 = vmatprep.subr.mxu0 0.0
  %1706 = vmatpush1.msra.mxu0 0.0
  %1707 = vmatprep.subr.mxu0 0.0
  %1708 = vmatpush1.msra.mxu0 0.0
  %1709 = vmatprep.subr.mxu0 0.0
  %1710 = vmatpush1.msra.mxu0 0.0
  %1711 = vmatprep.subr.mxu0 0.0
  %1712 = vmatpush1.msra.mxu0 0.0
  %1713 = vmatprep.subr.mxu0 0.0
  %1714 = vmatpush1.msra.mxu0 0.0
  %1715 = vmatprep.subr.mxu0 0.0
  %1716 = vmatpush1.msra.mxu0 0.0
  %1717 = vmatprep.subr.mxu0 0.0
  %1718 = vmatpush1.msra.mxu0 0.0
  %1719 = vmatprep.subr.mxu0 0.0
  %1720 = vmatpush1.msra.mxu0 0.0
  %1721 = vmatprep.subr.mxu0 0.0
  %1722 = vmatpush1.msra.mxu0 0.0
  %1723 = vmatprep.mubr.f32.mxu0 0.0
  %1724 = vmatmul.mubr.f32.gmra.mrb[0].mxu0 %v1647
  %v1725 = vpop.f32.mrb[0].mxu0
  %v1726 = vadd.f32 0.0, %v1725
  %v1727 = vpop.f32.mrb[0].mxu0
  %1728 = vmatprep.mubr.f32.mxu0 0.0
  %1729 = vmatmul.mubr.f32.gmra.mrb[0].mxu0 %v1650
  %v1730 = vpop.f32.mrb[0].mxu0
  %v1731 = vadd.f32 0.0, %v1730
  %v1732 = vpop.f32.mrb[0].mxu0
  %1733 = vmatprep.mubr.f32.mxu0 0.0
  %1734 = vmatmul.mubr.f32.gmra.mrb[0].mxu0 %v1653
  %v1735 = vpop.f32.mrb[0].mxu0
  %v1736 = vadd.f32 0.0, %v1735
  %v1737 = vpop.f32.mrb[0].mxu0
  %1738 = vdwg.mxu0
  %v1739 = vld [vmem:[%s8] sm:$0xff]
  %s1740 = scalar_lea.vmem %s6, 32
  %v1741 = vld [vmem:[%s1740] sm:$0xff]
  %v1742 = vld [vmem:[%s1740 + $0x8] sm:$0xff]
  %v1743 = vld [vmem:[%s1740 + $0x10] sm:$0xff]
  %v1744 = vld [vmem:[%s1740 + $0x18] sm:$0xff]
  %s1745 = scalar_lea.vmem %s7, 1
  %v1746 = vld [vmem:[%s1745] sm:$0x1]
  %v1748 = vlaneseq
  %v1749 = vshrl.u32 %v1748, 7
  %v1750 = vsub.s32 0, %v1749
  %v1751 = vrot.slane %v1746, %v1750
  %1753 = vmatprep.subr.mxu0 0.0
  %1754 = vmatpush1.msra.mxu0 %v1741
  %1755 = vmatprep.subr.mxu0 0.0
  %1756 = vmatpush1.msra.mxu0 %v1742
  %1757 = vmatprep.subr.mxu0 0.0
  %1758 = vmatpush1.msra.mxu0 %v1743
  %1759 = vmatprep.subr.mxu0 0.0
  %1760 = vmatpush1.msra.mxu0 %v1744
  %1761 = vmatprep.subr.mxu0 0.0
  %1762 = vmatpush1.msra.mxu0 0.0
  %1763 = vmatprep.subr.mxu0 0.0
  %1764 = vmatpush1.msra.mxu0 0.0
  %1765 = vmatprep.subr.mxu0 0.0
  %1766 = vmatpush1.msra.mxu0 0.0
  %1767 = vmatprep.subr.mxu0 0.0
  %1768 = vmatpush1.msra.mxu0 0.0
  %1769 = vmatprep.subr.mxu0 0.0
  %1770 = vmatpush1.msra.mxu0 0.0
  %1771 = vmatprep.subr.mxu0 0.0
  %1772 = vmatpush1.msra.mxu0 0.0
  %1773 = vmatprep.subr.mxu0 0.0
  %1774 = vmatpush1.msra.mxu0 0.0
  %1775 = vmatprep.subr.mxu0 0.0
  %1776 = vmatpush1.msra.mxu0 0.0
  %1777 = vmatprep.subr.mxu0 0.0
  %1778 = vmatpush1.msra.mxu0 0.0
  %1779 = vmatprep.subr.mxu0 0.0
  %1780 = vmatpush1.msra.mxu0 0.0
  %1781 = vmatprep.subr.mxu0 0.0
  %1782 = vmatpush1.msra.mxu0 0.0
  %1783 = vmatprep.subr.mxu0 0.0
  %1784 = vmatpush1.msra.mxu0 0.0
  %1785 = vmatprep.subr.mxu0 0.0
  %1786 = vmatpush1.msra.mxu0 0.0
  %1787 = vmatprep.subr.mxu0 0.0
  %1788 = vmatpush1.msra.mxu0 0.0
  %1789 = vmatprep.subr.mxu0 0.0
  %1790 = vmatpush1.msra.mxu0 0.0
  %1791 = vmatprep.subr.mxu0 0.0
  %1792 = vmatpush1.msra.mxu0 0.0
  %1793 = vmatprep.subr.mxu0 0.0
  %1794 = vmatpush1.msra.mxu0 0.0
  %1795 = vmatprep.subr.mxu0 0.0
  %1796 = vmatpush1.msra.mxu0 0.0
  %1797 = vmatprep.subr.mxu0 0.0
  %1798 = vmatpush1.msra.mxu0 0.0
  %1799 = vmatprep.subr.mxu0 0.0
  %1800 = vmatpush1.msra.mxu0 0.0
  %1801 = vmatprep.subr.mxu0 0.0
  %1802 = vmatpush1.msra.mxu0 0.0
  %1803 = vmatprep.subr.mxu0 0.0
  %1804 = vmatpush1.msra.mxu0 0.0
  %1805 = vmatprep.subr.mxu0 0.0
  %1806 = vmatpush1.msra.mxu0 0.0
  %1807 = vmatprep.subr.mxu0 0.0
  %1808 = vmatpush1.msra.mxu0 0.0
  %1809 = vmatprep.subr.mxu0 0.0
  %1810 = vmatpush1.msra.mxu0 0.0
  %1811 = vmatprep.subr.mxu0 0.0
  %1812 = vmatpush1.msra.mxu0 0.0
  %1813 = vmatprep.subr.mxu0 0.0
  %1814 = vmatpush1.msra.mxu0 0.0
  %1815 = vmatprep.subr.mxu0 0.0
  %1816 = vmatpush1.msra.mxu0 0.0
  %1817 = vmatprep.mubr.f32.mxu0 0.0
  %1818 = vmatmul.mubr.f32.gmra.mrb[0].mxu0 %v1238
  %v1819 = vpop.f32.mrb[0].mxu0
  %v1820 = vadd.f32 %v1751, %v1819
  %v1821 = vpop.f32.mrb[0].mxu0
  %1822 = vmatprep.mubr.f32.mxu0 0.0
  %1823 = vmatmul.mubr.f32.gmra.mrb[0].mxu0 %v1241
  %v1824 = vpop.f32.mrb[0].mxu0
  %v1825 = vadd.f32 %v1751, %v1824
  %v1826 = vpop.f32.mrb[0].mxu0
  %1827 = vmatprep.mubr.f32.mxu0 0.0
  %1828 = vmatmul.mubr.f32.gmra.mrb[0].mxu0 %v1244
  %v1829 = vpop.f32.mrb[0].mxu0
  %v1830 = vadd.f32 %v1751, %v1829
  %v1831 = vpop.f32.mrb[0].mxu0
  %1832 = vdwg.mxu0
  %s1833 = scalar_lea.vmem %s6, 160
  %v1834 = vld [vmem:[%s1833] sm:$0xff]
  %v1835 = vld [vmem:[%s1833 + $0x8] sm:$0xff]
  %v1836 = vld [vmem:[%s1833 + $0x10] sm:$0xff]
  %v1837 = vld [vmem:[%s1833 + $0x18] sm:$0xff]
  %s1838 = scalar_lea.vmem %s7, 5
  %v1839 = vld [vmem:[%s1838] sm:$0x1]
  %v1841 = vlaneseq
  %v1842 = vshrl.u32 %v1841, 7
  %v1843 = vsub.s32 0, %v1842
  %v1844 = vrot.slane %v1839, %v1843
  %1846 = vmatprep.subr.mxu0 0.0
  %1847 = vmatpush1.msra.mxu0 %v1834
  %1848 = vmatprep.subr.mxu0 0.0
  %1849 = vmatpush1.msra.mxu0 %v1835
  %1850 = vmatprep.subr.mxu0 0.0
  %1851 = vmatpush1.msra.mxu0 %v1836
  %1852 = vmatprep.subr.mxu0 0.0
  %1853 = vmatpush1.msra.mxu0 %v1837
  %1854 = vmatprep.subr.mxu0 0.0
  %1855 = vmatpush1.msra.mxu0 0.0
  %1856 = vmatprep.subr.mxu0 0.0
  %1857 = vmatpush1.msra.mxu0 0.0
  %1858 = vmatprep.subr.mxu0 0.0
  %1859 = vmatpush1.msra.mxu0 0.0
  %1860 = vmatprep.subr.mxu0 0.0
  %1861 = vmatpush1.msra.mxu0 0.0
  %1862 = vmatprep.subr.mxu0 0.0
  %1863 = vmatpush1.msra.mxu0 0.0
  %1864 = vmatprep.subr.mxu0 0.0
  %1865 = vmatpush1.msra.mxu0 0.0
  %1866 = vmatprep.subr.mxu0 0.0
  %1867 = vmatpush1.msra.mxu0 0.0
  %1868 = vmatprep.subr.mxu0 0.0
  %1869 = vmatpush1.msra.mxu0 0.0
  %1870 = vmatprep.subr.mxu0 0.0
  %1871 = vmatpush1.msra.mxu0 0.0
  %1872 = vmatprep.subr.mxu0 0.0
  %1873 = vmatpush1.msra.mxu0 0.0
  %1874 = vmatprep.subr.mxu0 0.0
  %1875 = vmatpush1.msra.mxu0 0.0
  %1876 = vmatprep.subr.mxu0 0.0
  %1877 = vmatpush1.msra.mxu0 0.0
  %1878 = vmatprep.subr.mxu0 0.0
  %1879 = vmatpush1.msra.mxu0 0.0
  %1880 = vmatprep.subr.mxu0 0.0
  %1881 = vmatpush1.msra.mxu0 0.0
  %1882 = vmatprep.subr.mxu0 0.0
  %1883 = vmatpush1.msra.mxu0 0.0
  %1884 = vmatprep.subr.mxu0 0.0
  %1885 = vmatpush1.msra.mxu0 0.0
  %1886 = vmatprep.subr.mxu0 0.0
  %1887 = vmatpush1.msra.mxu0 0.0
  %1888 = vmatprep.subr.mxu0 0.0
  %1889 = vmatpush1.msra.mxu0 0.0
  %1890 = vmatprep.subr.mxu0 0.0
  %1891 = vmatpush1.msra.mxu0 0.0
  %1892 = vmatprep.subr.mxu0 0.0
  %1893 = vmatpush1.msra.mxu0 0.0
  %1894 = vmatprep.subr.mxu0 0.0
  %1895 = vmatpush1.msra.mxu0 0.0
  %1896 = vmatprep.subr.mxu0 0.0
  %1897 = vmatpush1.msra.mxu0 0.0
  %1898 = vmatprep.subr.mxu0 0.0
  %1899 = vmatpush1.msra.mxu0 0.0
  %1900 = vmatprep.subr.mxu0 0.0
  %1901 = vmatpush1.msra.mxu0 0.0
  %1902 = vmatprep.subr.mxu0 0.0
  %1903 = vmatpush1.msra.mxu0 0.0
  %1904 = vmatprep.subr.mxu0 0.0
  %1905 = vmatpush1.msra.mxu0 0.0
  %1906 = vmatprep.subr.mxu0 0.0
  %1907 = vmatpush1.msra.mxu0 0.0
  %1908 = vmatprep.subr.mxu0 0.0
  %1909 = vmatpush1.msra.mxu0 0.0
  %1910 = vmatprep.mubr.f32.mxu0 0.0
  %1911 = vmatmul.mubr.f32.gmra.mrb[0].mxu0 %v1238
  %v1912 = vpop.f32.mrb[0].mxu0
  %v1913 = vadd.f32 %v1844, %v1912
  %v1914 = vpop.f32.mrb[0].mxu0
  %1915 = vmatprep.mubr.f32.mxu0 0.0
  %1916 = vmatmul.mubr.f32.gmra.mrb[0].mxu0 %v1241
  %v1917 = vpop.f32.mrb[0].mxu0
  %v1918 = vadd.f32 %v1844, %v1917
  %v1919 = vpop.f32.mrb[0].mxu0
  %1920 = vmatprep.mubr.f32.mxu0 0.0
  %1921 = vmatmul.mubr.f32.gmra.mrb[0].mxu0 %v1244
  %v1922 = vpop.f32.mrb[0].mxu0
  %v1923 = vadd.f32 %v1844, %v1922
  %v1924 = vpop.f32.mrb[0].mxu0
  %1925 = vdwg.mxu0
  %s1926 = scalar_lea.vmem %s6, 288
  %v1927 = vld [vmem:[%s1926] sm:$0xff]
  %v1928 = vld [vmem:[%s1926 + $0x8] sm:$0xff]
  %v1929 = vld [vmem:[%s1926 + $0x10] sm:$0xff]
  %v1930 = vld [vmem:[%s1926 + $0x18] sm:$0xff]
  %s1931 = scalar_lea.vmem %s7, 9
  %v1932 = vld [vmem:[%s1931] sm:$0x1]
  %v1934 = vlaneseq
  %v1935 = vshrl.u32 %v1934, 7
  %v1936 = vsub.s32 0, %v1935
  %v1937 = vrot.slane %v1932, %v1936
  %1939 = vmatprep.subr.mxu0 0.0
  %1940 = vmatpush1.msra.mxu0 %v1927
  %1941 = vmatprep.subr.mxu0 0.0
  %1942 = vmatpush1.msra.mxu0 %v1928
  %1943 = vmatprep.subr.mxu0 0.0
  %1944 = vmatpush1.msra.mxu0 %v1929
  %1945 = vmatprep.subr.mxu0 0.0
  %1946 = vmatpush1.msra.mxu0 %v1930
  %1947 = vmatprep.subr.mxu0 0.0
  %1948 = vmatpush1.msra.mxu0 0.0
  %1949 = vmatprep.subr.mxu0 0.0
  %1950 = vmatpush1.msra.mxu0 0.0
  %1951 = vmatprep.subr.mxu0 0.0
  %1952 = vmatpush1.msra.mxu0 0.0
  %1953 = vmatprep.subr.mxu0 0.0
  %1954 = vmatpush1.msra.mxu0 0.0
  %1955 = vmatprep.subr.mxu0 0.0
  %1956 = vmatpush1.msra.mxu0 0.0
  %1957 = vmatprep.subr.mxu0 0.0
  %1958 = vmatpush1.msra.mxu0 0.0
  %1959 = vmatprep.subr.mxu0 0.0
  %1960 = vmatpush1.msra.mxu0 0.0
  %1961 = vmatprep.subr.mxu0 0.0
  %1962 = vmatpush1.msra.mxu0 0.0
  %1963 = vmatprep.subr.mxu0 0.0
  %1964 = vmatpush1.msra.mxu0 0.0
  %1965 = vmatprep.subr.mxu0 0.0
  %1966 = vmatpush1.msra.mxu0 0.0
  %1967 = vmatprep.subr.mxu0 0.0
  %1968 = vmatpush1.msra.mxu0 0.0
  %1969 = vmatprep.subr.mxu0 0.0
  %1970 = vmatpush1.msra.mxu0 0.0
  %1971 = vmatprep.subr.mxu0 0.0
  %1972 = vmatpush1.msra.mxu0 0.0
  %1973 = vmatprep.subr.mxu0 0.0
  %1974 = vmatpush1.msra.mxu0 0.0
  %1975 = vmatprep.subr.mxu0 0.0
  %1976 = vmatpush1.msra.mxu0 0.0
  %1977 = vmatprep.subr.mxu0 0.0
  %1978 = vmatpush1.msra.mxu0 0.0
  %1979 = vmatprep.subr.mxu0 0.0
  %1980 = vmatpush1.msra.mxu0 0.0
  %1981 = vmatprep.subr.mxu0 0.0
  %1982 = vmatpush1.msra.mxu0 0.0
  %1983 = vmatprep.subr.mxu0 0.0
  %1984 = vmatpush1.msra.mxu0 0.0
  %1985 = vmatprep.subr.mxu0 0.0
  %1986 = vmatpush1.msra.mxu0 0.0
  %1987 = vmatprep.subr.mxu0 0.0
  %1988 = vmatpush1.msra.mxu0 0.0
  %1989 = vmatprep.subr.mxu0 0.0
  %1990 = vmatpush1.msra.mxu0 0.0
  %1991 = vmatprep.subr.mxu0 0.0
  %1992 = vmatpush1.msra.mxu0 0.0
  %1993 = vmatprep.subr.mxu0 0.0
  %1994 = vmatpush1.msra.mxu0 0.0
  %1995 = vmatprep.subr.mxu0 0.0
  %1996 = vmatpush1.msra.mxu0 0.0
  %1997 = vmatprep.subr.mxu0 0.0
  %1998 = vmatpush1.msra.mxu0 0.0
  %1999 = vmatprep.subr.mxu0 0.0
  %2000 = vmatpush1.msra.mxu0 0.0
  %2001 = vmatprep.subr.mxu0 0.0
  %2002 = vmatpush1.msra.mxu0 0.0
  %2003 = vmatprep.mubr.f32.mxu0 0.0
  %2004 = vmatmul.mubr.f32.gmra.mrb[0].mxu0 %v1238
  %v2005 = vpop.f32.mrb[0].mxu0
  %v2006 = vadd.f32 %v1937, %v2005
  %v2007 = vpop.f32.mrb[0].mxu0
  %2008 = vmatprep.mubr.f32.mxu0 0.0
  %2009 = vmatmul.mubr.f32.gmra.mrb[0].mxu0 %v1241
  %v2010 = vpop.f32.mrb[0].mxu0
  %v2011 = vadd.f32 %v1937, %v2010
  %v2012 = vpop.f32.mrb[0].mxu0
  %2013 = vmatprep.mubr.f32.mxu0 0.0
  %2014 = vmatmul.mubr.f32.gmra.mrb[0].mxu0 %v1244
  %v2015 = vpop.f32.mrb[0].mxu0
  %v2016 = vadd.f32 %v1937, %v2015
  %v2017 = vpop.f32.mrb[0].mxu0
  %2018 = vdwg.mxu0
  %v2020 = vsel %vm1512, %v1820, 0
  %v2023 = vsel %vm1512, %v1825, 0
  %v2026 = vsel %vm1512, %v1830, 0
  %v2029 = vsel %vm1512, %v1913, 0
  %v2032 = vsel %vm1512, %v1918, 0
  %v2035 = vsel %vm1512, %v1923, 0
  %2037 = vmatprep.subr.mxu0 0.0
  %2038 = vmatpush1.xpose.msra.mxu0 %v2029
  %2039 = vmatprep.subr.mxu0 0.0
  %2040 = vmatpush1.xpose.msra.mxu0 %v2032
  %2041 = vmatprep.subr.mxu0 0.0
  %2042 = vmatpush1.xpose.msra.mxu0 %v2035
  %2043 = vmatprep.subr.mxu0 0.0
  %2044 = vmatpush1.xpose.msra.mxu0 0.0
  %2045 = vmatprep.subr.mxu0 0.0
  %2046 = vmatpush1.xpose.msra.mxu0 0.0
  %2047 = vmatprep.subr.mxu0 0.0
  %2048 = vmatpush1.xpose.msra.mxu0 0.0
  %2049 = vmatprep.subr.mxu0 0.0
  %2050 = vmatpush1.xpose.msra.mxu0 0.0
  %2051 = vmatprep.subr.mxu0 0.0
  %2052 = vmatpush1.xpose.msra.mxu0 0.0
  %2053 = vmatprep.subr.mxu0 0.0
  %2054 = vmatpush1.xpose.msra.mxu0 0.0
  %2055 = vmatprep.subr.mxu0 0.0
  %2056 = vmatpush1.xpose.msra.mxu0 0.0
  %2057 = vmatprep.subr.mxu0 0.0
  %2058 = vmatpush1.xpose.msra.mxu0 0.0
  %2059 = vmatprep.subr.mxu0 0.0
  %2060 = vmatpush1.xpose.msra.mxu0 0.0
  %2061 = vmatprep.subr.mxu0 0.0
  %2062 = vmatpush1.xpose.msra.mxu0 0.0
  %2063 = vmatprep.subr.mxu0 0.0
  %2064 = vmatpush1.xpose.msra.mxu0 0.0
  %2065 = vmatprep.subr.mxu0 0.0
  %2066 = vmatpush1.xpose.msra.mxu0 0.0
  %2067 = vmatprep.subr.mxu0 0.0
  %2068 = vmatpush1.xpose.msra.mxu0 0.0
  %2069 = vmatprep.subr.mxu0 0.0
  %2070 = vmatpush1.xpose.msra.mxu0 0.0
  %2071 = vmatprep.subr.mxu0 0.0
  %2072 = vmatpush1.xpose.msra.mxu0 0.0
  %2073 = vmatprep.subr.mxu0 0.0
  %2074 = vmatpush1.xpose.msra.mxu0 0.0
  %2075 = vmatprep.subr.mxu0 0.0
  %2076 = vmatpush1.xpose.msra.mxu0 0.0
  %2077 = vmatprep.subr.mxu0 0.0
  %2078 = vmatpush1.xpose.msra.mxu0 0.0
  %2079 = vmatprep.subr.mxu0 0.0
  %2080 = vmatpush1.xpose.msra.mxu0 0.0
  %2081 = vmatprep.subr.mxu0 0.0
  %2082 = vmatpush1.xpose.msra.mxu0 0.0
  %2083 = vmatprep.subr.mxu0 0.0
  %2084 = vmatpush1.xpose.msra.mxu0 0.0
  %2085 = vmatprep.subr.mxu0 0.0
  %2086 = vmatpush1.xpose.msra.mxu0 0.0
  %2087 = vmatprep.subr.mxu0 0.0
  %2088 = vmatpush1.xpose.msra.mxu0 0.0
  %2089 = vmatprep.subr.mxu0 0.0
  %2090 = vmatpush1.xpose.msra.mxu0 0.0
  %2091 = vmatprep.subr.mxu0 0.0
  %2092 = vmatpush1.xpose.msra.mxu0 0.0
  %2093 = vmatprep.subr.mxu0 0.0
  %2094 = vmatpush1.xpose.msra.mxu0 0.0
  %2095 = vmatprep.subr.mxu0 0.0
  %2096 = vmatpush1.xpose.msra.mxu0 0.0
  %2097 = vmatprep.subr.mxu0 0.0
  %2098 = vmatpush1.xpose.msra.mxu0 0.0
  %2099 = vmatprep.subr.mxu0 0.0
  %2100 = vmatpush1.xpose.msra.mxu0 0.0
  %2101 = vmatprep.mubr.f32.mxu0 0.0
  %2102 = vmatmul.mubr.f32.gmra.mrb[0].mxu0 %v2020
  %v2103 = vpop.f32.mrb[0].mxu0
  %v2104 = vadd.f32 %v1161, %v2103
  %v2105 = vpop.f32.mrb[0].mxu0
  %2106 = vmatprep.mubr.f32.mxu0 0.0
  %2107 = vmatmul.mubr.f32.gmra.mrb[0].mxu0 %v2023
  %v2108 = vpop.f32.mrb[0].mxu0
  %v2109 = vadd.f32 %v1162, %v2108
  %v2110 = vpop.f32.mrb[0].mxu0
  %2111 = vmatprep.mubr.f32.mxu0 0.0
  %2112 = vmatmul.mubr.f32.gmra.mrb[0].mxu0 %v2026
  %v2113 = vpop.f32.mrb[0].mxu0
  %v2114 = vadd.f32 %v1163, %v2113
  %v2115 = vpop.f32.mrb[0].mxu0
  %2116 = vdwg.mxu0
  %v2117 = vsel %vm1611, %v2104, -inf
  %2118 = vmax.xlane.f32.xlu0 %v2117
  %v2119 = vpop.xlane.xlu0 %2118
  %v2120 = vsel %vm1611, %v2109, -inf
  %2121 = vmax.xlane.f32.xlu0 %v2120
  %v2122 = vpop.xlane.xlu0 %2121
  %v2123 = vsel %vm1618, %v2114, -inf
  %2124 = vmax.xlane.f32.xlu0 %v2123
  %v2125 = vpop.xlane.xlu0 %2124
  %v2126 = vsub.f32 %v2104, %v2119
  %v2127 = vsub.f32 %v2109, %v2122
  %v2128 = vsub.f32 %v2114, %v2125
  %v2129 = vmul.f32 %v2126, 1.442695
  %v2130 = vpow.pop %v2129
  %v2131 = vmul.f32 %v2127, 1.442695
  %v2132 = vpow.pop %v2131
  %v2133 = vmul.f32 %v2128, 1.442695
  %v2134 = vpow.pop %v2133
  %v2135 = vsel %vm1611, %v2130, 0.0
  %2136 = vadd.xlane.f32.xlu0 %v2135
  %v2137 = vpop.xlane.xlu0 %2136
  %v2138 = vsel %vm1611, %v2132, 0.0
  %2139 = vadd.xlane.f32.xlu0 %v2138
  %v2140 = vpop.xlane.xlu0 %2139
  %v2141 = vsel %vm1618, %v2134, 0.0
  %2142 = vadd.xlane.f32.xlu0 %v2141
  %v2143 = vpop.xlane.xlu0 %2142
  %v2144 = vrcp.pop %v2137
  %v2145 = vrcp.pop %v2140
  %v2146 = vrcp.pop %v2143
  %v2147 = vmul.f32 %v2130, %v2144
  %v2148 = vmul.f32 %v2132, %v2145
  %v2149 = vmul.f32 %v2134, %v2146
  %v2151 = vsel %vm1611, %v2147, 0
  %v2154 = vsel %vm1611, %v2148, 0
  %v2157 = vsel %vm1611, %v2149, 0
  %v2160 = vsel %vm1655, %v2016, 0
  %2162 = vmatprep.subr.mxu0 0.0
  %2163 = vmatpush1.msra.mxu0 %v2006
  %2164 = vmatprep.subr.mxu0 0.0
  %2165 = vmatpush1.msra.mxu0 %v2011
  %2166 = vmatprep.subr.mxu0 0.0
  %2167 = vmatpush1.msra.mxu0 %v2160
  %2168 = vmatprep.subr.mxu0 0.0
  %2169 = vmatpush1.msra.mxu0 0.0
  %2170 = vmatprep.subr.mxu0 0.0
  %2171 = vmatpush1.msra.mxu0 0.0
  %2172 = vmatprep.subr.mxu0 0.0
  %2173 = vmatpush1.msra.mxu0 0.0
  %2174 = vmatprep.subr.mxu0 0.0
  %2175 = vmatpush1.msra.mxu0 0.0
  %2176 = vmatprep.subr.mxu0 0.0
  %2177 = vmatpush1.msra.mxu0 0.0
  %2178 = vmatprep.subr.mxu0 0.0
  %2179 = vmatpush1.msra.mxu0 0.0
  %2180 = vmatprep.subr.mxu0 0.0
  %2181 = vmatpush1.msra.mxu0 0.0
  %2182 = vmatprep.subr.mxu0 0.0
  %2183 = vmatpush1.msra.mxu0 0.0
  %2184 = vmatprep.subr.mxu0 0.0
  %2185 = vmatpush1.msra.mxu0 0.0
  %2186 = vmatprep.subr.mxu0 0.0
  %2187 = vmatpush1.msra.mxu0 0.0
  %2188 = vmatprep.subr.mxu0 0.0
  %2189 = vmatpush1.msra.mxu0 0.0
  %2190 = vmatprep.subr.mxu0 0.0
  %2191 = vmatpush1.msra.mxu0 0.0
  %2192 = vmatprep.subr.mxu0 0.0
  %2193 = vmatpush1.msra.mxu0 0.0
  %2194 = vmatprep.subr.mxu0 0.0
  %2195 = vmatpush1.msra.mxu0 0.0
  %2196 = vmatprep.subr.mxu0 0.0
  %2197 = vmatpush1.msra.mxu0 0.0
  %2198 = vmatprep.subr.mxu0 0.0
  %2199 = vmatpush1.msra.mxu0 0.0
  %2200 = vmatprep.subr.mxu0 0.0
  %2201 = vmatpush1.msra.mxu0 0.0
  %2202 = vmatprep.subr.mxu0 0.0
  %2203 = vmatpush1.msra.mxu0 0.0
  %2204 = vmatprep.subr.mxu0 0.0
  %2205 = vmatpush1.msra.mxu0 0.0
  %2206 = vmatprep.subr.mxu0 0.0
  %2207 = vmatpush1.msra.mxu0 0.0
  %2208 = vmatprep.subr.mxu0 0.0
  %2209 = vmatpush1.msra.mxu0 0.0
  %2210 = vmatprep.subr.mxu0 0.0
  %2211 = vmatpush1.msra.mxu0 0.0
  %2212 = vmatprep.subr.mxu0 0.0
  %2213 = vmatpush1.msra.mxu0 0.0
  %2214 = vmatprep.subr.mxu0 0.0
  %2215 = vmatpush1.msra.mxu0 0.0
  %2216 = vmatprep.subr.mxu0 0.0
  %2217 = vmatpush1.msra.mxu0 0.0
  %2218 = vmatprep.subr.mxu0 0.0
  %2219 = vmatpush1.msra.mxu0 0.0
  %2220 = vmatprep.subr.mxu0 0.0
  %2221 = vmatpush1.msra.mxu0 0.0
  %2222 = vmatprep.subr.mxu0 0.0
  %2223 = vmatpush1.msra.mxu0 0.0
  %2224 = vmatprep.subr.mxu0 0.0
  %2225 = vmatpush1.msra.mxu0 0.0
  %2226 = vmatprep.mubr.f32.mxu0 0.0
  %2227 = vmatmul.mubr.f32.gmra.mrb[0].mxu0 %v2151
  %v2228 = vpop.f32.mrb[0].mxu0
  %v2229 = vadd.f32 0.0, %v2228
  %v2230 = vpop.f32.mrb[0].mxu0
  %2231 = vmatprep.mubr.f32.mxu0 0.0
  %2232 = vmatmul.mubr.f32.gmra.mrb[0].mxu0 %v2154
  %v2233 = vpop.f32.mrb[0].mxu0
  %v2234 = vadd.f32 0.0, %v2233
  %v2235 = vpop.f32.mrb[0].mxu0
  %2236 = vmatprep.mubr.f32.mxu0 0.0
  %2237 = vmatmul.mubr.f32.gmra.mrb[0].mxu0 %v2157
  %v2238 = vpop.f32.mrb[0].mxu0
  %v2239 = vadd.f32 0.0, %v2238
  %v2240 = vpop.f32.mrb[0].mxu0
  %2241 = vdwg.mxu0
  %s2242 = scalar_lea.vmem %s8, 8
  %v2243 = vld [vmem:[%s2242] sm:$0xff]
  %v2245 = vsel %vm1512, %v2229, 0
  %v2248 = vsel %vm1512, %v2234, 0
  %v2251 = vsel %vm1512, %v2239, 0
  %2253 = vmatprep.subr.mxu0 0.0
  %2254 = vmatpush1.msra.mxu0 %v2243
  %2255 = vmatprep.subr.mxu0 0.0
  %2256 = vmatpush1.msra.mxu0 0.0
  %2257 = vmatprep.subr.mxu0 0.0
  %2258 = vmatpush1.msra.mxu0 0.0
  %2259 = vmatprep.subr.mxu0 0.0
  %2260 = vmatpush1.msra.mxu0 0.0
  %2261 = vmatprep.subr.mxu0 0.0
  %2262 = vmatpush1.msra.mxu0 0.0
  %2263 = vmatprep.subr.mxu0 0.0
  %2264 = vmatpush1.msra.mxu0 0.0
  %2265 = vmatprep.subr.mxu0 0.0
  %2266 = vmatpush1.msra.mxu0 0.0
  %2267 = vmatprep.subr.mxu0 0.0
  %2268 = vmatpush1.msra.mxu0 0.0
  %2269 = vmatprep.subr.mxu0 0.0
  %2270 = vmatpush1.msra.mxu0 0.0
  %2271 = vmatprep.subr.mxu0 0.0
  %2272 = vmatpush1.msra.mxu0 0.0
  %2273 = vmatprep.subr.mxu0 0.0
  %2274 = vmatpush1.msra.mxu0 0.0
  %2275 = vmatprep.subr.mxu0 0.0
  %2276 = vmatpush1.msra.mxu0 0.0
  %2277 = vmatprep.subr.mxu0 0.0
  %2278 = vmatpush1.msra.mxu0 0.0
  %2279 = vmatprep.subr.mxu0 0.0
  %2280 = vmatpush1.msra.mxu0 0.0
  %2281 = vmatprep.subr.mxu0 0.0
  %2282 = vmatpush1.msra.mxu0 0.0
  %2283 = vmatprep.subr.mxu0 0.0
  %2284 = vmatpush1.msra.mxu0 0.0
  %2285 = vmatprep.subr.mxu0 0.0
  %2286 = vmatpush1.msra.mxu0 0.0
  %2287 = vmatprep.subr.mxu0 0.0
  %2288 = vmatpush1.msra.mxu0 0.0
  %2289 = vmatprep.subr.mxu0 0.0
  %2290 = vmatpush1.msra.mxu0 0.0
  %2291 = vmatprep.subr.mxu0 0.0
  %2292 = vmatpush1.msra.mxu0 0.0
  %2293 = vmatprep.subr.mxu0 0.0
  %2294 = vmatpush1.msra.mxu0 0.0
  %2295 = vmatprep.subr.mxu0 0.0
  %2296 = vmatpush1.msra.mxu0 0.0
  %2297 = vmatprep.subr.mxu0 0.0
  %2298 = vmatpush1.msra.mxu0 0.0
  %2299 = vmatprep.subr.mxu0 0.0
  %2300 = vmatpush1.msra.mxu0 0.0
  %2301 = vmatprep.subr.mxu0 0.0
  %2302 = vmatpush1.msra.mxu0 0.0
  %2303 = vmatprep.subr.mxu0 0.0
  %2304 = vmatpush1.msra.mxu0 0.0
  %2305 = vmatprep.subr.mxu0 0.0
  %2306 = vmatpush1.msra.mxu0 0.0
  %2307 = vmatprep.subr.mxu0 0.0
  %2308 = vmatpush1.msra.mxu0 0.0
  %2309 = vmatprep.subr.mxu0 0.0
  %2310 = vmatpush1.msra.mxu0 0.0
  %2311 = vmatprep.subr.mxu0 0.0
  %2312 = vmatpush1.msra.mxu0 0.0
  %2313 = vmatprep.subr.mxu0 0.0
  %2314 = vmatpush1.msra.mxu0 0.0
  %2315 = vmatprep.subr.mxu0 0.0
  %2316 = vmatpush1.msra.mxu0 0.0
  %2317 = vmatprep.mubr.f32.mxu0 0.0
  %2318 = vmatmul.mubr.f32.gmra.mrb[0].mxu0 %v2245
  %v2319 = vpop.f32.mrb[0].mxu0
  %v2320 = vadd.f32 0.0, %v2319
  %v2321 = vpop.f32.mrb[0].mxu0
  %2322 = vmatprep.mubr.f32.mxu0 0.0
  %2323 = vmatmul.mubr.f32.gmra.mrb[0].mxu0 %v2248
  %v2324 = vpop.f32.mrb[0].mxu0
  %v2325 = vadd.f32 0.0, %v2324
  %v2326 = vpop.f32.mrb[0].mxu0
  %2327 = vmatprep.mubr.f32.mxu0 0.0
  %2328 = vmatmul.mubr.f32.gmra.mrb[0].mxu0 %v2251
  %v2329 = vpop.f32.mrb[0].mxu0
  %v2330 = vadd.f32 0.0, %v2329
  %v2331 = vpop.f32.mrb[0].mxu0
  %2332 = vdwg.mxu0
  %v2334 = vsel %vm1512, %v1726, 0
  %v2337 = vsel %vm1512, %v1731, 0
  %v2340 = vsel %vm1512, %v1736, 0
  %2342 = vmatprep.subr.mxu0 0.0
  %2343 = vmatpush1.msra.mxu0 %v1739
  %2344 = vmatprep.subr.mxu0 0.0
  %2345 = vmatpush1.msra.mxu0 0.0
  %2346 = vmatprep.subr.mxu0 0.0
  %2347 = vmatpush1.msra.mxu0 0.0
  %2348 = vmatprep.subr.mxu0 0.0
  %2349 = vmatpush1.msra.mxu0 0.0
  %2350 = vmatprep.subr.mxu0 0.0
  %2351 = vmatpush1.msra.mxu0 0.0
  %2352 = vmatprep.subr.mxu0 0.0
  %2353 = vmatpush1.msra.mxu0 0.0
  %2354 = vmatprep.subr.mxu0 0.0
  %2355 = vmatpush1.msra.mxu0 0.0
  %2356 = vmatprep.subr.mxu0 0.0
  %2357 = vmatpush1.msra.mxu0 0.0
  %2358 = vmatprep.subr.mxu0 0.0
  %2359 = vmatpush1.msra.mxu0 0.0
  %2360 = vmatprep.subr.mxu0 0.0
  %2361 = vmatpush1.msra.mxu0 0.0
  %2362 = vmatprep.subr.mxu0 0.0
  %2363 = vmatpush1.msra.mxu0 0.0
  %2364 = vmatprep.subr.mxu0 0.0
  %2365 = vmatpush1.msra.mxu0 0.0
  %2366 = vmatprep.subr.mxu0 0.0
  %2367 = vmatpush1.msra.mxu0 0.0
  %2368 = vmatprep.subr.mxu0 0.0
  %2369 = vmatpush1.msra.mxu0 0.0
  %2370 = vmatprep.subr.mxu0 0.0
  %2371 = vmatpush1.msra.mxu0 0.0
  %2372 = vmatprep.subr.mxu0 0.0
  %2373 = vmatpush1.msra.mxu0 0.0
  %2374 = vmatprep.subr.mxu0 0.0
  %2375 = vmatpush1.msra.mxu0 0.0
  %2376 = vmatprep.subr.mxu0 0.0
  %2377 = vmatpush1.msra.mxu0 0.0
  %2378 = vmatprep.subr.mxu0 0.0
  %2379 = vmatpush1.msra.mxu0 0.0
  %2380 = vmatprep.subr.mxu0 0.0
  %2381 = vmatpush1.msra.mxu0 0.0
  %2382 = vmatprep.subr.mxu0 0.0
  %2383 = vmatpush1.msra.mxu0 0.0
  %2384 = vmatprep.subr.mxu0 0.0
  %2385 = vmatpush1.msra.mxu0 0.0
  %2386 = vmatprep.subr.mxu0 0.0
  %2387 = vmatpush1.msra.mxu0 0.0
  %2388 = vmatprep.subr.mxu0 0.0
  %2389 = vmatpush1.msra.mxu0 0.0
  %2390 = vmatprep.subr.mxu0 0.0
  %2391 = vmatpush1.msra.mxu0 0.0
  %2392 = vmatprep.subr.mxu0 0.0
  %2393 = vmatpush1.msra.mxu0 0.0
  %2394 = vmatprep.subr.mxu0 0.0
  %2395 = vmatpush1.msra.mxu0 0.0
  %2396 = vmatprep.subr.mxu0 0.0
  %2397 = vmatpush1.msra.mxu0 0.0
  %2398 = vmatprep.subr.mxu0 0.0
  %2399 = vmatpush1.msra.mxu0 0.0
  %2400 = vmatprep.subr.mxu0 0.0
  %2401 = vmatpush1.msra.mxu0 0.0
  %2402 = vmatprep.subr.mxu0 0.0
  %2403 = vmatpush1.msra.mxu0 0.0
  %2404 = vmatprep.subr.mxu0 0.0
  %2405 = vmatpush1.msra.mxu0 0.0
  %2406 = vmatprep.mubr.f32.mxu0 0.0
  %2407 = vmatmul.mubr.f32.gmra.mrb[0].mxu0 %v2334
  %v2408 = vpop.f32.mrb[0].mxu0
  %v2409 = vadd.f32 %v2320, %v2408
  %v2410 = vpop.f32.mrb[0].mxu0
  %2411 = vmatprep.mubr.f32.mxu0 0.0
  %2412 = vmatmul.mubr.f32.gmra.mrb[0].mxu0 %v2337
  %v2413 = vpop.f32.mrb[0].mxu0
  %v2414 = vadd.f32 %v2325, %v2413
  %v2415 = vpop.f32.mrb[0].mxu0
  %2416 = vmatprep.mubr.f32.mxu0 0.0
  %2417 = vmatmul.mubr.f32.gmra.mrb[0].mxu0 %v2340
  %v2418 = vpop.f32.mrb[0].mxu0
  %v2419 = vadd.f32 %v2330, %v2418
  %v2420 = vpop.f32.mrb[0].mxu0
  %2421 = vdwg.mxu0
  %s2422 = scalar_lea.vmem %s6, 64
  %v2423 = vld [vmem:[%s2422] sm:$0xff]
  %v2424 = vld [vmem:[%s2422 + $0x8] sm:$0xff]
  %v2425 = vld [vmem:[%s2422 + $0x10] sm:$0xff]
  %v2426 = vld [vmem:[%s2422 + $0x18] sm:$0xff]
  %s2427 = scalar_lea.vmem %s7, 2
  %v2428 = vld [vmem:[%s2427] sm:$0x1]
  %v2430 = vlaneseq
  %v2431 = vshrl.u32 %v2430, 7
  %v2432 = vsub.s32 0, %v2431
  %v2433 = vrot.slane %v2428, %v2432
  %2435 = vmatprep.subr.mxu0 0.0
  %2436 = vmatpush1.msra.mxu0 %v2423
  %2437 = vmatprep.subr.mxu0 0.0
  %2438 = vmatpush1.msra.mxu0 %v2424
  %2439 = vmatprep.subr.mxu0 0.0
  %2440 = vmatpush1.msra.mxu0 %v2425
  %2441 = vmatprep.subr.mxu0 0.0
  %2442 = vmatpush1.msra.mxu0 %v2426
  %2443 = vmatprep.subr.mxu0 0.0
  %2444 = vmatpush1.msra.mxu0 0.0
  %2445 = vmatprep.subr.mxu0 0.0
  %2446 = vmatpush1.msra.mxu0 0.0
  %2447 = vmatprep.subr.mxu0 0.0
  %2448 = vmatpush1.msra.mxu0 0.0
  %2449 = vmatprep.subr.mxu0 0.0
  %2450 = vmatpush1.msra.mxu0 0.0
  %2451 = vmatprep.subr.mxu0 0.0
  %2452 = vmatpush1.msra.mxu0 0.0
  %2453 = vmatprep.subr.mxu0 0.0
  %2454 = vmatpush1.msra.mxu0 0.0
  %2455 = vmatprep.subr.mxu0 0.0
  %2456 = vmatpush1.msra.mxu0 0.0
  %2457 = vmatprep.subr.mxu0 0.0
  %2458 = vmatpush1.msra.mxu0 0.0
  %2459 = vmatprep.subr.mxu0 0.0
  %2460 = vmatpush1.msra.mxu0 0.0
  %2461 = vmatprep.subr.mxu0 0.0
  %2462 = vmatpush1.msra.mxu0 0.0
  %2463 = vmatprep.subr.mxu0 0.0
  %2464 = vmatpush1.msra.mxu0 0.0
  %2465 = vmatprep.subr.mxu0 0.0
  %2466 = vmatpush1.msra.mxu0 0.0
  %2467 = vmatprep.subr.mxu0 0.0
  %2468 = vmatpush1.msra.mxu0 0.0
  %2469 = vmatprep.subr.mxu0 0.0
  %2470 = vmatpush1.msra.mxu0 0.0
  %2471 = vmatprep.subr.mxu0 0.0
  %2472 = vmatpush1.msra.mxu0 0.0
  %2473 = vmatprep.subr.mxu0 0.0
  %2474 = vmatpush1.msra.mxu0 0.0
  %2475 = vmatprep.subr.mxu0 0.0
  %2476 = vmatpush1.msra.mxu0 0.0
  %2477 = vmatprep.subr.mxu0 0.0
  %2478 = vmatpush1.msra.mxu0 0.0
  %2479 = vmatprep.subr.mxu0 0.0
  %2480 = vmatpush1.msra.mxu0 0.0
  %2481 = vmatprep.subr.mxu0 0.0
  %2482 = vmatpush1.msra.mxu0 0.0
  %2483 = vmatprep.subr.mxu0 0.0
  %2484 = vmatpush1.msra.mxu0 0.0
  %2485 = vmatprep.subr.mxu0 0.0
  %2486 = vmatpush1.msra.mxu0 0.0
  %2487 = vmatprep.subr.mxu0 0.0
  %2488 = vmatpush1.msra.mxu0 0.0
  %2489 = vmatprep.subr.mxu0 0.0
  %2490 = vmatpush1.msra.mxu0 0.0
  %2491 = vmatprep.subr.mxu0 0.0
  %2492 = vmatpush1.msra.mxu0 0.0
  %2493 = vmatprep.subr.mxu0 0.0
  %2494 = vmatpush1.msra.mxu0 0.0
  %2495 = vmatprep.subr.mxu0 0.0
  %2496 = vmatpush1.msra.mxu0 0.0
  %2497 = vmatprep.subr.mxu0 0.0
  %2498 = vmatpush1.msra.mxu0 0.0
  %2499 = vmatprep.mubr.f32.mxu0 0.0
  %2500 = vmatmul.mubr.f32.gmra.mrb[0].mxu0 %v1238
  %v2501 = vpop.f32.mrb[0].mxu0
  %v2502 = vadd.f32 %v2433, %v2501
  %v2503 = vpop.f32.mrb[0].mxu0
  %2504 = vmatprep.mubr.f32.mxu0 0.0
  %2505 = vmatmul.mubr.f32.gmra.mrb[0].mxu0 %v1241
  %v2506 = vpop.f32.mrb[0].mxu0
  %v2507 = vadd.f32 %v2433, %v2506
  %v2508 = vpop.f32.mrb[0].mxu0
  %2509 = vmatprep.mubr.f32.mxu0 0.0
  %2510 = vmatmul.mubr.f32.gmra.mrb[0].mxu0 %v1244
  %v2511 = vpop.f32.mrb[0].mxu0
  %v2512 = vadd.f32 %v2433, %v2511
  %v2513 = vpop.f32.mrb[0].mxu0
  %2514 = vdwg.mxu0
  %s2515 = scalar_lea.vmem %s6, 192
  %v2516 = vld [vmem:[%s2515] sm:$0xff]
  %v2517 = vld [vmem:[%s2515 + $0x8] sm:$0xff]
  %v2518 = vld [vmem:[%s2515 + $0x10] sm:$0xff]
  %v2519 = vld [vmem:[%s2515 + $0x18] sm:$0xff]
  %s2520 = scalar_lea.vmem %s7, 6
  %v2521 = vld [vmem:[%s2520] sm:$0x1]
  %v2523 = vlaneseq
  %v2524 = vshrl.u32 %v2523, 7
  %v2525 = vsub.s32 0, %v2524
  %v2526 = vrot.slane %v2521, %v2525
  %2528 = vmatprep.subr.mxu0 0.0
  %2529 = vmatpush1.msra.mxu0 %v2516
  %2530 = vmatprep.subr.mxu0 0.0
  %2531 = vmatpush1.msra.mxu0 %v2517
  %2532 = vmatprep.subr.mxu0 0.0
  %2533 = vmatpush1.msra.mxu0 %v2518
  %2534 = vmatprep.subr.mxu0 0.0
  %2535 = vmatpush1.msra.mxu0 %v2519
  %2536 = vmatprep.subr.mxu0 0.0
  %2537 = vmatpush1.msra.mxu0 0.0
  %2538 = vmatprep.subr.mxu0 0.0
  %2539 = vmatpush1.msra.mxu0 0.0
  %2540 = vmatprep.subr.mxu0 0.0
  %2541 = vmatpush1.msra.mxu0 0.0
  %2542 = vmatprep.subr.mxu0 0.0
  %2543 = vmatpush1.msra.mxu0 0.0
  %2544 = vmatprep.subr.mxu0 0.0
  %2545 = vmatpush1.msra.mxu0 0.0
  %2546 = vmatprep.subr.mxu0 0.0
  %2547 = vmatpush1.msra.mxu0 0.0
  %2548 = vmatprep.subr.mxu0 0.0
  %2549 = vmatpush1.msra.mxu0 0.0
  %2550 = vmatprep.subr.mxu0 0.0
  %2551 = vmatpush1.msra.mxu0 0.0
  %2552 = vmatprep.subr.mxu0 0.0
  %2553 = vmatpush1.msra.mxu0 0.0
  %2554 = vmatprep.subr.mxu0 0.0
  %2555 = vmatpush1.msra.mxu0 0.0
  %2556 = vmatprep.subr.mxu0 0.0
  %2557 = vmatpush1.msra.mxu0 0.0
  %2558 = vmatprep.subr.mxu0 0.0
  %2559 = vmatpush1.msra.mxu0 0.0
  %2560 = vmatprep.subr.mxu0 0.0
  %2561 = vmatpush1.msra.mxu0 0.0
  %2562 = vmatprep.subr.mxu0 0.0
  %2563 = vmatpush1.msra.mxu0 0.0
  %2564 = vmatprep.subr.mxu0 0.0
  %2565 = vmatpush1.msra.mxu0 0.0
  %2566 = vmatprep.subr.mxu0 0.0
  %2567 = vmatpush1.msra.mxu0 0.0
  %2568 = vmatprep.subr.mxu0 0.0
  %2569 = vmatpush1.msra.mxu0 0.0
  %2570 = vmatprep.subr.mxu0 0.0
  %2571 = vmatpush1.msra.mxu0 0.0
  %2572 = vmatprep.subr.mxu0 0.0
  %2573 = vmatpush1.msra.mxu0 0.0
  %2574 = vmatprep.subr.mxu0 0.0
  %2575 = vmatpush1.msra.mxu0 0.0
  %2576 = vmatprep.subr.mxu0 0.0
  %2577 = vmatpush1.msra.mxu0 0.0
  %2578 = vmatprep.subr.mxu0 0.0
  %2579 = vmatpush1.msra.mxu0 0.0
  %2580 = vmatprep.subr.mxu0 0.0
  %2581 = vmatpush1.msra.mxu0 0.0
  %2582 = vmatprep.subr.mxu0 0.0
  %2583 = vmatpush1.msra.mxu0 0.0
  %2584 = vmatprep.subr.mxu0 0.0
  %2585 = vmatpush1.msra.mxu0 0.0
  %2586 = vmatprep.subr.mxu0 0.0
  %2587 = vmatpush1.msra.mxu0 0.0
  %2588 = vmatprep.subr.mxu0 0.0
  %2589 = vmatpush1.msra.mxu0 0.0
  %2590 = vmatprep.subr.mxu0 0.0
  %2591 = vmatpush1.msra.mxu0 0.0
  %2592 = vmatprep.mubr.f32.mxu0 0.0
  %2593 = vmatmul.mubr.f32.gmra.mrb[0].mxu0 %v1238
  %v2594 = vpop.f32.mrb[0].mxu0
  %v2595 = vadd.f32 %v2526, %v2594
  %v2596 = vpop.f32.mrb[0].mxu0
  %2597 = vmatprep.mubr.f32.mxu0 0.0
  %2598 = vmatmul.mubr.f32.gmra.mrb[0].mxu0 %v1241
  %v2599 = vpop.f32.mrb[0].mxu0
  %v2600 = vadd.f32 %v2526, %v2599
  %v2601 = vpop.f32.mrb[0].mxu0
  %2602 = vmatprep.mubr.f32.mxu0 0.0
  %2603 = vmatmul.mubr.f32.gmra.mrb[0].mxu0 %v1244
  %v2604 = vpop.f32.mrb[0].mxu0
  %v2605 = vadd.f32 %v2526, %v2604
  %v2606 = vpop.f32.mrb[0].mxu0
  %2607 = vdwg.mxu0
  %s2608 = scalar_lea.vmem %s6, 320
  %v2609 = vld [vmem:[%s2608] sm:$0xff]
  %v2610 = vld [vmem:[%s2608 + $0x8] sm:$0xff]
  %v2611 = vld [vmem:[%s2608 + $0x10] sm:$0xff]
  %v2612 = vld [vmem:[%s2608 + $0x18] sm:$0xff]
  %s2613 = scalar_lea.vmem %s7, 10
  %v2614 = vld [vmem:[%s2613] sm:$0x1]
  %v2616 = vlaneseq
  %v2617 = vshrl.u32 %v2616, 7
  %v2618 = vsub.s32 0, %v2617
  %v2619 = vrot.slane %v2614, %v2618
  %2621 = vmatprep.subr.mxu0 0.0
  %2622 = vmatpush1.msra.mxu0 %v2609
  %2623 = vmatprep.subr.mxu0 0.0
  %2624 = vmatpush1.msra.mxu0 %v2610
  %2625 = vmatprep.subr.mxu0 0.0
  %2626 = vmatpush1.msra.mxu0 %v2611
  %2627 = vmatprep.subr.mxu0 0.0
  %2628 = vmatpush1.msra.mxu0 %v2612
  %2629 = vmatprep.subr.mxu0 0.0
  %2630 = vmatpush1.msra.mxu0 0.0
  %2631 = vmatprep.subr.mxu0 0.0
  %2632 = vmatpush1.msra.mxu0 0.0
  %2633 = vmatprep.subr.mxu0 0.0
  %2634 = vmatpush1.msra.mxu0 0.0
  %2635 = vmatprep.subr.mxu0 0.0
  %2636 = vmatpush1.msra.mxu0 0.0
  %2637 = vmatprep.subr.mxu0 0.0
  %2638 = vmatpush1.msra.mxu0 0.0
  %2639 = vmatprep.subr.mxu0 0.0
  %2640 = vmatpush1.msra.mxu0 0.0
  %2641 = vmatprep.subr.mxu0 0.0
  %2642 = vmatpush1.msra.mxu0 0.0
  %2643 = vmatprep.subr.mxu0 0.0
  %2644 = vmatpush1.msra.mxu0 0.0
  %2645 = vmatprep.subr.mxu0 0.0
  %2646 = vmatpush1.msra.mxu0 0.0
  %2647 = vmatprep.subr.mxu0 0.0
  %2648 = vmatpush1.msra.mxu0 0.0
  %2649 = vmatprep.subr.mxu0 0.0
  %2650 = vmatpush1.msra.mxu0 0.0
  %2651 = vmatprep.subr.mxu0 0.0
  %2652 = vmatpush1.msra.mxu0 0.0
  %2653 = vmatprep.subr.mxu0 0.0
  %2654 = vmatpush1.msra.mxu0 0.0
  %2655 = vmatprep.subr.mxu0 0.0
  %2656 = vmatpush1.msra.mxu0 0.0
  %2657 = vmatprep.subr.mxu0 0.0
  %2658 = vmatpush1.msra.mxu0 0.0
  %2659 = vmatprep.subr.mxu0 0.0
  %2660 = vmatpush1.msra.mxu0 0.0
  %2661 = vmatprep.subr.mxu0 0.0
  %2662 = vmatpush1.msra.mxu0 0.0
  %2663 = vmatprep.subr.mxu0 0.0
  %2664 = vmatpush1.msra.mxu0 0.0
  %2665 = vmatprep.subr.mxu0 0.0
  %2666 = vmatpush1.msra.mxu0 0.0
  %2667 = vmatprep.subr.mxu0 0.0
  %2668 = vmatpush1.msra.mxu0 0.0
  %2669 = vmatprep.subr.mxu0 0.0
  %2670 = vmatpush1.msra.mxu0 0.0
  %2671 = vmatprep.subr.mxu0 0.0
  %2672 = vmatpush1.msra.mxu0 0.0
  %2673 = vmatprep.subr.mxu0 0.0
  %2674 = vmatpush1.msra.mxu0 0.0
  %2675 = vmatprep.subr.mxu0 0.0
  %2676 = vmatpush1.msra.mxu0 0.0
  %2677 = vmatprep.subr.mxu0 0.0
  %2678 = vmatpush1.msra.mxu0 0.0
  %2679 = vmatprep.subr.mxu0 0.0
  %2680 = vmatpush1.msra.mxu0 0.0
  %2681 = vmatprep.subr.mxu0 0.0
  %2682 = vmatpush1.msra.mxu0 0.0
  %2683 = vmatprep.subr.mxu0 0.0
  %2684 = vmatpush1.msra.mxu0 0.0
  %2685 = vmatprep.mubr.f32.mxu0 0.0
  %2686 = vmatmul.mubr.f32.gmra.mrb[0].mxu0 %v1238
  %v2687 = vpop.f32.mrb[0].mxu0
  %v2688 = vadd.f32 %v2619, %v2687
  %v2689 = vpop.f32.mrb[0].mxu0
  %2690 = vmatprep.mubr.f32.mxu0 0.0
  %2691 = vmatmul.mubr.f32.gmra.mrb[0].mxu0 %v1241
  %v2692 = vpop.f32.mrb[0].mxu0
  %v2693 = vadd.f32 %v2619, %v2692
  %v2694 = vpop.f32.mrb[0].mxu0
  %2695 = vmatprep.mubr.f32.mxu0 0.0
  %2696 = vmatmul.mubr.f32.gmra.mrb[0].mxu0 %v1244
  %v2697 = vpop.f32.mrb[0].mxu0
  %v2698 = vadd.f32 %v2619, %v2697
  %v2699 = vpop.f32.mrb[0].mxu0
  %2700 = vdwg.mxu0
  %v2702 = vsel %vm1512, %v2502, 0
  %v2705 = vsel %vm1512, %v2507, 0
  %v2708 = vsel %vm1512, %v2512, 0
  %v2711 = vsel %vm1512, %v2595, 0
  %v2714 = vsel %vm1512, %v2600, 0
  %v2717 = vsel %vm1512, %v2605, 0
  %2719 = vmatprep.subr.mxu0 0.0
  %2720 = vmatpush1.xpose.msra.mxu0 %v2711
  %2721 = vmatprep.subr.mxu0 0.0
  %2722 = vmatpush1.xpose.msra.mxu0 %v2714
  %2723 = vmatprep.subr.mxu0 0.0
  %2724 = vmatpush1.xpose.msra.mxu0 %v2717
  %2725 = vmatprep.subr.mxu0 0.0
  %2726 = vmatpush1.xpose.msra.mxu0 0.0
  %2727 = vmatprep.subr.mxu0 0.0
  %2728 = vmatpush1.xpose.msra.mxu0 0.0
  %2729 = vmatprep.subr.mxu0 0.0
  %2730 = vmatpush1.xpose.msra.mxu0 0.0
  %2731 = vmatprep.subr.mxu0 0.0
  %2732 = vmatpush1.xpose.msra.mxu0 0.0
  %2733 = vmatprep.subr.mxu0 0.0
  %2734 = vmatpush1.xpose.msra.mxu0 0.0
  %2735 = vmatprep.subr.mxu0 0.0
  %2736 = vmatpush1.xpose.msra.mxu0 0.0
  %2737 = vmatprep.subr.mxu0 0.0
  %2738 = vmatpush1.xpose.msra.mxu0 0.0
  %2739 = vmatprep.subr.mxu0 0.0
  %2740 = vmatpush1.xpose.msra.mxu0 0.0
  %2741 = vmatprep.subr.mxu0 0.0
  %2742 = vmatpush1.xpose.msra.mxu0 0.0
  %2743 = vmatprep.subr.mxu0 0.0
  %2744 = vmatpush1.xpose.msra.mxu0 0.0
  %2745 = vmatprep.subr.mxu0 0.0
  %2746 = vmatpush1.xpose.msra.mxu0 0.0
  %2747 = vmatprep.subr.mxu0 0.0
  %2748 = vmatpush1.xpose.msra.mxu0 0.0
  %2749 = vmatprep.subr.mxu0 0.0
  %2750 = vmatpush1.xpose.msra.mxu0 0.0
  %2751 = vmatprep.subr.mxu0 0.0
  %2752 = vmatpush1.xpose.msra.mxu0 0.0
  %2753 = vmatprep.subr.mxu0 0.0
  %2754 = vmatpush1.xpose.msra.mxu0 0.0
  %2755 = vmatprep.subr.mxu0 0.0
  %2756 = vmatpush1.xpose.msra.mxu0 0.0
  %2757 = vmatprep.subr.mxu0 0.0
  %2758 = vmatpush1.xpose.msra.mxu0 0.0
  %2759 = vmatprep.subr.mxu0 0.0
  %2760 = vmatpush1.xpose.msra.mxu0 0.0
  %2761 = vmatprep.subr.mxu0 0.0
  %2762 = vmatpush1.xpose.msra.mxu0 0.0
  %2763 = vmatprep.subr.mxu0 0.0
  %2764 = vmatpush1.xpose.msra.mxu0 0.0
  %2765 = vmatprep.subr.mxu0 0.0
  %2766 = vmatpush1.xpose.msra.mxu0 0.0
  %2767 = vmatprep.subr.mxu0 0.0
  %2768 = vmatpush1.xpose.msra.mxu0 0.0
  %2769 = vmatprep.subr.mxu0 0.0
  %2770 = vmatpush1.xpose.msra.mxu0 0.0
  %2771 = vmatprep.subr.mxu0 0.0
  %2772 = vmatpush1.xpose.msra.mxu0 0.0
  %2773 = vmatprep.subr.mxu0 0.0
  %2774 = vmatpush1.xpose.msra.mxu0 0.0
  %2775 = vmatprep.subr.mxu0 0.0
  %2776 = vmatpush1.xpose.msra.mxu0 0.0
  %2777 = vmatprep.subr.mxu0 0.0
  %2778 = vmatpush1.xpose.msra.mxu0 0.0
  %2779 = vmatprep.subr.mxu0 0.0
  %2780 = vmatpush1.xpose.msra.mxu0 0.0
  %2781 = vmatprep.subr.mxu0 0.0
  %2782 = vmatpush1.xpose.msra.mxu0 0.0
  %2783 = vmatprep.mubr.f32.mxu0 0.0
  %2784 = vmatmul.mubr.f32.gmra.mrb[0].mxu0 %v2702
  %v2785 = vpop.f32.mrb[0].mxu0
  %v2786 = vadd.f32 %v1161, %v2785
  %v2787 = vpop.f32.mrb[0].mxu0
  %2788 = vmatprep.mubr.f32.mxu0 0.0
  %2789 = vmatmul.mubr.f32.gmra.mrb[0].mxu0 %v2705
  %v2790 = vpop.f32.mrb[0].mxu0
  %v2791 = vadd.f32 %v1162, %v2790
  %v2792 = vpop.f32.mrb[0].mxu0
  %2793 = vmatprep.mubr.f32.mxu0 0.0
  %2794 = vmatmul.mubr.f32.gmra.mrb[0].mxu0 %v2708
  %v2795 = vpop.f32.mrb[0].mxu0
  %v2796 = vadd.f32 %v1163, %v2795
  %v2797 = vpop.f32.mrb[0].mxu0
  %2798 = vdwg.mxu0
  %v2799 = vsel %vm1611, %v2786, -inf
  %2800 = vmax.xlane.f32.xlu0 %v2799
  %v2801 = vpop.xlane.xlu0 %2800
  %v2802 = vsel %vm1611, %v2791, -inf
  %2803 = vmax.xlane.f32.xlu0 %v2802
  %v2804 = vpop.xlane.xlu0 %2803
  %v2805 = vsel %vm1618, %v2796, -inf
  %2806 = vmax.xlane.f32.xlu0 %v2805
  %v2807 = vpop.xlane.xlu0 %2806
  %v2808 = vsub.f32 %v2786, %v2801
  %v2809 = vsub.f32 %v2791, %v2804
  %v2810 = vsub.f32 %v2796, %v2807
  %v2811 = vmul.f32 %v2808, 1.442695
  %v2812 = vpow.pop %v2811
  %v2813 = vmul.f32 %v2809, 1.442695
  %v2814 = vpow.pop %v2813
  %v2815 = vmul.f32 %v2810, 1.442695
  %v2816 = vpow.pop %v2815
  %v2817 = vsel %vm1611, %v2812, 0.0
  %2818 = vadd.xlane.f32.xlu0 %v2817
  %v2819 = vpop.xlane.xlu0 %2818
  %v2820 = vsel %vm1611, %v2814, 0.0
  %2821 = vadd.xlane.f32.xlu0 %v2820
  %v2822 = vpop.xlane.xlu0 %2821
  %v2823 = vsel %vm1618, %v2816, 0.0
  %2824 = vadd.xlane.f32.xlu0 %v2823
  %v2825 = vpop.xlane.xlu0 %2824
  %v2826 = vrcp.pop %v2819
  %v2827 = vrcp.pop %v2822
  %v2828 = vrcp.pop %v2825
  %v2829 = vmul.f32 %v2812, %v2826
  %v2830 = vmul.f32 %v2814, %v2827
  %v2831 = vmul.f32 %v2816, %v2828
  %v2833 = vsel %vm1611, %v2829, 0
  %v2836 = vsel %vm1611, %v2830, 0
  %v2839 = vsel %vm1611, %v2831, 0
  %v2842 = vsel %vm1655, %v2698, 0
  %2844 = vmatprep.subr.mxu0 0.0
  %2845 = vmatpush1.msra.mxu0 %v2688
  %2846 = vmatprep.subr.mxu0 0.0
  %2847 = vmatpush1.msra.mxu0 %v2693
  %2848 = vmatprep.subr.mxu0 0.0
  %2849 = vmatpush1.msra.mxu0 %v2842
  %2850 = vmatprep.subr.mxu0 0.0
  %2851 = vmatpush1.msra.mxu0 0.0
  %2852 = vmatprep.subr.mxu0 0.0
  %2853 = vmatpush1.msra.mxu0 0.0
  %2854 = vmatprep.subr.mxu0 0.0
  %2855 = vmatpush1.msra.mxu0 0.0
  %2856 = vmatprep.subr.mxu0 0.0
  %2857 = vmatpush1.msra.mxu0 0.0
  %2858 = vmatprep.subr.mxu0 0.0
  %2859 = vmatpush1.msra.mxu0 0.0
  %2860 = vmatprep.subr.mxu0 0.0
  %2861 = vmatpush1.msra.mxu0 0.0
  %2862 = vmatprep.subr.mxu0 0.0
  %2863 = vmatpush1.msra.mxu0 0.0
  %2864 = vmatprep.subr.mxu0 0.0
  %2865 = vmatpush1.msra.mxu0 0.0
  %2866 = vmatprep.subr.mxu0 0.0
  %2867 = vmatpush1.msra.mxu0 0.0
  %2868 = vmatprep.subr.mxu0 0.0
  %2869 = vmatpush1.msra.mxu0 0.0
  %2870 = vmatprep.subr.mxu0 0.0
  %2871 = vmatpush1.msra.mxu0 0.0
  %2872 = vmatprep.subr.mxu0 0.0
  %2873 = vmatpush1.msra.mxu0 0.0
  %2874 = vmatprep.subr.mxu0 0.0
  %2875 = vmatpush1.msra.mxu0 0.0
  %2876 = vmatprep.subr.mxu0 0.0
  %2877 = vmatpush1.msra.mxu0 0.0
  %2878 = vmatprep.subr.mxu0 0.0
  %2879 = vmatpush1.msra.mxu0 0.0
  %2880 = vmatprep.subr.mxu0 0.0
  %2881 = vmatpush1.msra.mxu0 0.0
  %2882 = vmatprep.subr.mxu0 0.0
  %2883 = vmatpush1.msra.mxu0 0.0
  %2884 = vmatprep.subr.mxu0 0.0
  %2885 = vmatpush1.msra.mxu0 0.0
  %2886 = vmatprep.subr.mxu0 0.0
  %2887 = vmatpush1.msra.mxu0 0.0
  %2888 = vmatprep.subr.mxu0 0.0
  %2889 = vmatpush1.msra.mxu0 0.0
  %2890 = vmatprep.subr.mxu0 0.0
  %2891 = vmatpush1.msra.mxu0 0.0
  %2892 = vmatprep.subr.mxu0 0.0
  %2893 = vmatpush1.msra.mxu0 0.0
  %2894 = vmatprep.subr.mxu0 0.0
  %2895 = vmatpush1.msra.mxu0 0.0
  %2896 = vmatprep.subr.mxu0 0.0
  %2897 = vmatpush1.msra.mxu0 0.0
  %2898 = vmatprep.subr.mxu0 0.0
  %2899 = vmatpush1.msra.mxu0 0.0
  %2900 = vmatprep.subr.mxu0 0.0
  %2901 = vmatpush1.msra.mxu0 0.0
  %2902 = vmatprep.subr.mxu0 0.0
  %2903 = vmatpush1.msra.mxu0 0.0
  %2904 = vmatprep.subr.mxu0 0.0
  %2905 = vmatpush1.msra.mxu0 0.0
  %2906 = vmatprep.subr.mxu0 0.0
  %2907 = vmatpush1.msra.mxu0 0.0
  %2908 = vmatprep.mubr.f32.mxu0 0.0
  %2909 = vmatmul.mubr.f32.gmra.mrb[0].mxu0 %v2833
  %v2910 = vpop.f32.mrb[0].mxu0
  %v2911 = vadd.f32 0.0, %v2910
  %v2912 = vpop.f32.mrb[0].mxu0
  %2913 = vmatprep.mubr.f32.mxu0 0.0
  %2914 = vmatmul.mubr.f32.gmra.mrb[0].mxu0 %v2836
  %v2915 = vpop.f32.mrb[0].mxu0
  %v2916 = vadd.f32 0.0, %v2915
  %v2917 = vpop.f32.mrb[0].mxu0
  %2918 = vmatprep.mubr.f32.mxu0 0.0
  %2919 = vmatmul.mubr.f32.gmra.mrb[0].mxu0 %v2839
  %v2920 = vpop.f32.mrb[0].mxu0
  %v2921 = vadd.f32 0.0, %v2920
  %v2922 = vpop.f32.mrb[0].mxu0
  %2923 = vdwg.mxu0
  %s2924 = scalar_lea.vmem %s8, 16
  %v2925 = vld [vmem:[%s2924] sm:$0xff]
  %v2927 = vsel %vm1512, %v2911, 0
  %v2930 = vsel %vm1512, %v2916, 0
  %v2933 = vsel %vm1512, %v2921, 0
  %2935 = vmatprep.subr.mxu0 0.0
  %2936 = vmatpush1.msra.mxu0 %v2925
  %2937 = vmatprep.subr.mxu0 0.0
  %2938 = vmatpush1.msra.mxu0 0.0
  %2939 = vmatprep.subr.mxu0 0.0
  %2940 = vmatpush1.msra.mxu0 0.0
  %2941 = vmatprep.subr.mxu0 0.0
  %2942 = vmatpush1.msra.mxu0 0.0
  %2943 = vmatprep.subr.mxu0 0.0
  %2944 = vmatpush1.msra.mxu0 0.0
  %2945 = vmatprep.subr.mxu0 0.0
  %2946 = vmatpush1.msra.mxu0 0.0
  %2947 = vmatprep.subr.mxu0 0.0
  %2948 = vmatpush1.msra.mxu0 0.0
  %2949 = vmatprep.subr.mxu0 0.0
  %2950 = vmatpush1.msra.mxu0 0.0
  %2951 = vmatprep.subr.mxu0 0.0
  %2952 = vmatpush1.msra.mxu0 0.0
  %2953 = vmatprep.subr.mxu0 0.0
  %2954 = vmatpush1.msra.mxu0 0.0
  %2955 = vmatprep.subr.mxu0 0.0
  %2956 = vmatpush1.msra.mxu0 0.0
  %2957 = vmatprep.subr.mxu0 0.0
  %2958 = vmatpush1.msra.mxu0 0.0
  %2959 = vmatprep.subr.mxu0 0.0
  %2960 = vmatpush1.msra.mxu0 0.0
  %2961 = vmatprep.subr.mxu0 0.0
  %2962 = vmatpush1.msra.mxu0 0.0
  %2963 = vmatprep.subr.mxu0 0.0
  %2964 = vmatpush1.msra.mxu0 0.0
  %2965 = vmatprep.subr.mxu0 0.0
  %2966 = vmatpush1.msra.mxu0 0.0
  %2967 = vmatprep.subr.mxu0 0.0
  %2968 = vmatpush1.msra.mxu0 0.0
  %2969 = vmatprep.subr.mxu0 0.0
  %2970 = vmatpush1.msra.mxu0 0.0
  %2971 = vmatprep.subr.mxu0 0.0
  %2972 = vmatpush1.msra.mxu0 0.0
  %2973 = vmatprep.subr.mxu0 0.0
  %2974 = vmatpush1.msra.mxu0 0.0
  %2975 = vmatprep.subr.mxu0 0.0
  %2976 = vmatpush1.msra.mxu0 0.0
  %2977 = vmatprep.subr.mxu0 0.0
  %2978 = vmatpush1.msra.mxu0 0.0
  %2979 = vmatprep.subr.mxu0 0.0
  %2980 = vmatpush1.msra.mxu0 0.0
  %2981 = vmatprep.subr.mxu0 0.0
  %2982 = vmatpush1.msra.mxu0 0.0
  %2983 = vmatprep.subr.mxu0 0.0
  %2984 = vmatpush1.msra.mxu0 0.0
  %2985 = vmatprep.subr.mxu0 0.0
  %2986 = vmatpush1.msra.mxu0 0.0
  %2987 = vmatprep.subr.mxu0 0.0
  %2988 = vmatpush1.msra.mxu0 0.0
  %2989 = vmatprep.subr.mxu0 0.0
  %2990 = vmatpush1.msra.mxu0 0.0
  %2991 = vmatprep.subr.mxu0 0.0
  %2992 = vmatpush1.msra.mxu0 0.0
  %2993 = vmatprep.subr.mxu0 0.0
  %2994 = vmatpush1.msra.mxu0 0.0
  %2995 = vmatprep.subr.mxu0 0.0
  %2996 = vmatpush1.msra.mxu0 0.0
  %2997 = vmatprep.subr.mxu0 0.0
  %2998 = vmatpush1.msra.mxu0 0.0
  %2999 = vmatprep.mubr.f32.mxu0 0.0
  %3000 = vmatmul.mubr.f32.gmra.mrb[0].mxu0 %v2927
  %v3001 = vpop.f32.mrb[0].mxu0
  %v3002 = vadd.f32 0.0, %v3001
  %v3003 = vpop.f32.mrb[0].mxu0
  %3004 = vmatprep.mubr.f32.mxu0 0.0
  %3005 = vmatmul.mubr.f32.gmra.mrb[0].mxu0 %v2930
  %v3006 = vpop.f32.mrb[0].mxu0
  %v3007 = vadd.f32 0.0, %v3006
  %v3008 = vpop.f32.mrb[0].mxu0
  %3009 = vmatprep.mubr.f32.mxu0 0.0
  %3010 = vmatmul.mubr.f32.gmra.mrb[0].mxu0 %v2933
  %v3011 = vpop.f32.mrb[0].mxu0
  %v3012 = vadd.f32 0.0, %v3011
  %v3013 = vpop.f32.mrb[0].mxu0
  %3014 = vdwg.mxu0
  %v3015 = vadd.f32 %v2409, %v3002
  %v3016 = vadd.f32 %v2414, %v3007
  %v3017 = vadd.f32 %v2419, %v3012
  %s3018 = scalar_lea.vmem %s6, 96
  %v3019 = vld [vmem:[%s3018] sm:$0xff]
  %v3020 = vld [vmem:[%s3018 + $0x8] sm:$0xff]
  %v3021 = vld [vmem:[%s3018 + $0x10] sm:$0xff]
  %v3022 = vld [vmem:[%s3018 + $0x18] sm:$0xff]
  %s3023 = scalar_lea.vmem %s7, 3
  %v3024 = vld [vmem:[%s3023] sm:$0x1]
  %v3026 = vlaneseq
  %v3027 = vshrl.u32 %v3026, 7
  %v3028 = vsub.s32 0, %v3027
  %v3029 = vrot.slane %v3024, %v3028
  %3031 = vmatprep.subr.mxu0 0.0
  %3032 = vmatpush1.msra.mxu0 %v3019
  %3033 = vmatprep.subr.mxu0 0.0
  %3034 = vmatpush1.msra.mxu0 %v3020
  %3035 = vmatprep.subr.mxu0 0.0
  %3036 = vmatpush1.msra.mxu0 %v3021
  %3037 = vmatprep.subr.mxu0 0.0
  %3038 = vmatpush1.msra.mxu0 %v3022
  %3039 = vmatprep.subr.mxu0 0.0
  %3040 = vmatpush1.msra.mxu0 0.0
  %3041 = vmatprep.subr.mxu0 0.0
  %3042 = vmatpush1.msra.mxu0 0.0
  %3043 = vmatprep.subr.mxu0 0.0
  %3044 = vmatpush1.msra.mxu0 0.0
  %3045 = vmatprep.subr.mxu0 0.0
  %3046 = vmatpush1.msra.mxu0 0.0
  %3047 = vmatprep.subr.mxu0 0.0
  %3048 = vmatpush1.msra.mxu0 0.0
  %3049 = vmatprep.subr.mxu0 0.0
  %3050 = vmatpush1.msra.mxu0 0.0
  %3051 = vmatprep.subr.mxu0 0.0
  %3052 = vmatpush1.msra.mxu0 0.0
  %3053 = vmatprep.subr.mxu0 0.0
  %3054 = vmatpush1.msra.mxu0 0.0
  %3055 = vmatprep.subr.mxu0 0.0
  %3056 = vmatpush1.msra.mxu0 0.0
  %3057 = vmatprep.subr.mxu0 0.0
  %3058 = vmatpush1.msra.mxu0 0.0
  %3059 = vmatprep.subr.mxu0 0.0
  %3060 = vmatpush1.msra.mxu0 0.0
  %3061 = vmatprep.subr.mxu0 0.0
  %3062 = vmatpush1.msra.mxu0 0.0
  %3063 = vmatprep.subr.mxu0 0.0
  %3064 = vmatpush1.msra.mxu0 0.0
  %3065 = vmatprep.subr.mxu0 0.0
  %3066 = vmatpush1.msra.mxu0 0.0
  %3067 = vmatprep.subr.mxu0 0.0
  %3068 = vmatpush1.msra.mxu0 0.0
  %3069 = vmatprep.subr.mxu0 0.0
  %3070 = vmatpush1.msra.mxu0 0.0
  %3071 = vmatprep.subr.mxu0 0.0
  %3072 = vmatpush1.msra.mxu0 0.0
  %3073 = vmatprep.subr.mxu0 0.0
  %3074 = vmatpush1.msra.mxu0 0.0
  %3075 = vmatprep.subr.mxu0 0.0
  %3076 = vmatpush1.msra.mxu0 0.0
  %3077 = vmatprep.subr.mxu0 0.0
  %3078 = vmatpush1.msra.mxu0 0.0
  %3079 = vmatprep.subr.mxu0 0.0
  %3080 = vmatpush1.msra.mxu0 0.0
  %3081 = vmatprep.subr.mxu0 0.0
  %3082 = vmatpush1.msra.mxu0 0.0
  %3083 = vmatprep.subr.mxu0 0.0
  %3084 = vmatpush1.msra.mxu0 0.0
  %3085 = vmatprep.subr.mxu0 0.0
  %3086 = vmatpush1.msra.mxu0 0.0
  %3087 = vmatprep.subr.mxu0 0.0
  %3088 = vmatpush1.msra.mxu0 0.0
  %3089 = vmatprep.subr.mxu0 0.0
  %3090 = vmatpush1.msra.mxu0 0.0
  %3091 = vmatprep.subr.mxu0 0.0
  %3092 = vmatpush1.msra.mxu0 0.0
  %3093 = vmatprep.subr.mxu0 0.0
  %3094 = vmatpush1.msra.mxu0 0.0
  %3095 = vmatprep.mubr.f32.mxu0 0.0
  %3096 = vmatmul.mubr.f32.gmra.mrb[0].mxu0 %v1238
  %v3097 = vpop.f32.mrb[0].mxu0
  %v3098 = vadd.f32 %v3029, %v3097
  %v3099 = vpop.f32.mrb[0].mxu0
  %3100 = vmatprep.mubr.f32.mxu0 0.0
  %3101 = vmatmul.mubr.f32.gmra.mrb[0].mxu0 %v1241
  %v3102 = vpop.f32.mrb[0].mxu0
  %v3103 = vadd.f32 %v3029, %v3102
  %v3104 = vpop.f32.mrb[0].mxu0
  %3105 = vmatprep.mubr.f32.mxu0 0.0
  %3106 = vmatmul.mubr.f32.gmra.mrb[0].mxu0 %v1244
  %v3107 = vpop.f32.mrb[0].mxu0
  %v3108 = vadd.f32 %v3029, %v3107
  %v3109 = vpop.f32.mrb[0].mxu0
  %3110 = vdwg.mxu0
  %s3111 = scalar_lea.vmem %s6, 224
  %v3112 = vld [vmem:[%s3111] sm:$0xff]
  %v3113 = vld [vmem:[%s3111 + $0x8] sm:$0xff]
  %v3114 = vld [vmem:[%s3111 + $0x10] sm:$0xff]
  %v3115 = vld [vmem:[%s3111 + $0x18] sm:$0xff]
  %s3116 = scalar_lea.vmem %s7, 7
  %v3117 = vld [vmem:[%s3116] sm:$0x1]
  %v3119 = vlaneseq
  %v3120 = vshrl.u32 %v3119, 7
  %v3121 = vsub.s32 0, %v3120
  %v3122 = vrot.slane %v3117, %v3121
  %3124 = vmatprep.subr.mxu0 0.0
  %3125 = vmatpush1.msra.mxu0 %v3112
  %3126 = vmatprep.subr.mxu0 0.0
  %3127 = vmatpush1.msra.mxu0 %v3113
  %3128 = vmatprep.subr.mxu0 0.0
  %3129 = vmatpush1.msra.mxu0 %v3114
  %3130 = vmatprep.subr.mxu0 0.0
  %3131 = vmatpush1.msra.mxu0 %v3115
  %3132 = vmatprep.subr.mxu0 0.0
  %3133 = vmatpush1.msra.mxu0 0.0
  %3134 = vmatprep.subr.mxu0 0.0
  %3135 = vmatpush1.msra.mxu0 0.0
  %3136 = vmatprep.subr.mxu0 0.0
  %3137 = vmatpush1.msra.mxu0 0.0
  %3138 = vmatprep.subr.mxu0 0.0
  %3139 = vmatpush1.msra.mxu0 0.0
  %3140 = vmatprep.subr.mxu0 0.0
  %3141 = vmatpush1.msra.mxu0 0.0
  %3142 = vmatprep.subr.mxu0 0.0
  %3143 = vmatpush1.msra.mxu0 0.0
  %3144 = vmatprep.subr.mxu0 0.0
  %3145 = vmatpush1.msra.mxu0 0.0
  %3146 = vmatprep.subr.mxu0 0.0
  %3147 = vmatpush1.msra.mxu0 0.0
  %3148 = vmatprep.subr.mxu0 0.0
  %3149 = vmatpush1.msra.mxu0 0.0
  %3150 = vmatprep.subr.mxu0 0.0
  %3151 = vmatpush1.msra.mxu0 0.0
  %3152 = vmatprep.subr.mxu0 0.0
  %3153 = vmatpush1.msra.mxu0 0.0
  %3154 = vmatprep.subr.mxu0 0.0
  %3155 = vmatpush1.msra.mxu0 0.0
  %3156 = vmatprep.subr.mxu0 0.0
  %3157 = vmatpush1.msra.mxu0 0.0
  %3158 = vmatprep.subr.mxu0 0.0
  %3159 = vmatpush1.msra.mxu0 0.0
  %3160 = vmatprep.subr.mxu0 0.0
  %3161 = vmatpush1.msra.mxu0 0.0
  %3162 = vmatprep.subr.mxu0 0.0
  %3163 = vmatpush1.msra.mxu0 0.0
  %3164 = vmatprep.subr.mxu0 0.0
  %3165 = vmatpush1.msra.mxu0 0.0
  %3166 = vmatprep.subr.mxu0 0.0
  %3167 = vmatpush1.msra.mxu0 0.0
  %3168 = vmatprep.subr.mxu0 0.0
  %3169 = vmatpush1.msra.mxu0 0.0
  %3170 = vmatprep.subr.mxu0 0.0
  %3171 = vmatpush1.msra.mxu0 0.0
  %3172 = vmatprep.subr.mxu0 0.0
  %3173 = vmatpush1.msra.mxu0 0.0
  %3174 = vmatprep.subr.mxu0 0.0
  %3175 = vmatpush1.msra.mxu0 0.0
  %3176 = vmatprep.subr.mxu0 0.0
  %3177 = vmatpush1.msra.mxu0 0.0
  %3178 = vmatprep.subr.mxu0 0.0
  %3179 = vmatpush1.msra.mxu0 0.0
  %3180 = vmatprep.subr.mxu0 0.0
  %3181 = vmatpush1.msra.mxu0 0.0
  %3182 = vmatprep.subr.mxu0 0.0
  %3183 = vmatpush1.msra.mxu0 0.0
  %3184 = vmatprep.subr.mxu0 0.0
  %3185 = vmatpush1.msra.mxu0 0.0
  %3186 = vmatprep.subr.mxu0 0.0
  %3187 = vmatpush1.msra.mxu0 0.0
  %3188 = vmatprep.mubr.f32.mxu0 0.0
  %3189 = vmatmul.mubr.f32.gmra.mrb[0].mxu0 %v1238
  %v3190 = vpop.f32.mrb[0].mxu0
  %v3191 = vadd.f32 %v3122, %v3190
  %v3192 = vpop.f32.mrb[0].mxu0
  %3193 = vmatprep.mubr.f32.mxu0 0.0
  %3194 = vmatmul.mubr.f32.gmra.mrb[0].mxu0 %v1241
  %v3195 = vpop.f32.mrb[0].mxu0
  %v3196 = vadd.f32 %v3122, %v3195
  %v3197 = vpop.f32.mrb[0].mxu0
  %3198 = vmatprep.mubr.f32.mxu0 0.0
  %3199 = vmatmul.mubr.f32.gmra.mrb[0].mxu0 %v1244
  %v3200 = vpop.f32.mrb[0].mxu0
  %v3201 = vadd.f32 %v3122, %v3200
  %v3202 = vpop.f32.mrb[0].mxu0
  %3203 = vdwg.mxu0
  %s3204 = scalar_lea.vmem %s6, 352
  %v3205 = vld [vmem:[%s3204] sm:$0xff]
  %v3206 = vld [vmem:[%s3204 + $0x8] sm:$0xff]
  %v3207 = vld [vmem:[%s3204 + $0x10] sm:$0xff]
  %v3208 = vld [vmem:[%s3204 + $0x18] sm:$0xff]
  %s3209 = scalar_lea.vmem %s7, 11
  %v3210 = vld [vmem:[%s3209] sm:$0x1]
  %v3212 = vlaneseq
  %v3213 = vshrl.u32 %v3212, 7
  %v3214 = vsub.s32 0, %v3213
  %v3215 = vrot.slane %v3210, %v3214
  %3217 = vmatprep.subr.mxu0 0.0
  %3218 = vmatpush1.msra.mxu0 %v3205
  %3219 = vmatprep.subr.mxu0 0.0
  %3220 = vmatpush1.msra.mxu0 %v3206
  %3221 = vmatprep.subr.mxu0 0.0
  %3222 = vmatpush1.msra.mxu0 %v3207
  %3223 = vmatprep.subr.mxu0 0.0
  %3224 = vmatpush1.msra.mxu0 %v3208
  %3225 = vmatprep.subr.mxu0 0.0
  %3226 = vmatpush1.msra.mxu0 0.0
  %3227 = vmatprep.subr.mxu0 0.0
  %3228 = vmatpush1.msra.mxu0 0.0
  %3229 = vmatprep.subr.mxu0 0.0
  %3230 = vmatpush1.msra.mxu0 0.0
  %3231 = vmatprep.subr.mxu0 0.0
  %3232 = vmatpush1.msra.mxu0 0.0
  %3233 = vmatprep.subr.mxu0 0.0
  %3234 = vmatpush1.msra.mxu0 0.0
  %3235 = vmatprep.subr.mxu0 0.0
  %3236 = vmatpush1.msra.mxu0 0.0
  %3237 = vmatprep.subr.mxu0 0.0
  %3238 = vmatpush1.msra.mxu0 0.0
  %3239 = vmatprep.subr.mxu0 0.0
  %3240 = vmatpush1.msra.mxu0 0.0
  %3241 = vmatprep.subr.mxu0 0.0
  %3242 = vmatpush1.msra.mxu0 0.0
  %3243 = vmatprep.subr.mxu0 0.0
  %3244 = vmatpush1.msra.mxu0 0.0
  %3245 = vmatprep.subr.mxu0 0.0
  %3246 = vmatpush1.msra.mxu0 0.0
  %3247 = vmatprep.subr.mxu0 0.0
  %3248 = vmatpush1.msra.mxu0 0.0
  %3249 = vmatprep.subr.mxu0 0.0
  %3250 = vmatpush1.msra.mxu0 0.0
  %3251 = vmatprep.subr.mxu0 0.0
  %3252 = vmatpush1.msra.mxu0 0.0
  %3253 = vmatprep.subr.mxu0 0.0
  %3254 = vmatpush1.msra.mxu0 0.0
  %3255 = vmatprep.subr.mxu0 0.0
  %3256 = vmatpush1.msra.mxu0 0.0
  %3257 = vmatprep.subr.mxu0 0.0
  %3258 = vmatpush1.msra.mxu0 0.0
  %3259 = vmatprep.subr.mxu0 0.0
  %3260 = vmatpush1.msra.mxu0 0.0
  %3261 = vmatprep.subr.mxu0 0.0
  %3262 = vmatpush1.msra.mxu0 0.0
  %3263 = vmatprep.subr.mxu0 0.0
  %3264 = vmatpush1.msra.mxu0 0.0
  %3265 = vmatprep.subr.mxu0 0.0
  %3266 = vmatpush1.msra.mxu0 0.0
  %3267 = vmatprep.subr.mxu0 0.0
  %3268 = vmatpush1.msra.mxu0 0.0
  %3269 = vmatprep.subr.mxu0 0.0
  %3270 = vmatpush1.msra.mxu0 0.0
  %3271 = vmatprep.subr.mxu0 0.0
  %3272 = vmatpush1.msra.mxu0 0.0
  %3273 = vmatprep.subr.mxu0 0.0
  %3274 = vmatpush1.msra.mxu0 0.0
  %3275 = vmatprep.subr.mxu0 0.0
  %3276 = vmatpush1.msra.mxu0 0.0
  %3277 = vmatprep.subr.mxu0 0.0
  %3278 = vmatpush1.msra.mxu0 0.0
  %3279 = vmatprep.subr.mxu0 0.0
  %3280 = vmatpush1.msra.mxu0 0.0
  %3281 = vmatprep.mubr.f32.mxu0 0.0
  %3282 = vmatmul.mubr.f32.gmra.mrb[0].mxu0 %v1238
  %v3283 = vpop.f32.mrb[0].mxu0
  %v3284 = vadd.f32 %v3215, %v3283
  %v3285 = vpop.f32.mrb[0].mxu0
  %3286 = vmatprep.mubr.f32.mxu0 0.0
  %3287 = vmatmul.mubr.f32.gmra.mrb[0].mxu0 %v1241
  %v3288 = vpop.f32.mrb[0].mxu0
  %v3289 = vadd.f32 %v3215, %v3288
  %v3290 = vpop.f32.mrb[0].mxu0
  %3291 = vmatprep.mubr.f32.mxu0 0.0
  %3292 = vmatmul.mubr.f32.gmra.mrb[0].mxu0 %v1244
  %v3293 = vpop.f32.mrb[0].mxu0
  %v3294 = vadd.f32 %v3215, %v3293
  %v3295 = vpop.f32.mrb[0].mxu0
  %3296 = vdwg.mxu0
  %v3298 = vsel %vm1512, %v3098, 0
  %v3301 = vsel %vm1512, %v3103, 0
  %v3304 = vsel %vm1512, %v3108, 0
  %v3307 = vsel %vm1512, %v3191, 0
  %v3310 = vsel %vm1512, %v3196, 0
  %v3313 = vsel %vm1512, %v3201, 0
  %3315 = vmatprep.subr.mxu0 0.0
  %3316 = vmatpush1.xpose.msra.mxu0 %v3307
  %3317 = vmatprep.subr.mxu0 0.0
  %3318 = vmatpush1.xpose.msra.mxu0 %v3310
  %3319 = vmatprep.subr.mxu0 0.0
  %3320 = vmatpush1.xpose.msra.mxu0 %v3313
  %3321 = vmatprep.subr.mxu0 0.0
  %3322 = vmatpush1.xpose.msra.mxu0 0.0
  %3323 = vmatprep.subr.mxu0 0.0
  %3324 = vmatpush1.xpose.msra.mxu0 0.0
  %3325 = vmatprep.subr.mxu0 0.0
  %3326 = vmatpush1.xpose.msra.mxu0 0.0
  %3327 = vmatprep.subr.mxu0 0.0
  %3328 = vmatpush1.xpose.msra.mxu0 0.0
  %3329 = vmatprep.subr.mxu0 0.0
  %3330 = vmatpush1.xpose.msra.mxu0 0.0
  %3331 = vmatprep.subr.mxu0 0.0
  %3332 = vmatpush1.xpose.msra.mxu0 0.0
  %3333 = vmatprep.subr.mxu0 0.0
  %3334 = vmatpush1.xpose.msra.mxu0 0.0
  %3335 = vmatprep.subr.mxu0 0.0
  %3336 = vmatpush1.xpose.msra.mxu0 0.0
  %3337 = vmatprep.subr.mxu0 0.0
  %3338 = vmatpush1.xpose.msra.mxu0 0.0
  %3339 = vmatprep.subr.mxu0 0.0
  %3340 = vmatpush1.xpose.msra.mxu0 0.0
  %3341 = vmatprep.subr.mxu0 0.0
  %3342 = vmatpush1.xpose.msra.mxu0 0.0
  %3343 = vmatprep.subr.mxu0 0.0
  %3344 = vmatpush1.xpose.msra.mxu0 0.0
  %3345 = vmatprep.subr.mxu0 0.0
  %3346 = vmatpush1.xpose.msra.mxu0 0.0
  %3347 = vmatprep.subr.mxu0 0.0
  %3348 = vmatpush1.xpose.msra.mxu0 0.0
  %3349 = vmatprep.subr.mxu0 0.0
  %3350 = vmatpush1.xpose.msra.mxu0 0.0
  %3351 = vmatprep.subr.mxu0 0.0
  %3352 = vmatpush1.xpose.msra.mxu0 0.0
  %3353 = vmatprep.subr.mxu0 0.0
  %3354 = vmatpush1.xpose.msra.mxu0 0.0
  %3355 = vmatprep.subr.mxu0 0.0
  %3356 = vmatpush1.xpose.msra.mxu0 0.0
  %3357 = vmatprep.subr.mxu0 0.0
  %3358 = vmatpush1.xpose.msra.mxu0 0.0
  %3359 = vmatprep.subr.mxu0 0.0
  %3360 = vmatpush1.xpose.msra.mxu0 0.0
  %3361 = vmatprep.subr.mxu0 0.0
  %3362 = vmatpush1.xpose.msra.mxu0 0.0
  %3363 = vmatprep.subr.mxu0 0.0
  %3364 = vmatpush1.xpose.msra.mxu0 0.0
  %3365 = vmatprep.subr.mxu0 0.0
  %3366 = vmatpush1.xpose.msra.mxu0 0.0
  %3367 = vmatprep.subr.mxu0 0.0
  %3368 = vmatpush1.xpose.msra.mxu0 0.0
  %3369 = vmatprep.subr.mxu0 0.0
  %3370 = vmatpush1.xpose.msra.mxu0 0.0
  %3371 = vmatprep.subr.mxu0 0.0
  %3372 = vmatpush1.xpose.msra.mxu0 0.0
  %3373 = vmatprep.subr.mxu0 0.0
  %3374 = vmatpush1.xpose.msra.mxu0 0.0
  %3375 = vmatprep.subr.mxu0 0.0
  %3376 = vmatpush1.xpose.msra.mxu0 0.0
  %3377 = vmatprep.subr.mxu0 0.0
  %3378 = vmatpush1.xpose.msra.mxu0 0.0
  %3379 = vmatprep.mubr.f32.mxu0 0.0
  %3380 = vmatmul.mubr.f32.gmra.mrb[0].mxu0 %v3298
  %v3381 = vpop.f32.mrb[0].mxu0
  %v3382 = vadd.f32 %v1161, %v3381
  %v3383 = vpop.f32.mrb[0].mxu0
  %3384 = vmatprep.mubr.f32.mxu0 0.0
  %3385 = vmatmul.mubr.f32.gmra.mrb[0].mxu0 %v3301
  %v3386 = vpop.f32.mrb[0].mxu0
  %v3387 = vadd.f32 %v1162, %v3386
  %v3388 = vpop.f32.mrb[0].mxu0
  %3389 = vmatprep.mubr.f32.mxu0 0.0
  %3390 = vmatmul.mubr.f32.gmra.mrb[0].mxu0 %v3304
  %v3391 = vpop.f32.mrb[0].mxu0
  %v3392 = vadd.f32 %v1163, %v3391
  %v3393 = vpop.f32.mrb[0].mxu0
  %3394 = vdwg.mxu0
  %v3395 = vsel %vm1611, %v3382, -inf
  %3396 = vmax.xlane.f32.xlu0 %v3395
  %v3397 = vpop.xlane.xlu0 %3396
  %v3398 = vsel %vm1611, %v3387, -inf
  %3399 = vmax.xlane.f32.xlu0 %v3398
  %v3400 = vpop.xlane.xlu0 %3399
  %v3401 = vsel %vm1618, %v3392, -inf
  %3402 = vmax.xlane.f32.xlu0 %v3401
  %v3403 = vpop.xlane.xlu0 %3402
  %v3404 = vsub.f32 %v3382, %v3397
  %v3405 = vsub.f32 %v3387, %v3400
  %v3406 = vsub.f32 %v3392, %v3403
  %v3407 = vmul.f32 %v3404, 1.442695
  %v3408 = vpow.pop %v3407
  %v3409 = vmul.f32 %v3405, 1.442695
  %v3410 = vpow.pop %v3409
  %v3411 = vmul.f32 %v3406, 1.442695
  %v3412 = vpow.pop %v3411
  %v3413 = vsel %vm1611, %v3408, 0.0
  %3414 = vadd.xlane.f32.xlu0 %v3413
  %v3415 = vpop.xlane.xlu0 %3414
  %v3416 = vsel %vm1611, %v3410, 0.0
  %3417 = vadd.xlane.f32.xlu0 %v3416
  %v3418 = vpop.xlane.xlu0 %3417
  %v3419 = vsel %vm1618, %v3412, 0.0
  %3420 = vadd.xlane.f32.xlu0 %v3419
  %v3421 = vpop.xlane.xlu0 %3420
  %v3422 = vrcp.pop %v3415
  %v3423 = vrcp.pop %v3418
  %v3424 = vrcp.pop %v3421
  %v3425 = vmul.f32 %v3408, %v3422
  %v3426 = vmul.f32 %v3410, %v3423
  %v3427 = vmul.f32 %v3412, %v3424
  %v3429 = vsel %vm1611, %v3425, 0
  %v3432 = vsel %vm1611, %v3426, 0
  %v3435 = vsel %vm1611, %v3427, 0
  %v3438 = vsel %vm1655, %v3294, 0
  %3440 = vmatprep.subr.mxu0 0.0
  %3441 = vmatpush1.msra.mxu0 %v3284
  %3442 = vmatprep.subr.mxu0 0.0
  %3443 = vmatpush1.msra.mxu0 %v3289
  %3444 = vmatprep.subr.mxu0 0.0
  %3445 = vmatpush1.msra.mxu0 %v3438
  %3446 = vmatprep.subr.mxu0 0.0
  %3447 = vmatpush1.msra.mxu0 0.0
  %3448 = vmatprep.subr.mxu0 0.0
  %3449 = vmatpush1.msra.mxu0 0.0
  %3450 = vmatprep.subr.mxu0 0.0
  %3451 = vmatpush1.msra.mxu0 0.0
  %3452 = vmatprep.subr.mxu0 0.0
  %3453 = vmatpush1.msra.mxu0 0.0
  %3454 = vmatprep.subr.mxu0 0.0
  %3455 = vmatpush1.msra.mxu0 0.0
  %3456 = vmatprep.subr.mxu0 0.0
  %3457 = vmatpush1.msra.mxu0 0.0
  %3458 = vmatprep.subr.mxu0 0.0
  %3459 = vmatpush1.msra.mxu0 0.0
  %3460 = vmatprep.subr.mxu0 0.0
  %3461 = vmatpush1.msra.mxu0 0.0
  %3462 = vmatprep.subr.mxu0 0.0
  %3463 = vmatpush1.msra.mxu0 0.0
  %3464 = vmatprep.subr.mxu0 0.0
  %3465 = vmatpush1.msra.mxu0 0.0
  %3466 = vmatprep.subr.mxu0 0.0
  %3467 = vmatpush1.msra.mxu0 0.0
  %3468 = vmatprep.subr.mxu0 0.0
  %3469 = vmatpush1.msra.mxu0 0.0
  %3470 = vmatprep.subr.mxu0 0.0
  %3471 = vmatpush1.msra.mxu0 0.0
  %3472 = vmatprep.subr.mxu0 0.0
  %3473 = vmatpush1.msra.mxu0 0.0
  %3474 = vmatprep.subr.mxu0 0.0
  %3475 = vmatpush1.msra.mxu0 0.0
  %3476 = vmatprep.subr.mxu0 0.0
  %3477 = vmatpush1.msra.mxu0 0.0
  %3478 = vmatprep.subr.mxu0 0.0
  %3479 = vmatpush1.msra.mxu0 0.0
  %3480 = vmatprep.subr.mxu0 0.0
  %3481 = vmatpush1.msra.mxu0 0.0
  %3482 = vmatprep.subr.mxu0 0.0
  %3483 = vmatpush1.msra.mxu0 0.0
  %3484 = vmatprep.subr.mxu0 0.0
  %3485 = vmatpush1.msra.mxu0 0.0
  %3486 = vmatprep.subr.mxu0 0.0
  %3487 = vmatpush1.msra.mxu0 0.0
  %3488 = vmatprep.subr.mxu0 0.0
  %3489 = vmatpush1.msra.mxu0 0.0
  %3490 = vmatprep.subr.mxu0 0.0
  %3491 = vmatpush1.msra.mxu0 0.0
  %3492 = vmatprep.subr.mxu0 0.0
  %3493 = vmatpush1.msra.mxu0 0.0
  %3494 = vmatprep.subr.mxu0 0.0
  %3495 = vmatpush1.msra.mxu0 0.0
  %3496 = vmatprep.subr.mxu0 0.0
  %3497 = vmatpush1.msra.mxu0 0.0
  %3498 = vmatprep.subr.mxu0 0.0
  %3499 = vmatpush1.msra.mxu0 0.0
  %3500 = vmatprep.subr.mxu0 0.0
  %3501 = vmatpush1.msra.mxu0 0.0
  %3502 = vmatprep.subr.mxu0 0.0
  %3503 = vmatpush1.msra.mxu0 0.0
  %3504 = vmatprep.mubr.f32.mxu0 0.0
  %3505 = vmatmul.mubr.f32.gmra.mrb[0].mxu0 %v3429
  %v3506 = vpop.f32.mrb[0].mxu0
  %v3507 = vadd.f32 0.0, %v3506
  %v3508 = vpop.f32.mrb[0].mxu0
  %3509 = vmatprep.mubr.f32.mxu0 0.0
  %3510 = vmatmul.mubr.f32.gmra.mrb[0].mxu0 %v3432
  %v3511 = vpop.f32.mrb[0].mxu0
  %v3512 = vadd.f32 0.0, %v3511
  %v3513 = vpop.f32.mrb[0].mxu0
  %3514 = vmatprep.mubr.f32.mxu0 0.0
  %3515 = vmatmul.mubr.f32.gmra.mrb[0].mxu0 %v3435
  %v3516 = vpop.f32.mrb[0].mxu0
  %v3517 = vadd.f32 0.0, %v3516
  %v3518 = vpop.f32.mrb[0].mxu0
  %3519 = vdwg.mxu0
  %s3520 = scalar_lea.vmem %s8, 24
  %v3521 = vld [vmem:[%s3520] sm:$0xff]
  %v3523 = vsel %vm1512, %v3507, 0
  %v3526 = vsel %vm1512, %v3512, 0
  %v3529 = vsel %vm1512, %v3517, 0
  %3531 = vmatprep.subr.mxu0 0.0
  %3532 = vmatpush1.msra.mxu0 %v3521
  %3533 = vmatprep.subr.mxu0 0.0
  %3534 = vmatpush1.msra.mxu0 0.0
  %3535 = vmatprep.subr.mxu0 0.0
  %3536 = vmatpush1.msra.mxu0 0.0
  %3537 = vmatprep.subr.mxu0 0.0
  %3538 = vmatpush1.msra.mxu0 0.0
  %3539 = vmatprep.subr.mxu0 0.0
  %3540 = vmatpush1.msra.mxu0 0.0
  %3541 = vmatprep.subr.mxu0 0.0
  %3542 = vmatpush1.msra.mxu0 0.0
  %3543 = vmatprep.subr.mxu0 0.0
  %3544 = vmatpush1.msra.mxu0 0.0
  %3545 = vmatprep.subr.mxu0 0.0
  %3546 = vmatpush1.msra.mxu0 0.0
  %3547 = vmatprep.subr.mxu0 0.0
  %3548 = vmatpush1.msra.mxu0 0.0
  %3549 = vmatprep.subr.mxu0 0.0
  %3550 = vmatpush1.msra.mxu0 0.0
  %3551 = vmatprep.subr.mxu0 0.0
  %3552 = vmatpush1.msra.mxu0 0.0
  %3553 = vmatprep.subr.mxu0 0.0
  %3554 = vmatpush1.msra.mxu0 0.0
  %3555 = vmatprep.subr.mxu0 0.0
  %3556 = vmatpush1.msra.mxu0 0.0
  %3557 = vmatprep.subr.mxu0 0.0
  %3558 = vmatpush1.msra.mxu0 0.0
  %3559 = vmatprep.subr.mxu0 0.0
  %3560 = vmatpush1.msra.mxu0 0.0
  %3561 = vmatprep.subr.mxu0 0.0
  %3562 = vmatpush1.msra.mxu0 0.0
  %3563 = vmatprep.subr.mxu0 0.0
  %3564 = vmatpush1.msra.mxu0 0.0
  %3565 = vmatprep.subr.mxu0 0.0
  %3566 = vmatpush1.msra.mxu0 0.0
  %3567 = vmatprep.subr.mxu0 0.0
  %3568 = vmatpush1.msra.mxu0 0.0
  %3569 = vmatprep.subr.mxu0 0.0
  %3570 = vmatpush1.msra.mxu0 0.0
  %3571 = vmatprep.subr.mxu0 0.0
  %3572 = vmatpush1.msra.mxu0 0.0
  %3573 = vmatprep.subr.mxu0 0.0
  %3574 = vmatpush1.msra.mxu0 0.0
  %3575 = vmatprep.subr.mxu0 0.0
  %3576 = vmatpush1.msra.mxu0 0.0
  %3577 = vmatprep.subr.mxu0 0.0
  %3578 = vmatpush1.msra.mxu0 0.0
  %3579 = vmatprep.subr.mxu0 0.0
  %3580 = vmatpush1.msra.mxu0 0.0
  %3581 = vmatprep.subr.mxu0 0.0
  %3582 = vmatpush1.msra.mxu0 0.0
  %3583 = vmatprep.subr.mxu0 0.0
  %3584 = vmatpush1.msra.mxu0 0.0
  %3585 = vmatprep.subr.mxu0 0.0
  %3586 = vmatpush1.msra.mxu0 0.0
  %3587 = vmatprep.subr.mxu0 0.0
  %3588 = vmatpush1.msra.mxu0 0.0
  %3589 = vmatprep.subr.mxu0 0.0
  %3590 = vmatpush1.msra.mxu0 0.0
  %3591 = vmatprep.subr.mxu0 0.0
  %3592 = vmatpush1.msra.mxu0 0.0
  %3593 = vmatprep.subr.mxu0 0.0
  %3594 = vmatpush1.msra.mxu0 0.0
  %3595 = vmatprep.mubr.f32.mxu0 0.0
  %3596 = vmatmul.mubr.f32.gmra.mrb[0].mxu0 %v3523
  %v3597 = vpop.f32.mrb[0].mxu0
  %v3598 = vadd.f32 0.0, %v3597
  %v3599 = vpop.f32.mrb[0].mxu0
  %3600 = vmatprep.mubr.f32.mxu0 0.0
  %3601 = vmatmul.mubr.f32.gmra.mrb[0].mxu0 %v3526
  %v3602 = vpop.f32.mrb[0].mxu0
  %v3603 = vadd.f32 0.0, %v3602
  %v3604 = vpop.f32.mrb[0].mxu0
  %3605 = vmatprep.mubr.f32.mxu0 0.0
  %3606 = vmatmul.mubr.f32.gmra.mrb[0].mxu0 %v3529
  %v3607 = vpop.f32.mrb[0].mxu0
  %v3608 = vadd.f32 0.0, %v3607
  %v3609 = vpop.f32.mrb[0].mxu0
  %3610 = vdwg.mxu0
  %v3611 = vadd.f32 %v3015, %v3598
  %v3612 = vadd.f32 %v3016, %v3603
  %v3613 = vadd.f32 %v3017, %v3608
  %v3614 = vadd.f32 %v1158, %v3611
  %v3615 = vadd.f32 %v1159, %v3612
  %v3616 = vadd.f32 %v1160, %v3613
  %v3617 = vld [vmem:[%s9] sm:$0x1]
  %v3619 = vlaneseq
  %v3620 = vshrl.u32 %v3619, 7
  %v3621 = vsub.s32 0, %v3620
  %v3622 = vrot.slane %v3617, %v3621
  %v3624 = vadd.f32 %v3614, %v3622
  %v3625 = vadd.f32 %v3615, %v3622
  %v3626 = vadd.f32 %v3616, %v3622
  %v3627 = vld [vmem:[%s10] sm:$0x1]
  %v3628 = vld [vmem:[%s11] sm:$0x1]
  %v3629 = vsel %vm1166, %v3624, 0.0
  %3630 = vadd.xlane.f32.xlu0 %v3629
  %v3631 = vpop.xlane.xlu0 %3630
  %v3632 = vsel %vm1166, %v3625, 0.0
  %3633 = vadd.xlane.f32.xlu0 %v3632
  %v3634 = vpop.xlane.xlu0 %3633
  %v3635 = vsel %vm1173, %v3626, 0.0
  %3636 = vadd.xlane.f32.xlu0 %v3635
  %v3637 = vpop.xlane.xlu0 %3636
  %v3638 = vmul.f32 %v3631, %v1177
  %v3639 = vmul.f32 %v3634, %v1177
  %v3640 = vmul.f32 %v3637, %v1177
  %v3641 = vsub.f32 %v3624, %v3638
  %v3642 = vsub.f32 %v3625, %v3639
  %v3643 = vsub.f32 %v3626, %v3640
  %v3644 = vmul.f32 %v3641, %v3641
  %v3645 = vmul.f32 %v3642, %v3642
  %v3646 = vmul.f32 %v3643, %v3643
  %v3647 = vsel %vm1166, %v3644, 0.0
  %3648 = vadd.xlane.f32.xlu0 %v3647
  %v3649 = vpop.xlane.xlu0 %3648
  %v3650 = vsel %vm1166, %v3645, 0.0
  %3651 = vadd.xlane.f32.xlu0 %v3650
  %v3652 = vpop.xlane.xlu0 %3651
  %v3653 = vsel %vm1173, %v3646, 0.0
  %3654 = vadd.xlane.f32.xlu0 %v3653
  %v3655 = vpop.xlane.xlu0 %3654
  %v3656 = vmul.f32 %v3649, %v1177
  %v3657 = vmul.f32 %v3652, %v1177
  %v3658 = vmul.f32 %v3655, %v1177
  %v3659 = vadd.f32 %v3656, 1e-05
  %v3660 = vadd.f32 %v3657, 1e-05
  %v3661 = vadd.f32 %v3658, 1e-05
  %v3662 = vrsqrt.pop %v3659
  %v3663 = vrsqrt.pop %v3660
  %v3664 = vrsqrt.pop %v3661
  %v3665 = vmul.f32 %v3641, %v3662
  %v3666 = vmul.f32 %v3642, %v3663
  %v3667 = vmul.f32 %v3643, %v3664
  %v3669 = vlaneseq
  %v3670 = vshrl.u32 %v3669, 7
  %v3671 = vsub.s32 0, %v3670
  %v3672 = vrot.slane %v3627, %v3671
  %v3674 = vmul.f32 %v3665, %v3672
  %v3675 = vmul.f32 %v3666, %v3672
  %v3676 = vmul.f32 %v3667, %v3672
  %v3678 = vlaneseq
  %v3679 = vshrl.u32 %v3678, 7
  %v3680 = vsub.s32 0, %v3679
  %v3681 = vrot.slane %v3628, %v3680
  %v3683 = vadd.f32 %v3674, %v3681
  %v3684 = vadd.f32 %v3675, %v3681
  %v3685 = vadd.f32 %v3676, %v3681
  %v3686 = vld [vmem:[%s12] sm:$0xff]
  %v3687 = vld [vmem:[%s12 + $0x8] sm:$0xff]
  %v3688 = vld [vmem:[%s12 + $0x10] sm:$0xff]
  %v3689 = vld [vmem:[%s12 + $0x18] sm:$0xff]
  %v3690 = vld [vmem:[%s13] sm:$0x1]
  %v3692 = vlaneseq
  %v3693 = vshrl.u32 %v3692, 7
  %v3694 = vsub.s32 0, %v3693
  %v3695 = vrot.slane %v3690, %v3694
  %v3698 = vsel %vm1166, %v3683, 0
  %v3701 = vsel %vm1166, %v3684, 0
  %v3704 = vsel %vm1166, %v3685, 0
  %3706 = vmatprep.subr.mxu0 0.0
  %3707 = vmatpush1.msra.mxu0 %v3686
  %3708 = vmatprep.subr.mxu0 0.0
  %3709 = vmatpush1.msra.mxu0 %v3687
  %3710 = vmatprep.subr.mxu0 0.0
  %3711 = vmatpush1.msra.mxu0 %v3688
  %3712 = vmatprep.subr.mxu0 0.0
  %3713 = vmatpush1.msra.mxu0 %v3689
  %3714 = vmatprep.subr.mxu0 0.0
  %3715 = vmatpush1.msra.mxu0 0.0
  %3716 = vmatprep.subr.mxu0 0.0
  %3717 = vmatpush1.msra.mxu0 0.0
  %3718 = vmatprep.subr.mxu0 0.0
  %3719 = vmatpush1.msra.mxu0 0.0
  %3720 = vmatprep.subr.mxu0 0.0
  %3721 = vmatpush1.msra.mxu0 0.0
  %3722 = vmatprep.subr.mxu0 0.0
  %3723 = vmatpush1.msra.mxu0 0.0
  %3724 = vmatprep.subr.mxu0 0.0
  %3725 = vmatpush1.msra.mxu0 0.0
  %3726 = vmatprep.subr.mxu0 0.0
  %3727 = vmatpush1.msra.mxu0 0.0
  %3728 = vmatprep.subr.mxu0 0.0
  %3729 = vmatpush1.msra.mxu0 0.0
  %3730 = vmatprep.subr.mxu0 0.0
  %3731 = vmatpush1.msra.mxu0 0.0
  %3732 = vmatprep.subr.mxu0 0.0
  %3733 = vmatpush1.msra.mxu0 0.0
  %3734 = vmatprep.subr.mxu0 0.0
  %3735 = vmatpush1.msra.mxu0 0.0
  %3736 = vmatprep.subr.mxu0 0.0
  %3737 = vmatpush1.msra.mxu0 0.0
  %3738 = vmatprep.subr.mxu0 0.0
  %3739 = vmatpush1.msra.mxu0 0.0
  %3740 = vmatprep.subr.mxu0 0.0
  %3741 = vmatpush1.msra.mxu0 0.0
  %3742 = vmatprep.subr.mxu0 0.0
  %3743 = vmatpush1.msra.mxu0 0.0
  %3744 = vmatprep.subr.mxu0 0.0
  %3745 = vmatpush1.msra.mxu0 0.0
  %3746 = vmatprep.subr.mxu0 0.0
  %3747 = vmatpush1.msra.mxu0 0.0
  %3748 = vmatprep.subr.mxu0 0.0
  %3749 = vmatpush1.msra.mxu0 0.0
  %3750 = vmatprep.subr.mxu0 0.0
  %3751 = vmatpush1.msra.mxu0 0.0
  %3752 = vmatprep.subr.mxu0 0.0
  %3753 = vmatpush1.msra.mxu0 0.0
  %3754 = vmatprep.subr.mxu0 0.0
  %3755 = vmatpush1.msra.mxu0 0.0
  %3756 = vmatprep.subr.mxu0 0.0
  %3757 = vmatpush1.msra.mxu0 0.0
  %3758 = vmatprep.subr.mxu0 0.0
  %3759 = vmatpush1.msra.mxu0 0.0
  %3760 = vmatprep.subr.mxu0 0.0
  %3761 = vmatpush1.msra.mxu0 0.0
  %3762 = vmatprep.subr.mxu0 0.0
  %3763 = vmatpush1.msra.mxu0 0.0
  %3764 = vmatprep.subr.mxu0 0.0
  %3765 = vmatpush1.msra.mxu0 0.0
  %3766 = vmatprep.subr.mxu0 0.0
  %3767 = vmatpush1.msra.mxu0 0.0
  %3768 = vmatprep.subr.mxu0 0.0
  %3769 = vmatpush1.msra.mxu0 0.0
  %3770 = vmatprep.mubr.f32.mxu0 0.0
  %3771 = vmatmul.mubr.f32.gmra.mrb[0].mxu0 %v3698
  %v3772 = vpop.f32.mrb[0].mxu0
  %v3773 = vadd.f32 %v3695, %v3772
  %v3774 = vpop.f32.mrb[0].mxu0
  %3775 = vmatprep.mubr.f32.mxu0 0.0
  %3776 = vmatmul.mubr.f32.gmra.mrb[0].mxu0 %v3701
  %v3777 = vpop.f32.mrb[0].mxu0
  %v3778 = vadd.f32 %v3695, %v3777
  %v3779 = vpop.f32.mrb[0].mxu0
  %3780 = vmatprep.mubr.f32.mxu0 0.0
  %3781 = vmatmul.mubr.f32.gmra.mrb[0].mxu0 %v3704
  %v3782 = vpop.f32.mrb[0].mxu0
  %v3783 = vadd.f32 %v3695, %v3782
  %v3784 = vpop.f32.mrb[0].mxu0
  %3785 = vdwg.mxu0
  %v3786 = vmul.f32 %v3773, 0.5
  %v3787 = vmul.f32 %v3778, 0.5
  %v3788 = vmul.f32 %v3783, 0.5
  %v3789 = vmul.f32 %v3773, 0.044715
  %v3790 = vmul.f32 %v3778, 0.044715
  %v3791 = vmul.f32 %v3783, 0.044715
  %v3792 = vmul.f32 %v3789, %v3773
  %v3793 = vmul.f32 %v3790, %v3778
  %v3794 = vmul.f32 %v3791, %v3783
  %v3795 = vmul.f32 %v3792, %v3773
  %v3796 = vmul.f32 %v3793, %v3778
  %v3797 = vmul.f32 %v3794, %v3783
  %v3798 = vadd.f32 %v3773, %v3795
  %v3799 = vadd.f32 %v3778, %v3796
  %v3800 = vadd.f32 %v3783, %v3797
  %v3801 = vmul.f32 %v3798, 0.7978846
  %v3802 = vmul.f32 %v3799, 0.7978846
  %v3803 = vmul.f32 %v3800, 0.7978846
  %v3804 = vtanh.pop %v3801
  %v3805 = vtanh.pop %v3802
  %v3806 = vtanh.pop %v3803
  %v3807 = vadd.f32 %v3804, 1.0
  %v3808 = vadd.f32 %v3805, 1.0
  %v3809 = vadd.f32 %v3806, 1.0
  %v3810 = vmul.f32 %v3786, %v3807
  %v3811 = vmul.f32 %v3787, %v3808
  %v3812 = vmul.f32 %v3788, %v3809
  %v3813 = vld [vmem:[%s14] sm:$0xff]
  %v3814 = vld [vmem:[%s14 + $0x8] sm:$0xff]
  %v3815 = vld [vmem:[%s14 + $0x10] sm:$0xff]
  %v3816 = vld [vmem:[%s14 + $0x18] sm:$0xff]
  %v3817 = vld [vmem:[%s14 + $0x20] sm:$0xff]
  %v3818 = vld [vmem:[%s14 + $0x28] sm:$0xff]
  %v3819 = vld [vmem:[%s14 + $0x30] sm:$0xff]
  %v3820 = vld [vmem:[%s14 + $0x38] sm:$0xff]
  %v3821 = vld [vmem:[%s14 + $0x40] sm:$0xff]
  %v3822 = vld [vmem:[%s14 + $0x48] sm:$0xff]
  %v3823 = vld [vmem:[%s14 + $0x50] sm:$0xff]
  %v3824 = vld [vmem:[%s14 + $0x58] sm:$0xff]
  %v3825 = vld [vmem:[%s14 + $0x60] sm:$0xff]
  %v3826 = vld [vmem:[%s14 + $0x68] sm:$0xff]
  %v3827 = vld [vmem:[%s14 + $0x70] sm:$0xff]
  %v3828 = vld [vmem:[%s14 + $0x78] sm:$0xff]
  %v3829 = vld [vmem:[%s15] sm:$0x1]
  %v3831 = vlaneseq
  %v3832 = vshrl.u32 %v3831, 7
  %v3833 = vsub.s32 0, %v3832
  %v3834 = vrot.slane %v3829, %v3833
  %3836 = vmatprep.subr.mxu0 0.0
  %3837 = vmatpush1.msra.mxu0 %v3813
  %3838 = vmatprep.subr.mxu0 0.0
  %3839 = vmatpush1.msra.mxu0 %v3814
  %3840 = vmatprep.subr.mxu0 0.0
  %3841 = vmatpush1.msra.mxu0 %v3815
  %3842 = vmatprep.subr.mxu0 0.0
  %3843 = vmatpush1.msra.mxu0 %v3816
  %3844 = vmatprep.subr.mxu0 0.0
  %3845 = vmatpush1.msra.mxu0 %v3817
  %3846 = vmatprep.subr.mxu0 0.0
  %3847 = vmatpush1.msra.mxu0 %v3818
  %3848 = vmatprep.subr.mxu0 0.0
  %3849 = vmatpush1.msra.mxu0 %v3819
  %3850 = vmatprep.subr.mxu0 0.0
  %3851 = vmatpush1.msra.mxu0 %v3820
  %3852 = vmatprep.subr.mxu0 0.0
  %3853 = vmatpush1.msra.mxu0 %v3821
  %3854 = vmatprep.subr.mxu0 0.0
  %3855 = vmatpush1.msra.mxu0 %v3822
  %3856 = vmatprep.subr.mxu0 0.0
  %3857 = vmatpush1.msra.mxu0 %v3823
  %3858 = vmatprep.subr.mxu0 0.0
  %3859 = vmatpush1.msra.mxu0 %v3824
  %3860 = vmatprep.subr.mxu0 0.0
  %3861 = vmatpush1.msra.mxu0 %v3825
  %3862 = vmatprep.subr.mxu0 0.0
  %3863 = vmatpush1.msra.mxu0 %v3826
  %3864 = vmatprep.subr.mxu0 0.0
  %3865 = vmatpush1.msra.mxu0 %v3827
  %3866 = vmatprep.subr.mxu0 0.0
  %3867 = vmatpush1.msra.mxu0 %v3828
  %3868 = vmatprep.subr.mxu0 0.0
  %3869 = vmatpush1.msra.mxu0 0.0
  %3870 = vmatprep.subr.mxu0 0.0
  %3871 = vmatpush1.msra.mxu0 0.0
  %3872 = vmatprep.subr.mxu0 0.0
  %3873 = vmatpush1.msra.mxu0 0.0
  %3874 = vmatprep.subr.mxu0 0.0
  %3875 = vmatpush1.msra.mxu0 0.0
  %3876 = vmatprep.subr.mxu0 0.0
  %3877 = vmatpush1.msra.mxu0 0.0
  %3878 = vmatprep.subr.mxu0 0.0
  %3879 = vmatpush1.msra.mxu0 0.0
  %3880 = vmatprep.subr.mxu0 0.0
  %3881 = vmatpush1.msra.mxu0 0.0
  %3882 = vmatprep.subr.mxu0 0.0
  %3883 = vmatpush1.msra.mxu0 0.0
  %3884 = vmatprep.subr.mxu0 0.0
  %3885 = vmatpush1.msra.mxu0 0.0
  %3886 = vmatprep.subr.mxu0 0.0
  %3887 = vmatpush1.msra.mxu0 0.0
  %3888 = vmatprep.subr.mxu0 0.0
  %3889 = vmatpush1.msra.mxu0 0.0
  %3890 = vmatprep.subr.mxu0 0.0
  %3891 = vmatpush1.msra.mxu0 0.0
  %3892 = vmatprep.subr.mxu0 0.0
  %3893 = vmatpush1.msra.mxu0 0.0
  %3894 = vmatprep.subr.mxu0 0.0
  %3895 = vmatpush1.msra.mxu0 0.0
  %3896 = vmatprep.subr.mxu0 0.0
  %3897 = vmatpush1.msra.mxu0 0.0
  %3898 = vmatprep.subr.mxu0 0.0
  %3899 = vmatpush1.msra.mxu0 0.0
  %3900 = vmatprep.mubr.f32.mxu0 0.0
  %3901 = vmatmul.mubr.f32.gmra.mrb[0].mxu0 %v3810
  %v3902 = vpop.f32.mrb[0].mxu0
  %v3903 = vadd.f32 %v3834, %v3902
  %v3904 = vpop.f32.mrb[0].mxu0
  %3905 = vmatprep.mubr.f32.mxu0 0.0
  %3906 = vmatmul.mubr.f32.gmra.mrb[0].mxu0 %v3811
  %v3907 = vpop.f32.mrb[0].mxu0
  %v3908 = vadd.f32 %v3834, %v3907
  %v3909 = vpop.f32.mrb[0].mxu0
  %3910 = vmatprep.mubr.f32.mxu0 0.0
  %3911 = vmatmul.mubr.f32.gmra.mrb[0].mxu0 %v3812
  %v3912 = vpop.f32.mrb[0].mxu0
  %v3913 = vadd.f32 %v3834, %v3912
  %v3914 = vpop.f32.mrb[0].mxu0
  %3915 = vdwg.mxu0
  %v3916 = vadd.f32 %v3624, %v3903
  %v3917 = vadd.f32 %v3625, %v3908
  %v3918 = vadd.f32 %v3626, %v3913
  %s3919 = scalar_lea.vmem %s4, 1
  %v3920 = vld [vmem:[%s3919] sm:$0x1]
  %s3921 = scalar_lea.vmem %s5, 1
  %v3922 = vld [vmem:[%s3921] sm:$0x1]
  %v3923 = vsel %vm1166, %v3916, 0.0
  %3924 = vadd.xlane.f32.xlu0 %v3923
  %v3925 = vpop.xlane.xlu0 %3924
  %v3926 = vsel %vm1166, %v3917, 0.0
  %3927 = vadd.xlane.f32.xlu0 %v3926
  %v3928 = vpop.xlane.xlu0 %3927
  %v3929 = vsel %vm1173, %v3918, 0.0
  %3930 = vadd.xlane.f32.xlu0 %v3929
  %v3931 = vpop.xlane.xlu0 %3930
  %v3932 = vmul.f32 %v3925, %v1177
  %v3933 = vmul.f32 %v3928, %v1177
  %v3934 = vmul.f32 %v3931, %v1177
  %v3935 = vsub.f32 %v3916, %v3932
  %v3936 = vsub.f32 %v3917, %v3933
  %v3937 = vsub.f32 %v3918, %v3934
  %v3938 = vmul.f32 %v3935, %v3935
  %v3939 = vmul.f32 %v3936, %v3936
  %v3940 = vmul.f32 %v3937, %v3937
  %v3941 = vsel %vm1166, %v3938, 0.0
  %3942 = vadd.xlane.f32.xlu0 %v3941
  %v3943 = vpop.xlane.xlu0 %3942
  %v3944 = vsel %vm1166, %v3939, 0.0
  %3945 = vadd.xlane.f32.xlu0 %v3944
  %v3946 = vpop.xlane.xlu0 %3945
  %v3947 = vsel %vm1173, %v3940, 0.0
  %3948 = vadd.xlane.f32.xlu0 %v3947
  %v3949 = vpop.xlane.xlu0 %3948
  %v3950 = vmul.f32 %v3943, %v1177
  %v3951 = vmul.f32 %v3946, %v1177
  %v3952 = vmul.f32 %v3949, %v1177
  %v3953 = vadd.f32 %v3950, 1e-05
  %v3954 = vadd.f32 %v3951, 1e-05
  %v3955 = vadd.f32 %v3952, 1e-05
  %v3956 = vrsqrt.pop %v3953
  %v3957 = vrsqrt.pop %v3954
  %v3958 = vrsqrt.pop %v3955
  %v3959 = vmul.f32 %v3935, %v3956
  %v3960 = vmul.f32 %v3936, %v3957
  %v3961 = vmul.f32 %v3937, %v3958
  %v3963 = vlaneseq
  %v3964 = vshrl.u32 %v3963, 7
  %v3965 = vsub.s32 0, %v3964
  %v3966 = vrot.slane %v3920, %v3965
  %v3968 = vmul.f32 %v3959, %v3966
  %v3969 = vmul.f32 %v3960, %v3966
  %v3970 = vmul.f32 %v3961, %v3966
  %v3972 = vlaneseq
  %v3973 = vshrl.u32 %v3972, 7
  %v3974 = vsub.s32 0, %v3973
  %v3975 = vrot.slane %v3922, %v3974
  %v3977 = vadd.f32 %v3968, %v3975
  %v3978 = vadd.f32 %v3969, %v3975
  %v3979 = vadd.f32 %v3970, %v3975
  %s3980 = scalar_lea.vmem %s6, 384
  %v3981 = vld [vmem:[%s3980] sm:$0xff]
  %v3982 = vld [vmem:[%s3980 + $0x8] sm:$0xff]
  %v3983 = vld [vmem:[%s3980 + $0x10] sm:$0xff]
  %v3984 = vld [vmem:[%s3980 + $0x18] sm:$0xff]
  %s3985 = scalar_lea.vmem %s7, 12
  %v3986 = vld [vmem:[%s3985] sm:$0x1]
  %v3988 = vlaneseq
  %v3989 = vshrl.u32 %v3988, 7
  %v3990 = vsub.s32 0, %v3989
  %v3991 = vrot.slane %v3986, %v3990
  %v3994 = vsel %vm1166, %v3977, 0
  %v3997 = vsel %vm1166, %v3978, 0
  %v4000 = vsel %vm1166, %v3979, 0
  %4002 = vmatprep.subr.mxu0 0.0
  %4003 = vmatpush1.msra.mxu0 %v3981
  %4004 = vmatprep.subr.mxu0 0.0
  %4005 = vmatpush1.msra.mxu0 %v3982
  %4006 = vmatprep.subr.mxu0 0.0
  %4007 = vmatpush1.msra.mxu0 %v3983
  %4008 = vmatprep.subr.mxu0 0.0
  %4009 = vmatpush1.msra.mxu0 %v3984
  %4010 = vmatprep.subr.mxu0 0.0
  %4011 = vmatpush1.msra.mxu0 0.0
  %4012 = vmatprep.subr.mxu0 0.0
  %4013 = vmatpush1.msra.mxu0 0.0
  %4014 = vmatprep.subr.mxu0 0.0
  %4015 = vmatpush1.msra.mxu0 0.0
  %4016 = vmatprep.subr.mxu0 0.0
  %4017 = vmatpush1.msra.mxu0 0.0
  %4018 = vmatprep.subr.mxu0 0.0
  %4019 = vmatpush1.msra.mxu0 0.0
  %4020 = vmatprep.subr.mxu0 0.0
  %4021 = vmatpush1.msra.mxu0 0.0
  %4022 = vmatprep.subr.mxu0 0.0
  %4023 = vmatpush1.msra.mxu0 0.0
  %4024 = vmatprep.subr.mxu0 0.0
  %4025 = vmatpush1.msra.mxu0 0.0
  %4026 = vmatprep.subr.mxu0 0.0
  %4027 = vmatpush1.msra.mxu0 0.0
  %4028 = vmatprep.subr.mxu0 0.0
  %4029 = vmatpush1.msra.mxu0 0.0
  %4030 = vmatprep.subr.mxu0 0.0
  %4031 = vmatpush1.msra.mxu0 0.0
  %4032 = vmatprep.subr.mxu0 0.0
  %4033 = vmatpush1.msra.mxu0 0.0
  %4034 = vmatprep.subr.mxu0 0.0
  %4035 = vmatpush1.msra.mxu0 0.0
  %4036 = vmatprep.subr.mxu0 0.0
  %4037 = vmatpush1.msra.mxu0 0.0
  %4038 = vmatprep.subr.mxu0 0.0
  %4039 = vmatpush1.msra.mxu0 0.0
  %4040 = vmatprep.subr.mxu0 0.0
  %4041 = vmatpush1.msra.mxu0 0.0
  %4042 = vmatprep.subr.mxu0 0.0
  %4043 = vmatpush1.msra.mxu0 0.0
  %4044 = vmatprep.subr.mxu0 0.0
  %4045 = vmatpush1.msra.mxu0 0.0
  %4046 = vmatprep.subr.mxu0 0.0
  %4047 = vmatpush1.msra.mxu0 0.0
  %4048 = vmatprep.subr.mxu0 0.0
  %4049 = vmatpush1.msra.mxu0 0.0
  %4050 = vmatprep.subr.mxu0 0.0
  %4051 = vmatpush1.msra.mxu0 0.0
  %4052 = vmatprep.subr.mxu0 0.0
  %4053 = vmatpush1.msra.mxu0 0.0
  %4054 = vmatprep.subr.mxu0 0.0
  %4055 = vmatpush1.msra.mxu0 0.0
  %4056 = vmatprep.subr.mxu0 0.0
  %4057 = vmatpush1.msra.mxu0 0.0
  %4058 = vmatprep.subr.mxu0 0.0
  %4059 = vmatpush1.msra.mxu0 0.0
  %4060 = vmatprep.subr.mxu0 0.0
  %4061 = vmatpush1.msra.mxu0 0.0
  %4062 = vmatprep.subr.mxu0 0.0
  %4063 = vmatpush1.msra.mxu0 0.0
  %4064 = vmatprep.subr.mxu0 0.0
  %4065 = vmatpush1.msra.mxu0 0.0
  %4066 = vmatprep.mubr.f32.mxu0 0.0
  %4067 = vmatmul.mubr.f32.gmra.mrb[0].mxu0 %v3994
  %v4068 = vpop.f32.mrb[0].mxu0
  %v4069 = vadd.f32 %v3991, %v4068
  %v4070 = vpop.f32.mrb[0].mxu0
  %4071 = vmatprep.mubr.f32.mxu0 0.0
  %4072 = vmatmul.mubr.f32.gmra.mrb[0].mxu0 %v3997
  %v4073 = vpop.f32.mrb[0].mxu0
  %v4074 = vadd.f32 %v3991, %v4073
  %v4075 = vpop.f32.mrb[0].mxu0
  %4076 = vmatprep.mubr.f32.mxu0 0.0
  %4077 = vmatmul.mubr.f32.gmra.mrb[0].mxu0 %v4000
  %v4078 = vpop.f32.mrb[0].mxu0
  %v4079 = vadd.f32 %v3991, %v4078
  %v4080 = vpop.f32.mrb[0].mxu0
  %4081 = vdwg.mxu0
  %s4082 = scalar_lea.vmem %s6, 512
  %v4083 = vld [vmem:[%s4082] sm:$0xff]
  %v4084 = vld [vmem:[%s4082 + $0x8] sm:$0xff]
  %v4085 = vld [vmem:[%s4082 + $0x10] sm:$0xff]
  %v4086 = vld [vmem:[%s4082 + $0x18] sm:$0xff]
  %s4087 = scalar_lea.vmem %s7, 16
  %v4088 = vld [vmem:[%s4087] sm:$0x1]
  %v4090 = vlaneseq
  %v4091 = vshrl.u32 %v4090, 7
  %v4092 = vsub.s32 0, %v4091
  %v4093 = vrot.slane %v4088, %v4092
  %4095 = vmatprep.subr.mxu0 0.0
  %4096 = vmatpush1.msra.mxu0 %v4083
  %4097 = vmatprep.subr.mxu0 0.0
  %4098 = vmatpush1.msra.mxu0 %v4084
  %4099 = vmatprep.subr.mxu0 0.0
  %4100 = vmatpush1.msra.mxu0 %v4085
  %4101 = vmatprep.subr.mxu0 0.0
  %4102 = vmatpush1.msra.mxu0 %v4086
  %4103 = vmatprep.subr.mxu0 0.0
  %4104 = vmatpush1.msra.mxu0 0.0
  %4105 = vmatprep.subr.mxu0 0.0
  %4106 = vmatpush1.msra.mxu0 0.0
  %4107 = vmatprep.subr.mxu0 0.0
  %4108 = vmatpush1.msra.mxu0 0.0
  %4109 = vmatprep.subr.mxu0 0.0
  %4110 = vmatpush1.msra.mxu0 0.0
  %4111 = vmatprep.subr.mxu0 0.0
  %4112 = vmatpush1.msra.mxu0 0.0
  %4113 = vmatprep.subr.mxu0 0.0
  %4114 = vmatpush1.msra.mxu0 0.0
  %4115 = vmatprep.subr.mxu0 0.0
  %4116 = vmatpush1.msra.mxu0 0.0
  %4117 = vmatprep.subr.mxu0 0.0
  %4118 = vmatpush1.msra.mxu0 0.0
  %4119 = vmatprep.subr.mxu0 0.0
  %4120 = vmatpush1.msra.mxu0 0.0
  %4121 = vmatprep.subr.mxu0 0.0
  %4122 = vmatpush1.msra.mxu0 0.0
  %4123 = vmatprep.subr.mxu0 0.0
  %4124 = vmatpush1.msra.mxu0 0.0
  %4125 = vmatprep.subr.mxu0 0.0
  %4126 = vmatpush1.msra.mxu0 0.0
  %4127 = vmatprep.subr.mxu0 0.0
  %4128 = vmatpush1.msra.mxu0 0.0
  %4129 = vmatprep.subr.mxu0 0.0
  %4130 = vmatpush1.msra.mxu0 0.0
  %4131 = vmatprep.subr.mxu0 0.0
  %4132 = vmatpush1.msra.mxu0 0.0
  %4133 = vmatprep.subr.mxu0 0.0
  %4134 = vmatpush1.msra.mxu0 0.0
  %4135 = vmatprep.subr.mxu0 0.0
  %4136 = vmatpush1.msra.mxu0 0.0
  %4137 = vmatprep.subr.mxu0 0.0
  %4138 = vmatpush1.msra.mxu0 0.0
  %4139 = vmatprep.subr.mxu0 0.0
  %4140 = vmatpush1.msra.mxu0 0.0
  %4141 = vmatprep.subr.mxu0 0.0
  %4142 = vmatpush1.msra.mxu0 0.0
  %4143 = vmatprep.subr.mxu0 0.0
  %4144 = vmatpush1.msra.mxu0 0.0
  %4145 = vmatprep.subr.mxu0 0.0
  %4146 = vmatpush1.msra.mxu0 0.0
  %4147 = vmatprep.subr.mxu0 0.0
  %4148 = vmatpush1.msra.mxu0 0.0
  %4149 = vmatprep.subr.mxu0 0.0
  %4150 = vmatpush1.msra.mxu0 0.0
  %4151 = vmatprep.subr.mxu0 0.0
  %4152 = vmatpush1.msra.mxu0 0.0
  %4153 = vmatprep.subr.mxu0 0.0
  %4154 = vmatpush1.msra.mxu0 0.0
  %4155 = vmatprep.subr.mxu0 0.0
  %4156 = vmatpush1.msra.mxu0 0.0
  %4157 = vmatprep.subr.mxu0 0.0
  %4158 = vmatpush1.msra.mxu0 0.0
  %4159 = vmatprep.mubr.f32.mxu0 0.0
  %4160 = vmatmul.mubr.f32.gmra.mrb[0].mxu0 %v3994
  %v4161 = vpop.f32.mrb[0].mxu0
  %v4162 = vadd.f32 %v4093, %v4161
  %v4163 = vpop.f32.mrb[0].mxu0
  %4164 = vmatprep.mubr.f32.mxu0 0.0
  %4165 = vmatmul.mubr.f32.gmra.mrb[0].mxu0 %v3997
  %v4166 = vpop.f32.mrb[0].mxu0
  %v4167 = vadd.f32 %v4093, %v4166
  %v4168 = vpop.f32.mrb[0].mxu0
  %4169 = vmatprep.mubr.f32.mxu0 0.0
  %4170 = vmatmul.mubr.f32.gmra.mrb[0].mxu0 %v4000
  %v4171 = vpop.f32.mrb[0].mxu0
  %v4172 = vadd.f32 %v4093, %v4171
  %v4173 = vpop.f32.mrb[0].mxu0
  %4174 = vdwg.mxu0
  %s4175 = scalar_lea.vmem %s6, 640
  %v4176 = vld [vmem:[%s4175] sm:$0xff]
  %v4177 = vld [vmem:[%s4175 + $0x8] sm:$0xff]
  %v4178 = vld [vmem:[%s4175 + $0x10] sm:$0xff]
  %v4179 = vld [vmem:[%s4175 + $0x18] sm:$0xff]
  %s4180 = scalar_lea.vmem %s7, 20
  %v4181 = vld [vmem:[%s4180] sm:$0x1]
  %v4183 = vlaneseq
  %v4184 = vshrl.u32 %v4183, 7
  %v4185 = vsub.s32 0, %v4184
  %v4186 = vrot.slane %v4181, %v4185
  %4188 = vmatprep.subr.mxu0 0.0
  %4189 = vmatpush1.msra.mxu0 %v4176
  %4190 = vmatprep.subr.mxu0 0.0
  %4191 = vmatpush1.msra.mxu0 %v4177
  %4192 = vmatprep.subr.mxu0 0.0
  %4193 = vmatpush1.msra.mxu0 %v4178
  %4194 = vmatprep.subr.mxu0 0.0
  %4195 = vmatpush1.msra.mxu0 %v4179
  %4196 = vmatprep.subr.mxu0 0.0
  %4197 = vmatpush1.msra.mxu0 0.0
  %4198 = vmatprep.subr.mxu0 0.0
  %4199 = vmatpush1.msra.mxu0 0.0
  %4200 = vmatprep.subr.mxu0 0.0
  %4201 = vmatpush1.msra.mxu0 0.0
  %4202 = vmatprep.subr.mxu0 0.0
  %4203 = vmatpush1.msra.mxu0 0.0
  %4204 = vmatprep.subr.mxu0 0.0
  %4205 = vmatpush1.msra.mxu0 0.0
  %4206 = vmatprep.subr.mxu0 0.0
  %4207 = vmatpush1.msra.mxu0 0.0
  %4208 = vmatprep.subr.mxu0 0.0
  %4209 = vmatpush1.msra.mxu0 0.0
  %4210 = vmatprep.subr.mxu0 0.0
  %4211 = vmatpush1.msra.mxu0 0.0
  %4212 = vmatprep.subr.mxu0 0.0
  %4213 = vmatpush1.msra.mxu0 0.0
  %4214 = vmatprep.subr.mxu0 0.0
  %4215 = vmatpush1.msra.mxu0 0.0
  %4216 = vmatprep.subr.mxu0 0.0
  %4217 = vmatpush1.msra.mxu0 0.0
  %4218 = vmatprep.subr.mxu0 0.0
  %4219 = vmatpush1.msra.mxu0 0.0
  %4220 = vmatprep.subr.mxu0 0.0
  %4221 = vmatpush1.msra.mxu0 0.0
  %4222 = vmatprep.subr.mxu0 0.0
  %4223 = vmatpush1.msra.mxu0 0.0
  %4224 = vmatprep.subr.mxu0 0.0
  %4225 = vmatpush1.msra.mxu0 0.0
  %4226 = vmatprep.subr.mxu0 0.0
  %4227 = vmatpush1.msra.mxu0 0.0
  %4228 = vmatprep.subr.mxu0 0.0
  %4229 = vmatpush1.msra.mxu0 0.0
  %4230 = vmatprep.subr.mxu0 0.0
  %4231 = vmatpush1.msra.mxu0 0.0
  %4232 = vmatprep.subr.mxu0 0.0
  %4233 = vmatpush1.msra.mxu0 0.0
  %4234 = vmatprep.subr.mxu0 0.0
  %4235 = vmatpush1.msra.mxu0 0.0
  %4236 = vmatprep.subr.mxu0 0.0
  %4237 = vmatpush1.msra.mxu0 0.0
  %4238 = vmatprep.subr.mxu0 0.0
  %4239 = vmatpush1.msra.mxu0 0.0
  %4240 = vmatprep.subr.mxu0 0.0
  %4241 = vmatpush1.msra.mxu0 0.0
  %4242 = vmatprep.subr.mxu0 0.0
  %4243 = vmatpush1.msra.mxu0 0.0
  %4244 = vmatprep.subr.mxu0 0.0
  %4245 = vmatpush1.msra.mxu0 0.0
  %4246 = vmatprep.subr.mxu0 0.0
  %4247 = vmatpush1.msra.mxu0 0.0
  %4248 = vmatprep.subr.mxu0 0.0
  %4249 = vmatpush1.msra.mxu0 0.0
  %4250 = vmatprep.subr.mxu0 0.0
  %4251 = vmatpush1.msra.mxu0 0.0
  %4252 = vmatprep.mubr.f32.mxu0 0.0
  %4253 = vmatmul.mubr.f32.gmra.mrb[0].mxu0 %v3994
  %v4254 = vpop.f32.mrb[0].mxu0
  %v4255 = vadd.f32 %v4186, %v4254
  %v4256 = vpop.f32.mrb[0].mxu0
  %4257 = vmatprep.mubr.f32.mxu0 0.0
  %4258 = vmatmul.mubr.f32.gmra.mrb[0].mxu0 %v3997
  %v4259 = vpop.f32.mrb[0].mxu0
  %v4260 = vadd.f32 %v4186, %v4259
  %v4261 = vpop.f32.mrb[0].mxu0
  %4262 = vmatprep.mubr.f32.mxu0 0.0
  %4263 = vmatmul.mubr.f32.gmra.mrb[0].mxu0 %v4000
  %v4264 = vpop.f32.mrb[0].mxu0
  %v4265 = vadd.f32 %v4186, %v4264
  %v4266 = vpop.f32.mrb[0].mxu0
  %4267 = vdwg.mxu0
  %v4269 = vsel %vm1512, %v4069, 0
  %v4272 = vsel %vm1512, %v4074, 0
  %v4275 = vsel %vm1512, %v4079, 0
  %v4278 = vsel %vm1512, %v4162, 0
  %v4281 = vsel %vm1512, %v4167, 0
  %v4284 = vsel %vm1512, %v4172, 0
  %4286 = vmatprep.subr.mxu0 0.0
  %4287 = vmatpush1.xpose.msra.mxu0 %v4278
  %4288 = vmatprep.subr.mxu0 0.0
  %4289 = vmatpush1.xpose.msra.mxu0 %v4281
  %4290 = vmatprep.subr.mxu0 0.0
  %4291 = vmatpush1.xpose.msra.mxu0 %v4284
  %4292 = vmatprep.subr.mxu0 0.0
  %4293 = vmatpush1.xpose.msra.mxu0 0.0
  %4294 = vmatprep.subr.mxu0 0.0
  %4295 = vmatpush1.xpose.msra.mxu0 0.0
  %4296 = vmatprep.subr.mxu0 0.0
  %4297 = vmatpush1.xpose.msra.mxu0 0.0
  %4298 = vmatprep.subr.mxu0 0.0
  %4299 = vmatpush1.xpose.msra.mxu0 0.0
  %4300 = vmatprep.subr.mxu0 0.0
  %4301 = vmatpush1.xpose.msra.mxu0 0.0
  %4302 = vmatprep.subr.mxu0 0.0
  %4303 = vmatpush1.xpose.msra.mxu0 0.0
  %4304 = vmatprep.subr.mxu0 0.0
  %4305 = vmatpush1.xpose.msra.mxu0 0.0
  %4306 = vmatprep.subr.mxu0 0.0
  %4307 = vmatpush1.xpose.msra.mxu0 0.0
  %4308 = vmatprep.subr.mxu0 0.0
  %4309 = vmatpush1.xpose.msra.mxu0 0.0
  %4310 = vmatprep.subr.mxu0 0.0
  %4311 = vmatpush1.xpose.msra.mxu0 0.0
  %4312 = vmatprep.subr.mxu0 0.0
  %4313 = vmatpush1.xpose.msra.mxu0 0.0
  %4314 = vmatprep.subr.mxu0 0.0
  %4315 = vmatpush1.xpose.msra.mxu0 0.0
  %4316 = vmatprep.subr.mxu0 0.0
  %4317 = vmatpush1.xpose.msra.mxu0 0.0
  %4318 = vmatprep.subr.mxu0 0.0
  %4319 = vmatpush1.xpose.msra.mxu0 0.0
  %4320 = vmatprep.subr.mxu0 0.0
  %4321 = vmatpush1.xpose.msra.mxu0 0.0
  %4322 = vmatprep.subr.mxu0 0.0
  %4323 = vmatpush1.xpose.msra.mxu0 0.0
  %4324 = vmatprep.subr.mxu0 0.0
  %4325 = vmatpush1.xpose.msra.mxu0 0.0
  %4326 = vmatprep.subr.mxu0 0.0
  %4327 = vmatpush1.xpose.msra.mxu0 0.0
  %4328 = vmatprep.subr.mxu0 0.0
  %4329 = vmatpush1.xpose.msra.mxu0 0.0
  %4330 = vmatprep.subr.mxu0 0.0
  %4331 = vmatpush1.xpose.msra.mxu0 0.0
  %4332 = vmatprep.subr.mxu0 0.0
  %4333 = vmatpush1.xpose.msra.mxu0 0.0
  %4334 = vmatprep.subr.mxu0 0.0
  %4335 = vmatpush1.xpose.msra.mxu0 0.0
  %4336 = vmatprep.subr.mxu0 0.0
  %4337 = vmatpush1.xpose.msra.mxu0 0.0
  %4338 = vmatprep.subr.mxu0 0.0
  %4339 = vmatpush1.xpose.msra.mxu0 0.0
  %4340 = vmatprep.subr.mxu0 0.0
  %4341 = vmatpush1.xpose.msra.mxu0 0.0
  %4342 = vmatprep.subr.mxu0 0.0
  %4343 = vmatpush1.xpose.msra.mxu0 0.0
  %4344 = vmatprep.subr.mxu0 0.0
  %4345 = vmatpush1.xpose.msra.mxu0 0.0
  %4346 = vmatprep.subr.mxu0 0.0
  %4347 = vmatpush1.xpose.msra.mxu0 0.0
  %4348 = vmatprep.subr.mxu0 0.0
  %4349 = vmatpush1.xpose.msra.mxu0 0.0
  %4350 = vmatprep.mubr.f32.mxu0 0.0
  %4351 = vmatmul.mubr.f32.gmra.mrb[0].mxu0 %v4269
  %v4352 = vpop.f32.mrb[0].mxu0
  %v4353 = vadd.f32 %v1161, %v4352
  %v4354 = vpop.f32.mrb[0].mxu0
  %4355 = vmatprep.mubr.f32.mxu0 0.0
  %4356 = vmatmul.mubr.f32.gmra.mrb[0].mxu0 %v4272
  %v4357 = vpop.f32.mrb[0].mxu0
  %v4358 = vadd.f32 %v1162, %v4357
  %v4359 = vpop.f32.mrb[0].mxu0
  %4360 = vmatprep.mubr.f32.mxu0 0.0
  %4361 = vmatmul.mubr.f32.gmra.mrb[0].mxu0 %v4275
  %v4362 = vpop.f32.mrb[0].mxu0
  %v4363 = vadd.f32 %v1163, %v4362
  %v4364 = vpop.f32.mrb[0].mxu0
  %4365 = vdwg.mxu0
  %v4366 = vsel %vm1611, %v4353, -inf
  %4367 = vmax.xlane.f32.xlu0 %v4366
  %v4368 = vpop.xlane.xlu0 %4367
  %v4369 = vsel %vm1611, %v4358, -inf
  %4370 = vmax.xlane.f32.xlu0 %v4369
  %v4371 = vpop.xlane.xlu0 %4370
  %v4372 = vsel %vm1618, %v4363, -inf
  %4373 = vmax.xlane.f32.xlu0 %v4372
  %v4374 = vpop.xlane.xlu0 %4373
  %v4375 = vsub.f32 %v4353, %v4368
  %v4376 = vsub.f32 %v4358, %v4371
  %v4377 = vsub.f32 %v4363, %v4374
  %v4378 = vmul.f32 %v4375, 1.442695
  %v4379 = vpow.pop %v4378
  %v4380 = vmul.f32 %v4376, 1.442695
  %v4381 = vpow.pop %v4380
  %v4382 = vmul.f32 %v4377, 1.442695
  %v4383 = vpow.pop %v4382
  %v4384 = vsel %vm1611, %v4379, 0.0
  %4385 = vadd.xlane.f32.xlu0 %v4384
  %v4386 = vpop.xlane.xlu0 %4385
  %v4387 = vsel %vm1611, %v4381, 0.0
  %4388 = vadd.xlane.f32.xlu0 %v4387
  %v4389 = vpop.xlane.xlu0 %4388
  %v4390 = vsel %vm1618, %v4383, 0.0
  %4391 = vadd.xlane.f32.xlu0 %v4390
  %v4392 = vpop.xlane.xlu0 %4391
  %v4393 = vrcp.pop %v4386
  %v4394 = vrcp.pop %v4389
  %v4395 = vrcp.pop %v4392
  %v4396 = vmul.f32 %v4379, %v4393
  %v4397 = vmul.f32 %v4381, %v4394
  %v4398 = vmul.f32 %v4383, %v4395
  %v4400 = vsel %vm1611, %v4396, 0
  %v4403 = vsel %vm1611, %v4397, 0
  %v4406 = vsel %vm1611, %v4398, 0
  %v4409 = vsel %vm1655, %v4265, 0
  %4411 = vmatprep.subr.mxu0 0.0
  %4412 = vmatpush1.msra.mxu0 %v4255
  %4413 = vmatprep.subr.mxu0 0.0
  %4414 = vmatpush1.msra.mxu0 %v4260
  %4415 = vmatprep.subr.mxu0 0.0
  %4416 = vmatpush1.msra.mxu0 %v4409
  %4417 = vmatprep.subr.mxu0 0.0
  %4418 = vmatpush1.msra.mxu0 0.0
  %4419 = vmatprep.subr.mxu0 0.0
  %4420 = vmatpush1.msra.mxu0 0.0
  %4421 = vmatprep.subr.mxu0 0.0
  %4422 = vmatpush1.msra.mxu0 0.0
  %4423 = vmatprep.subr.mxu0 0.0
  %4424 = vmatpush1.msra.mxu0 0.0
  %4425 = vmatprep.subr.mxu0 0.0
  %4426 = vmatpush1.msra.mxu0 0.0
  %4427 = vmatprep.subr.mxu0 0.0
  %4428 = vmatpush1.msra.mxu0 0.0
  %4429 = vmatprep.subr.mxu0 0.0
  %4430 = vmatpush1.msra.mxu0 0.0
  %4431 = vmatprep.subr.mxu0 0.0
  %4432 = vmatpush1.msra.mxu0 0.0
  %4433 = vmatprep.subr.mxu0 0.0
  %4434 = vmatpush1.msra.mxu0 0.0
  %4435 = vmatprep.subr.mxu0 0.0
  %4436 = vmatpush1.msra.mxu0 0.0
  %4437 = vmatprep.subr.mxu0 0.0
  %4438 = vmatpush1.msra.mxu0 0.0
  %4439 = vmatprep.subr.mxu0 0.0
  %4440 = vmatpush1.msra.mxu0 0.0
  %4441 = vmatprep.subr.mxu0 0.0
  %4442 = vmatpush1.msra.mxu0 0.0
  %4443 = vmatprep.subr.mxu0 0.0
  %4444 = vmatpush1.msra.mxu0 0.0
  %4445 = vmatprep.subr.mxu0 0.0
  %4446 = vmatpush1.msra.mxu0 0.0
  %4447 = vmatprep.subr.mxu0 0.0
  %4448 = vmatpush1.msra.mxu0 0.0
  %4449 = vmatprep.subr.mxu0 0.0
  %4450 = vmatpush1.msra.mxu0 0.0
  %4451 = vmatprep.subr.mxu0 0.0
  %4452 = vmatpush1.msra.mxu0 0.0
  %4453 = vmatprep.subr.mxu0 0.0
  %4454 = vmatpush1.msra.mxu0 0.0
  %4455 = vmatprep.subr.mxu0 0.0
  %4456 = vmatpush1.msra.mxu0 0.0
  %4457 = vmatprep.subr.mxu0 0.0
  %4458 = vmatpush1.msra.mxu0 0.0
  %4459 = vmatprep.subr.mxu0 0.0
  %4460 = vmatpush1.msra.mxu0 0.0
  %4461 = vmatprep.subr.mxu0 0.0
  %4462 = vmatpush1.msra.mxu0 0.0
  %4463 = vmatprep.subr.mxu0 0.0
  %4464 = vmatpush1.msra.mxu0 0.0
  %4465 = vmatprep.subr.mxu0 0.0
  %4466 = vmatpush1.msra.mxu0 0.0
  %4467 = vmatprep.subr.mxu0 0.0
  %4468 = vmatpush1.msra.mxu0 0.0
  %4469 = vmatprep.subr.mxu0 0.0
  %4470 = vmatpush1.msra.mxu0 0.0
  %4471 = vmatprep.subr.mxu0 0.0
  %4472 = vmatpush1.msra.mxu0 0.0
  %4473 = vmatprep.subr.mxu0 0.0
  %4474 = vmatpush1.msra.mxu0 0.0
  %4475 = vmatprep.mubr.f32.mxu0 0.0
  %4476 = vmatmul.mubr.f32.gmra.mrb[0].mxu0 %v4400
  %v4477 = vpop.f32.mrb[0].mxu0
  %v4478 = vadd.f32 0.0, %v4477
  %v4479 = vpop.f32.mrb[0].mxu0
  %4480 = vmatprep.mubr.f32.mxu0 0.0
  %4481 = vmatmul.mubr.f32.gmra.mrb[0].mxu0 %v4403
  %v4482 = vpop.f32.mrb[0].mxu0
  %v4483 = vadd.f32 0.0, %v4482
  %v4484 = vpop.f32.mrb[0].mxu0
  %4485 = vmatprep.mubr.f32.mxu0 0.0
  %4486 = vmatmul.mubr.f32.gmra.mrb[0].mxu0 %v4406
  %v4487 = vpop.f32.mrb[0].mxu0
  %v4488 = vadd.f32 0.0, %v4487
  %v4489 = vpop.f32.mrb[0].mxu0
  %4490 = vdwg.mxu0
  %s4491 = scalar_lea.vmem %s8, 32
  %v4492 = vld [vmem:[%s4491] sm:$0xff]
  %s4493 = scalar_lea.vmem %s6, 416
  %v4494 = vld [vmem:[%s4493] sm:$0xff]
  %v4495 = vld [vmem:[%s4493 + $0x8] sm:$0xff]
  %v4496 = vld [vmem:[%s4493 + $0x10] sm:$0xff]
  %v4497 = vld [vmem:[%s4493 + $0x18] sm:$0xff]
  %s4498 = scalar_lea.vmem %s7, 13
  %v4499 = vld [vmem:[%s4498] sm:$0x1]
  %v4501 = vlaneseq
  %v4502 = vshrl.u32 %v4501, 7
  %v4503 = vsub.s32 0, %v4502
  %v4504 = vrot.slane %v4499, %v4503
  %4506 = vmatprep.subr.mxu0 0.0
  %4507 = vmatpush1.msra.mxu0 %v4494
  %4508 = vmatprep.subr.mxu0 0.0
  %4509 = vmatpush1.msra.mxu0 %v4495
  %4510 = vmatprep.subr.mxu0 0.0
  %4511 = vmatpush1.msra.mxu0 %v4496
  %4512 = vmatprep.subr.mxu0 0.0
  %4513 = vmatpush1.msra.mxu0 %v4497
  %4514 = vmatprep.subr.mxu0 0.0
  %4515 = vmatpush1.msra.mxu0 0.0
  %4516 = vmatprep.subr.mxu0 0.0
  %4517 = vmatpush1.msra.mxu0 0.0
  %4518 = vmatprep.subr.mxu0 0.0
  %4519 = vmatpush1.msra.mxu0 0.0
  %4520 = vmatprep.subr.mxu0 0.0
  %4521 = vmatpush1.msra.mxu0 0.0
  %4522 = vmatprep.subr.mxu0 0.0
  %4523 = vmatpush1.msra.mxu0 0.0
  %4524 = vmatprep.subr.mxu0 0.0
  %4525 = vmatpush1.msra.mxu0 0.0
  %4526 = vmatprep.subr.mxu0 0.0
  %4527 = vmatpush1.msra.mxu0 0.0
  %4528 = vmatprep.subr.mxu0 0.0
  %4529 = vmatpush1.msra.mxu0 0.0
  %4530 = vmatprep.subr.mxu0 0.0
  %4531 = vmatpush1.msra.mxu0 0.0
  %4532 = vmatprep.subr.mxu0 0.0
  %4533 = vmatpush1.msra.mxu0 0.0
  %4534 = vmatprep.subr.mxu0 0.0
  %4535 = vmatpush1.msra.mxu0 0.0
  %4536 = vmatprep.subr.mxu0 0.0
  %4537 = vmatpush1.msra.mxu0 0.0
  %4538 = vmatprep.subr.mxu0 0.0
  %4539 = vmatpush1.msra.mxu0 0.0
  %4540 = vmatprep.subr.mxu0 0.0
  %4541 = vmatpush1.msra.mxu0 0.0
  %4542 = vmatprep.subr.mxu0 0.0
  %4543 = vmatpush1.msra.mxu0 0.0
  %4544 = vmatprep.subr.mxu0 0.0
  %4545 = vmatpush1.msra.mxu0 0.0
  %4546 = vmatprep.subr.mxu0 0.0
  %4547 = vmatpush1.msra.mxu0 0.0
  %4548 = vmatprep.subr.mxu0 0.0
  %4549 = vmatpush1.msra.mxu0 0.0
  %4550 = vmatprep.subr.mxu0 0.0
  %4551 = vmatpush1.msra.mxu0 0.0
  %4552 = vmatprep.subr.mxu0 0.0
  %4553 = vmatpush1.msra.mxu0 0.0
  %4554 = vmatprep.subr.mxu0 0.0
  %4555 = vmatpush1.msra.mxu0 0.0
  %4556 = vmatprep.subr.mxu0 0.0
  %4557 = vmatpush1.msra.mxu0 0.0
  %4558 = vmatprep.subr.mxu0 0.0
  %4559 = vmatpush1.msra.mxu0 0.0
  %4560 = vmatprep.subr.mxu0 0.0
  %4561 = vmatpush1.msra.mxu0 0.0
  %4562 = vmatprep.subr.mxu0 0.0
  %4563 = vmatpush1.msra.mxu0 0.0
  %4564 = vmatprep.subr.mxu0 0.0
  %4565 = vmatpush1.msra.mxu0 0.0
  %4566 = vmatprep.subr.mxu0 0.0
  %4567 = vmatpush1.msra.mxu0 0.0
  %4568 = vmatprep.subr.mxu0 0.0
  %4569 = vmatpush1.msra.mxu0 0.0
  %4570 = vmatprep.mubr.f32.mxu0 0.0
  %4571 = vmatmul.mubr.f32.gmra.mrb[0].mxu0 %v3994
  %v4572 = vpop.f32.mrb[0].mxu0
  %v4573 = vadd.f32 %v4504, %v4572
  %v4574 = vpop.f32.mrb[0].mxu0
  %4575 = vmatprep.mubr.f32.mxu0 0.0
  %4576 = vmatmul.mubr.f32.gmra.mrb[0].mxu0 %v3997
  %v4577 = vpop.f32.mrb[0].mxu0
  %v4578 = vadd.f32 %v4504, %v4577
  %v4579 = vpop.f32.mrb[0].mxu0
  %4580 = vmatprep.mubr.f32.mxu0 0.0
  %4581 = vmatmul.mubr.f32.gmra.mrb[0].mxu0 %v4000
  %v4582 = vpop.f32.mrb[0].mxu0
  %v4583 = vadd.f32 %v4504, %v4582
  %v4584 = vpop.f32.mrb[0].mxu0
  %4585 = vdwg.mxu0
  %s4586 = scalar_lea.vmem %s6, 544
  %v4587 = vld [vmem:[%s4586] sm:$0xff]
  %v4588 = vld [vmem:[%s4586 + $0x8] sm:$0xff]
  %v4589 = vld [vmem:[%s4586 + $0x10] sm:$0xff]
  %v4590 = vld [vmem:[%s4586 + $0x18] sm:$0xff]
  %s4591 = scalar_lea.vmem %s7, 17
  %v4592 = vld [vmem:[%s4591] sm:$0x1]
  %v4594 = vlaneseq
  %v4595 = vshrl.u32 %v4594, 7
  %v4596 = vsub.s32 0, %v4595
  %v4597 = vrot.slane %v4592, %v4596
  %4599 = vmatprep.subr.mxu0 0.0
  %4600 = vmatpush1.msra.mxu0 %v4587
  %4601 = vmatprep.subr.mxu0 0.0
  %4602 = vmatpush1.msra.mxu0 %v4588
  %4603 = vmatprep.subr.mxu0 0.0
  %4604 = vmatpush1.msra.mxu0 %v4589
  %4605 = vmatprep.subr.mxu0 0.0
  %4606 = vmatpush1.msra.mxu0 %v4590
  %4607 = vmatprep.subr.mxu0 0.0
  %4608 = vmatpush1.msra.mxu0 0.0
  %4609 = vmatprep.subr.mxu0 0.0
  %4610 = vmatpush1.msra.mxu0 0.0
  %4611 = vmatprep.subr.mxu0 0.0
  %4612 = vmatpush1.msra.mxu0 0.0
  %4613 = vmatprep.subr.mxu0 0.0
  %4614 = vmatpush1.msra.mxu0 0.0
  %4615 = vmatprep.subr.mxu0 0.0
  %4616 = vmatpush1.msra.mxu0 0.0
  %4617 = vmatprep.subr.mxu0 0.0
  %4618 = vmatpush1.msra.mxu0 0.0
  %4619 = vmatprep.subr.mxu0 0.0
  %4620 = vmatpush1.msra.mxu0 0.0
  %4621 = vmatprep.subr.mxu0 0.0
  %4622 = vmatpush1.msra.mxu0 0.0
  %4623 = vmatprep.subr.mxu0 0.0
  %4624 = vmatpush1.msra.mxu0 0.0
  %4625 = vmatprep.subr.mxu0 0.0
  %4626 = vmatpush1.msra.mxu0 0.0
  %4627 = vmatprep.subr.mxu0 0.0
  %4628 = vmatpush1.msra.mxu0 0.0
  %4629 = vmatprep.subr.mxu0 0.0
  %4630 = vmatpush1.msra.mxu0 0.0
  %4631 = vmatprep.subr.mxu0 0.0
  %4632 = vmatpush1.msra.mxu0 0.0
  %4633 = vmatprep.subr.mxu0 0.0
  %4634 = vmatpush1.msra.mxu0 0.0
  %4635 = vmatprep.subr.mxu0 0.0
  %4636 = vmatpush1.msra.mxu0 0.0
  %4637 = vmatprep.subr.mxu0 0.0
  %4638 = vmatpush1.msra.mxu0 0.0
  %4639 = vmatprep.subr.mxu0 0.0
  %4640 = vmatpush1.msra.mxu0 0.0
  %4641 = vmatprep.subr.mxu0 0.0
  %4642 = vmatpush1.msra.mxu0 0.0
  %4643 = vmatprep.subr.mxu0 0.0
  %4644 = vmatpush1.msra.mxu0 0.0
  %4645 = vmatprep.subr.mxu0 0.0
  %4646 = vmatpush1.msra.mxu0 0.0
  %4647 = vmatprep.subr.mxu0 0.0
  %4648 = vmatpush1.msra.mxu0 0.0
  %4649 = vmatprep.subr.mxu0 0.0
  %4650 = vmatpush1.msra.mxu0 0.0
  %4651 = vmatprep.subr.mxu0 0.0
  %4652 = vmatpush1.msra.mxu0 0.0
  %4653 = vmatprep.subr.mxu0 0.0
  %4654 = vmatpush1.msra.mxu0 0.0
  %4655 = vmatprep.subr.mxu0 0.0
  %4656 = vmatpush1.msra.mxu0 0.0
  %4657 = vmatprep.subr.mxu0 0.0
  %4658 = vmatpush1.msra.mxu0 0.0
  %4659 = vmatprep.subr.mxu0 0.0
  %4660 = vmatpush1.msra.mxu0 0.0
  %4661 = vmatprep.subr.mxu0 0.0
  %4662 = vmatpush1.msra.mxu0 0.0
  %4663 = vmatprep.mubr.f32.mxu0 0.0
  %4664 = vmatmul.mubr.f32.gmra.mrb[0].mxu0 %v3994
  %v4665 = vpop.f32.mrb[0].mxu0
  %v4666 = vadd.f32 %v4597, %v4665
  %v4667 = vpop.f32.mrb[0].mxu0
  %4668 = vmatprep.mubr.f32.mxu0 0.0
  %4669 = vmatmul.mubr.f32.gmra.mrb[0].mxu0 %v3997
  %v4670 = vpop.f32.mrb[0].mxu0
  %v4671 = vadd.f32 %v4597, %v4670
  %v4672 = vpop.f32.mrb[0].mxu0
  %4673 = vmatprep.mubr.f32.mxu0 0.0
  %4674 = vmatmul.mubr.f32.gmra.mrb[0].mxu0 %v4000
  %v4675 = vpop.f32.mrb[0].mxu0
  %v4676 = vadd.f32 %v4597, %v4675
  %v4677 = vpop.f32.mrb[0].mxu0
  %4678 = vdwg.mxu0
  %s4679 = scalar_lea.vmem %s6, 672
  %v4680 = vld [vmem:[%s4679] sm:$0xff]
  %v4681 = vld [vmem:[%s4679 + $0x8] sm:$0xff]
  %v4682 = vld [vmem:[%s4679 + $0x10] sm:$0xff]
  %v4683 = vld [vmem:[%s4679 + $0x18] sm:$0xff]
  %s4684 = scalar_lea.vmem %s7, 21
  %v4685 = vld [vmem:[%s4684] sm:$0x1]
  %v4687 = vlaneseq
  %v4688 = vshrl.u32 %v4687, 7
  %v4689 = vsub.s32 0, %v4688
  %v4690 = vrot.slane %v4685, %v4689
  %4692 = vmatprep.subr.mxu0 0.0
  %4693 = vmatpush1.msra.mxu0 %v4680
  %4694 = vmatprep.subr.mxu0 0.0
  %4695 = vmatpush1.msra.mxu0 %v4681
  %4696 = vmatprep.subr.mxu0 0.0
  %4697 = vmatpush1.msra.mxu0 %v4682
  %4698 = vmatprep.subr.mxu0 0.0
  %4699 = vmatpush1.msra.mxu0 %v4683
  %4700 = vmatprep.subr.mxu0 0.0
  %4701 = vmatpush1.msra.mxu0 0.0
  %4702 = vmatprep.subr.mxu0 0.0
  %4703 = vmatpush1.msra.mxu0 0.0
  %4704 = vmatprep.subr.mxu0 0.0
  %4705 = vmatpush1.msra.mxu0 0.0
  %4706 = vmatprep.subr.mxu0 0.0
  %4707 = vmatpush1.msra.mxu0 0.0
  %4708 = vmatprep.subr.mxu0 0.0
  %4709 = vmatpush1.msra.mxu0 0.0
  %4710 = vmatprep.subr.mxu0 0.0
  %4711 = vmatpush1.msra.mxu0 0.0
  %4712 = vmatprep.subr.mxu0 0.0
  %4713 = vmatpush1.msra.mxu0 0.0
  %4714 = vmatprep.subr.mxu0 0.0
  %4715 = vmatpush1.msra.mxu0 0.0
  %4716 = vmatprep.subr.mxu0 0.0
  %4717 = vmatpush1.msra.mxu0 0.0
  %4718 = vmatprep.subr.mxu0 0.0
  %4719 = vmatpush1.msra.mxu0 0.0
  %4720 = vmatprep.subr.mxu0 0.0
  %4721 = vmatpush1.msra.mxu0 0.0
  %4722 = vmatprep.subr.mxu0 0.0
  %4723 = vmatpush1.msra.mxu0 0.0
  %4724 = vmatprep.subr.mxu0 0.0
  %4725 = vmatpush1.msra.mxu0 0.0
  %4726 = vmatprep.subr.mxu0 0.0
  %4727 = vmatpush1.msra.mxu0 0.0
  %4728 = vmatprep.subr.mxu0 0.0
  %4729 = vmatpush1.msra.mxu0 0.0
  %4730 = vmatprep.subr.mxu0 0.0
  %4731 = vmatpush1.msra.mxu0 0.0
  %4732 = vmatprep.subr.mxu0 0.0
  %4733 = vmatpush1.msra.mxu0 0.0
  %4734 = vmatprep.subr.mxu0 0.0
  %4735 = vmatpush1.msra.mxu0 0.0
  %4736 = vmatprep.subr.mxu0 0.0
  %4737 = vmatpush1.msra.mxu0 0.0
  %4738 = vmatprep.subr.mxu0 0.0
  %4739 = vmatpush1.msra.mxu0 0.0
  %4740 = vmatprep.subr.mxu0 0.0
  %4741 = vmatpush1.msra.mxu0 0.0
  %4742 = vmatprep.subr.mxu0 0.0
  %4743 = vmatpush1.msra.mxu0 0.0
  %4744 = vmatprep.subr.mxu0 0.0
  %4745 = vmatpush1.msra.mxu0 0.0
  %4746 = vmatprep.subr.mxu0 0.0
  %4747 = vmatpush1.msra.mxu0 0.0
  %4748 = vmatprep.subr.mxu0 0.0
  %4749 = vmatpush1.msra.mxu0 0.0
  %4750 = vmatprep.subr.mxu0 0.0
  %4751 = vmatpush1.msra.mxu0 0.0
  %4752 = vmatprep.subr.mxu0 0.0
  %4753 = vmatpush1.msra.mxu0 0.0
  %4754 = vmatprep.subr.mxu0 0.0
  %4755 = vmatpush1.msra.mxu0 0.0
  %4756 = vmatprep.mubr.f32.mxu0 0.0
  %4757 = vmatmul.mubr.f32.gmra.mrb[0].mxu0 %v3994
  %v4758 = vpop.f32.mrb[0].mxu0
  %v4759 = vadd.f32 %v4690, %v4758
  %v4760 = vpop.f32.mrb[0].mxu0
  %4761 = vmatprep.mubr.f32.mxu0 0.0
  %4762 = vmatmul.mubr.f32.gmra.mrb[0].mxu0 %v3997
  %v4763 = vpop.f32.mrb[0].mxu0
  %v4764 = vadd.f32 %v4690, %v4763
  %v4765 = vpop.f32.mrb[0].mxu0
  %4766 = vmatprep.mubr.f32.mxu0 0.0
  %4767 = vmatmul.mubr.f32.gmra.mrb[0].mxu0 %v4000
  %v4768 = vpop.f32.mrb[0].mxu0
  %v4769 = vadd.f32 %v4690, %v4768
  %v4770 = vpop.f32.mrb[0].mxu0
  %4771 = vdwg.mxu0
  %v4773 = vsel %vm1512, %v4573, 0
  %v4776 = vsel %vm1512, %v4578, 0
  %v4779 = vsel %vm1512, %v4583, 0
  %v4782 = vsel %vm1512, %v4666, 0
  %v4785 = vsel %vm1512, %v4671, 0
  %v4788 = vsel %vm1512, %v4676, 0
  %4790 = vmatprep.subr.mxu0 0.0
  %4791 = vmatpush1.xpose.msra.mxu0 %v4782
  %4792 = vmatprep.subr.mxu0 0.0
  %4793 = vmatpush1.xpose.msra.mxu0 %v4785
  %4794 = vmatprep.subr.mxu0 0.0
  %4795 = vmatpush1.xpose.msra.mxu0 %v4788
  %4796 = vmatprep.subr.mxu0 0.0
  %4797 = vmatpush1.xpose.msra.mxu0 0.0
  %4798 = vmatprep.subr.mxu0 0.0
  %4799 = vmatpush1.xpose.msra.mxu0 0.0
  %4800 = vmatprep.subr.mxu0 0.0
  %4801 = vmatpush1.xpose.msra.mxu0 0.0
  %4802 = vmatprep.subr.mxu0 0.0
  %4803 = vmatpush1.xpose.msra.mxu0 0.0
  %4804 = vmatprep.subr.mxu0 0.0
  %4805 = vmatpush1.xpose.msra.mxu0 0.0
  %4806 = vmatprep.subr.mxu0 0.0
  %4807 = vmatpush1.xpose.msra.mxu0 0.0
  %4808 = vmatprep.subr.mxu0 0.0
  %4809 = vmatpush1.xpose.msra.mxu0 0.0
  %4810 = vmatprep.subr.mxu0 0.0
  %4811 = vmatpush1.xpose.msra.mxu0 0.0
  %4812 = vmatprep.subr.mxu0 0.0
  %4813 = vmatpush1.xpose.msra.mxu0 0.0
  %4814 = vmatprep.subr.mxu0 0.0
  %4815 = vmatpush1.xpose.msra.mxu0 0.0
  %4816 = vmatprep.subr.mxu0 0.0
  %4817 = vmatpush1.xpose.msra.mxu0 0.0
  %4818 = vmatprep.subr.mxu0 0.0
  %4819 = vmatpush1.xpose.msra.mxu0 0.0
  %4820 = vmatprep.subr.mxu0 0.0
  %4821 = vmatpush1.xpose.msra.mxu0 0.0
  %4822 = vmatprep.subr.mxu0 0.0
  %4823 = vmatpush1.xpose.msra.mxu0 0.0
  %4824 = vmatprep.subr.mxu0 0.0
  %4825 = vmatpush1.xpose.msra.mxu0 0.0
  %4826 = vmatprep.subr.mxu0 0.0
  %4827 = vmatpush1.xpose.msra.mxu0 0.0
  %4828 = vmatprep.subr.mxu0 0.0
  %4829 = vmatpush1.xpose.msra.mxu0 0.0
  %4830 = vmatprep.subr.mxu0 0.0
  %4831 = vmatpush1.xpose.msra.mxu0 0.0
  %4832 = vmatprep.subr.mxu0 0.0
  %4833 = vmatpush1.xpose.msra.mxu0 0.0
  %4834 = vmatprep.subr.mxu0 0.0
  %4835 = vmatpush1.xpose.msra.mxu0 0.0
  %4836 = vmatprep.subr.mxu0 0.0
  %4837 = vmatpush1.xpose.msra.mxu0 0.0
  %4838 = vmatprep.subr.mxu0 0.0
  %4839 = vmatpush1.xpose.msra.mxu0 0.0
  %4840 = vmatprep.subr.mxu0 0.0
  %4841 = vmatpush1.xpose.msra.mxu0 0.0
  %4842 = vmatprep.subr.mxu0 0.0
  %4843 = vmatpush1.xpose.msra.mxu0 0.0
  %4844 = vmatprep.subr.mxu0 0.0
  %4845 = vmatpush1.xpose.msra.mxu0 0.0
  %4846 = vmatprep.subr.mxu0 0.0
  %4847 = vmatpush1.xpose.msra.mxu0 0.0
  %4848 = vmatprep.subr.mxu0 0.0
  %4849 = vmatpush1.xpose.msra.mxu0 0.0
  %4850 = vmatprep.subr.mxu0 0.0
  %4851 = vmatpush1.xpose.msra.mxu0 0.0
  %4852 = vmatprep.subr.mxu0 0.0
  %4853 = vmatpush1.xpose.msra.mxu0 0.0
  %4854 = vmatprep.mubr.f32.mxu0 0.0
  %4855 = vmatmul.mubr.f32.gmra.mrb[0].mxu0 %v4773
  %v4856 = vpop.f32.mrb[0].mxu0
  %v4857 = vadd.f32 %v1161, %v4856
  %v4858 = vpop.f32.mrb[0].mxu0
  %4859 = vmatprep.mubr.f32.mxu0 0.0
  %4860 = vmatmul.mubr.f32.gmra.mrb[0].mxu0 %v4776
  %v4861 = vpop.f32.mrb[0].mxu0
  %v4862 = vadd.f32 %v1162, %v4861
  %v4863 = vpop.f32.mrb[0].mxu0
  %4864 = vmatprep.mubr.f32.mxu0 0.0
  %4865 = vmatmul.mubr.f32.gmra.mrb[0].mxu0 %v4779
  %v4866 = vpop.f32.mrb[0].mxu0
  %v4867 = vadd.f32 %v1163, %v4866
  %v4868 = vpop.f32.mrb[0].mxu0
  %4869 = vdwg.mxu0
  %v4870 = vsel %vm1611, %v4857, -inf
  %4871 = vmax.xlane.f32.xlu0 %v4870
  %v4872 = vpop.xlane.xlu0 %4871
  %v4873 = vsel %vm1611, %v4862, -inf
  %4874 = vmax.xlane.f32.xlu0 %v4873
  %v4875 = vpop.xlane.xlu0 %4874
  %v4876 = vsel %vm1618, %v4867, -inf
  %4877 = vmax.xlane.f32.xlu0 %v4876
  %v4878 = vpop.xlane.xlu0 %4877
  %v4879 = vsub.f32 %v4857, %v4872
  %v4880 = vsub.f32 %v4862, %v4875
  %v4881 = vsub.f32 %v4867, %v4878
  %v4882 = vmul.f32 %v4879, 1.442695
  %v4883 = vpow.pop %v4882
  %v4884 = vmul.f32 %v4880, 1.442695
  %v4885 = vpow.pop %v4884
  %v4886 = vmul.f32 %v4881, 1.442695
  %v4887 = vpow.pop %v4886
  %v4888 = vsel %vm1611, %v4883, 0.0
  %4889 = vadd.xlane.f32.xlu0 %v4888
  %v4890 = vpop.xlane.xlu0 %4889
  %v4891 = vsel %vm1611, %v4885, 0.0
  %4892 = vadd.xlane.f32.xlu0 %v4891
  %v4893 = vpop.xlane.xlu0 %4892
  %v4894 = vsel %vm1618, %v4887, 0.0
  %4895 = vadd.xlane.f32.xlu0 %v4894
  %v4896 = vpop.xlane.xlu0 %4895
  %v4897 = vrcp.pop %v4890
  %v4898 = vrcp.pop %v4893
  %v4899 = vrcp.pop %v4896
  %v4900 = vmul.f32 %v4883, %v4897
  %v4901 = vmul.f32 %v4885, %v4898
  %v4902 = vmul.f32 %v4887, %v4899
  %v4904 = vsel %vm1611, %v4900, 0
  %v4907 = vsel %vm1611, %v4901, 0
  %v4910 = vsel %vm1611, %v4902, 0
  %v4913 = vsel %vm1655, %v4769, 0
  %4915 = vmatprep.subr.mxu0 0.0
  %4916 = vmatpush1.msra.mxu0 %v4759
  %4917 = vmatprep.subr.mxu0 0.0
  %4918 = vmatpush1.msra.mxu0 %v4764
  %4919 = vmatprep.subr.mxu0 0.0
  %4920 = vmatpush1.msra.mxu0 %v4913
  %4921 = vmatprep.subr.mxu0 0.0
  %4922 = vmatpush1.msra.mxu0 0.0
  %4923 = vmatprep.subr.mxu0 0.0
  %4924 = vmatpush1.msra.mxu0 0.0
  %4925 = vmatprep.subr.mxu0 0.0
  %4926 = vmatpush1.msra.mxu0 0.0
  %4927 = vmatprep.subr.mxu0 0.0
  %4928 = vmatpush1.msra.mxu0 0.0
  %4929 = vmatprep.subr.mxu0 0.0
  %4930 = vmatpush1.msra.mxu0 0.0
  %4931 = vmatprep.subr.mxu0 0.0
  %4932 = vmatpush1.msra.mxu0 0.0
  %4933 = vmatprep.subr.mxu0 0.0
  %4934 = vmatpush1.msra.mxu0 0.0
  %4935 = vmatprep.subr.mxu0 0.0
  %4936 = vmatpush1.msra.mxu0 0.0
  %4937 = vmatprep.subr.mxu0 0.0
  %4938 = vmatpush1.msra.mxu0 0.0
  %4939 = vmatprep.subr.mxu0 0.0
  %4940 = vmatpush1.msra.mxu0 0.0
  %4941 = vmatprep.subr.mxu0 0.0
  %4942 = vmatpush1.msra.mxu0 0.0
  %4943 = vmatprep.subr.mxu0 0.0
  %4944 = vmatpush1.msra.mxu0 0.0
  %4945 = vmatprep.subr.mxu0 0.0
  %4946 = vmatpush1.msra.mxu0 0.0
  %4947 = vmatprep.subr.mxu0 0.0
  %4948 = vmatpush1.msra.mxu0 0.0
  %4949 = vmatprep.subr.mxu0 0.0
  %4950 = vmatpush1.msra.mxu0 0.0
  %4951 = vmatprep.subr.mxu0 0.0
  %4952 = vmatpush1.msra.mxu0 0.0
  %4953 = vmatprep.subr.mxu0 0.0
  %4954 = vmatpush1.msra.mxu0 0.0
  %4955 = vmatprep.subr.mxu0 0.0
  %4956 = vmatpush1.msra.mxu0 0.0
  %4957 = vmatprep.subr.mxu0 0.0
  %4958 = vmatpush1.msra.mxu0 0.0
  %4959 = vmatprep.subr.mxu0 0.0
  %4960 = vmatpush1.msra.mxu0 0.0
  %4961 = vmatprep.subr.mxu0 0.0
  %4962 = vmatpush1.msra.mxu0 0.0
  %4963 = vmatprep.subr.mxu0 0.0
  %4964 = vmatpush1.msra.mxu0 0.0
  %4965 = vmatprep.subr.mxu0 0.0
  %4966 = vmatpush1.msra.mxu0 0.0
  %4967 = vmatprep.subr.mxu0 0.0
  %4968 = vmatpush1.msra.mxu0 0.0
  %4969 = vmatprep.subr.mxu0 0.0
  %4970 = vmatpush1.msra.mxu0 0.0
  %4971 = vmatprep.subr.mxu0 0.0
  %4972 = vmatpush1.msra.mxu0 0.0
  %4973 = vmatprep.subr.mxu0 0.0
  %4974 = vmatpush1.msra.mxu0 0.0
  %4975 = vmatprep.subr.mxu0 0.0
  %4976 = vmatpush1.msra.mxu0 0.0
  %4977 = vmatprep.subr.mxu0 0.0
  %4978 = vmatpush1.msra.mxu0 0.0
  %4979 = vmatprep.mubr.f32.mxu0 0.0
  %4980 = vmatmul.mubr.f32.gmra.mrb[0].mxu0 %v4904
  %v4981 = vpop.f32.mrb[0].mxu0
  %v4982 = vadd.f32 0.0, %v4981
  %v4983 = vpop.f32.mrb[0].mxu0
  %4984 = vmatprep.mubr.f32.mxu0 0.0
  %4985 = vmatmul.mubr.f32.gmra.mrb[0].mxu0 %v4907
  %v4986 = vpop.f32.mrb[0].mxu0
  %v4987 = vadd.f32 0.0, %v4986
  %v4988 = vpop.f32.mrb[0].mxu0
  %4989 = vmatprep.mubr.f32.mxu0 0.0
  %4990 = vmatmul.mubr.f32.gmra.mrb[0].mxu0 %v4910
  %v4991 = vpop.f32.mrb[0].mxu0
  %v4992 = vadd.f32 0.0, %v4991
  %v4993 = vpop.f32.mrb[0].mxu0
  %4994 = vdwg.mxu0
  %s4995 = scalar_lea.vmem %s8, 40
  %v4996 = vld [vmem:[%s4995] sm:$0xff]
  %v4998 = vsel %vm1512, %v4982, 0
  %v5001 = vsel %vm1512, %v4987, 0
  %v5004 = vsel %vm1512, %v4992, 0
  %5006 = vmatprep.subr.mxu0 0.0
  %5007 = vmatpush1.msra.mxu0 %v4996
  %5008 = vmatprep.subr.mxu0 0.0
  %5009 = vmatpush1.msra.mxu0 0.0
  %5010 = vmatprep.subr.mxu0 0.0
  %5011 = vmatpush1.msra.mxu0 0.0
  %5012 = vmatprep.subr.mxu0 0.0
  %5013 = vmatpush1.msra.mxu0 0.0
  %5014 = vmatprep.subr.mxu0 0.0
  %5015 = vmatpush1.msra.mxu0 0.0
  %5016 = vmatprep.subr.mxu0 0.0
  %5017 = vmatpush1.msra.mxu0 0.0
  %5018 = vmatprep.subr.mxu0 0.0
  %5019 = vmatpush1.msra.mxu0 0.0
  %5020 = vmatprep.subr.mxu0 0.0
  %5021 = vmatpush1.msra.mxu0 0.0
  %5022 = vmatprep.subr.mxu0 0.0
  %5023 = vmatpush1.msra.mxu0 0.0
  %5024 = vmatprep.subr.mxu0 0.0
  %5025 = vmatpush1.msra.mxu0 0.0
  %5026 = vmatprep.subr.mxu0 0.0
  %5027 = vmatpush1.msra.mxu0 0.0
  %5028 = vmatprep.subr.mxu0 0.0
  %5029 = vmatpush1.msra.mxu0 0.0
  %5030 = vmatprep.subr.mxu0 0.0
  %5031 = vmatpush1.msra.mxu0 0.0
  %5032 = vmatprep.subr.mxu0 0.0
  %5033 = vmatpush1.msra.mxu0 0.0
  %5034 = vmatprep.subr.mxu0 0.0
  %5035 = vmatpush1.msra.mxu0 0.0
  %5036 = vmatprep.subr.mxu0 0.0
  %5037 = vmatpush1.msra.mxu0 0.0
  %5038 = vmatprep.subr.mxu0 0.0
  %5039 = vmatpush1.msra.mxu0 0.0
  %5040 = vmatprep.subr.mxu0 0.0
  %5041 = vmatpush1.msra.mxu0 0.0
  %5042 = vmatprep.subr.mxu0 0.0
  %5043 = vmatpush1.msra.mxu0 0.0
  %5044 = vmatprep.subr.mxu0 0.0
  %5045 = vmatpush1.msra.mxu0 0.0
  %5046 = vmatprep.subr.mxu0 0.0
  %5047 = vmatpush1.msra.mxu0 0.0
  %5048 = vmatprep.subr.mxu0 0.0
  %5049 = vmatpush1.msra.mxu0 0.0
  %5050 = vmatprep.subr.mxu0 0.0
  %5051 = vmatpush1.msra.mxu0 0.0
  %5052 = vmatprep.subr.mxu0 0.0
  %5053 = vmatpush1.msra.mxu0 0.0
  %5054 = vmatprep.subr.mxu0 0.0
  %5055 = vmatpush1.msra.mxu0 0.0
  %5056 = vmatprep.subr.mxu0 0.0
  %5057 = vmatpush1.msra.mxu0 0.0
  %5058 = vmatprep.subr.mxu0 0.0
  %5059 = vmatpush1.msra.mxu0 0.0
  %5060 = vmatprep.subr.mxu0 0.0
  %5061 = vmatpush1.msra.mxu0 0.0
  %5062 = vmatprep.subr.mxu0 0.0
  %5063 = vmatpush1.msra.mxu0 0.0
  %5064 = vmatprep.subr.mxu0 0.0
  %5065 = vmatpush1.msra.mxu0 0.0
  %5066 = vmatprep.subr.mxu0 0.0
  %5067 = vmatpush1.msra.mxu0 0.0
  %5068 = vmatprep.subr.mxu0 0.0
  %5069 = vmatpush1.msra.mxu0 0.0
  %5070 = vmatprep.mubr.f32.mxu0 0.0
  %5071 = vmatmul.mubr.f32.gmra.mrb[0].mxu0 %v4998
  %v5072 = vpop.f32.mrb[0].mxu0
  %v5073 = vadd.f32 0.0, %v5072
  %v5074 = vpop.f32.mrb[0].mxu0
  %5075 = vmatprep.mubr.f32.mxu0 0.0
  %5076 = vmatmul.mubr.f32.gmra.mrb[0].mxu0 %v5001
  %v5077 = vpop.f32.mrb[0].mxu0
  %v5078 = vadd.f32 0.0, %v5077
  %v5079 = vpop.f32.mrb[0].mxu0
  %5080 = vmatprep.mubr.f32.mxu0 0.0
  %5081 = vmatmul.mubr.f32.gmra.mrb[0].mxu0 %v5004
  %v5082 = vpop.f32.mrb[0].mxu0
  %v5083 = vadd.f32 0.0, %v5082
  %v5084 = vpop.f32.mrb[0].mxu0
  %5085 = vdwg.mxu0
  %v5087 = vsel %vm1512, %v4478, 0
  %v5090 = vsel %vm1512, %v4483, 0
  %v5093 = vsel %vm1512, %v4488, 0
  %5095 = vmatprep.subr.mxu0 0.0
  %5096 = vmatpush1.msra.mxu0 %v4492
  %5097 = vmatprep.subr.mxu0 0.0
  %5098 = vmatpush1.msra.mxu0 0.0
  %5099 = vmatprep.subr.mxu0 0.0
  %5100 = vmatpush1.msra.mxu0 0.0
  %5101 = vmatprep.subr.mxu0 0.0
  %5102 = vmatpush1.msra.mxu0 0.0
  %5103 = vmatprep.subr.mxu0 0.0
  %5104 = vmatpush1.msra.mxu0 0.0
  %5105 = vmatprep.subr.mxu0 0.0
  %5106 = vmatpush1.msra.mxu0 0.0
  %5107 = vmatprep.subr.mxu0 0.0
  %5108 = vmatpush1.msra.mxu0 0.0
  %5109 = vmatprep.subr.mxu0 0.0
  %5110 = vmatpush1.msra.mxu0 0.0
  %5111 = vmatprep.subr.mxu0 0.0
  %5112 = vmatpush1.msra.mxu0 0.0
  %5113 = vmatprep.subr.mxu0 0.0
  %5114 = vmatpush1.msra.mxu0 0.0
  %5115 = vmatprep.subr.mxu0 0.0
  %5116 = vmatpush1.msra.mxu0 0.0
  %5117 = vmatprep.subr.mxu0 0.0
  %5118 = vmatpush1.msra.mxu0 0.0
  %5119 = vmatprep.subr.mxu0 0.0
  %5120 = vmatpush1.msra.mxu0 0.0
  %5121 = vmatprep.subr.mxu0 0.0
  %5122 = vmatpush1.msra.mxu0 0.0
  %5123 = vmatprep.subr.mxu0 0.0
  %5124 = vmatpush1.msra.mxu0 0.0
  %5125 = vmatprep.subr.mxu0 0.0
  %5126 = vmatpush1.msra.mxu0 0.0
  %5127 = vmatprep.subr.mxu0 0.0
  %5128 = vmatpush1.msra.mxu0 0.0
  %5129 = vmatprep.subr.mxu0 0.0
  %5130 = vmatpush1.msra.mxu0 0.0
  %5131 = vmatprep.subr.mxu0 0.0
  %5132 = vmatpush1.msra.mxu0 0.0
  %5133 = vmatprep.subr.mxu0 0.0
  %5134 = vmatpush1.msra.mxu0 0.0
  %5135 = vmatprep.subr.mxu0 0.0
  %5136 = vmatpush1.msra.mxu0 0.0
  %5137 = vmatprep.subr.mxu0 0.0
  %5138 = vmatpush1.msra.mxu0 0.0
  %5139 = vmatprep.subr.mxu0 0.0
  %5140 = vmatpush1.msra.mxu0 0.0
  %5141 = vmatprep.subr.mxu0 0.0
  %5142 = vmatpush1.msra.mxu0 0.0
  %5143 = vmatprep.subr.mxu0 0.0
  %5144 = vmatpush1.msra.mxu0 0.0
  %5145 = vmatprep.subr.mxu0 0.0
  %5146 = vmatpush1.msra.mxu0 0.0
  %5147 = vmatprep.subr.mxu0 0.0
  %5148 = vmatpush1.msra.mxu0 0.0
  %5149 = vmatprep.subr.mxu0 0.0
  %5150 = vmatpush1.msra.mxu0 0.0
  %5151 = vmatprep.subr.mxu0 0.0
  %5152 = vmatpush1.msra.mxu0 0.0
  %5153 = vmatprep.subr.mxu0 0.0
  %5154 = vmatpush1.msra.mxu0 0.0
  %5155 = vmatprep.subr.mxu0 0.0
  %5156 = vmatpush1.msra.mxu0 0.0
  %5157 = vmatprep.subr.mxu0 0.0
  %5158 = vmatpush1.msra.mxu0 0.0
  %5159 = vmatprep.mubr.f32.mxu0 0.0
  %5160 = vmatmul.mubr.f32.gmra.mrb[0].mxu0 %v5087
  %v5161 = vpop.f32.mrb[0].mxu0
  %v5162 = vadd.f32 %v5073, %v5161
  %v5163 = vpop.f32.mrb[0].mxu0
  %5164 = vmatprep.mubr.f32.mxu0 0.0
  %5165 = vmatmul.mubr.f32.gmra.mrb[0].mxu0 %v5090
  %v5166 = vpop.f32.mrb[0].mxu0
  %v5167 = vadd.f32 %v5078, %v5166
  %v5168 = vpop.f32.mrb[0].mxu0
  %5169 = vmatprep.mubr.f32.mxu0 0.0
  %5170 = vmatmul.mubr.f32.gmra.mrb[0].mxu0 %v5093
  %v5171 = vpop.f32.mrb[0].mxu0
  %v5172 = vadd.f32 %v5083, %v5171
  %v5173 = vpop.f32.mrb[0].mxu0
  %5174 = vdwg.mxu0
  %s5175 = scalar_lea.vmem %s6, 448
  %v5176 = vld [vmem:[%s5175] sm:$0xff]
  %v5177 = vld [vmem:[%s5175 + $0x8] sm:$0xff]
  %v5178 = vld [vmem:[%s5175 + $0x10] sm:$0xff]
  %v5179 = vld [vmem:[%s5175 + $0x18] sm:$0xff]
  %s5180 = scalar_lea.vmem %s7, 14
  %v5181 = vld [vmem:[%s5180] sm:$0x1]
  %v5183 = vlaneseq
  %v5184 = vshrl.u32 %v5183, 7
  %v5185 = vsub.s32 0, %v5184
  %v5186 = vrot.slane %v5181, %v5185
  %5188 = vmatprep.subr.mxu0 0.0
  %5189 = vmatpush1.msra.mxu0 %v5176
  %5190 = vmatprep.subr.mxu0 0.0
  %5191 = vmatpush1.msra.mxu0 %v5177
  %5192 = vmatprep.subr.mxu0 0.0
  %5193 = vmatpush1.msra.mxu0 %v5178
  %5194 = vmatprep.subr.mxu0 0.0
  %5195 = vmatpush1.msra.mxu0 %v5179
  %5196 = vmatprep.subr.mxu0 0.0
  %5197 = vmatpush1.msra.mxu0 0.0
  %5198 = vmatprep.subr.mxu0 0.0
  %5199 = vmatpush1.msra.mxu0 0.0
  %5200 = vmatprep.subr.mxu0 0.0
  %5201 = vmatpush1.msra.mxu0 0.0
  %5202 = vmatprep.subr.mxu0 0.0
  %5203 = vmatpush1.msra.mxu0 0.0
  %5204 = vmatprep.subr.mxu0 0.0
  %5205 = vmatpush1.msra.mxu0 0.0
  %5206 = vmatprep.subr.mxu0 0.0
  %5207 = vmatpush1.msra.mxu0 0.0
  %5208 = vmatprep.subr.mxu0 0.0
  %5209 = vmatpush1.msra.mxu0 0.0
  %5210 = vmatprep.subr.mxu0 0.0
  %5211 = vmatpush1.msra.mxu0 0.0
  %5212 = vmatprep.subr.mxu0 0.0
  %5213 = vmatpush1.msra.mxu0 0.0
  %5214 = vmatprep.subr.mxu0 0.0
  %5215 = vmatpush1.msra.mxu0 0.0
  %5216 = vmatprep.subr.mxu0 0.0
  %5217 = vmatpush1.msra.mxu0 0.0
  %5218 = vmatprep.subr.mxu0 0.0
  %5219 = vmatpush1.msra.mxu0 0.0
  %5220 = vmatprep.subr.mxu0 0.0
  %5221 = vmatpush1.msra.mxu0 0.0
  %5222 = vmatprep.subr.mxu0 0.0
  %5223 = vmatpush1.msra.mxu0 0.0
  %5224 = vmatprep.subr.mxu0 0.0
  %5225 = vmatpush1.msra.mxu0 0.0
  %5226 = vmatprep.subr.mxu0 0.0
  %5227 = vmatpush1.msra.mxu0 0.0
  %5228 = vmatprep.subr.mxu0 0.0
  %5229 = vmatpush1.msra.mxu0 0.0
  %5230 = vmatprep.subr.mxu0 0.0
  %5231 = vmatpush1.msra.mxu0 0.0
  %5232 = vmatprep.subr.mxu0 0.0
  %5233 = vmatpush1.msra.mxu0 0.0
  %5234 = vmatprep.subr.mxu0 0.0
  %5235 = vmatpush1.msra.mxu0 0.0
  %5236 = vmatprep.subr.mxu0 0.0
  %5237 = vmatpush1.msra.mxu0 0.0
  %5238 = vmatprep.subr.mxu0 0.0
  %5239 = vmatpush1.msra.mxu0 0.0
  %5240 = vmatprep.subr.mxu0 0.0
  %5241 = vmatpush1.msra.mxu0 0.0
  %5242 = vmatprep.subr.mxu0 0.0
  %5243 = vmatpush1.msra.mxu0 0.0
  %5244 = vmatprep.subr.mxu0 0.0
  %5245 = vmatpush1.msra.mxu0 0.0
  %5246 = vmatprep.subr.mxu0 0.0
  %5247 = vmatpush1.msra.mxu0 0.0
  %5248 = vmatprep.subr.mxu0 0.0
  %5249 = vmatpush1.msra.mxu0 0.0
  %5250 = vmatprep.subr.mxu0 0.0
  %5251 = vmatpush1.msra.mxu0 0.0
  %5252 = vmatprep.mubr.f32.mxu0 0.0
  %5253 = vmatmul.mubr.f32.gmra.mrb[0].mxu0 %v3994
  %v5254 = vpop.f32.mrb[0].mxu0
  %v5255 = vadd.f32 %v5186, %v5254
  %v5256 = vpop.f32.mrb[0].mxu0
  %5257 = vmatprep.mubr.f32.mxu0 0.0
  %5258 = vmatmul.mubr.f32.gmra.mrb[0].mxu0 %v3997
  %v5259 = vpop.f32.mrb[0].mxu0
  %v5260 = vadd.f32 %v5186, %v5259
  %v5261 = vpop.f32.mrb[0].mxu0
  %5262 = vmatprep.mubr.f32.mxu0 0.0
  %5263 = vmatmul.mubr.f32.gmra.mrb[0].mxu0 %v4000
  %v5264 = vpop.f32.mrb[0].mxu0
  %v5265 = vadd.f32 %v5186, %v5264
  %v5266 = vpop.f32.mrb[0].mxu0
  %5267 = vdwg.mxu0
  %s5268 = scalar_lea.vmem %s6, 576
  %v5269 = vld [vmem:[%s5268] sm:$0xff]
  %v5270 = vld [vmem:[%s5268 + $0x8] sm:$0xff]
  %v5271 = vld [vmem:[%s5268 + $0x10] sm:$0xff]
  %v5272 = vld [vmem:[%s5268 + $0x18] sm:$0xff]
  %s5273 = scalar_lea.vmem %s7, 18
  %v5274 = vld [vmem:[%s5273] sm:$0x1]
  %v5276 = vlaneseq
  %v5277 = vshrl.u32 %v5276, 7
  %v5278 = vsub.s32 0, %v5277
  %v5279 = vrot.slane %v5274, %v5278
  %5281 = vmatprep.subr.mxu0 0.0
  %5282 = vmatpush1.msra.mxu0 %v5269
  %5283 = vmatprep.subr.mxu0 0.0
  %5284 = vmatpush1.msra.mxu0 %v5270
  %5285 = vmatprep.subr.mxu0 0.0
  %5286 = vmatpush1.msra.mxu0 %v5271
  %5287 = vmatprep.subr.mxu0 0.0
  %5288 = vmatpush1.msra.mxu0 %v5272
  %5289 = vmatprep.subr.mxu0 0.0
  %5290 = vmatpush1.msra.mxu0 0.0
  %5291 = vmatprep.subr.mxu0 0.0
  %5292 = vmatpush1.msra.mxu0 0.0
  %5293 = vmatprep.subr.mxu0 0.0
  %5294 = vmatpush1.msra.mxu0 0.0
  %5295 = vmatprep.subr.mxu0 0.0
  %5296 = vmatpush1.msra.mxu0 0.0
  %5297 = vmatprep.subr.mxu0 0.0
  %5298 = vmatpush1.msra.mxu0 0.0
  %5299 = vmatprep.subr.mxu0 0.0
  %5300 = vmatpush1.msra.mxu0 0.0
  %5301 = vmatprep.subr.mxu0 0.0
  %5302 = vmatpush1.msra.mxu0 0.0
  %5303 = vmatprep.subr.mxu0 0.0
  %5304 = vmatpush1.msra.mxu0 0.0
  %5305 = vmatprep.subr.mxu0 0.0
  %5306 = vmatpush1.msra.mxu0 0.0
  %5307 = vmatprep.subr.mxu0 0.0
  %5308 = vmatpush1.msra.mxu0 0.0
  %5309 = vmatprep.subr.mxu0 0.0
  %5310 = vmatpush1.msra.mxu0 0.0
  %5311 = vmatprep.subr.mxu0 0.0
  %5312 = vmatpush1.msra.mxu0 0.0
  %5313 = vmatprep.subr.mxu0 0.0
  %5314 = vmatpush1.msra.mxu0 0.0
  %5315 = vmatprep.subr.mxu0 0.0
  %5316 = vmatpush1.msra.mxu0 0.0
  %5317 = vmatprep.subr.mxu0 0.0
  %5318 = vmatpush1.msra.mxu0 0.0
  %5319 = vmatprep.subr.mxu0 0.0
  %5320 = vmatpush1.msra.mxu0 0.0
  %5321 = vmatprep.subr.mxu0 0.0
  %5322 = vmatpush1.msra.mxu0 0.0
  %5323 = vmatprep.subr.mxu0 0.0
  %5324 = vmatpush1.msra.mxu0 0.0
  %5325 = vmatprep.subr.mxu0 0.0
  %5326 = vmatpush1.msra.mxu0 0.0
  %5327 = vmatprep.subr.mxu0 0.0
  %5328 = vmatpush1.msra.mxu0 0.0
  %5329 = vmatprep.subr.mxu0 0.0
  %5330 = vmatpush1.msra.mxu0 0.0
  %5331 = vmatprep.subr.mxu0 0.0
  %5332 = vmatpush1.msra.mxu0 0.0
  %5333 = vmatprep.subr.mxu0 0.0
  %5334 = vmatpush1.msra.mxu0 0.0
  %5335 = vmatprep.subr.mxu0 0.0
  %5336 = vmatpush1.msra.mxu0 0.0
  %5337 = vmatprep.subr.mxu0 0.0
  %5338 = vmatpush1.msra.mxu0 0.0
  %5339 = vmatprep.subr.mxu0 0.0
  %5340 = vmatpush1.msra.mxu0 0.0
  %5341 = vmatprep.subr.mxu0 0.0
  %5342 = vmatpush1.msra.mxu0 0.0
  %5343 = vmatprep.subr.mxu0 0.0
  %5344 = vmatpush1.msra.mxu0 0.0
  %5345 = vmatprep.mubr.f32.mxu0 0.0
  %5346 = vmatmul.mubr.f32.gmra.mrb[0].mxu0 %v3994
  %v5347 = vpop.f32.mrb[0].mxu0
  %v5348 = vadd.f32 %v5279, %v5347
  %v5349 = vpop.f32.mrb[0].mxu0
  %5350 = vmatprep.mubr.f32.mxu0 0.0
  %5351 = vmatmul.mubr.f32.gmra.mrb[0].mxu0 %v3997
  %v5352 = vpop.f32.mrb[0].mxu0
  %v5353 = vadd.f32 %v5279, %v5352
  %v5354 = vpop.f32.mrb[0].mxu0
  %5355 = vmatprep.mubr.f32.mxu0 0.0
  %5356 = vmatmul.mubr.f32.gmra.mrb[0].mxu0 %v4000
  %v5357 = vpop.f32.mrb[0].mxu0
  %v5358 = vadd.f32 %v5279, %v5357
  %v5359 = vpop.f32.mrb[0].mxu0
  %5360 = vdwg.mxu0
  %s5361 = scalar_lea.vmem %s6, 704
  %v5362 = vld [vmem:[%s5361] sm:$0xff]
  %v5363 = vld [vmem:[%s5361 + $0x8] sm:$0xff]
  %v5364 = vld [vmem:[%s5361 + $0x10] sm:$0xff]
  %v5365 = vld [vmem:[%s5361 + $0x18] sm:$0xff]
  %s5366 = scalar_lea.vmem %s7, 22
  %v5367 = vld [vmem:[%s5366] sm:$0x1]
  %v5369 = vlaneseq
  %v5370 = vshrl.u32 %v5369, 7
  %v5371 = vsub.s32 0, %v5370
  %v5372 = vrot.slane %v5367, %v5371
  %5374 = vmatprep.subr.mxu0 0.0
  %5375 = vmatpush1.msra.mxu0 %v5362
  %5376 = vmatprep.subr.mxu0 0.0
  %5377 = vmatpush1.msra.mxu0 %v5363
  %5378 = vmatprep.subr.mxu0 0.0
  %5379 = vmatpush1.msra.mxu0 %v5364
  %5380 = vmatprep.subr.mxu0 0.0
  %5381 = vmatpush1.msra.mxu0 %v5365
  %5382 = vmatprep.subr.mxu0 0.0
  %5383 = vmatpush1.msra.mxu0 0.0
  %5384 = vmatprep.subr.mxu0 0.0
  %5385 = vmatpush1.msra.mxu0 0.0
  %5386 = vmatprep.subr.mxu0 0.0
  %5387 = vmatpush1.msra.mxu0 0.0
  %5388 = vmatprep.subr.mxu0 0.0
  %5389 = vmatpush1.msra.mxu0 0.0
  %5390 = vmatprep.subr.mxu0 0.0
  %5391 = vmatpush1.msra.mxu0 0.0
  %5392 = vmatprep.subr.mxu0 0.0
  %5393 = vmatpush1.msra.mxu0 0.0
  %5394 = vmatprep.subr.mxu0 0.0
  %5395 = vmatpush1.msra.mxu0 0.0
  %5396 = vmatprep.subr.mxu0 0.0
  %5397 = vmatpush1.msra.mxu0 0.0
  %5398 = vmatprep.subr.mxu0 0.0
  %5399 = vmatpush1.msra.mxu0 0.0
  %5400 = vmatprep.subr.mxu0 0.0
  %5401 = vmatpush1.msra.mxu0 0.0
  %5402 = vmatprep.subr.mxu0 0.0
  %5403 = vmatpush1.msra.mxu0 0.0
  %5404 = vmatprep.subr.mxu0 0.0
  %5405 = vmatpush1.msra.mxu0 0.0
  %5406 = vmatprep.subr.mxu0 0.0
  %5407 = vmatpush1.msra.mxu0 0.0
  %5408 = vmatprep.subr.mxu0 0.0
  %5409 = vmatpush1.msra.mxu0 0.0
  %5410 = vmatprep.subr.mxu0 0.0
  %5411 = vmatpush1.msra.mxu0 0.0
  %5412 = vmatprep.subr.mxu0 0.0
  %5413 = vmatpush1.msra.mxu0 0.0
  %5414 = vmatprep.subr.mxu0 0.0
  %5415 = vmatpush1.msra.mxu0 0.0
  %5416 = vmatprep.subr.mxu0 0.0
  %5417 = vmatpush1.msra.mxu0 0.0
  %5418 = vmatprep.subr.mxu0 0.0
  %5419 = vmatpush1.msra.mxu0 0.0
  %5420 = vmatprep.subr.mxu0 0.0
  %5421 = vmatpush1.msra.mxu0 0.0
  %5422 = vmatprep.subr.mxu0 0.0
  %5423 = vmatpush1.msra.mxu0 0.0
  %5424 = vmatprep.subr.mxu0 0.0
  %5425 = vmatpush1.msra.mxu0 0.0
  %5426 = vmatprep.subr.mxu0 0.0
  %5427 = vmatpush1.msra.mxu0 0.0
  %5428 = vmatprep.subr.mxu0 0.0
  %5429 = vmatpush1.msra.mxu0 0.0
  %5430 = vmatprep.subr.mxu0 0.0
  %5431 = vmatpush1.msra.mxu0 0.0
  %5432 = vmatprep.subr.mxu0 0.0
  %5433 = vmatpush1.msra.mxu0 0.0
  %5434 = vmatprep.subr.mxu0 0.0
  %5435 = vmatpush1.msra.mxu0 0.0
  %5436 = vmatprep.subr.mxu0 0.0
  %5437 = vmatpush1.msra.mxu0 0.0
  %5438 = vmatprep.mubr.f32.mxu0 0.0
  %5439 = vmatmul.mubr.f32.gmra.mrb[0].mxu0 %v3994
  %v5440 = vpop.f32.mrb[0].mxu0
  %v5441 = vadd.f32 %v5372, %v5440
  %v5442 = vpop.f32.mrb[0].mxu0
  %5443 = vmatprep.mubr.f32.mxu0 0.0
  %5444 = vmatmul.mubr.f32.gmra.mrb[0].mxu0 %v3997
  %v5445 = vpop.f32.mrb[0].mxu0
  %v5446 = vadd.f32 %v5372, %v5445
  %v5447 = vpop.f32.mrb[0].mxu0
  %5448 = vmatprep.mubr.f32.mxu0 0.0
  %5449 = vmatmul.mubr.f32.gmra.mrb[0].mxu0 %v4000
  %v5450 = vpop.f32.mrb[0].mxu0
  %v5451 = vadd.f32 %v5372, %v5450
  %v5452 = vpop.f32.mrb[0].mxu0
  %5453 = vdwg.mxu0
  %v5455 = vsel %vm1512, %v5255, 0
  %v5458 = vsel %vm1512, %v5260, 0
  %v5461 = vsel %vm1512, %v5265, 0
  %v5464 = vsel %vm1512, %v5348, 0
  %v5467 = vsel %vm1512, %v5353, 0
  %v5470 = vsel %vm1512, %v5358, 0
  %5472 = vmatprep.subr.mxu0 0.0
  %5473 = vmatpush1.xpose.msra.mxu0 %v5464
  %5474 = vmatprep.subr.mxu0 0.0
  %5475 = vmatpush1.xpose.msra.mxu0 %v5467
  %5476 = vmatprep.subr.mxu0 0.0
  %5477 = vmatpush1.xpose.msra.mxu0 %v5470
  %5478 = vmatprep.subr.mxu0 0.0
  %5479 = vmatpush1.xpose.msra.mxu0 0.0
  %5480 = vmatprep.subr.mxu0 0.0
  %5481 = vmatpush1.xpose.msra.mxu0 0.0
  %5482 = vmatprep.subr.mxu0 0.0
  %5483 = vmatpush1.xpose.msra.mxu0 0.0
  %5484 = vmatprep.subr.mxu0 0.0
  %5485 = vmatpush1.xpose.msra.mxu0 0.0
  %5486 = vmatprep.subr.mxu0 0.0
  %5487 = vmatpush1.xpose.msra.mxu0 0.0
  %5488 = vmatprep.subr.mxu0 0.0
  %5489 = vmatpush1.xpose.msra.mxu0 0.0
  %5490 = vmatprep.subr.mxu0 0.0
  %5491 = vmatpush1.xpose.msra.mxu0 0.0
  %5492 = vmatprep.subr.mxu0 0.0
  %5493 = vmatpush1.xpose.msra.mxu0 0.0
  %5494 = vmatprep.subr.mxu0 0.0
  %5495 = vmatpush1.xpose.msra.mxu0 0.0
  %5496 = vmatprep.subr.mxu0 0.0
  %5497 = vmatpush1.xpose.msra.mxu0 0.0
  %5498 = vmatprep.subr.mxu0 0.0
  %5499 = vmatpush1.xpose.msra.mxu0 0.0
  %5500 = vmatprep.subr.mxu0 0.0
  %5501 = vmatpush1.xpose.msra.mxu0 0.0
  %5502 = vmatprep.subr.mxu0 0.0
  %5503 = vmatpush1.xpose.msra.mxu0 0.0
  %5504 = vmatprep.subr.mxu0 0.0
  %5505 = vmatpush1.xpose.msra.mxu0 0.0
  %5506 = vmatprep.subr.mxu0 0.0
  %5507 = vmatpush1.xpose.msra.mxu0 0.0
  %5508 = vmatprep.subr.mxu0 0.0
  %5509 = vmatpush1.xpose.msra.mxu0 0.0
  %5510 = vmatprep.subr.mxu0 0.0
  %5511 = vmatpush1.xpose.msra.mxu0 0.0
  %5512 = vmatprep.subr.mxu0 0.0
  %5513 = vmatpush1.xpose.msra.mxu0 0.0
  %5514 = vmatprep.subr.mxu0 0.0
  %5515 = vmatpush1.xpose.msra.mxu0 0.0
  %5516 = vmatprep.subr.mxu0 0.0
  %5517 = vmatpush1.xpose.msra.mxu0 0.0
  %5518 = vmatprep.subr.mxu0 0.0
  %5519 = vmatpush1.xpose.msra.mxu0 0.0
  %5520 = vmatprep.subr.mxu0 0.0
  %5521 = vmatpush1.xpose.msra.mxu0 0.0
  %5522 = vmatprep.subr.mxu0 0.0
  %5523 = vmatpush1.xpose.msra.mxu0 0.0
  %5524 = vmatprep.subr.mxu0 0.0
  %5525 = vmatpush1.xpose.msra.mxu0 0.0
  %5526 = vmatprep.subr.mxu0 0.0
  %5527 = vmatpush1.xpose.msra.mxu0 0.0
  %5528 = vmatprep.subr.mxu0 0.0
  %5529 = vmatpush1.xpose.msra.mxu0 0.0
  %5530 = vmatprep.subr.mxu0 0.0
  %5531 = vmatpush1.xpose.msra.mxu0 0.0
  %5532 = vmatprep.subr.mxu0 0.0
  %5533 = vmatpush1.xpose.msra.mxu0 0.0
  %5534 = vmatprep.subr.mxu0 0.0
  %5535 = vmatpush1.xpose.msra.mxu0 0.0
  %5536 = vmatprep.mubr.f32.mxu0 0.0
  %5537 = vmatmul.mubr.f32.gmra.mrb[0].mxu0 %v5455
  %v5538 = vpop.f32.mrb[0].mxu0
  %v5539 = vadd.f32 %v1161, %v5538
  %v5540 = vpop.f32.mrb[0].mxu0
  %5541 = vmatprep.mubr.f32.mxu0 0.0
  %5542 = vmatmul.mubr.f32.gmra.mrb[0].mxu0 %v5458
  %v5543 = vpop.f32.mrb[0].mxu0
  %v5544 = vadd.f32 %v1162, %v5543
  %v5545 = vpop.f32.mrb[0].mxu0
  %5546 = vmatprep.mubr.f32.mxu0 0.0
  %5547 = vmatmul.mubr.f32.gmra.mrb[0].mxu0 %v5461
  %v5548 = vpop.f32.mrb[0].mxu0
  %v5549 = vadd.f32 %v1163, %v5548
  %v5550 = vpop.f32.mrb[0].mxu0
  %5551 = vdwg.mxu0
  %v5552 = vsel %vm1611, %v5539, -inf
  %5553 = vmax.xlane.f32.xlu0 %v5552
  %v5554 = vpop.xlane.xlu0 %5553
  %v5555 = vsel %vm1611, %v5544, -inf
  %5556 = vmax.xlane.f32.xlu0 %v5555
  %v5557 = vpop.xlane.xlu0 %5556
  %v5558 = vsel %vm1618, %v5549, -inf
  %5559 = vmax.xlane.f32.xlu0 %v5558
  %v5560 = vpop.xlane.xlu0 %5559
  %v5561 = vsub.f32 %v5539, %v5554
  %v5562 = vsub.f32 %v5544, %v5557
  %v5563 = vsub.f32 %v5549, %v5560
  %v5564 = vmul.f32 %v5561, 1.442695
  %v5565 = vpow.pop %v5564
  %v5566 = vmul.f32 %v5562, 1.442695
  %v5567 = vpow.pop %v5566
  %v5568 = vmul.f32 %v5563, 1.442695
  %v5569 = vpow.pop %v5568
  %v5570 = vsel %vm1611, %v5565, 0.0
  %5571 = vadd.xlane.f32.xlu0 %v5570
  %v5572 = vpop.xlane.xlu0 %5571
  %v5573 = vsel %vm1611, %v5567, 0.0
  %5574 = vadd.xlane.f32.xlu0 %v5573
  %v5575 = vpop.xlane.xlu0 %5574
  %v5576 = vsel %vm1618, %v5569, 0.0
  %5577 = vadd.xlane.f32.xlu0 %v5576
  %v5578 = vpop.xlane.xlu0 %5577
  %v5579 = vrcp.pop %v5572
  %v5580 = vrcp.pop %v5575
  %v5581 = vrcp.pop %v5578
  %v5582 = vmul.f32 %v5565, %v5579
  %v5583 = vmul.f32 %v5567, %v5580
  %v5584 = vmul.f32 %v5569, %v5581
  %v5586 = vsel %vm1611, %v5582, 0
  %v5589 = vsel %vm1611, %v5583, 0
  %v5592 = vsel %vm1611, %v5584, 0
  %v5595 = vsel %vm1655, %v5451, 0
  %5597 = vmatprep.subr.mxu0 0.0
  %5598 = vmatpush1.msra.mxu0 %v5441
  %5599 = vmatprep.subr.mxu0 0.0
  %5600 = vmatpush1.msra.mxu0 %v5446
  %5601 = vmatprep.subr.mxu0 0.0
  %5602 = vmatpush1.msra.mxu0 %v5595
  %5603 = vmatprep.subr.mxu0 0.0
  %5604 = vmatpush1.msra.mxu0 0.0
  %5605 = vmatprep.subr.mxu0 0.0
  %5606 = vmatpush1.msra.mxu0 0.0
  %5607 = vmatprep.subr.mxu0 0.0
  %5608 = vmatpush1.msra.mxu0 0.0
  %5609 = vmatprep.subr.mxu0 0.0
  %5610 = vmatpush1.msra.mxu0 0.0
  %5611 = vmatprep.subr.mxu0 0.0
  %5612 = vmatpush1.msra.mxu0 0.0
  %5613 = vmatprep.subr.mxu0 0.0
  %5614 = vmatpush1.msra.mxu0 0.0
  %5615 = vmatprep.subr.mxu0 0.0
  %5616 = vmatpush1.msra.mxu0 0.0
  %5617 = vmatprep.subr.mxu0 0.0
  %5618 = vmatpush1.msra.mxu0 0.0
  %5619 = vmatprep.subr.mxu0 0.0
  %5620 = vmatpush1.msra.mxu0 0.0
  %5621 = vmatprep.subr.mxu0 0.0
  %5622 = vmatpush1.msra.mxu0 0.0
  %5623 = vmatprep.subr.mxu0 0.0
  %5624 = vmatpush1.msra.mxu0 0.0
  %5625 = vmatprep.subr.mxu0 0.0
  %5626 = vmatpush1.msra.mxu0 0.0
  %5627 = vmatprep.subr.mxu0 0.0
  %5628 = vmatpush1.msra.mxu0 0.0
  %5629 = vmatprep.subr.mxu0 0.0
  %5630 = vmatpush1.msra.mxu0 0.0
  %5631 = vmatprep.subr.mxu0 0.0
  %5632 = vmatpush1.msra.mxu0 0.0
  %5633 = vmatprep.subr.mxu0 0.0
  %5634 = vmatpush1.msra.mxu0 0.0
  %5635 = vmatprep.subr.mxu0 0.0
  %5636 = vmatpush1.msra.mxu0 0.0
  %5637 = vmatprep.subr.mxu0 0.0
  %5638 = vmatpush1.msra.mxu0 0.0
  %5639 = vmatprep.subr.mxu0 0.0
  %5640 = vmatpush1.msra.mxu0 0.0
  %5641 = vmatprep.subr.mxu0 0.0
  %5642 = vmatpush1.msra.mxu0 0.0
  %5643 = vmatprep.subr.mxu0 0.0
  %5644 = vmatpush1.msra.mxu0 0.0
  %5645 = vmatprep.subr.mxu0 0.0
  %5646 = vmatpush1.msra.mxu0 0.0
  %5647 = vmatprep.subr.mxu0 0.0
  %5648 = vmatpush1.msra.mxu0 0.0
  %5649 = vmatprep.subr.mxu0 0.0
  %5650 = vmatpush1.msra.mxu0 0.0
  %5651 = vmatprep.subr.mxu0 0.0
  %5652 = vmatpush1.msra.mxu0 0.0
  %5653 = vmatprep.subr.mxu0 0.0
  %5654 = vmatpush1.msra.mxu0 0.0
  %5655 = vmatprep.subr.mxu0 0.0
  %5656 = vmatpush1.msra.mxu0 0.0
  %5657 = vmatprep.subr.mxu0 0.0
  %5658 = vmatpush1.msra.mxu0 0.0
  %5659 = vmatprep.subr.mxu0 0.0
  %5660 = vmatpush1.msra.mxu0 0.0
  %5661 = vmatprep.mubr.f32.mxu0 0.0
  %5662 = vmatmul.mubr.f32.gmra.mrb[0].mxu0 %v5586
  %v5663 = vpop.f32.mrb[0].mxu0
  %v5664 = vadd.f32 0.0, %v5663
  %v5665 = vpop.f32.mrb[0].mxu0
  %5666 = vmatprep.mubr.f32.mxu0 0.0
  %5667 = vmatmul.mubr.f32.gmra.mrb[0].mxu0 %v5589
  %v5668 = vpop.f32.mrb[0].mxu0
  %v5669 = vadd.f32 0.0, %v5668
  %v5670 = vpop.f32.mrb[0].mxu0
  %5671 = vmatprep.mubr.f32.mxu0 0.0
  %5672 = vmatmul.mubr.f32.gmra.mrb[0].mxu0 %v5592
  %v5673 = vpop.f32.mrb[0].mxu0
  %v5674 = vadd.f32 0.0, %v5673
  %v5675 = vpop.f32.mrb[0].mxu0
  %5676 = vdwg.mxu0
  %s5677 = scalar_lea.vmem %s8, 48
  %v5678 = vld [vmem:[%s5677] sm:$0xff]
  %v5680 = vsel %vm1512, %v5664, 0
  %v5683 = vsel %vm1512, %v5669, 0
  %v5686 = vsel %vm1512, %v5674, 0
  %5688 = vmatprep.subr.mxu0 0.0
  %5689 = vmatpush1.msra.mxu0 %v5678
  %5690 = vmatprep.subr.mxu0 0.0
  %5691 = vmatpush1.msra.mxu0 0.0
  %5692 = vmatprep.subr.mxu0 0.0
  %5693 = vmatpush1.msra.mxu0 0.0
  %5694 = vmatprep.subr.mxu0 0.0
  %5695 = vmatpush1.msra.mxu0 0.0
  %5696 = vmatprep.subr.mxu0 0.0
  %5697 = vmatpush1.msra.mxu0 0.0
  %5698 = vmatprep.subr.mxu0 0.0
  %5699 = vmatpush1.msra.mxu0 0.0
  %5700 = vmatprep.subr.mxu0 0.0
  %5701 = vmatpush1.msra.mxu0 0.0
  %5702 = vmatprep.subr.mxu0 0.0
  %5703 = vmatpush1.msra.mxu0 0.0
  %5704 = vmatprep.subr.mxu0 0.0
  %5705 = vmatpush1.msra.mxu0 0.0
  %5706 = vmatprep.subr.mxu0 0.0
  %5707 = vmatpush1.msra.mxu0 0.0
  %5708 = vmatprep.subr.mxu0 0.0
  %5709 = vmatpush1.msra.mxu0 0.0
  %5710 = vmatprep.subr.mxu0 0.0
  %5711 = vmatpush1.msra.mxu0 0.0
  %5712 = vmatprep.subr.mxu0 0.0
  %5713 = vmatpush1.msra.mxu0 0.0
  %5714 = vmatprep.subr.mxu0 0.0
  %5715 = vmatpush1.msra.mxu0 0.0
  %5716 = vmatprep.subr.mxu0 0.0
  %5717 = vmatpush1.msra.mxu0 0.0
  %5718 = vmatprep.subr.mxu0 0.0
  %5719 = vmatpush1.msra.mxu0 0.0
  %5720 = vmatprep.subr.mxu0 0.0
  %5721 = vmatpush1.msra.mxu0 0.0
  %5722 = vmatprep.subr.mxu0 0.0
  %5723 = vmatpush1.msra.mxu0 0.0
  %5724 = vmatprep.subr.mxu0 0.0
  %5725 = vmatpush1.msra.mxu0 0.0
  %5726 = vmatprep.subr.mxu0 0.0
  %5727 = vmatpush1.msra.mxu0 0.0
  %5728 = vmatprep.subr.mxu0 0.0
  %5729 = vmatpush1.msra.mxu0 0.0
  %5730 = vmatprep.subr.mxu0 0.0
  %5731 = vmatpush1.msra.mxu0 0.0
  %5732 = vmatprep.subr.mxu0 0.0
  %5733 = vmatpush1.msra.mxu0 0.0
  %5734 = vmatprep.subr.mxu0 0.0
  %5735 = vmatpush1.msra.mxu0 0.0
  %5736 = vmatprep.subr.mxu0 0.0
  %5737 = vmatpush1.msra.mxu0 0.0
  %5738 = vmatprep.subr.mxu0 0.0
  %5739 = vmatpush1.msra.mxu0 0.0
  %5740 = vmatprep.subr.mxu0 0.0
  %5741 = vmatpush1.msra.mxu0 0.0
  %5742 = vmatprep.subr.mxu0 0.0
  %5743 = vmatpush1.msra.mxu0 0.0
  %5744 = vmatprep.subr.mxu0 0.0
  %5745 = vmatpush1.msra.mxu0 0.0
  %5746 = vmatprep.subr.mxu0 0.0
  %5747 = vmatpush1.msra.mxu0 0.0
  %5748 = vmatprep.subr.mxu0 0.0
  %5749 = vmatpush1.msra.mxu0 0.0
  %5750 = vmatprep.subr.mxu0 0.0
  %5751 = vmatpush1.msra.mxu0 0.0
  %5752 = vmatprep.mubr.f32.mxu0 0.0
  %5753 = vmatmul.mubr.f32.gmra.mrb[0].mxu0 %v5680
  %v5754 = vpop.f32.mrb[0].mxu0
  %v5755 = vadd.f32 0.0, %v5754
  %v5756 = vpop.f32.mrb[0].mxu0
  %5757 = vmatprep.mubr.f32.mxu0 0.0
  %5758 = vmatmul.mubr.f32.gmra.mrb[0].mxu0 %v5683
  %v5759 = vpop.f32.mrb[0].mxu0
  %v5760 = vadd.f32 0.0, %v5759
  %v5761 = vpop.f32.mrb[0].mxu0
  %5762 = vmatprep.mubr.f32.mxu0 0.0
  %5763 = vmatmul.mubr.f32.gmra.mrb[0].mxu0 %v5686
  %v5764 = vpop.f32.mrb[0].mxu0
  %v5765 = vadd.f32 0.0, %v5764
  %v5766 = vpop.f32.mrb[0].mxu0
  %5767 = vdwg.mxu0
  %v5768 = vadd.f32 %v5162, %v5755
  %v5769 = vadd.f32 %v5167, %v5760
  %v5770 = vadd.f32 %v5172, %v5765
  %s5771 = scalar_lea.vmem %s6, 480
  %v5772 = vld [vmem:[%s5771] sm:$0xff]
  %v5773 = vld [vmem:[%s5771 + $0x8] sm:$0xff]
  %v5774 = vld [vmem:[%s5771 + $0x10] sm:$0xff]
  %v5775 = vld [vmem:[%s5771 + $0x18] sm:$0xff]
  %s5776 = scalar_lea.vmem %s7, 15
  %v5777 = vld [vmem:[%s5776] sm:$0x1]
  %v5779 = vlaneseq
  %v5780 = vshrl.u32 %v5779, 7
  %v5781 = vsub.s32 0, %v5780
  %v5782 = vrot.slane %v5777, %v5781
  %5784 = vmatprep.subr.mxu0 0.0
  %5785 = vmatpush1.msra.mxu0 %v5772
  %5786 = vmatprep.subr.mxu0 0.0
  %5787 = vmatpush1.msra.mxu0 %v5773
  %5788 = vmatprep.subr.mxu0 0.0
  %5789 = vmatpush1.msra.mxu0 %v5774
  %5790 = vmatprep.subr.mxu0 0.0
  %5791 = vmatpush1.msra.mxu0 %v5775
  %5792 = vmatprep.subr.mxu0 0.0
  %5793 = vmatpush1.msra.mxu0 0.0
  %5794 = vmatprep.subr.mxu0 0.0
  %5795 = vmatpush1.msra.mxu0 0.0
  %5796 = vmatprep.subr.mxu0 0.0
  %5797 = vmatpush1.msra.mxu0 0.0
  %5798 = vmatprep.subr.mxu0 0.0
  %5799 = vmatpush1.msra.mxu0 0.0
  %5800 = vmatprep.subr.mxu0 0.0
  %5801 = vmatpush1.msra.mxu0 0.0
  %5802 = vmatprep.subr.mxu0 0.0
  %5803 = vmatpush1.msra.mxu0 0.0
  %5804 = vmatprep.subr.mxu0 0.0
  %5805 = vmatpush1.msra.mxu0 0.0
  %5806 = vmatprep.subr.mxu0 0.0
  %5807 = vmatpush1.msra.mxu0 0.0
  %5808 = vmatprep.subr.mxu0 0.0
  %5809 = vmatpush1.msra.mxu0 0.0
  %5810 = vmatprep.subr.mxu0 0.0
  %5811 = vmatpush1.msra.mxu0 0.0
  %5812 = vmatprep.subr.mxu0 0.0
  %5813 = vmatpush1.msra.mxu0 0.0
  %5814 = vmatprep.subr.mxu0 0.0
  %5815 = vmatpush1.msra.mxu0 0.0
  %5816 = vmatprep.subr.mxu0 0.0
  %5817 = vmatpush1.msra.mxu0 0.0
  %5818 = vmatprep.subr.mxu0 0.0
  %5819 = vmatpush1.msra.mxu0 0.0
  %5820 = vmatprep.subr.mxu0 0.0
  %5821 = vmatpush1.msra.mxu0 0.0
  %5822 = vmatprep.subr.mxu0 0.0
  %5823 = vmatpush1.msra.mxu0 0.0
  %5824 = vmatprep.subr.mxu0 0.0
  %5825 = vmatpush1.msra.mxu0 0.0
  %5826 = vmatprep.subr.mxu0 0.0
  %5827 = vmatpush1.msra.mxu0 0.0
  %5828 = vmatprep.subr.mxu0 0.0
  %5829 = vmatpush1.msra.mxu0 0.0
  %5830 = vmatprep.subr.mxu0 0.0
  %5831 = vmatpush1.msra.mxu0 0.0
  %5832 = vmatprep.subr.mxu0 0.0
  %5833 = vmatpush1.msra.mxu0 0.0
  %5834 = vmatprep.subr.mxu0 0.0
  %5835 = vmatpush1.msra.mxu0 0.0
  %5836 = vmatprep.subr.mxu0 0.0
  %5837 = vmatpush1.msra.mxu0 0.0
  %5838 = vmatprep.subr.mxu0 0.0
  %5839 = vmatpush1.msra.mxu0 0.0
  %5840 = vmatprep.subr.mxu0 0.0
  %5841 = vmatpush1.msra.mxu0 0.0
  %5842 = vmatprep.subr.mxu0 0.0
  %5843 = vmatpush1.msra.mxu0 0.0
  %5844 = vmatprep.subr.mxu0 0.0
  %5845 = vmatpush1.msra.mxu0 0.0
  %5846 = vmatprep.subr.mxu0 0.0
  %5847 = vmatpush1.msra.mxu0 0.0
  %5848 = vmatprep.mubr.f32.mxu0 0.0
  %5849 = vmatmul.mubr.f32.gmra.mrb[0].mxu0 %v3994
  %v5850 = vpop.f32.mrb[0].mxu0
  %v5851 = vadd.f32 %v5782, %v5850
  %v5852 = vpop.f32.mrb[0].mxu0
  %5853 = vmatprep.mubr.f32.mxu0 0.0
  %5854 = vmatmul.mubr.f32.gmra.mrb[0].mxu0 %v3997
  %v5855 = vpop.f32.mrb[0].mxu0
  %v5856 = vadd.f32 %v5782, %v5855
  %v5857 = vpop.f32.mrb[0].mxu0
  %5858 = vmatprep.mubr.f32.mxu0 0.0
  %5859 = vmatmul.mubr.f32.gmra.mrb[0].mxu0 %v4000
  %v5860 = vpop.f32.mrb[0].mxu0
  %v5861 = vadd.f32 %v5782, %v5860
  %v5862 = vpop.f32.mrb[0].mxu0
  %5863 = vdwg.mxu0
  %s5864 = scalar_lea.vmem %s6, 608
  %v5865 = vld [vmem:[%s5864] sm:$0xff]
  %v5866 = vld [vmem:[%s5864 + $0x8] sm:$0xff]
  %v5867 = vld [vmem:[%s5864 + $0x10] sm:$0xff]
  %v5868 = vld [vmem:[%s5864 + $0x18] sm:$0xff]
  %s5869 = scalar_lea.vmem %s7, 19
  %v5870 = vld [vmem:[%s5869] sm:$0x1]
  %v5872 = vlaneseq
  %v5873 = vshrl.u32 %v5872, 7
  %v5874 = vsub.s32 0, %v5873
  %v5875 = vrot.slane %v5870, %v5874
  %5877 = vmatprep.subr.mxu0 0.0
  %5878 = vmatpush1.msra.mxu0 %v5865
  %5879 = vmatprep.subr.mxu0 0.0
  %5880 = vmatpush1.msra.mxu0 %v5866
  %5881 = vmatprep.subr.mxu0 0.0
  %5882 = vmatpush1.msra.mxu0 %v5867
  %5883 = vmatprep.subr.mxu0 0.0
  %5884 = vmatpush1.msra.mxu0 %v5868
  %5885 = vmatprep.subr.mxu0 0.0
  %5886 = vmatpush1.msra.mxu0 0.0
  %5887 = vmatprep.subr.mxu0 0.0
  %5888 = vmatpush1.msra.mxu0 0.0
  %5889 = vmatprep.subr.mxu0 0.0
  %5890 = vmatpush1.msra.mxu0 0.0
  %5891 = vmatprep.subr.mxu0 0.0
  %5892 = vmatpush1.msra.mxu0 0.0
  %5893 = vmatprep.subr.mxu0 0.0
  %5894 = vmatpush1.msra.mxu0 0.0
  %5895 = vmatprep.subr.mxu0 0.0
  %5896 = vmatpush1.msra.mxu0 0.0
  %5897 = vmatprep.subr.mxu0 0.0
  %5898 = vmatpush1.msra.mxu0 0.0
  %5899 = vmatprep.subr.mxu0 0.0
  %5900 = vmatpush1.msra.mxu0 0.0
  %5901 = vmatprep.subr.mxu0 0.0
  %5902 = vmatpush1.msra.mxu0 0.0
  %5903 = vmatprep.subr.mxu0 0.0
  %5904 = vmatpush1.msra.mxu0 0.0
  %5905 = vmatprep.subr.mxu0 0.0
  %5906 = vmatpush1.msra.mxu0 0.0
  %5907 = vmatprep.subr.mxu0 0.0
  %5908 = vmatpush1.msra.mxu0 0.0
  %5909 = vmatprep.subr.mxu0 0.0
  %5910 = vmatpush1.msra.mxu0 0.0
  %5911 = vmatprep.subr.mxu0 0.0
  %5912 = vmatpush1.msra.mxu0 0.0
  %5913 = vmatprep.subr.mxu0 0.0
  %5914 = vmatpush1.msra.mxu0 0.0
  %5915 = vmatprep.subr.mxu0 0.0
  %5916 = vmatpush1.msra.mxu0 0.0
  %5917 = vmatprep.subr.mxu0 0.0
  %5918 = vmatpush1.msra.mxu0 0.0
  %5919 = vmatprep.subr.mxu0 0.0
  %5920 = vmatpush1.msra.mxu0 0.0
  %5921 = vmatprep.subr.mxu0 0.0
  %5922 = vmatpush1.msra.mxu0 0.0
  %5923 = vmatprep.subr.mxu0 0.0
  %5924 = vmatpush1.msra.mxu0 0.0
  %5925 = vmatprep.subr.mxu0 0.0
  %5926 = vmatpush1.msra.mxu0 0.0
  %5927 = vmatprep.subr.mxu0 0.0
  %5928 = vmatpush1.msra.mxu0 0.0
  %5929 = vmatprep.subr.mxu0 0.0
  %5930 = vmatpush1.msra.mxu0 0.0
  %5931 = vmatprep.subr.mxu0 0.0
  %5932 = vmatpush1.msra.mxu0 0.0
  %5933 = vmatprep.subr.mxu0 0.0
  %5934 = vmatpush1.msra.mxu0 0.0
  %5935 = vmatprep.subr.mxu0 0.0
  %5936 = vmatpush1.msra.mxu0 0.0
  %5937 = vmatprep.subr.mxu0 0.0
  %5938 = vmatpush1.msra.mxu0 0.0
  %5939 = vmatprep.subr.mxu0 0.0
  %5940 = vmatpush1.msra.mxu0 0.0
  %5941 = vmatprep.mubr.f32.mxu0 0.0
  %5942 = vmatmul.mubr.f32.gmra.mrb[0].mxu0 %v3994
  %v5943 = vpop.f32.mrb[0].mxu0
  %v5944 = vadd.f32 %v5875, %v5943
  %v5945 = vpop.f32.mrb[0].mxu0
  %5946 = vmatprep.mubr.f32.mxu0 0.0
  %5947 = vmatmul.mubr.f32.gmra.mrb[0].mxu0 %v3997
  %v5948 = vpop.f32.mrb[0].mxu0
  %v5949 = vadd.f32 %v5875, %v5948
  %v5950 = vpop.f32.mrb[0].mxu0
  %5951 = vmatprep.mubr.f32.mxu0 0.0
  %5952 = vmatmul.mubr.f32.gmra.mrb[0].mxu0 %v4000
  %v5953 = vpop.f32.mrb[0].mxu0
  %v5954 = vadd.f32 %v5875, %v5953
  %v5955 = vpop.f32.mrb[0].mxu0
  %5956 = vdwg.mxu0
  %s5957 = scalar_lea.vmem %s6, 736
  %v5958 = vld [vmem:[%s5957] sm:$0xff]
  %v5959 = vld [vmem:[%s5957 + $0x8] sm:$0xff]
  %v5960 = vld [vmem:[%s5957 + $0x10] sm:$0xff]
  %v5961 = vld [vmem:[%s5957 + $0x18] sm:$0xff]
  %s5962 = scalar_lea.vmem %s7, 23
  %v5963 = vld [vmem:[%s5962] sm:$0x1]
  %v5965 = vlaneseq
  %v5966 = vshrl.u32 %v5965, 7
  %v5967 = vsub.s32 0, %v5966
  %v5968 = vrot.slane %v5963, %v5967
  %5970 = vmatprep.subr.mxu0 0.0
  %5971 = vmatpush1.msra.mxu0 %v5958
  %5972 = vmatprep.subr.mxu0 0.0
  %5973 = vmatpush1.msra.mxu0 %v5959
  %5974 = vmatprep.subr.mxu0 0.0
  %5975 = vmatpush1.msra.mxu0 %v5960
  %5976 = vmatprep.subr.mxu0 0.0
  %5977 = vmatpush1.msra.mxu0 %v5961
  %5978 = vmatprep.subr.mxu0 0.0
  %5979 = vmatpush1.msra.mxu0 0.0
  %5980 = vmatprep.subr.mxu0 0.0
  %5981 = vmatpush1.msra.mxu0 0.0
  %5982 = vmatprep.subr.mxu0 0.0
  %5983 = vmatpush1.msra.mxu0 0.0
  %5984 = vmatprep.subr.mxu0 0.0
  %5985 = vmatpush1.msra.mxu0 0.0
  %5986 = vmatprep.subr.mxu0 0.0
  %5987 = vmatpush1.msra.mxu0 0.0
  %5988 = vmatprep.subr.mxu0 0.0
  %5989 = vmatpush1.msra.mxu0 0.0
  %5990 = vmatprep.subr.mxu0 0.0
  %5991 = vmatpush1.msra.mxu0 0.0
  %5992 = vmatprep.subr.mxu0 0.0
  %5993 = vmatpush1.msra.mxu0 0.0
  %5994 = vmatprep.subr.mxu0 0.0
  %5995 = vmatpush1.msra.mxu0 0.0
  %5996 = vmatprep.subr.mxu0 0.0
  %5997 = vmatpush1.msra.mxu0 0.0
  %5998 = vmatprep.subr.mxu0 0.0
  %5999 = vmatpush1.msra.mxu0 0.0
  %6000 = vmatprep.subr.mxu0 0.0
  %6001 = vmatpush1.msra.mxu0 0.0
  %6002 = vmatprep.subr.mxu0 0.0
  %6003 = vmatpush1.msra.mxu0 0.0
  %6004 = vmatprep.subr.mxu0 0.0
  %6005 = vmatpush1.msra.mxu0 0.0
  %6006 = vmatprep.subr.mxu0 0.0
  %6007 = vmatpush1.msra.mxu0 0.0
  %6008 = vmatprep.subr.mxu0 0.0
  %6009 = vmatpush1.msra.mxu0 0.0
  %6010 = vmatprep.subr.mxu0 0.0
  %6011 = vmatpush1.msra.mxu0 0.0
  %6012 = vmatprep.subr.mxu0 0.0
  %6013 = vmatpush1.msra.mxu0 0.0
  %6014 = vmatprep.subr.mxu0 0.0
  %6015 = vmatpush1.msra.mxu0 0.0
  %6016 = vmatprep.subr.mxu0 0.0
  %6017 = vmatpush1.msra.mxu0 0.0
  %6018 = vmatprep.subr.mxu0 0.0
  %6019 = vmatpush1.msra.mxu0 0.0
  %6020 = vmatprep.subr.mxu0 0.0
  %6021 = vmatpush1.msra.mxu0 0.0
  %6022 = vmatprep.subr.mxu0 0.0
  %6023 = vmatpush1.msra.mxu0 0.0
  %6024 = vmatprep.subr.mxu0 0.0
  %6025 = vmatpush1.msra.mxu0 0.0
  %6026 = vmatprep.subr.mxu0 0.0
  %6027 = vmatpush1.msra.mxu0 0.0
  %6028 = vmatprep.subr.mxu0 0.0
  %6029 = vmatpush1.msra.mxu0 0.0
  %6030 = vmatprep.subr.mxu0 0.0
  %6031 = vmatpush1.msra.mxu0 0.0
  %6032 = vmatprep.subr.mxu0 0.0
  %6033 = vmatpush1.msra.mxu0 0.0
  %6034 = vmatprep.mubr.f32.mxu0 0.0
  %6035 = vmatmul.mubr.f32.gmra.mrb[0].mxu0 %v3994
  %v6036 = vpop.f32.mrb[0].mxu0
  %v6037 = vadd.f32 %v5968, %v6036
  %v6038 = vpop.f32.mrb[0].mxu0
  %6039 = vmatprep.mubr.f32.mxu0 0.0
  %6040 = vmatmul.mubr.f32.gmra.mrb[0].mxu0 %v3997
  %v6041 = vpop.f32.mrb[0].mxu0
  %v6042 = vadd.f32 %v5968, %v6041
  %v6043 = vpop.f32.mrb[0].mxu0
  %6044 = vmatprep.mubr.f32.mxu0 0.0
  %6045 = vmatmul.mubr.f32.gmra.mrb[0].mxu0 %v4000
  %v6046 = vpop.f32.mrb[0].mxu0
  %v6047 = vadd.f32 %v5968, %v6046
  %v6048 = vpop.f32.mrb[0].mxu0
  %6049 = vdwg.mxu0
  %v6051 = vsel %vm1512, %v5851, 0
  %v6054 = vsel %vm1512, %v5856, 0
  %v6057 = vsel %vm1512, %v5861, 0
  %v6060 = vsel %vm1512, %v5944, 0
  %v6063 = vsel %vm1512, %v5949, 0
  %v6066 = vsel %vm1512, %v5954, 0
  %6068 = vmatprep.subr.mxu0 0.0
  %6069 = vmatpush1.xpose.msra.mxu0 %v6060
  %6070 = vmatprep.subr.mxu0 0.0
  %6071 = vmatpush1.xpose.msra.mxu0 %v6063
  %6072 = vmatprep.subr.mxu0 0.0
  %6073 = vmatpush1.xpose.msra.mxu0 %v6066
  %6074 = vmatprep.subr.mxu0 0.0
  %6075 = vmatpush1.xpose.msra.mxu0 0.0
  %6076 = vmatprep.subr.mxu0 0.0
  %6077 = vmatpush1.xpose.msra.mxu0 0.0
  %6078 = vmatprep.subr.mxu0 0.0
  %6079 = vmatpush1.xpose.msra.mxu0 0.0
  %6080 = vmatprep.subr.mxu0 0.0
  %6081 = vmatpush1.xpose.msra.mxu0 0.0
  %6082 = vmatprep.subr.mxu0 0.0
  %6083 = vmatpush1.xpose.msra.mxu0 0.0
  %6084 = vmatprep.subr.mxu0 0.0
  %6085 = vmatpush1.xpose.msra.mxu0 0.0
  %6086 = vmatprep.subr.mxu0 0.0
  %6087 = vmatpush1.xpose.msra.mxu0 0.0
  %6088 = vmatprep.subr.mxu0 0.0
  %6089 = vmatpush1.xpose.msra.mxu0 0.0
  %6090 = vmatprep.subr.mxu0 0.0
  %6091 = vmatpush1.xpose.msra.mxu0 0.0
  %6092 = vmatprep.subr.mxu0 0.0
  %6093 = vmatpush1.xpose.msra.mxu0 0.0
  %6094 = vmatprep.subr.mxu0 0.0
  %6095 = vmatpush1.xpose.msra.mxu0 0.0
  %6096 = vmatprep.subr.mxu0 0.0
  %6097 = vmatpush1.xpose.msra.mxu0 0.0
  %6098 = vmatprep.subr.mxu0 0.0
  %6099 = vmatpush1.xpose.msra.mxu0 0.0
  %6100 = vmatprep.subr.mxu0 0.0
  %6101 = vmatpush1.xpose.msra.mxu0 0.0
  %6102 = vmatprep.subr.mxu0 0.0
  %6103 = vmatpush1.xpose.msra.mxu0 0.0
  %6104 = vmatprep.subr.mxu0 0.0
  %6105 = vmatpush1.xpose.msra.mxu0 0.0
  %6106 = vmatprep.subr.mxu0 0.0
  %6107 = vmatpush1.xpose.msra.mxu0 0.0
  %6108 = vmatprep.subr.mxu0 0.0
  %6109 = vmatpush1.xpose.msra.mxu0 0.0
  %6110 = vmatprep.subr.mxu0 0.0
  %6111 = vmatpush1.xpose.msra.mxu0 0.0
  %6112 = vmatprep.subr.mxu0 0.0
  %6113 = vmatpush1.xpose.msra.mxu0 0.0
  %6114 = vmatprep.subr.mxu0 0.0
  %6115 = vmatpush1.xpose.msra.mxu0 0.0
  %6116 = vmatprep.subr.mxu0 0.0
  %6117 = vmatpush1.xpose.msra.mxu0 0.0
  %6118 = vmatprep.subr.mxu0 0.0
  %6119 = vmatpush1.xpose.msra.mxu0 0.0
  %6120 = vmatprep.subr.mxu0 0.0
  %6121 = vmatpush1.xpose.msra.mxu0 0.0
  %6122 = vmatprep.subr.mxu0 0.0
  %6123 = vmatpush1.xpose.msra.mxu0 0.0
  %6124 = vmatprep.subr.mxu0 0.0
  %6125 = vmatpush1.xpose.msra.mxu0 0.0
  %6126 = vmatprep.subr.mxu0 0.0
  %6127 = vmatpush1.xpose.msra.mxu0 0.0
  %6128 = vmatprep.subr.mxu0 0.0
  %6129 = vmatpush1.xpose.msra.mxu0 0.0
  %6130 = vmatprep.subr.mxu0 0.0
  %6131 = vmatpush1.xpose.msra.mxu0 0.0
  %6132 = vmatprep.mubr.f32.mxu0 0.0
  %6133 = vmatmul.mubr.f32.gmra.mrb[0].mxu0 %v6051
  %v6134 = vpop.f32.mrb[0].mxu0
  %v6135 = vadd.f32 %v1161, %v6134
  %v6136 = vpop.f32.mrb[0].mxu0
  %6137 = vmatprep.mubr.f32.mxu0 0.0
  %6138 = vmatmul.mubr.f32.gmra.mrb[0].mxu0 %v6054
  %v6139 = vpop.f32.mrb[0].mxu0
  %v6140 = vadd.f32 %v1162, %v6139
  %v6141 = vpop.f32.mrb[0].mxu0
  %6142 = vmatprep.mubr.f32.mxu0 0.0
  %6143 = vmatmul.mubr.f32.gmra.mrb[0].mxu0 %v6057
  %v6144 = vpop.f32.mrb[0].mxu0
  %v6145 = vadd.f32 %v1163, %v6144
  %v6146 = vpop.f32.mrb[0].mxu0
  %6147 = vdwg.mxu0
  %v6148 = vsel %vm1611, %v6135, -inf
  %6149 = vmax.xlane.f32.xlu0 %v6148
  %v6150 = vpop.xlane.xlu0 %6149
  %v6151 = vsel %vm1611, %v6140, -inf
  %6152 = vmax.xlane.f32.xlu0 %v6151
  %v6153 = vpop.xlane.xlu0 %6152
  %v6154 = vsel %vm1618, %v6145, -inf
  %6155 = vmax.xlane.f32.xlu0 %v6154
  %v6156 = vpop.xlane.xlu0 %6155
  %v6157 = vsub.f32 %v6135, %v6150
  %v6158 = vsub.f32 %v6140, %v6153
  %v6159 = vsub.f32 %v6145, %v6156
  %v6160 = vmul.f32 %v6157, 1.442695
  %v6161 = vpow.pop %v6160
  %v6162 = vmul.f32 %v6158, 1.442695
  %v6163 = vpow.pop %v6162
  %v6164 = vmul.f32 %v6159, 1.442695
  %v6165 = vpow.pop %v6164
  %v6166 = vsel %vm1611, %v6161, 0.0
  %6167 = vadd.xlane.f32.xlu0 %v6166
  %v6168 = vpop.xlane.xlu0 %6167
  %v6169 = vsel %vm1611, %v6163, 0.0
  %6170 = vadd.xlane.f32.xlu0 %v6169
  %v6171 = vpop.xlane.xlu0 %6170
  %v6172 = vsel %vm1618, %v6165, 0.0
  %6173 = vadd.xlane.f32.xlu0 %v6172
  %v6174 = vpop.xlane.xlu0 %6173
  %v6175 = vrcp.pop %v6168
  %v6176 = vrcp.pop %v6171
  %v6177 = vrcp.pop %v6174
  %v6178 = vmul.f32 %v6161, %v6175
  %v6179 = vmul.f32 %v6163, %v6176
  %v6180 = vmul.f32 %v6165, %v6177
  %v6182 = vsel %vm1611, %v6178, 0
  %v6185 = vsel %vm1611, %v6179, 0
  %v6188 = vsel %vm1611, %v6180, 0
  %v6191 = vsel %vm1655, %v6047, 0
  %6193 = vmatprep.subr.mxu0 0.0
  %6194 = vmatpush1.msra.mxu0 %v6037
  %6195 = vmatprep.subr.mxu0 0.0
  %6196 = vmatpush1.msra.mxu0 %v6042
  %6197 = vmatprep.subr.mxu0 0.0
  %6198 = vmatpush1.msra.mxu0 %v6191
  %6199 = vmatprep.subr.mxu0 0.0
  %6200 = vmatpush1.msra.mxu0 0.0
  %6201 = vmatprep.subr.mxu0 0.0
  %6202 = vmatpush1.msra.mxu0 0.0
  %6203 = vmatprep.subr.mxu0 0.0
  %6204 = vmatpush1.msra.mxu0 0.0
  %6205 = vmatprep.subr.mxu0 0.0
  %6206 = vmatpush1.msra.mxu0 0.0
  %6207 = vmatprep.subr.mxu0 0.0
  %6208 = vmatpush1.msra.mxu0 0.0
  %6209 = vmatprep.subr.mxu0 0.0
  %6210 = vmatpush1.msra.mxu0 0.0
  %6211 = vmatprep.subr.mxu0 0.0
  %6212 = vmatpush1.msra.mxu0 0.0
  %6213 = vmatprep.subr.mxu0 0.0
  %6214 = vmatpush1.msra.mxu0 0.0
  %6215 = vmatprep.subr.mxu0 0.0
  %6216 = vmatpush1.msra.mxu0 0.0
  %6217 = vmatprep.subr.mxu0 0.0
  %6218 = vmatpush1.msra.mxu0 0.0
  %6219 = vmatprep.subr.mxu0 0.0
  %6220 = vmatpush1.msra.mxu0 0.0
  %6221 = vmatprep.subr.mxu0 0.0
  %6222 = vmatpush1.msra.mxu0 0.0
  %6223 = vmatprep.subr.mxu0 0.0
  %6224 = vmatpush1.msra.mxu0 0.0
  %6225 = vmatprep.subr.mxu0 0.0
  %6226 = vmatpush1.msra.mxu0 0.0
  %6227 = vmatprep.subr.mxu0 0.0
  %6228 = vmatpush1.msra.mxu0 0.0
  %6229 = vmatprep.subr.mxu0 0.0
  %6230 = vmatpush1.msra.mxu0 0.0
  %6231 = vmatprep.subr.mxu0 0.0
  %6232 = vmatpush1.msra.mxu0 0.0
  %6233 = vmatprep.subr.mxu0 0.0
  %6234 = vmatpush1.msra.mxu0 0.0
  %6235 = vmatprep.subr.mxu0 0.0
  %6236 = vmatpush1.msra.mxu0 0.0
  %6237 = vmatprep.subr.mxu0 0.0
  %6238 = vmatpush1.msra.mxu0 0.0
  %6239 = vmatprep.subr.mxu0 0.0
  %6240 = vmatpush1.msra.mxu0 0.0
  %6241 = vmatprep.subr.mxu0 0.0
  %6242 = vmatpush1.msra.mxu0 0.0
  %6243 = vmatprep.subr.mxu0 0.0
  %6244 = vmatpush1.msra.mxu0 0.0
  %6245 = vmatprep.subr.mxu0 0.0
  %6246 = vmatpush1.msra.mxu0 0.0
  %6247 = vmatprep.subr.mxu0 0.0
  %6248 = vmatpush1.msra.mxu0 0.0
  %6249 = vmatprep.subr.mxu0 0.0
  %6250 = vmatpush1.msra.mxu0 0.0
  %6251 = vmatprep.subr.mxu0 0.0
  %6252 = vmatpush1.msra.mxu0 0.0
  %6253 = vmatprep.subr.mxu0 0.0
  %6254 = vmatpush1.msra.mxu0 0.0
  %6255 = vmatprep.subr.mxu0 0.0
  %6256 = vmatpush1.msra.mxu0 0.0
  %6257 = vmatprep.mubr.f32.mxu0 0.0
  %6258 = vmatmul.mubr.f32.gmra.mrb[0].mxu0 %v6182
  %v6259 = vpop.f32.mrb[0].mxu0
  %v6260 = vadd.f32 0.0, %v6259
  %v6261 = vpop.f32.mrb[0].mxu0
  %6262 = vmatprep.mubr.f32.mxu0 0.0
  %6263 = vmatmul.mubr.f32.gmra.mrb[0].mxu0 %v6185
  %v6264 = vpop.f32.mrb[0].mxu0
  %v6265 = vadd.f32 0.0, %v6264
  %v6266 = vpop.f32.mrb[0].mxu0
  %6267 = vmatprep.mubr.f32.mxu0 0.0
  %6268 = vmatmul.mubr.f32.gmra.mrb[0].mxu0 %v6188
  %v6269 = vpop.f32.mrb[0].mxu0
  %v6270 = vadd.f32 0.0, %v6269
  %v6271 = vpop.f32.mrb[0].mxu0
  %6272 = vdwg.mxu0
  %s6273 = scalar_lea.vmem %s8, 56
  %v6274 = vld [vmem:[%s6273] sm:$0xff]
  %v6276 = vsel %vm1512, %v6260, 0
  %v6279 = vsel %vm1512, %v6265, 0
  %v6282 = vsel %vm1512, %v6270, 0
  %6284 = vmatprep.subr.mxu0 0.0
  %6285 = vmatpush1.msra.mxu0 %v6274
  %6286 = vmatprep.subr.mxu0 0.0
  %6287 = vmatpush1.msra.mxu0 0.0
  %6288 = vmatprep.subr.mxu0 0.0
  %6289 = vmatpush1.msra.mxu0 0.0
  %6290 = vmatprep.subr.mxu0 0.0
  %6291 = vmatpush1.msra.mxu0 0.0
  %6292 = vmatprep.subr.mxu0 0.0
  %6293 = vmatpush1.msra.mxu0 0.0
  %6294 = vmatprep.subr.mxu0 0.0
  %6295 = vmatpush1.msra.mxu0 0.0
  %6296 = vmatprep.subr.mxu0 0.0
  %6297 = vmatpush1.msra.mxu0 0.0
  %6298 = vmatprep.subr.mxu0 0.0
  %6299 = vmatpush1.msra.mxu0 0.0
  %6300 = vmatprep.subr.mxu0 0.0
  %6301 = vmatpush1.msra.mxu0 0.0
  %6302 = vmatprep.subr.mxu0 0.0
  %6303 = vmatpush1.msra.mxu0 0.0
  %6304 = vmatprep.subr.mxu0 0.0
  %6305 = vmatpush1.msra.mxu0 0.0
  %6306 = vmatprep.subr.mxu0 0.0
  %6307 = vmatpush1.msra.mxu0 0.0
  %6308 = vmatprep.subr.mxu0 0.0
  %6309 = vmatpush1.msra.mxu0 0.0
  %6310 = vmatprep.subr.mxu0 0.0
  %6311 = vmatpush1.msra.mxu0 0.0
  %6312 = vmatprep.subr.mxu0 0.0
  %6313 = vmatpush1.msra.mxu0 0.0
  %6314 = vmatprep.subr.mxu0 0.0
  %6315 = vmatpush1.msra.mxu0 0.0
  %6316 = vmatprep.subr.mxu0 0.0
  %6317 = vmatpush1.msra.mxu0 0.0
  %6318 = vmatprep.subr.mxu0 0.0
  %6319 = vmatpush1.msra.mxu0 0.0
  %6320 = vmatprep.subr.mxu0 0.0
  %6321 = vmatpush1.msra.mxu0 0.0
  %6322 = vmatprep.subr.mxu0 0.0
  %6323 = vmatpush1.msra.mxu0 0.0
  %6324 = vmatprep.subr.mxu0 0.0
  %6325 = vmatpush1.msra.mxu0 0.0
  %6326 = vmatprep.subr.mxu0 0.0
  %6327 = vmatpush1.msra.mxu0 0.0
  %6328 = vmatprep.subr.mxu0 0.0
  %6329 = vmatpush1.msra.mxu0 0.0
  %6330 = vmatprep.subr.mxu0 0.0
  %6331 = vmatpush1.msra.mxu0 0.0
  %6332 = vmatprep.subr.mxu0 0.0
  %6333 = vmatpush1.msra.mxu0 0.0
  %6334 = vmatprep.subr.mxu0 0.0
  %6335 = vmatpush1.msra.mxu0 0.0
  %6336 = vmatprep.subr.mxu0 0.0
  %6337 = vmatpush1.msra.mxu0 0.0
  %6338 = vmatprep.subr.mxu0 0.0
  %6339 = vmatpush1.msra.mxu0 0.0
  %6340 = vmatprep.subr.mxu0 0.0
  %6341 = vmatpush1.msra.mxu0 0.0
  %6342 = vmatprep.subr.mxu0 0.0
  %6343 = vmatpush1.msra.mxu0 0.0
  %6344 = vmatprep.subr.mxu0 0.0
  %6345 = vmatpush1.msra.mxu0 0.0
  %6346 = vmatprep.subr.mxu0 0.0
  %6347 = vmatpush1.msra.mxu0 0.0
  %6348 = vmatprep.mubr.f32.mxu0 0.0
  %6349 = vmatmul.mubr.f32.gmra.mrb[0].mxu0 %v6276
  %v6350 = vpop.f32.mrb[0].mxu0
  %v6351 = vadd.f32 0.0, %v6350
  %v6352 = vpop.f32.mrb[0].mxu0
  %6353 = vmatprep.mubr.f32.mxu0 0.0
  %6354 = vmatmul.mubr.f32.gmra.mrb[0].mxu0 %v6279
  %v6355 = vpop.f32.mrb[0].mxu0
  %v6356 = vadd.f32 0.0, %v6355
  %v6357 = vpop.f32.mrb[0].mxu0
  %6358 = vmatprep.mubr.f32.mxu0 0.0
  %6359 = vmatmul.mubr.f32.gmra.mrb[0].mxu0 %v6282
  %v6360 = vpop.f32.mrb[0].mxu0
  %v6361 = vadd.f32 0.0, %v6360
  %v6362 = vpop.f32.mrb[0].mxu0
  %6363 = vdwg.mxu0
  %v6364 = vadd.f32 %v5768, %v6351
  %v6365 = vadd.f32 %v5769, %v6356
  %v6366 = vadd.f32 %v5770, %v6361
  %v6367 = vadd.f32 %v3916, %v6364
  %v6368 = vadd.f32 %v3917, %v6365
  %v6369 = vadd.f32 %v3918, %v6366
  %s6370 = scalar_lea.vmem %s9, 1
  %v6371 = vld [vmem:[%s6370] sm:$0x1]
  %v6373 = vlaneseq
  %v6374 = vshrl.u32 %v6373, 7
  %v6375 = vsub.s32 0, %v6374
  %v6376 = vrot.slane %v6371, %v6375
  %v6378 = vadd.f32 %v6367, %v6376
  %v6379 = vadd.f32 %v6368, %v6376
  %v6380 = vadd.f32 %v6369, %v6376
  %s6381 = scalar_lea.vmem %s10, 1
  %v6382 = vld [vmem:[%s6381] sm:$0x1]
  %s6383 = scalar_lea.vmem %s11, 1
  %v6384 = vld [vmem:[%s6383] sm:$0x1]
  %v6385 = vsel %vm1166, %v6378, 0.0
  %6386 = vadd.xlane.f32.xlu0 %v6385
  %v6387 = vpop.xlane.xlu0 %6386
  %v6388 = vsel %vm1166, %v6379, 0.0
  %6389 = vadd.xlane.f32.xlu0 %v6388
  %v6390 = vpop.xlane.xlu0 %6389
  %v6391 = vsel %vm1173, %v6380, 0.0
  %6392 = vadd.xlane.f32.xlu0 %v6391
  %v6393 = vpop.xlane.xlu0 %6392
  %v6394 = vmul.f32 %v6387, %v1177
  %v6395 = vmul.f32 %v6390, %v1177
  %v6396 = vmul.f32 %v6393, %v1177
  %v6397 = vsub.f32 %v6378, %v6394
  %v6398 = vsub.f32 %v6379, %v6395
  %v6399 = vsub.f32 %v6380, %v6396
  %v6400 = vmul.f32 %v6397, %v6397
  %v6401 = vmul.f32 %v6398, %v6398
  %v6402 = vmul.f32 %v6399, %v6399
  %v6403 = vsel %vm1166, %v6400, 0.0
  %6404 = vadd.xlane.f32.xlu0 %v6403
  %v6405 = vpop.xlane.xlu0 %6404
  %v6406 = vsel %vm1166, %v6401, 0.0
  %6407 = vadd.xlane.f32.xlu0 %v6406
  %v6408 = vpop.xlane.xlu0 %6407
  %v6409 = vsel %vm1173, %v6402, 0.0
  %6410 = vadd.xlane.f32.xlu0 %v6409
  %v6411 = vpop.xlane.xlu0 %6410
  %v6412 = vmul.f32 %v6405, %v1177
  %v6413 = vmul.f32 %v6408, %v1177
  %v6414 = vmul.f32 %v6411, %v1177
  %v6415 = vadd.f32 %v6412, 1e-05
  %v6416 = vadd.f32 %v6413, 1e-05
  %v6417 = vadd.f32 %v6414, 1e-05
  %v6418 = vrsqrt.pop %v6415
  %v6419 = vrsqrt.pop %v6416
  %v6420 = vrsqrt.pop %v6417
  %v6421 = vmul.f32 %v6397, %v6418
  %v6422 = vmul.f32 %v6398, %v6419
  %v6423 = vmul.f32 %v6399, %v6420
  %v6425 = vlaneseq
  %v6426 = vshrl.u32 %v6425, 7
  %v6427 = vsub.s32 0, %v6426
  %v6428 = vrot.slane %v6382, %v6427
  %v6430 = vmul.f32 %v6421, %v6428
  %v6431 = vmul.f32 %v6422, %v6428
  %v6432 = vmul.f32 %v6423, %v6428
  %v6434 = vlaneseq
  %v6435 = vshrl.u32 %v6434, 7
  %v6436 = vsub.s32 0, %v6435
  %v6437 = vrot.slane %v6384, %v6436
  %v6439 = vadd.f32 %v6430, %v6437
  %v6440 = vadd.f32 %v6431, %v6437
  %v6441 = vadd.f32 %v6432, %v6437
  %s6442 = scalar_lea.vmem %s12, 32
  %v6443 = vld [vmem:[%s6442] sm:$0xff]
  %v6444 = vld [vmem:[%s6442 + $0x8] sm:$0xff]
  %v6445 = vld [vmem:[%s6442 + $0x10] sm:$0xff]
  %v6446 = vld [vmem:[%s6442 + $0x18] sm:$0xff]
  %s6447 = scalar_lea.vmem %s13, 1
  %v6448 = vld [vmem:[%s6447] sm:$0x1]
  %v6450 = vlaneseq
  %v6451 = vshrl.u32 %v6450, 7
  %v6452 = vsub.s32 0, %v6451
  %v6453 = vrot.slane %v6448, %v6452
  %v6456 = vsel %vm1166, %v6439, 0
  %v6459 = vsel %vm1166, %v6440, 0
  %v6462 = vsel %vm1166, %v6441, 0
  %6464 = vmatprep.subr.mxu0 0.0
  %6465 = vmatpush1.msra.mxu0 %v6443
  %6466 = vmatprep.subr.mxu0 0.0
  %6467 = vmatpush1.msra.mxu0 %v6444
  %6468 = vmatprep.subr.mxu0 0.0
  %6469 = vmatpush1.msra.mxu0 %v6445
  %6470 = vmatprep.subr.mxu0 0.0
  %6471 = vmatpush1.msra.mxu0 %v6446
  %6472 = vmatprep.subr.mxu0 0.0
  %6473 = vmatpush1.msra.mxu0 0.0
  %6474 = vmatprep.subr.mxu0 0.0
  %6475 = vmatpush1.msra.mxu0 0.0
  %6476 = vmatprep.subr.mxu0 0.0
  %6477 = vmatpush1.msra.mxu0 0.0
  %6478 = vmatprep.subr.mxu0 0.0
  %6479 = vmatpush1.msra.mxu0 0.0
  %6480 = vmatprep.subr.mxu0 0.0
  %6481 = vmatpush1.msra.mxu0 0.0
  %6482 = vmatprep.subr.mxu0 0.0
  %6483 = vmatpush1.msra.mxu0 0.0
  %6484 = vmatprep.subr.mxu0 0.0
  %6485 = vmatpush1.msra.mxu0 0.0
  %6486 = vmatprep.subr.mxu0 0.0
  %6487 = vmatpush1.msra.mxu0 0.0
  %6488 = vmatprep.subr.mxu0 0.0
  %6489 = vmatpush1.msra.mxu0 0.0
  %6490 = vmatprep.subr.mxu0 0.0
  %6491 = vmatpush1.msra.mxu0 0.0
  %6492 = vmatprep.subr.mxu0 0.0
  %6493 = vmatpush1.msra.mxu0 0.0
  %6494 = vmatprep.subr.mxu0 0.0
  %6495 = vmatpush1.msra.mxu0 0.0
  %6496 = vmatprep.subr.mxu0 0.0
  %6497 = vmatpush1.msra.mxu0 0.0
  %6498 = vmatprep.subr.mxu0 0.0
  %6499 = vmatpush1.msra.mxu0 0.0
  %6500 = vmatprep.subr.mxu0 0.0
  %6501 = vmatpush1.msra.mxu0 0.0
  %6502 = vmatprep.subr.mxu0 0.0
  %6503 = vmatpush1.msra.mxu0 0.0
  %6504 = vmatprep.subr.mxu0 0.0
  %6505 = vmatpush1.msra.mxu0 0.0
  %6506 = vmatprep.subr.mxu0 0.0
  %6507 = vmatpush1.msra.mxu0 0.0
  %6508 = vmatprep.subr.mxu0 0.0
  %6509 = vmatpush1.msra.mxu0 0.0
  %6510 = vmatprep.subr.mxu0 0.0
  %6511 = vmatpush1.msra.mxu0 0.0
  %6512 = vmatprep.subr.mxu0 0.0
  %6513 = vmatpush1.msra.mxu0 0.0
  %6514 = vmatprep.subr.mxu0 0.0
  %6515 = vmatpush1.msra.mxu0 0.0
  %6516 = vmatprep.subr.mxu0 0.0
  %6517 = vmatpush1.msra.mxu0 0.0
  %6518 = vmatprep.subr.mxu0 0.0
  %6519 = vmatpush1.msra.mxu0 0.0
  %6520 = vmatprep.subr.mxu0 0.0
  %6521 = vmatpush1.msra.mxu0 0.0
  %6522 = vmatprep.subr.mxu0 0.0
  %6523 = vmatpush1.msra.mxu0 0.0
  %6524 = vmatprep.subr.mxu0 0.0
  %6525 = vmatpush1.msra.mxu0 0.0
  %6526 = vmatprep.subr.mxu0 0.0
  %6527 = vmatpush1.msra.mxu0 0.0
  %6528 = vmatprep.mubr.f32.mxu0 0.0
  %6529 = vmatmul.mubr.f32.gmra.mrb[0].mxu0 %v6456
  %v6530 = vpop.f32.mrb[0].mxu0
  %v6531 = vadd.f32 %v6453, %v6530
  %v6532 = vpop.f32.mrb[0].mxu0
  %6533 = vmatprep.mubr.f32.mxu0 0.0
  %6534 = vmatmul.mubr.f32.gmra.mrb[0].mxu0 %v6459
  %v6535 = vpop.f32.mrb[0].mxu0
  %v6536 = vadd.f32 %v6453, %v6535
  %v6537 = vpop.f32.mrb[0].mxu0
  %6538 = vmatprep.mubr.f32.mxu0 0.0
  %6539 = vmatmul.mubr.f32.gmra.mrb[0].mxu0 %v6462
  %v6540 = vpop.f32.mrb[0].mxu0
  %v6541 = vadd.f32 %v6453, %v6540
  %v6542 = vpop.f32.mrb[0].mxu0
  %6543 = vdwg.mxu0
  %v6544 = vmul.f32 %v6531, 0.5
  %v6545 = vmul.f32 %v6536, 0.5
  %v6546 = vmul.f32 %v6541, 0.5
  %v6547 = vmul.f32 %v6531, 0.044715
  %v6548 = vmul.f32 %v6536, 0.044715
  %v6549 = vmul.f32 %v6541, 0.044715
  %v6550 = vmul.f32 %v6547, %v6531
  %v6551 = vmul.f32 %v6548, %v6536
  %v6552 = vmul.f32 %v6549, %v6541
  %v6553 = vmul.f32 %v6550, %v6531
  %v6554 = vmul.f32 %v6551, %v6536
  %v6555 = vmul.f32 %v6552, %v6541
  %v6556 = vadd.f32 %v6531, %v6553
  %v6557 = vadd.f32 %v6536, %v6554
  %v6558 = vadd.f32 %v6541, %v6555
  %v6559 = vmul.f32 %v6556, 0.7978846
  %v6560 = vmul.f32 %v6557, 0.7978846
  %v6561 = vmul.f32 %v6558, 0.7978846
  %v6562 = vtanh.pop %v6559
  %v6563 = vtanh.pop %v6560
  %v6564 = vtanh.pop %v6561
  %v6565 = vadd.f32 %v6562, 1.0
  %v6566 = vadd.f32 %v6563, 1.0
  %v6567 = vadd.f32 %v6564, 1.0
  %v6568 = vmul.f32 %v6544, %v6565
  %v6569 = vmul.f32 %v6545, %v6566
  %v6570 = vmul.f32 %v6546, %v6567
  %s6571 = scalar_lea.vmem %s14, 128
  %v6572 = vld [vmem:[%s6571] sm:$0xff]
  %v6573 = vld [vmem:[%s6571 + $0x8] sm:$0xff]
  %v6574 = vld [vmem:[%s6571 + $0x10] sm:$0xff]
  %v6575 = vld [vmem:[%s6571 + $0x18] sm:$0xff]
  %v6576 = vld [vmem:[%s6571 + $0x20] sm:$0xff]
  %v6577 = vld [vmem:[%s6571 + $0x28] sm:$0xff]
  %v6578 = vld [vmem:[%s6571 + $0x30] sm:$0xff]
  %v6579 = vld [vmem:[%s6571 + $0x38] sm:$0xff]
  %v6580 = vld [vmem:[%s6571 + $0x40] sm:$0xff]
  %v6581 = vld [vmem:[%s6571 + $0x48] sm:$0xff]
  %v6582 = vld [vmem:[%s6571 + $0x50] sm:$0xff]
  %v6583 = vld [vmem:[%s6571 + $0x58] sm:$0xff]
  %v6584 = vld [vmem:[%s6571 + $0x60] sm:$0xff]
  %v6585 = vld [vmem:[%s6571 + $0x68] sm:$0xff]
  %v6586 = vld [vmem:[%s6571 + $0x70] sm:$0xff]
  %v6587 = vld [vmem:[%s6571 + $0x78] sm:$0xff]
  %s6588 = scalar_lea.vmem %s15, 1
  %v6589 = vld [vmem:[%s6588] sm:$0x1]
  %v6591 = vlaneseq
  %v6592 = vshrl.u32 %v6591, 7
  %v6593 = vsub.s32 0, %v6592
  %v6594 = vrot.slane %v6589, %v6593
  %6596 = vmatprep.subr.mxu0 0.0
  %6597 = vmatpush1.msra.mxu0 %v6572
  %6598 = vmatprep.subr.mxu0 0.0
  %6599 = vmatpush1.msra.mxu0 %v6573
  %6600 = vmatprep.subr.mxu0 0.0
  %6601 = vmatpush1.msra.mxu0 %v6574
  %6602 = vmatprep.subr.mxu0 0.0
  %6603 = vmatpush1.msra.mxu0 %v6575
  %6604 = vmatprep.subr.mxu0 0.0
  %6605 = vmatpush1.msra.mxu0 %v6576
  %6606 = vmatprep.subr.mxu0 0.0
  %6607 = vmatpush1.msra.mxu0 %v6577
  %6608 = vmatprep.subr.mxu0 0.0
  %6609 = vmatpush1.msra.mxu0 %v6578
  %6610 = vmatprep.subr.mxu0 0.0
  %6611 = vmatpush1.msra.mxu0 %v6579
  %6612 = vmatprep.subr.mxu0 0.0
  %6613 = vmatpush1.msra.mxu0 %v6580
  %6614 = vmatprep.subr.mxu0 0.0
  %6615 = vmatpush1.msra.mxu0 %v6581
  %6616 = vmatprep.subr.mxu0 0.0
  %6617 = vmatpush1.msra.mxu0 %v6582
  %6618 = vmatprep.subr.mxu0 0.0
  %6619 = vmatpush1.msra.mxu0 %v6583
  %6620 = vmatprep.subr.mxu0 0.0
  %6621 = vmatpush1.msra.mxu0 %v6584
  %6622 = vmatprep.subr.mxu0 0.0
  %6623 = vmatpush1.msra.mxu0 %v6585
  %6624 = vmatprep.subr.mxu0 0.0
  %6625 = vmatpush1.msra.mxu0 %v6586
  %6626 = vmatprep.subr.mxu0 0.0
  %6627 = vmatpush1.msra.mxu0 %v6587
  %6628 = vmatprep.subr.mxu0 0.0
  %6629 = vmatpush1.msra.mxu0 0.0
  %6630 = vmatprep.subr.mxu0 0.0
  %6631 = vmatpush1.msra.mxu0 0.0
  %6632 = vmatprep.subr.mxu0 0.0
  %6633 = vmatpush1.msra.mxu0 0.0
  %6634 = vmatprep.subr.mxu0 0.0
  %6635 = vmatpush1.msra.mxu0 0.0
  %6636 = vmatprep.subr.mxu0 0.0
  %6637 = vmatpush1.msra.mxu0 0.0
  %6638 = vmatprep.subr.mxu0 0.0
  %6639 = vmatpush1.msra.mxu0 0.0
  %6640 = vmatprep.subr.mxu0 0.0
  %6641 = vmatpush1.msra.mxu0 0.0
  %6642 = vmatprep.subr.mxu0 0.0
  %6643 = vmatpush1.msra.mxu0 0.0
  %6644 = vmatprep.subr.mxu0 0.0
  %6645 = vmatpush1.msra.mxu0 0.0
  %6646 = vmatprep.subr.mxu0 0.0
  %6647 = vmatpush1.msra.mxu0 0.0
  %6648 = vmatprep.subr.mxu0 0.0
  %6649 = vmatpush1.msra.mxu0 0.0
  %6650 = vmatprep.subr.mxu0 0.0
  %6651 = vmatpush1.msra.mxu0 0.0
  %6652 = vmatprep.subr.mxu0 0.0
  %6653 = vmatpush1.msra.mxu0 0.0
  %6654 = vmatprep.subr.mxu0 0.0
  %6655 = vmatpush1.msra.mxu0 0.0
  %6656 = vmatprep.subr.mxu0 0.0
  %6657 = vmatpush1.msra.mxu0 0.0
  %6658 = vmatprep.subr.mxu0 0.0
  %6659 = vmatpush1.msra.mxu0 0.0
  %6660 = vmatprep.mubr.f32.mxu0 0.0
  %6661 = vmatmul.mubr.f32.gmra.mrb[0].mxu0 %v6568
  %v6662 = vpop.f32.mrb[0].mxu0
  %v6663 = vpop.f32.mrb[0].mxu0
  %6664 = vmatprep.mubr.f32.mxu0 0.0
  %6665 = vmatmul.mubr.f32.gmra.mrb[0].mxu0 %v6569
  %v6666 = vpop.f32.mrb[0].mxu0
  %v6667 = vpop.f32.mrb[0].mxu0
  %6668 = vmatprep.mubr.f32.mxu0 0.0
  %6669 = vmatmul.mubr.f32.gmra.mrb[0].mxu0 %v6570
  %v6670 = vpop.f32.mrb[0].mxu0
  %v6671 = vadd.f32 %v6594, %v6670
  %v6672 = vpop.f32.mrb[0].mxu0
  %6673 = vdwg.mxu0
  %v6674 = vadd.f32 %v6380, %v6671
  %v6675 = vld [vmem:[%s16] sm:$0x1]
  %v6676 = vld [vmem:[%s17] sm:$0x1]
  %v6677 = vsel %vm1173, %v6674, 0.0
  %6678 = vadd.xlane.f32.xlu0 %v6677
  %v6679 = vpop.xlane.xlu0 %6678
  %v6680 = vmul.f32 %v6679, %v1177
  %v6681 = vsub.f32 %v6674, %v6680
  %v6682 = vmul.f32 %v6681, %v6681
  %v6683 = vsel %vm1173, %v6682, 0.0
  %6684 = vadd.xlane.f32.xlu0 %v6683
  %v6685 = vpop.xlane.xlu0 %6684
  %v6686 = vmul.f32 %v6685, %v1177
  %v6687 = vadd.f32 %v6686, 1e-05
  %v6688 = vrsqrt.pop %v6687
  %v6689 = vmul.f32 %v6681, %v6688
  %v6691 = vlaneseq
  %v6692 = vshrl.u32 %v6691, 7
  %v6693 = vsub.s32 0, %v6692
  %v6694 = vrot.slane %v6675, %v6693
  %v6696 = vmul.f32 %v6689, %v6694
  %v6698 = vlaneseq
  %v6699 = vshrl.u32 %v6698, 7
  %v6700 = vsub.s32 0, %v6699
  %v6701 = vrot.slane %v6676, %v6700
  %v6703 = vadd.f32 %v6696, %v6701
  %v6704 = vld [vmem:[%s18] sm:$0xff]
  %v6705 = vld [vmem:[%s18 + $0x8] sm:$0xff]
  %v6706 = vld [vmem:[%s18 + $0x10] sm:$0xff]
  %v6707 = vld [vmem:[%s18 + $0x18] sm:$0xff]
  %v6708 = vld [vmem:[%s19] sm:$0x1]
  %v6710 = vlaneseq
  %v6711 = vshrl.u32 %v6710, 7
  %v6712 = vsub.s32 0, %v6711
  %v6713 = vrot.slane %v6708, %v6712
  %v6716 = vsel %vm1166, %v6703, 0
  %6718 = vmatprep.subr.mxu0 0.0
  %6719 = vmatpush1.msra.mxu0 %v6704
  %6720 = vmatprep.subr.mxu0 0.0
  %6721 = vmatpush1.msra.mxu0 %v6705
  %6722 = vmatprep.subr.mxu0 0.0
  %6723 = vmatpush1.msra.mxu0 %v6706
  %6724 = vmatprep.subr.mxu0 0.0
  %6725 = vmatpush1.msra.mxu0 %v6707
  %6726 = vmatprep.subr.mxu0 0.0
  %6727 = vmatpush1.msra.mxu0 0.0
  %6728 = vmatprep.subr.mxu0 0.0
  %6729 = vmatpush1.msra.mxu0 0.0
  %6730 = vmatprep.subr.mxu0 0.0
  %6731 = vmatpush1.msra.mxu0 0.0
  %6732 = vmatprep.subr.mxu0 0.0
  %6733 = vmatpush1.msra.mxu0 0.0
  %6734 = vmatprep.subr.mxu0 0.0
  %6735 = vmatpush1.msra.mxu0 0.0
  %6736 = vmatprep.subr.mxu0 0.0
  %6737 = vmatpush1.msra.mxu0 0.0
  %6738 = vmatprep.subr.mxu0 0.0
  %6739 = vmatpush1.msra.mxu0 0.0
  %6740 = vmatprep.subr.mxu0 0.0
  %6741 = vmatpush1.msra.mxu0 0.0
  %6742 = vmatprep.subr.mxu0 0.0
  %6743 = vmatpush1.msra.mxu0 0.0
  %6744 = vmatprep.subr.mxu0 0.0
  %6745 = vmatpush1.msra.mxu0 0.0
  %6746 = vmatprep.subr.mxu0 0.0
  %6747 = vmatpush1.msra.mxu0 0.0
  %6748 = vmatprep.subr.mxu0 0.0
  %6749 = vmatpush1.msra.mxu0 0.0
  %6750 = vmatprep.subr.mxu0 0.0
  %6751 = vmatpush1.msra.mxu0 0.0
  %6752 = vmatprep.subr.mxu0 0.0
  %6753 = vmatpush1.msra.mxu0 0.0
  %6754 = vmatprep.subr.mxu0 0.0
  %6755 = vmatpush1.msra.mxu0 0.0
  %6756 = vmatprep.subr.mxu0 0.0
  %6757 = vmatpush1.msra.mxu0 0.0
  %6758 = vmatprep.subr.mxu0 0.0
  %6759 = vmatpush1.msra.mxu0 0.0
  %6760 = vmatprep.subr.mxu0 0.0
  %6761 = vmatpush1.msra.mxu0 0.0
  %6762 = vmatprep.subr.mxu0 0.0
  %6763 = vmatpush1.msra.mxu0 0.0
  %6764 = vmatprep.subr.mxu0 0.0
  %6765 = vmatpush1.msra.mxu0 0.0
  %6766 = vmatprep.subr.mxu0 0.0
  %6767 = vmatpush1.msra.mxu0 0.0
  %6768 = vmatprep.subr.mxu0 0.0
  %6769 = vmatpush1.msra.mxu0 0.0
  %6770 = vmatprep.subr.mxu0 0.0
  %6771 = vmatpush1.msra.mxu0 0.0
  %6772 = vmatprep.subr.mxu0 0.0
  %6773 = vmatpush1.msra.mxu0 0.0
  %6774 = vmatprep.subr.mxu0 0.0
  %6775 = vmatpush1.msra.mxu0 0.0
  %6776 = vmatprep.subr.mxu0 0.0
  %6777 = vmatpush1.msra.mxu0 0.0
  %6778 = vmatprep.subr.mxu0 0.0
  %6779 = vmatpush1.msra.mxu0 0.0
  %6780 = vmatprep.subr.mxu0 0.0
  %6781 = vmatpush1.msra.mxu0 0.0
  %6782 = vmatprep.mubr.f32.mxu0 0.0
  %6783 = vmatmul.mubr.f32.gmra.mrb[0].mxu0 %v6716
  %v6784 = vpop.f32.mrb[0].mxu0
  %v6785 = vadd.f32 %v6713, %v6784
  %v6786 = vpop.f32.mrb[0].mxu0
  %6787 = vdwg.mxu0
  %v6788 = vmul.f32 %v6785, %v6785
  %vm6789 = vcmask 123904
  %v6790 = vsel %vm6789, %v6788, 0.0
  %6791 = vadd.xlane.f32.xlu0 %v6790
  %v6792 = vpop.xlane.xlu0 %6791
  %v6793 = vadd.f32 %v6792, 1e-12
  %v6794 = vrsqrt.pop %v6793
  %v6795 = vmul.f32 %v6785, %v6794
  %v6796 = vld [vmem:[%s20] sm:$0xff]
  %v6797 = vld [vmem:[%s20 + $0x8] sm:$0xff]
  %vm6798 = vcmask 130048
  %v6800 = vsel %vm6798, %v6795, 0
  %6802 = vmatprep.subr.mxu0 0.0
  %6803 = vmatpush1.msra.mxu0 %v6796
  %6804 = vmatprep.subr.mxu0 0.0
  %6805 = vmatpush1.msra.mxu0 %v6797
  %6806 = vmatprep.subr.mxu0 0.0
  %6807 = vmatpush1.msra.mxu0 0.0
  %6808 = vmatprep.subr.mxu0 0.0
  %6809 = vmatpush1.msra.mxu0 0.0
  %6810 = vmatprep.subr.mxu0 0.0
  %6811 = vmatpush1.msra.mxu0 0.0
  %6812 = vmatprep.subr.mxu0 0.0
  %6813 = vmatpush1.msra.mxu0 0.0
  %6814 = vmatprep.subr.mxu0 0.0
  %6815 = vmatpush1.msra.mxu0 0.0
  %6816 = vmatprep.subr.mxu0 0.0
  %6817 = vmatpush1.msra.mxu0 0.0
  %6818 = vmatprep.subr.mxu0 0.0
  %6819 = vmatpush1.msra.mxu0 0.0
  %6820 = vmatprep.subr.mxu0 0.0
  %6821 = vmatpush1.msra.mxu0 0.0
  %6822 = vmatprep.subr.mxu0 0.0
  %6823 = vmatpush1.msra.mxu0 0.0
  %6824 = vmatprep.subr.mxu0 0.0
  %6825 = vmatpush1.msra.mxu0 0.0
  %6826 = vmatprep.subr.mxu0 0.0
  %6827 = vmatpush1.msra.mxu0 0.0
  %6828 = vmatprep.subr.mxu0 0.0
  %6829 = vmatpush1.msra.mxu0 0.0
  %6830 = vmatprep.subr.mxu0 0.0
  %6831 = vmatpush1.msra.mxu0 0.0
  %6832 = vmatprep.subr.mxu0 0.0
  %6833 = vmatpush1.msra.mxu0 0.0
  %6834 = vmatprep.subr.mxu0 0.0
  %6835 = vmatpush1.msra.mxu0 0.0
  %6836 = vmatprep.subr.mxu0 0.0
  %6837 = vmatpush1.msra.mxu0 0.0
  %6838 = vmatprep.subr.mxu0 0.0
  %6839 = vmatpush1.msra.mxu0 0.0
  %6840 = vmatprep.subr.mxu0 0.0
  %6841 = vmatpush1.msra.mxu0 0.0
  %6842 = vmatprep.subr.mxu0 0.0
  %6843 = vmatpush1.msra.mxu0 0.0
  %6844 = vmatprep.subr.mxu0 0.0
  %6845 = vmatpush1.msra.mxu0 0.0
  %6846 = vmatprep.subr.mxu0 0.0
  %6847 = vmatpush1.msra.mxu0 0.0
  %6848 = vmatprep.subr.mxu0 0.0
  %6849 = vmatpush1.msra.mxu0 0.0
  %6850 = vmatprep.subr.mxu0 0.0
  %6851 = vmatpush1.msra.mxu0 0.0
  %6852 = vmatprep.subr.mxu0 0.0
  %6853 = vmatpush1.msra.mxu0 0.0
  %6854 = vmatprep.subr.mxu0 0.0
  %6855 = vmatpush1.msra.mxu0 0.0
  %6856 = vmatprep.subr.mxu0 0.0
  %6857 = vmatpush1.msra.mxu0 0.0
  %6858 = vmatprep.subr.mxu0 0.0
  %6859 = vmatpush1.msra.mxu0 0.0
  %6860 = vmatprep.subr.mxu0 0.0
  %6861 = vmatpush1.msra.mxu0 0.0
  %6862 = vmatprep.subr.mxu0 0.0
  %6863 = vmatpush1.msra.mxu0 0.0
  %6864 = vmatprep.subr.mxu0 0.0
  %6865 = vmatpush1.msra.mxu0 0.0
  %6866 = vmatprep.mubr.f32.mxu0 0.0
  %6867 = vmatmul.mubr.f32.gmra.mrb[0].mxu0 %v6800
  %v6868 = vpop.f32.mrb[0].mxu0
  %v6869 = vadd.f32 0.0, %v6868
  %v6870 = vpop.f32.mrb[0].mxu0
  %6871 = vdwg.mxu0
  %6872 = vst [vmem:[%s21] sm:$0x3] %v6869
  // Predicated region
  $region86: #{clipnet_forward.1} parent=0 // pred_check
    _
  $region87: #{clipnet_forward.1} parent=0 // pred_check_branch
    %6874 = sbr.rel (0) target = $region89
  $region88: #{clipnet_forward.1} parent=0 // pred_region
    _
  $region89: #{clipnet_forward.1} parent=0 // pred_fallthru
    _
  // Predicated region
  $region90: #{clipnet_forward.1} parent=0 // pred_check
    _
  $region91: #{clipnet_forward.1} parent=0 // pred_check_branch
    %6876 = sbr.rel (0) target = $region93
  $region92: #{clipnet_forward.1} parent=0 // pred_region
    _
  $region93: #{clipnet_forward.1} parent=0 // pred_fallthru
    _

</llo_original>
